<compile_context>
chip_gen: v6e
topology: v6e:2x2x1
jax: 0.10.0
libtpu: 0.0.40
codegen_flags: <defaults>
</compile_context>

<pallas_src>
import functools

import jax
import jax.numpy as jnp
import numpy as np
from jax.experimental import pallas as pl
from jax.experimental.pallas import tpu as pltpu

_BN_EPS = 1e-5


# ----------------------------------------------------------------------------
# Fused Pallas kernel
# ----------------------------------------------------------------------------
def _tsresnet_kernel(x_ref, *refs, L, TN, kss, has_sc, cdt, sdt, fold_taps,
                     pmax):
    """refs = (per-block params..., w_lin, b_lin, o_ref, pad_scratch)."""
    o_ref, pad_ref = refs[-2], refs[-1]
    params = refs[:-2]
    NL = TN * L

    # ---- hoisted per-row sample-boundary masks (shared by all 9 convs) -----
    r_iota = jax.lax.broadcasted_iota(jnp.int32, (NL, 1), 0)
    if L & (L - 1) == 0:                       # L power of two -> cheap AND
        row_l = jnp.bitwise_and(r_iota, L - 1)
    else:
        row_l = r_iota % L
    valid = {d: jnp.logical_and(row_l + d >= 0, row_l + d < L)
             for d in range(-pmax, pmax + 1) if d != 0}
    # NOTE: no scratch memset.  Halo rows of pad_ref hold stale data (the
    # scratch persists across grid steps), but every shifted tap read that can
    # touch them is zeroed by `valid[d]`, so they are never observed.

    def conv_bn(xf, w_ref, b_ref, K, relu):
        """xf: (NL, Cin) f32; w_ref: (K*Cin, Cout) cdt; b_ref: (1, Cout) f32."""
        cin = xf.shape[1]
        cout = w_ref.shape[1]
        if K == 1:
            y = jnp.dot(xf.astype(cdt), w_ref[...],
                        preferred_element_type=jnp.float32)
        else:
            P = K // 2
            # Stage once (compute dtype) in the halo'd scratch; shifted static
            # slices give the K taps ("same" padding, no jnp.pad / HBM traffic).
            # TODO(synk): optionally build taps with pltpu.roll(xc, -d, axis=0)
            # + the same masks and drop the scratch entirely (XLU shift).
            pad_ref[pmax:pmax + NL, :cin] = xf.astype(sdt)
            taps = []
            for k in range(K):
                d = k - P
                t = pad_ref[pmax + d:pmax + d + NL, :cin]
                if d != 0:
                    t = jnp.where(valid[d], t, 0.0)  # zero cross-boundary taps
                taps.append(t)
            if fold_taps:
                # Single MXU matmul with contraction dim K*Cin.
                # TODO(synk): on v5e prefer the per-tap path below for the
                # 128-channel convs (MXU is only 128 deep there).
                slab = jnp.concatenate(taps, axis=1).astype(cdt)
                y = jnp.dot(slab, w_ref[...],
                            preferred_element_type=jnp.float32)
            else:
                # K accumulated matmuls (no lane-axis concatenation).
                y = jnp.zeros((NL, cout), jnp.float32)
                for k, t in enumerate(taps):
                    y = y + jnp.dot(t.astype(cdt),
                                    w_ref[k * cin:(k + 1) * cin, :],
                                    preferred_element_type=jnp.float32)
        y = y + b_ref[...]                      # folded-BN bias (f32 epilogue)
        if relu:
            y = jnp.maximum(y, 0.0)
        return y                                # (NL, Cout) f32

    it = iter(params)
    x = x_ref[...].astype(jnp.float32)          # (NL, Cin)
    for sc in has_sc:                           # static unroll over blocks
        w1 = next(it); b1 = next(it)
        w2 = next(it); b2 = next(it)
        w3 = next(it); b3 = next(it)
        orig = x
        y = conv_bn(x, w1, b1, kss[0], True)
        y = conv_bn(y, w2, b2, kss[1], True)
        y = conv_bn(y, w3, b3, kss[2], False)
        if sc:                                  # Shortcut: conv1d(ks=1)+BN
            ws = next(it); bs = next(it)
            shortcut = conv_bn(orig, ws, bs, 1, False)
        else:                                   # Shortcut: identity (noop)
            shortcut = orig
        x = jnp.maximum(y + shortcut, 0.0)      # residual add + trailing ReLU

    w_lin = next(it); b_lin = next(it)

    # Global average pool over L (per sample): sublane reduce, then the head.
    pooled = jnp.mean(x.reshape(TN, L, x.shape[1]), axis=1)        # (TN, C)
    logits = jnp.dot(pooled.astype(cdt), w_lin[...],
                     preferred_element_type=jnp.float32) + b_lin[...]
    o_ref[...] = logits.astype(o_ref.dtype)


# ----------------------------------------------------------------------------
# Wrapper: one pallas_call for the whole network
# ----------------------------------------------------------------------------
def tsresnet_forward(x_ncw, params, *, compute_dtype=jnp.bfloat16,
                     stage_dtype=None, fold_taps=True, batch_tile=None):
    """x_ncw: (N, C, L) float32 (PyTorch Conv1d layout).  Returns (N, n_out)."""
    N, c_in, L = x_ncw.shape
    cdt = compute_dtype
    sdt = cdt if stage_dtype is None else stage_dtype
    blocks = params["blocks"]
    kss = (7, 5, 3)
    has_sc = tuple(blk["ws"] is not None for blk in blocks)
    n_out = params["w_lin"].shape[-1]

    # Batch tile: prefer >=2 grid steps (keeps both v7x TensorCores busy and
    # lets BlockSpec pipelining prefetch x) with tile dims legal for (8,128).
    if batch_tile is None:
        TN = N
        for cand in range(N // 2, 0, -1):
            if N % cand == 0 and cand % 8 == 0 and (cand * L) % 8 == 0:
                TN = cand
                break
    else:
        TN = batch_tile
    assert N % TN == 0
    assert TN % 8 == 0 or TN == N            # (TN, n_out) output tile
    assert (TN * L) % 8 == 0 or TN == N      # (TN*L, c_in) input tile

    # NCW -> NLC -> stacked rows (N*L, C): channels on the lane axis, batch
    # folded into the matmul M dimension.
    # TODO(synk): optionally im2col the first (ks=7, cin=4) conv host-side so
    # the input lane dim is 28 instead of 4.
    x2 = jnp.transpose(x_ncw, (0, 2, 1)).reshape(N * L, c_in).astype(jnp.float32)

    args = [x2]
    in_specs = [pl.BlockSpec((TN * L, c_in), lambda n: (n, 0))]

    # TODO(synk): mark the weight/bias specs pipeline_mode=pl.Buffered(1) to
    # drop their double-buffer copies (VMEM headroom on v7x).
    def add_w(w):
        wf = jnp.asarray(w).reshape(-1, w.shape[-1]).astype(cdt)
        args.append(wf)
        in_specs.append(pl.BlockSpec(wf.shape, lambda n: (0, 0)))

    def add_b(b):
        b2 = jnp.asarray(b).reshape(1, -1).astype(jnp.float32)
        args.append(b2)
        in_specs.append(pl.BlockSpec(b2.shape, lambda n: (0, 0)))

    for blk in blocks:
        add_w(blk["w1"]); add_b(blk["b1"])
        add_w(blk["w2"]); add_b(blk["b2"])
        add_w(blk["w3"]); add_b(blk["b3"])
        if blk["ws"] is not None:
            add_w(blk["ws"]); add_b(blk["bs"])
    add_w(params["w_lin"]); add_b(params["b_lin"])

    pmax = max(kss) // 2
    cmax = max([c_in] + [blk["w1"].shape[-1] for blk in blocks])
    nl_t = TN * L

    # Advisory cost estimate for the XLA scheduler.
    flops = 0
    ci = c_in
    for blk in blocks:
        co = blk["w1"].shape[-1]
        flops += 2 * N * L * co * (kss[0] * ci + kss[1] * co + kss[2] * co)
        if blk["ws"] is not None:
            flops += 2 * N * L * ci * co
        ci = co
    flops += 2 * N * L * ci + 2 * N * ci * n_out
    bytes_accessed = N * n_out * 4 + sum(
        int(np.prod(a.shape)) * a.dtype.itemsize for a in args)

    kernel = functools.partial(
        _tsresnet_kernel, L=L, TN=TN, kss=kss, has_sc=has_sc, cdt=cdt, sdt=sdt,
        fold_taps=fold_taps, pmax=pmax)

    # TODO(synk): when scaling L/N, tile L with a (K-1)-row halo per tile and
    # size TN*L per-generation (v7x has 64 MiB VMEM vs 128 MiB on v5e/v6e).
    return pl.pallas_call(
        kernel,
        out_shape=jax.ShapeDtypeStruct((N, n_out), jnp.float32),
        grid=(N // TN,),
        in_specs=in_specs,
        out_specs=pl.BlockSpec((TN, n_out), lambda n: (n, 0)),
        scratch_shapes=[pltpu.VMEM((nl_t + 2 * pmax, cmax), sdt)],
        compiler_params=pltpu.CompilerParams(
            dimension_semantics=("parallel",),
            vmem_limit_bytes=64 * 1024 * 1024),
        cost_estimate=pl.CostEstimate(flops=int(flops), transcendentals=0,
                                      bytes_accessed=int(bytes_accessed)),
    )(*args)


# ----------------------------------------------------------------------------
# Parameter construction (deterministic synthetic; BN folded in eval mode)
# ----------------------------------------------------------------------------
def _fold_bn(w, gamma, beta, mean, var):
    scale = gamma / jnp.sqrt(var + _BN_EPS)             # (Cout,)
    w_eff = w * scale[None, None, :]
    b_eff = beta - mean * scale
    return w_eff.astype(jnp.float32), b_eff.astype(jnp.float32)


def _make_convlayer_params(key, cin, cout, ks):
    k1, k2, k3, k4, k5 = jax.random.split(key, 5)
    std = 1.0 / np.sqrt(cin * ks)
    w = std * jax.random.normal(k1, (ks, cin, cout), jnp.float32)
    gamma = 1.0 + 0.1 * jax.random.normal(k2, (cout,), jnp.float32)
    beta = 0.1 * jax.random.normal(k3, (cout,), jnp.float32)
    mean = 0.1 * jax.random.normal(k4, (cout,), jnp.float32)
    var = jax.random.uniform(k5, (cout,), jnp.float32, 0.5, 1.5)
    return _fold_bn(w, gamma, beta, mean, var)


def make_params(key, n_in, n_out):
    conv_sizes = [64, 128, 128]
    kss = [7, 5, 3]
    blocks = []
    ni = n_in
    keys = jax.random.split(key, 3 * 4 + 1)
    ki = 0
    for nf in conv_sizes:
        w1, b1 = _make_convlayer_params(keys[ki], ni, nf, kss[0]); ki += 1
        w2, b2 = _make_convlayer_params(keys[ki], nf, nf, kss[1]); ki += 1
        w3, b3 = _make_convlayer_params(keys[ki], nf, nf, kss[2]); ki += 1
        if ni == nf:                       # Shortcut == identity (noop)
            ws, bs = None, None
            ki += 1
        else:                              # Shortcut == conv1d(ks=1)+BN
            ws, bs = _make_convlayer_params(keys[ki], ni, nf, 1); ki += 1
        blocks.append(dict(w1=w1, b1=b1, w2=w2, b2=b2, w3=w3, b3=b3,
                           ws=ws, bs=bs))
        ni = nf
    klin1, klin2 = jax.random.split(keys[ki], 2)
    w_lin = (1.0 / np.sqrt(conv_sizes[-1])) * jax.random.normal(
        klin1, (conv_sizes[-1], n_out), jnp.float32)
    b_lin = 0.1 * jax.random.normal(klin2, (n_out,), jnp.float32)
    return dict(blocks=blocks, w_lin=w_lin, b_lin=b_lin)


# ----------------------------------------------------------------------------
# Pure-jnp reference
# ----------------------------------------------------------------------------
def _conv_ref(x, w, b, relu, residual=None):
    K = w.shape[0]
    pad = K // 2
    L = x.shape[1]
    xp = jnp.pad(x, ((0, 0), (pad, pad), (0, 0)))
    acc = jnp.zeros((x.shape[0], L, w.shape[2]), jnp.float32) + b
    for k in range(K):
        acc = acc + jnp.einsum("nlc,cd->nld", xp[:, k:k + L, :], w[k])
    if residual is not None:
        acc = acc + residual
    if relu:
        acc = jnp.maximum(acc, 0.0)
    return acc


def tsresnet_ref(x_ncw, params):
    x = jnp.transpose(x_ncw, (0, 2, 1))
    for blk in params["blocks"]:
        orig = x
        y = _conv_ref(x, blk["w1"], blk["b1"], True)
        y = _conv_ref(y, blk["w2"], blk["b2"], True)
        sc = orig if blk["ws"] is None else _conv_ref(orig, blk["ws"],
                                                      blk["bs"], False)
        x = _conv_ref(y, blk["w3"], blk["b3"], True, residual=sc)
    pooled = jnp.mean(x, axis=1)
    return pooled @ params["w_lin"] + params["b_lin"]


# ----------------------------------------------------------------------------
if __name__ == "__main__":
    key = jax.random.PRNGKey(0)
    kx, kp = jax.random.split(key)

    # Small demo shapes.  N=16 so the auto batch tile is TN=8: grid=(2,)
    # "parallel" steps (both v7x TensorCores busy) and M = TN*L = 128 rows per
    # conv matmul.
    N, c_in, L, n_out = 16, 4, 16, 5
    x = jax.random.normal(kx, (N, c_in, L), jnp.float32)
    params = make_params(kp, c_in, n_out)

    ref = np.asarray(jax.block_until_ready(tsresnet_ref(x, params)))

    _LOWERING_ERRS = (pltpu.LoweringException,
                      getattr(jax.errors, "JaxRuntimeError", RuntimeError))

    def run(**kw):
        return np.asarray(
            jax.block_until_ready(tsresnet_forward(x, params, **kw)))

    # f32 path first: tight numerical check of the fused-kernel semantics.
    try:
        out_f32 = run(compute_dtype=jnp.float32)
    except _LOWERING_ERRS:
        out_f32 = run(compute_dtype=jnp.float32, fold_taps=False)
    np.testing.assert_allclose(out_f32, ref, rtol=1e-2, atol=1e-2)

    # Default perf path: bf16 MXU inputs + bf16 halo staging + folded taps
    # (f32 accumulation / epilogue).  Fall back to the f32-staged per-tap
    # matmul structure only on a Mosaic lowering failure.
    try:
        out = run()
    except _LOWERING_ERRS:
        out = run(stage_dtype=jnp.float32, fold_taps=False)
    assert out.shape == (N, n_out)
    np.testing.assert_allclose(out, ref, rtol=2e-1, atol=2e-1)

    print("KERNEL_OK")
</pallas_src>

<mosaic_0001>
module attributes {stable_mosaic.version = 11 : i64} {
  func.func @_tsresnet_kernel(%arg0: i32, %arg1: memref<128x4xf32, #tpu.memory_space<vmem>>, %arg2: memref<28x64xf32, #tpu.memory_space<vmem>>, %arg3: memref<1x64xf32, #tpu.memory_space<vmem>>, %arg4: memref<320x64xf32, #tpu.memory_space<vmem>>, %arg5: memref<1x64xf32, #tpu.memory_space<vmem>>, %arg6: memref<192x64xf32, #tpu.memory_space<vmem>>, %arg7: memref<1x64xf32, #tpu.memory_space<vmem>>, %arg8: memref<4x64xf32, #tpu.memory_space<vmem>>, %arg9: memref<1x64xf32, #tpu.memory_space<vmem>>, %arg10: memref<448x128xf32, #tpu.memory_space<vmem>>, %arg11: memref<1x128xf32, #tpu.memory_space<vmem>>, %arg12: memref<640x128xf32, #tpu.memory_space<vmem>>, %arg13: memref<1x128xf32, #tpu.memory_space<vmem>>, %arg14: memref<384x128xf32, #tpu.memory_space<vmem>>, %arg15: memref<1x128xf32, #tpu.memory_space<vmem>>, %arg16: memref<64x128xf32, #tpu.memory_space<vmem>>, %arg17: memref<1x128xf32, #tpu.memory_space<vmem>>, %arg18: memref<896x128xf32, #tpu.memory_space<vmem>>, %arg19: memref<1x128xf32, #tpu.memory_space<vmem>>, %arg20: memref<640x128xf32, #tpu.memory_space<vmem>>, %arg21: memref<1x128xf32, #tpu.memory_space<vmem>>, %arg22: memref<384x128xf32, #tpu.memory_space<vmem>>, %arg23: memref<1x128xf32, #tpu.memory_space<vmem>>, %arg24: memref<128x5xf32, #tpu.memory_space<vmem>>, %arg25: memref<1x5xf32, #tpu.memory_space<vmem>>, %arg26: memref<8x5xf32, #tpu.memory_space<vmem>>, %arg27: memref<134x128xf32, #tpu.memory_space<vmem>>) attributes {dimension_semantics = [#tpu.dimension_semantics<parallel>], iteration_bounds = array<i64: 2>, scalar_prefetch = 0 : i64, scratch_operands = 1 : i64, tpu.core_type = #tpu.core_type<tc>, window_params = [{transform_indices = @transform_0, window_bounds = array<i64: 128, 4>}, {pipeline_mode = #tpu.pipeline_mode<synchronous>, transform_indices = @transform_1, window_bounds = array<i64: 28, 64>}, {pipeline_mode = #tpu.pipeline_mode<synchronous>, transform_indices = @transform_2, window_bounds = array<i64: 1, 64>}, {pipeline_mode = #tpu.pipeline_mode<synchronous>, transform_indices = @transform_3, window_bounds = array<i64: 320, 64>}, {pipeline_mode = #tpu.pipeline_mode<synchronous>, transform_indices = @transform_4, window_bounds = array<i64: 1, 64>}, {pipeline_mode = #tpu.pipeline_mode<synchronous>, transform_indices = @transform_5, window_bounds = array<i64: 192, 64>}, {pipeline_mode = #tpu.pipeline_mode<synchronous>, transform_indices = @transform_6, window_bounds = array<i64: 1, 64>}, {pipeline_mode = #tpu.pipeline_mode<synchronous>, transform_indices = @transform_7, window_bounds = array<i64: 4, 64>}, {pipeline_mode = #tpu.pipeline_mode<synchronous>, transform_indices = @transform_8, window_bounds = array<i64: 1, 64>}, {pipeline_mode = #tpu.pipeline_mode<synchronous>, transform_indices = @transform_9, window_bounds = array<i64: 448, 128>}, {pipeline_mode = #tpu.pipeline_mode<synchronous>, transform_indices = @transform_10, window_bounds = array<i64: 1, 128>}, {pipeline_mode = #tpu.pipeline_mode<synchronous>, transform_indices = @transform_11, window_bounds = array<i64: 640, 128>}, {pipeline_mode = #tpu.pipeline_mode<synchronous>, transform_indices = @transform_12, window_bounds = array<i64: 1, 128>}, {pipeline_mode = #tpu.pipeline_mode<synchronous>, transform_indices = @transform_13, window_bounds = array<i64: 384, 128>}, {pipeline_mode = #tpu.pipeline_mode<synchronous>, transform_indices = @transform_14, window_bounds = array<i64: 1, 128>}, {pipeline_mode = #tpu.pipeline_mode<synchronous>, transform_indices = @transform_15, window_bounds = array<i64: 64, 128>}, {pipeline_mode = #tpu.pipeline_mode<synchronous>, transform_indices = @transform_16, window_bounds = array<i64: 1, 128>}, {pipeline_mode = #tpu.pipeline_mode<synchronous>, transform_indices = @transform_17, window_bounds = array<i64: 896, 128>}, {pipeline_mode = #tpu.pipeline_mode<synchronous>, transform_indices = @transform_18, window_bounds = array<i64: 1, 128>}, {pipeline_mode = #tpu.pipeline_mode<synchronous>, transform_indices = @transform_19, window_bounds = array<i64: 640, 128>}, {pipeline_mode = #tpu.pipeline_mode<synchronous>, transform_indices = @transform_20, window_bounds = array<i64: 1, 128>}, {pipeline_mode = #tpu.pipeline_mode<synchronous>, transform_indices = @transform_21, window_bounds = array<i64: 384, 128>}, {pipeline_mode = #tpu.pipeline_mode<synchronous>, transform_indices = @transform_22, window_bounds = array<i64: 1, 128>}, {pipeline_mode = #tpu.pipeline_mode<synchronous>, transform_indices = @transform_23, window_bounds = array<i64: 128, 5>}, {pipeline_mode = #tpu.pipeline_mode<synchronous>, transform_indices = @transform_24, window_bounds = array<i64: 1, 5>}, {transform_indices = @transform_25, window_bounds = array<i64: 8, 5>}]} {
    %0 = tpu.iota {dimensions = array<i32: 0>} : vector<128x1xi32>
    %c15_i32 = arith.constant 15 : i32
    %1 = vector.broadcast %c15_i32 : i32 to vector<128x1xi32>
    %2 = arith.andi %0, %1 : vector<128x1xi32>
    %c-3_i32 = arith.constant -3 : i32
    %3 = vector.broadcast %c-3_i32 : i32 to vector<128x1xi32>
    %4 = arith.addi %2, %3 : vector<128x1xi32>
    %c0_i32 = arith.constant 0 : i32
    %5 = vector.broadcast %c0_i32 : i32 to vector<128x1xi32>
    %6 = arith.cmpi sge, %4, %5 : vector<128x1xi32>
    %c-3_i32_0 = arith.constant -3 : i32
    %7 = vector.broadcast %c-3_i32_0 : i32 to vector<128x1xi32>
    %8 = arith.addi %2, %7 : vector<128x1xi32>
    %c16_i32 = arith.constant 16 : i32
    %9 = vector.broadcast %c16_i32 : i32 to vector<128x1xi32>
    %10 = arith.cmpi slt, %8, %9 : vector<128x1xi32>
    %11 = arith.andi %6, %10 : vector<128x1xi1>
    %c-2_i32 = arith.constant -2 : i32
    %12 = vector.broadcast %c-2_i32 : i32 to vector<128x1xi32>
    %13 = arith.addi %2, %12 : vector<128x1xi32>
    %c0_i32_1 = arith.constant 0 : i32
    %14 = vector.broadcast %c0_i32_1 : i32 to vector<128x1xi32>
    %15 = arith.cmpi sge, %13, %14 : vector<128x1xi32>
    %c-2_i32_2 = arith.constant -2 : i32
    %16 = vector.broadcast %c-2_i32_2 : i32 to vector<128x1xi32>
    %17 = arith.addi %2, %16 : vector<128x1xi32>
    %c16_i32_3 = arith.constant 16 : i32
    %18 = vector.broadcast %c16_i32_3 : i32 to vector<128x1xi32>
    %19 = arith.cmpi slt, %17, %18 : vector<128x1xi32>
    %20 = arith.andi %15, %19 : vector<128x1xi1>
    %c-1_i32 = arith.constant -1 : i32
    %21 = vector.broadcast %c-1_i32 : i32 to vector<128x1xi32>
    %22 = arith.addi %2, %21 : vector<128x1xi32>
    %c0_i32_4 = arith.constant 0 : i32
    %23 = vector.broadcast %c0_i32_4 : i32 to vector<128x1xi32>
    %24 = arith.cmpi sge, %22, %23 : vector<128x1xi32>
    %c-1_i32_5 = arith.constant -1 : i32
    %25 = vector.broadcast %c-1_i32_5 : i32 to vector<128x1xi32>
    %26 = arith.addi %2, %25 : vector<128x1xi32>
    %c16_i32_6 = arith.constant 16 : i32
    %27 = vector.broadcast %c16_i32_6 : i32 to vector<128x1xi32>
    %28 = arith.cmpi slt, %26, %27 : vector<128x1xi32>
    %29 = arith.andi %24, %28 : vector<128x1xi1>
    %c1_i32 = arith.constant 1 : i32
    %30 = vector.broadcast %c1_i32 : i32 to vector<128x1xi32>
    %31 = arith.addi %2, %30 : vector<128x1xi32>
    %c0_i32_7 = arith.constant 0 : i32
    %32 = vector.broadcast %c0_i32_7 : i32 to vector<128x1xi32>
    %33 = arith.cmpi sge, %31, %32 : vector<128x1xi32>
    %c1_i32_8 = arith.constant 1 : i32
    %34 = vector.broadcast %c1_i32_8 : i32 to vector<128x1xi32>
    %35 = arith.addi %2, %34 : vector<128x1xi32>
    %c16_i32_9 = arith.constant 16 : i32
    %36 = vector.broadcast %c16_i32_9 : i32 to vector<128x1xi32>
    %37 = arith.cmpi slt, %35, %36 : vector<128x1xi32>
    %38 = arith.andi %33, %37 : vector<128x1xi1>
    %c2_i32 = arith.constant 2 : i32
    %39 = vector.broadcast %c2_i32 : i32 to vector<128x1xi32>
    %40 = arith.addi %2, %39 : vector<128x1xi32>
    %c0_i32_10 = arith.constant 0 : i32
    %41 = vector.broadcast %c0_i32_10 : i32 to vector<128x1xi32>
    %42 = arith.cmpi sge, %40, %41 : vector<128x1xi32>
    %c2_i32_11 = arith.constant 2 : i32
    %43 = vector.broadcast %c2_i32_11 : i32 to vector<128x1xi32>
    %44 = arith.addi %2, %43 : vector<128x1xi32>
    %c16_i32_12 = arith.constant 16 : i32
    %45 = vector.broadcast %c16_i32_12 : i32 to vector<128x1xi32>
    %46 = arith.cmpi slt, %44, %45 : vector<128x1xi32>
    %47 = arith.andi %42, %46 : vector<128x1xi1>
    %c3_i32 = arith.constant 3 : i32
    %48 = vector.broadcast %c3_i32 : i32 to vector<128x1xi32>
    %49 = arith.addi %2, %48 : vector<128x1xi32>
    %c0_i32_13 = arith.constant 0 : i32
    %50 = vector.broadcast %c0_i32_13 : i32 to vector<128x1xi32>
    %51 = arith.cmpi sge, %49, %50 : vector<128x1xi32>
    %c3_i32_14 = arith.constant 3 : i32
    %52 = vector.broadcast %c3_i32_14 : i32 to vector<128x1xi32>
    %53 = arith.addi %2, %52 : vector<128x1xi32>
    %c16_i32_15 = arith.constant 16 : i32
    %54 = vector.broadcast %c16_i32_15 : i32 to vector<128x1xi32>
    %55 = arith.cmpi slt, %53, %54 : vector<128x1xi32>
    %56 = arith.andi %51, %55 : vector<128x1xi1>
    %c0 = arith.constant 0 : index
    %c0_16 = arith.constant 0 : index
    %57 = vector.load %arg1[%c0, %c0_16] : memref<128x4xf32, #tpu.memory_space<vmem>>, vector<128x4xf32>
    %c3 = arith.constant 3 : index
    %c0_17 = arith.constant 0 : index
    %58 = vector.load %arg27[%c3, %c0_17] : memref<134x128xf32, #tpu.memory_space<vmem>>, vector<128x4xf32>
    tpu.vector_store %arg27[%c3, %c0_17], %57 {strides = array<i32>} : memref<134x128xf32, #tpu.memory_space<vmem>>, vector<128x4xf32>,
    %c0_18 = arith.constant 0 : index
    %c0_19 = arith.constant 0 : index
    %59 = vector.load %arg27[%c0_18, %c0_19] : memref<134x128xf32, #tpu.memory_space<vmem>>, vector<128x4xf32>
    %cst = arith.constant 0.000000e+00 : f32
    %60 = vector.shape_cast %11 : vector<128x1xi1> to vector<128x1xi1>
    %61 = vector.broadcast %60 : vector<128x1xi1> to vector<128x4xi1>
    %62 = vector.broadcast %cst : f32 to vector<128x4xf32>
    %63 = arith.select %61, %59, %62 : vector<128x4xi1>, vector<128x4xf32>
    %c1 = arith.constant 1 : index
    %c0_20 = arith.constant 0 : index
    %64 = vector.load %arg27[%c1, %c0_20] : memref<134x128xf32, #tpu.memory_space<vmem>>, vector<128x4xf32>
    %cst_21 = arith.constant 0.000000e+00 : f32
    %65 = vector.shape_cast %20 : vector<128x1xi1> to vector<128x1xi1>
    %66 = vector.broadcast %65 : vector<128x1xi1> to vector<128x4xi1>
    %67 = vector.broadcast %cst_21 : f32 to vector<128x4xf32>
    %68 = arith.select %66, %64, %67 : vector<128x4xi1>, vector<128x4xf32>
    %c2 = arith.constant 2 : index
    %c0_22 = arith.constant 0 : index
    %69 = vector.load %arg27[%c2, %c0_22] : memref<134x128xf32, #tpu.memory_space<vmem>>, vector<128x4xf32>
    %cst_23 = arith.constant 0.000000e+00 : f32
    %70 = vector.shape_cast %29 : vector<128x1xi1> to vector<128x1xi1>
    %71 = vector.broadcast %70 : vector<128x1xi1> to vector<128x4xi1>
    %72 = vector.broadcast %cst_23 : f32 to vector<128x4xf32>
    %73 = arith.select %71, %69, %72 : vector<128x4xi1>, vector<128x4xf32>
    %c3_24 = arith.constant 3 : index
    %c0_25 = arith.constant 0 : index
    %74 = vector.load %arg27[%c3_24, %c0_25] : memref<134x128xf32, #tpu.memory_space<vmem>>, vector<128x4xf32>
    %c4 = arith.constant 4 : index
    %c0_26 = arith.constant 0 : index
    %75 = vector.load %arg27[%c4, %c0_26] : memref<134x128xf32, #tpu.memory_space<vmem>>, vector<128x4xf32>
    %cst_27 = arith.constant 0.000000e+00 : f32
    %76 = vector.shape_cast %38 : vector<128x1xi1> to vector<128x1xi1>
    %77 = vector.broadcast %76 : vector<128x1xi1> to vector<128x4xi1>
    %78 = vector.broadcast %cst_27 : f32 to vector<128x4xf32>
    %79 = arith.select %77, %75, %78 : vector<128x4xi1>, vector<128x4xf32>
    %c5 = arith.constant 5 : index
    %c0_28 = arith.constant 0 : index
    %80 = vector.load %arg27[%c5, %c0_28] : memref<134x128xf32, #tpu.memory_space<vmem>>, vector<128x4xf32>
    %cst_29 = arith.constant 0.000000e+00 : f32
    %81 = vector.shape_cast %47 : vector<128x1xi1> to vector<128x1xi1>
    %82 = vector.broadcast %81 : vector<128x1xi1> to vector<128x4xi1>
    %83 = vector.broadcast %cst_29 : f32 to vector<128x4xf32>
    %84 = arith.select %82, %80, %83 : vector<128x4xi1>, vector<128x4xf32>
    %c6 = arith.constant 6 : index
    %c0_30 = arith.constant 0 : index
    %85 = vector.load %arg27[%c6, %c0_30] : memref<134x128xf32, #tpu.memory_space<vmem>>, vector<128x4xf32>
    %cst_31 = arith.constant 0.000000e+00 : f32
    %86 = vector.shape_cast %56 : vector<128x1xi1> to vector<128x1xi1>
    %87 = vector.broadcast %86 : vector<128x1xi1> to vector<128x4xi1>
    %88 = vector.broadcast %cst_31 : f32 to vector<128x4xf32>
    %89 = arith.select %87, %85, %88 : vector<128x4xi1>, vector<128x4xf32>
    %90 = tpu.concatenate %63, %68, %73, %74, %79, %84, %89 in 1 : vector<128x4xf32>, vector<128x4xf32>, vector<128x4xf32>, vector<128x4xf32>, vector<128x4xf32>, vector<128x4xf32>, vector<128x4xf32> -> vector<128x28xf32>
    %c0_32 = arith.constant 0 : index
    %c0_33 = arith.constant 0 : index
    %91 = vector.load %arg2[%c0_32, %c0_33] : memref<28x64xf32, #tpu.memory_space<vmem>>, vector<28x64xf32>
    %cst_34 = arith.constant dense<0.000000e+00> : vector<128x64xf32>
    %92 = tpu.matmul %90, %91, %cst_34 {dimension_numbers = #tpu.dot_dimension_numbers<[1], [0], [0], [1], [0, 0, 1, 1], [], []>} : vector<128x28xf32>, vector<28x64xf32>, vector<128x64xf32> -> vector<128x64xf32>
    %c0_35 = arith.constant 0 : index
    %c0_36 = arith.constant 0 : index
    %93 = vector.load %arg3[%c0_35, %c0_36] : memref<1x64xf32, #tpu.memory_space<vmem>>, vector<1x64xf32>
    %94 = vector.broadcast %93 : vector<1x64xf32> to vector<128x64xf32>
    %95 = arith.addf %92, %94 : vector<128x64xf32>
    %cst_37 = arith.constant 0.000000e+00 : f32
    %96 = vector.broadcast %cst_37 : f32 to vector<128x64xf32>
    %97 = arith.maximumf %95, %96 : vector<128x64xf32>
    %c3_38 = arith.constant 3 : index
    %c0_39 = arith.constant 0 : index
    %98 = vector.load %arg27[%c3_38, %c0_39] : memref<134x128xf32, #tpu.memory_space<vmem>>, vector<128x64xf32>
    tpu.vector_store %arg27[%c3_38, %c0_39], %97 {strides = array<i32>} : memref<134x128xf32, #tpu.memory_space<vmem>>, vector<128x64xf32>,
    %c1_40 = arith.constant 1 : index
    %c0_41 = arith.constant 0 : index
    %99 = vector.load %arg27[%c1_40, %c0_41] : memref<134x128xf32, #tpu.memory_space<vmem>>, vector<128x64xf32>
    %cst_42 = arith.constant 0.000000e+00 : f32
    %100 = vector.shape_cast %20 : vector<128x1xi1> to vector<128x1xi1>
    %101 = vector.broadcast %100 : vector<128x1xi1> to vector<128x64xi1>
    %102 = vector.broadcast %cst_42 : f32 to vector<128x64xf32>
    %103 = arith.select %101, %99, %102 : vector<128x64xi1>, vector<128x64xf32>
    %c2_43 = arith.constant 2 : index
    %c0_44 = arith.constant 0 : index
    %104 = vector.load %arg27[%c2_43, %c0_44] : memref<134x128xf32, #tpu.memory_space<vmem>>, vector<128x64xf32>
    %cst_45 = arith.constant 0.000000e+00 : f32
    %105 = vector.shape_cast %29 : vector<128x1xi1> to vector<128x1xi1>
    %106 = vector.broadcast %105 : vector<128x1xi1> to vector<128x64xi1>
    %107 = vector.broadcast %cst_45 : f32 to vector<128x64xf32>
    %108 = arith.select %106, %104, %107 : vector<128x64xi1>, vector<128x64xf32>
    %c3_46 = arith.constant 3 : index
    %c0_47 = arith.constant 0 : index
    %109 = vector.load %arg27[%c3_46, %c0_47] : memref<134x128xf32, #tpu.memory_space<vmem>>, vector<128x64xf32>
    %c4_48 = arith.constant 4 : index
    %c0_49 = arith.constant 0 : index
    %110 = vector.load %arg27[%c4_48, %c0_49] : memref<134x128xf32, #tpu.memory_space<vmem>>, vector<128x64xf32>
    %cst_50 = arith.constant 0.000000e+00 : f32
    %111 = vector.shape_cast %38 : vector<128x1xi1> to vector<128x1xi1>
    %112 = vector.broadcast %111 : vector<128x1xi1> to vector<128x64xi1>
    %113 = vector.broadcast %cst_50 : f32 to vector<128x64xf32>
    %114 = arith.select %112, %110, %113 : vector<128x64xi1>, vector<128x64xf32>
    %c5_51 = arith.constant 5 : index
    %c0_52 = arith.constant 0 : index
    %115 = vector.load %arg27[%c5_51, %c0_52] : memref<134x128xf32, #tpu.memory_space<vmem>>, vector<128x64xf32>
    %cst_53 = arith.constant 0.000000e+00 : f32
    %116 = vector.shape_cast %47 : vector<128x1xi1> to vector<128x1xi1>
    %117 = vector.broadcast %116 : vector<128x1xi1> to vector<128x64xi1>
    %118 = vector.broadcast %cst_53 : f32 to vector<128x64xf32>
    %119 = arith.select %117, %115, %118 : vector<128x64xi1>, vector<128x64xf32>
    %120 = tpu.concatenate %103, %108, %109, %114, %119 in 1 : vector<128x64xf32>, vector<128x64xf32>, vector<128x64xf32>, vector<128x64xf32>, vector<128x64xf32> -> vector<128x320xf32>
    %c0_54 = arith.constant 0 : index
    %c0_55 = arith.constant 0 : index
    %121 = vector.load %arg4[%c0_54, %c0_55] : memref<320x64xf32, #tpu.memory_space<vmem>>, vector<320x64xf32>
    %cst_56 = arith.constant dense<0.000000e+00> : vector<128x64xf32>
    %122 = tpu.matmul %120, %121, %cst_56 {dimension_numbers = #tpu.dot_dimension_numbers<[1], [0], [0], [1], [0, 0, 1, 1], [], []>} : vector<128x320xf32>, vector<320x64xf32>, vector<128x64xf32> -> vector<128x64xf32>
    %c0_57 = arith.constant 0 : index
    %c0_58 = arith.constant 0 : index
    %123 = vector.load %arg5[%c0_57, %c0_58] : memref<1x64xf32, #tpu.memory_space<vmem>>, vector<1x64xf32>
    %124 = vector.broadcast %123 : vector<1x64xf32> to vector<128x64xf32>
    %125 = arith.addf %122, %124 : vector<128x64xf32>
    %cst_59 = arith.constant 0.000000e+00 : f32
    %126 = vector.broadcast %cst_59 : f32 to vector<128x64xf32>
    %127 = arith.maximumf %125, %126 : vector<128x64xf32>
    %c3_60 = arith.constant 3 : index
    %c0_61 = arith.constant 0 : index
    %128 = vector.load %arg27[%c3_60, %c0_61] : memref<134x128xf32, #tpu.memory_space<vmem>>, vector<128x64xf32>
    tpu.vector_store %arg27[%c3_60, %c0_61], %127 {strides = array<i32>} : memref<134x128xf32, #tpu.memory_space<vmem>>, vector<128x64xf32>,
    %c2_62 = arith.constant 2 : index
    %c0_63 = arith.constant 0 : index
    %129 = vector.load %arg27[%c2_62, %c0_63] : memref<134x128xf32, #tpu.memory_space<vmem>>, vector<128x64xf32>
    %cst_64 = arith.constant 0.000000e+00 : f32
    %130 = vector.shape_cast %29 : vector<128x1xi1> to vector<128x1xi1>
    %131 = vector.broadcast %130 : vector<128x1xi1> to vector<128x64xi1>
    %132 = vector.broadcast %cst_64 : f32 to vector<128x64xf32>
    %133 = arith.select %131, %129, %132 : vector<128x64xi1>, vector<128x64xf32>
    %c3_65 = arith.constant 3 : index
    %c0_66 = arith.constant 0 : index
    %134 = vector.load %arg27[%c3_65, %c0_66] : memref<134x128xf32, #tpu.memory_space<vmem>>, vector<128x64xf32>
    %c4_67 = arith.constant 4 : index
    %c0_68 = arith.constant 0 : index
    %135 = vector.load %arg27[%c4_67, %c0_68] : memref<134x128xf32, #tpu.memory_space<vmem>>, vector<128x64xf32>
    %cst_69 = arith.constant 0.000000e+00 : f32
    %136 = vector.shape_cast %38 : vector<128x1xi1> to vector<128x1xi1>
    %137 = vector.broadcast %136 : vector<128x1xi1> to vector<128x64xi1>
    %138 = vector.broadcast %cst_69 : f32 to vector<128x64xf32>
    %139 = arith.select %137, %135, %138 : vector<128x64xi1>, vector<128x64xf32>
    %140 = tpu.concatenate %133, %134, %139 in 1 : vector<128x64xf32>, vector<128x64xf32>, vector<128x64xf32> -> vector<128x192xf32>
    %c0_70 = arith.constant 0 : index
    %c0_71 = arith.constant 0 : index
    %141 = vector.load %arg6[%c0_70, %c0_71] : memref<192x64xf32, #tpu.memory_space<vmem>>, vector<192x64xf32>
    %cst_72 = arith.constant dense<0.000000e+00> : vector<128x64xf32>
    %142 = tpu.matmul %140, %141, %cst_72 {dimension_numbers = #tpu.dot_dimension_numbers<[1], [0], [0], [1], [0, 0, 1, 1], [], []>} : vector<128x192xf32>, vector<192x64xf32>, vector<128x64xf32> -> vector<128x64xf32>
    %c0_73 = arith.constant 0 : index
    %c0_74 = arith.constant 0 : index
    %143 = vector.load %arg7[%c0_73, %c0_74] : memref<1x64xf32, #tpu.memory_space<vmem>>, vector<1x64xf32>
    %144 = vector.broadcast %143 : vector<1x64xf32> to vector<128x64xf32>
    %145 = arith.addf %142, %144 : vector<128x64xf32>
    %c0_75 = arith.constant 0 : index
    %c0_76 = arith.constant 0 : index
    %146 = vector.load %arg8[%c0_75, %c0_76] : memref<4x64xf32, #tpu.memory_space<vmem>>, vector<4x64xf32>
    %cst_77 = arith.constant dense<0.000000e+00> : vector<128x64xf32>
    %147 = tpu.matmul %57, %146, %cst_77 {dimension_numbers = #tpu.dot_dimension_numbers<[1], [0], [0], [1], [0, 0, 1, 1], [], []>} : vector<128x4xf32>, vector<4x64xf32>, vector<128x64xf32> -> vector<128x64xf32>
    %c0_78 = arith.constant 0 : index
    %c0_79 = arith.constant 0 : index
    %148 = vector.load %arg9[%c0_78, %c0_79] : memref<1x64xf32, #tpu.memory_space<vmem>>, vector<1x64xf32>
    %149 = vector.broadcast %148 : vector<1x64xf32> to vector<128x64xf32>
    %150 = arith.addf %147, %149 : vector<128x64xf32>
    %151 = arith.addf %145, %150 : vector<128x64xf32>
    %cst_80 = arith.constant 0.000000e+00 : f32
    %152 = vector.broadcast %cst_80 : f32 to vector<128x64xf32>
    %153 = arith.maximumf %151, %152 : vector<128x64xf32>
    %c3_81 = arith.constant 3 : index
    %c0_82 = arith.constant 0 : index
    %154 = vector.load %arg27[%c3_81, %c0_82] : memref<134x128xf32, #tpu.memory_space<vmem>>, vector<128x64xf32>
    tpu.vector_store %arg27[%c3_81, %c0_82], %153 {strides = array<i32>} : memref<134x128xf32, #tpu.memory_space<vmem>>, vector<128x64xf32>,
    %c0_83 = arith.constant 0 : index
    %c0_84 = arith.constant 0 : index
    %155 = vector.load %arg27[%c0_83, %c0_84] : memref<134x128xf32, #tpu.memory_space<vmem>>, vector<128x64xf32>
    %cst_85 = arith.constant 0.000000e+00 : f32
    %156 = vector.shape_cast %11 : vector<128x1xi1> to vector<128x1xi1>
    %157 = vector.broadcast %156 : vector<128x1xi1> to vector<128x64xi1>
    %158 = vector.broadcast %cst_85 : f32 to vector<128x64xf32>
    %159 = arith.select %157, %155, %158 : vector<128x64xi1>, vector<128x64xf32>
    %c1_86 = arith.constant 1 : index
    %c0_87 = arith.constant 0 : index
    %160 = vector.load %arg27[%c1_86, %c0_87] : memref<134x128xf32, #tpu.memory_space<vmem>>, vector<128x64xf32>
    %cst_88 = arith.constant 0.000000e+00 : f32
    %161 = vector.shape_cast %20 : vector<128x1xi1> to vector<128x1xi1>
    %162 = vector.broadcast %161 : vector<128x1xi1> to vector<128x64xi1>
    %163 = vector.broadcast %cst_88 : f32 to vector<128x64xf32>
    %164 = arith.select %162, %160, %163 : vector<128x64xi1>, vector<128x64xf32>
    %c2_89 = arith.constant 2 : index
    %c0_90 = arith.constant 0 : index
    %165 = vector.load %arg27[%c2_89, %c0_90] : memref<134x128xf32, #tpu.memory_space<vmem>>, vector<128x64xf32>
    %cst_91 = arith.constant 0.000000e+00 : f32
    %166 = vector.shape_cast %29 : vector<128x1xi1> to vector<128x1xi1>
    %167 = vector.broadcast %166 : vector<128x1xi1> to vector<128x64xi1>
    %168 = vector.broadcast %cst_91 : f32 to vector<128x64xf32>
    %169 = arith.select %167, %165, %168 : vector<128x64xi1>, vector<128x64xf32>
    %c3_92 = arith.constant 3 : index
    %c0_93 = arith.constant 0 : index
    %170 = vector.load %arg27[%c3_92, %c0_93] : memref<134x128xf32, #tpu.memory_space<vmem>>, vector<128x64xf32>
    %c4_94 = arith.constant 4 : index
    %c0_95 = arith.constant 0 : index
    %171 = vector.load %arg27[%c4_94, %c0_95] : memref<134x128xf32, #tpu.memory_space<vmem>>, vector<128x64xf32>
    %cst_96 = arith.constant 0.000000e+00 : f32
    %172 = vector.shape_cast %38 : vector<128x1xi1> to vector<128x1xi1>
    %173 = vector.broadcast %172 : vector<128x1xi1> to vector<128x64xi1>
    %174 = vector.broadcast %cst_96 : f32 to vector<128x64xf32>
    %175 = arith.select %173, %171, %174 : vector<128x64xi1>, vector<128x64xf32>
    %c5_97 = arith.constant 5 : index
    %c0_98 = arith.constant 0 : index
    %176 = vector.load %arg27[%c5_97, %c0_98] : memref<134x128xf32, #tpu.memory_space<vmem>>, vector<128x64xf32>
    %cst_99 = arith.constant 0.000000e+00 : f32
    %177 = vector.shape_cast %47 : vector<128x1xi1> to vector<128x1xi1>
    %178 = vector.broadcast %177 : vector<128x1xi1> to vector<128x64xi1>
    %179 = vector.broadcast %cst_99 : f32 to vector<128x64xf32>
    %180 = arith.select %178, %176, %179 : vector<128x64xi1>, vector<128x64xf32>
    %c6_100 = arith.constant 6 : index
    %c0_101 = arith.constant 0 : index
    %181 = vector.load %arg27[%c6_100, %c0_101] : memref<134x128xf32, #tpu.memory_space<vmem>>, vector<128x64xf32>
    %cst_102 = arith.constant 0.000000e+00 : f32
    %182 = vector.shape_cast %56 : vector<128x1xi1> to vector<128x1xi1>
    %183 = vector.broadcast %182 : vector<128x1xi1> to vector<128x64xi1>
    %184 = vector.broadcast %cst_102 : f32 to vector<128x64xf32>
    %185 = arith.select %183, %181, %184 : vector<128x64xi1>, vector<128x64xf32>
    %186 = tpu.concatenate %159, %164, %169, %170, %175, %180, %185 in 1 : vector<128x64xf32>, vector<128x64xf32>, vector<128x64xf32>, vector<128x64xf32>, vector<128x64xf32>, vector<128x64xf32>, vector<128x64xf32> -> vector<128x448xf32>
    %c0_103 = arith.constant 0 : index
    %c0_104 = arith.constant 0 : index
    %187 = vector.load %arg10[%c0_103, %c0_104] : memref<448x128xf32, #tpu.memory_space<vmem>>, vector<448x128xf32>
    %cst_105 = arith.constant dense<0.000000e+00> : vector<128x128xf32>
    %188 = tpu.matmul %186, %187, %cst_105 {dimension_numbers = #tpu.dot_dimension_numbers<[1], [0], [0], [1], [0, 0, 1, 1], [], []>} : vector<128x448xf32>, vector<448x128xf32>, vector<128x128xf32> -> vector<128x128xf32>
    %c0_106 = arith.constant 0 : index
    %c0_107 = arith.constant 0 : index
    %189 = vector.load %arg11[%c0_106, %c0_107] : memref<1x128xf32, #tpu.memory_space<vmem>>, vector<1x128xf32>
    %190 = vector.broadcast %189 : vector<1x128xf32> to vector<128x128xf32>
    %191 = arith.addf %188, %190 : vector<128x128xf32>
    %cst_108 = arith.constant 0.000000e+00 : f32
    %192 = vector.broadcast %cst_108 : f32 to vector<128x128xf32>
    %193 = arith.maximumf %191, %192 : vector<128x128xf32>
    %c3_109 = arith.constant 3 : index
    %c0_110 = arith.constant 0 : index
    %194 = vector.load %arg27[%c3_109, %c0_110] : memref<134x128xf32, #tpu.memory_space<vmem>>, vector<128x128xf32>
    tpu.vector_store %arg27[%c3_109, %c0_110], %193 {strides = array<i32>} : memref<134x128xf32, #tpu.memory_space<vmem>>, vector<128x128xf32>,
    %c1_111 = arith.constant 1 : index
    %c0_112 = arith.constant 0 : index
    %195 = vector.load %arg27[%c1_111, %c0_112] : memref<134x128xf32, #tpu.memory_space<vmem>>, vector<128x128xf32>
    %cst_113 = arith.constant 0.000000e+00 : f32
    %196 = vector.shape_cast %20 : vector<128x1xi1> to vector<128x1xi1>
    %197 = vector.broadcast %196 : vector<128x1xi1> to vector<128x128xi1>
    %198 = vector.broadcast %cst_113 : f32 to vector<128x128xf32>
    %199 = arith.select %197, %195, %198 : vector<128x128xi1>, vector<128x128xf32>
    %c2_114 = arith.constant 2 : index
    %c0_115 = arith.constant 0 : index
    %200 = vector.load %arg27[%c2_114, %c0_115] : memref<134x128xf32, #tpu.memory_space<vmem>>, vector<128x128xf32>
    %cst_116 = arith.constant 0.000000e+00 : f32
    %201 = vector.shape_cast %29 : vector<128x1xi1> to vector<128x1xi1>
    %202 = vector.broadcast %201 : vector<128x1xi1> to vector<128x128xi1>
    %203 = vector.broadcast %cst_116 : f32 to vector<128x128xf32>
    %204 = arith.select %202, %200, %203 : vector<128x128xi1>, vector<128x128xf32>
    %c3_117 = arith.constant 3 : index
    %c0_118 = arith.constant 0 : index
    %205 = vector.load %arg27[%c3_117, %c0_118] : memref<134x128xf32, #tpu.memory_space<vmem>>, vector<128x128xf32>
    %c4_119 = arith.constant 4 : index
    %c0_120 = arith.constant 0 : index
    %206 = vector.load %arg27[%c4_119, %c0_120] : memref<134x128xf32, #tpu.memory_space<vmem>>, vector<128x128xf32>
    %cst_121 = arith.constant 0.000000e+00 : f32
    %207 = vector.shape_cast %38 : vector<128x1xi1> to vector<128x1xi1>
    %208 = vector.broadcast %207 : vector<128x1xi1> to vector<128x128xi1>
    %209 = vector.broadcast %cst_121 : f32 to vector<128x128xf32>
    %210 = arith.select %208, %206, %209 : vector<128x128xi1>, vector<128x128xf32>
    %c5_122 = arith.constant 5 : index
    %c0_123 = arith.constant 0 : index
    %211 = vector.load %arg27[%c5_122, %c0_123] : memref<134x128xf32, #tpu.memory_space<vmem>>, vector<128x128xf32>
    %cst_124 = arith.constant 0.000000e+00 : f32
    %212 = vector.shape_cast %47 : vector<128x1xi1> to vector<128x1xi1>
    %213 = vector.broadcast %212 : vector<128x1xi1> to vector<128x128xi1>
    %214 = vector.broadcast %cst_124 : f32 to vector<128x128xf32>
    %215 = arith.select %213, %211, %214 : vector<128x128xi1>, vector<128x128xf32>
    %216 = tpu.concatenate %199, %204, %205, %210, %215 in 1 : vector<128x128xf32>, vector<128x128xf32>, vector<128x128xf32>, vector<128x128xf32>, vector<128x128xf32> -> vector<128x640xf32>
    %c0_125 = arith.constant 0 : index
    %c0_126 = arith.constant 0 : index
    %217 = vector.load %arg12[%c0_125, %c0_126] : memref<640x128xf32, #tpu.memory_space<vmem>>, vector<640x128xf32>
    %cst_127 = arith.constant dense<0.000000e+00> : vector<128x128xf32>
    %218 = tpu.matmul %216, %217, %cst_127 {dimension_numbers = #tpu.dot_dimension_numbers<[1], [0], [0], [1], [0, 0, 1, 1], [], []>} : vector<128x640xf32>, vector<640x128xf32>, vector<128x128xf32> -> vector<128x128xf32>
    %c0_128 = arith.constant 0 : index
    %c0_129 = arith.constant 0 : index
    %219 = vector.load %arg13[%c0_128, %c0_129] : memref<1x128xf32, #tpu.memory_space<vmem>>, vector<1x128xf32>
    %220 = vector.broadcast %219 : vector<1x128xf32> to vector<128x128xf32>
    %221 = arith.addf %218, %220 : vector<128x128xf32>
    %cst_130 = arith.constant 0.000000e+00 : f32
    %222 = vector.broadcast %cst_130 : f32 to vector<128x128xf32>
    %223 = arith.maximumf %221, %222 : vector<128x128xf32>
    %c3_131 = arith.constant 3 : index
    %c0_132 = arith.constant 0 : index
    %224 = vector.load %arg27[%c3_131, %c0_132] : memref<134x128xf32, #tpu.memory_space<vmem>>, vector<128x128xf32>
    tpu.vector_store %arg27[%c3_131, %c0_132], %223 {strides = array<i32>} : memref<134x128xf32, #tpu.memory_space<vmem>>, vector<128x128xf32>,
    %c2_133 = arith.constant 2 : index
    %c0_134 = arith.constant 0 : index
    %225 = vector.load %arg27[%c2_133, %c0_134] : memref<134x128xf32, #tpu.memory_space<vmem>>, vector<128x128xf32>
    %cst_135 = arith.constant 0.000000e+00 : f32
    %226 = vector.shape_cast %29 : vector<128x1xi1> to vector<128x1xi1>
    %227 = vector.broadcast %226 : vector<128x1xi1> to vector<128x128xi1>
    %228 = vector.broadcast %cst_135 : f32 to vector<128x128xf32>
    %229 = arith.select %227, %225, %228 : vector<128x128xi1>, vector<128x128xf32>
    %c3_136 = arith.constant 3 : index
    %c0_137 = arith.constant 0 : index
    %230 = vector.load %arg27[%c3_136, %c0_137] : memref<134x128xf32, #tpu.memory_space<vmem>>, vector<128x128xf32>
    %c4_138 = arith.constant 4 : index
    %c0_139 = arith.constant 0 : index
    %231 = vector.load %arg27[%c4_138, %c0_139] : memref<134x128xf32, #tpu.memory_space<vmem>>, vector<128x128xf32>
    %cst_140 = arith.constant 0.000000e+00 : f32
    %232 = vector.shape_cast %38 : vector<128x1xi1> to vector<128x1xi1>
    %233 = vector.broadcast %232 : vector<128x1xi1> to vector<128x128xi1>
    %234 = vector.broadcast %cst_140 : f32 to vector<128x128xf32>
    %235 = arith.select %233, %231, %234 : vector<128x128xi1>, vector<128x128xf32>
    %236 = tpu.concatenate %229, %230, %235 in 1 : vector<128x128xf32>, vector<128x128xf32>, vector<128x128xf32> -> vector<128x384xf32>
    %c0_141 = arith.constant 0 : index
    %c0_142 = arith.constant 0 : index
    %237 = vector.load %arg14[%c0_141, %c0_142] : memref<384x128xf32, #tpu.memory_space<vmem>>, vector<384x128xf32>
    %cst_143 = arith.constant dense<0.000000e+00> : vector<128x128xf32>
    %238 = tpu.matmul %236, %237, %cst_143 {dimension_numbers = #tpu.dot_dimension_numbers<[1], [0], [0], [1], [0, 0, 1, 1], [], []>} : vector<128x384xf32>, vector<384x128xf32>, vector<128x128xf32> -> vector<128x128xf32>
    %c0_144 = arith.constant 0 : index
    %c0_145 = arith.constant 0 : index
    %239 = vector.load %arg15[%c0_144, %c0_145] : memref<1x128xf32, #tpu.memory_space<vmem>>, vector<1x128xf32>
    %240 = vector.broadcast %239 : vector<1x128xf32> to vector<128x128xf32>
    %241 = arith.addf %238, %240 : vector<128x128xf32>
    %c0_146 = arith.constant 0 : index
    %c0_147 = arith.constant 0 : index
    %242 = vector.load %arg16[%c0_146, %c0_147] : memref<64x128xf32, #tpu.memory_space<vmem>>, vector<64x128xf32>
    %cst_148 = arith.constant dense<0.000000e+00> : vector<128x128xf32>
    %243 = tpu.matmul %153, %242, %cst_148 {dimension_numbers = #tpu.dot_dimension_numbers<[1], [0], [0], [1], [0, 0, 1, 1], [], []>} : vector<128x64xf32>, vector<64x128xf32>, vector<128x128xf32> -> vector<128x128xf32>
    %c0_149 = arith.constant 0 : index
    %c0_150 = arith.constant 0 : index
    %244 = vector.load %arg17[%c0_149, %c0_150] : memref<1x128xf32, #tpu.memory_space<vmem>>, vector<1x128xf32>
    %245 = vector.broadcast %244 : vector<1x128xf32> to vector<128x128xf32>
    %246 = arith.addf %243, %245 : vector<128x128xf32>
    %247 = arith.addf %241, %246 : vector<128x128xf32>
    %cst_151 = arith.constant 0.000000e+00 : f32
    %248 = vector.broadcast %cst_151 : f32 to vector<128x128xf32>
    %249 = arith.maximumf %247, %248 : vector<128x128xf32>
    %c3_152 = arith.constant 3 : index
    %c0_153 = arith.constant 0 : index
    %250 = vector.load %arg27[%c3_152, %c0_153] : memref<134x128xf32, #tpu.memory_space<vmem>>, vector<128x128xf32>
    tpu.vector_store %arg27[%c3_152, %c0_153], %249 {strides = array<i32>} : memref<134x128xf32, #tpu.memory_space<vmem>>, vector<128x128xf32>,
    %c0_154 = arith.constant 0 : index
    %c0_155 = arith.constant 0 : index
    %251 = vector.load %arg27[%c0_154, %c0_155] : memref<134x128xf32, #tpu.memory_space<vmem>>, vector<128x128xf32>
    %cst_156 = arith.constant 0.000000e+00 : f32
    %252 = vector.shape_cast %11 : vector<128x1xi1> to vector<128x1xi1>
    %253 = vector.broadcast %252 : vector<128x1xi1> to vector<128x128xi1>
    %254 = vector.broadcast %cst_156 : f32 to vector<128x128xf32>
    %255 = arith.select %253, %251, %254 : vector<128x128xi1>, vector<128x128xf32>
    %c1_157 = arith.constant 1 : index
    %c0_158 = arith.constant 0 : index
    %256 = vector.load %arg27[%c1_157, %c0_158] : memref<134x128xf32, #tpu.memory_space<vmem>>, vector<128x128xf32>
    %cst_159 = arith.constant 0.000000e+00 : f32
    %257 = vector.shape_cast %20 : vector<128x1xi1> to vector<128x1xi1>
    %258 = vector.broadcast %257 : vector<128x1xi1> to vector<128x128xi1>
    %259 = vector.broadcast %cst_159 : f32 to vector<128x128xf32>
    %260 = arith.select %258, %256, %259 : vector<128x128xi1>, vector<128x128xf32>
    %c2_160 = arith.constant 2 : index
    %c0_161 = arith.constant 0 : index
    %261 = vector.load %arg27[%c2_160, %c0_161] : memref<134x128xf32, #tpu.memory_space<vmem>>, vector<128x128xf32>
    %cst_162 = arith.constant 0.000000e+00 : f32
    %262 = vector.shape_cast %29 : vector<128x1xi1> to vector<128x1xi1>
    %263 = vector.broadcast %262 : vector<128x1xi1> to vector<128x128xi1>
    %264 = vector.broadcast %cst_162 : f32 to vector<128x128xf32>
    %265 = arith.select %263, %261, %264 : vector<128x128xi1>, vector<128x128xf32>
    %c3_163 = arith.constant 3 : index
    %c0_164 = arith.constant 0 : index
    %266 = vector.load %arg27[%c3_163, %c0_164] : memref<134x128xf32, #tpu.memory_space<vmem>>, vector<128x128xf32>
    %c4_165 = arith.constant 4 : index
    %c0_166 = arith.constant 0 : index
    %267 = vector.load %arg27[%c4_165, %c0_166] : memref<134x128xf32, #tpu.memory_space<vmem>>, vector<128x128xf32>
    %cst_167 = arith.constant 0.000000e+00 : f32
    %268 = vector.shape_cast %38 : vector<128x1xi1> to vector<128x1xi1>
    %269 = vector.broadcast %268 : vector<128x1xi1> to vector<128x128xi1>
    %270 = vector.broadcast %cst_167 : f32 to vector<128x128xf32>
    %271 = arith.select %269, %267, %270 : vector<128x128xi1>, vector<128x128xf32>
    %c5_168 = arith.constant 5 : index
    %c0_169 = arith.constant 0 : index
    %272 = vector.load %arg27[%c5_168, %c0_169] : memref<134x128xf32, #tpu.memory_space<vmem>>, vector<128x128xf32>
    %cst_170 = arith.constant 0.000000e+00 : f32
    %273 = vector.shape_cast %47 : vector<128x1xi1> to vector<128x1xi1>
    %274 = vector.broadcast %273 : vector<128x1xi1> to vector<128x128xi1>
    %275 = vector.broadcast %cst_170 : f32 to vector<128x128xf32>
    %276 = arith.select %274, %272, %275 : vector<128x128xi1>, vector<128x128xf32>
    %c6_171 = arith.constant 6 : index
    %c0_172 = arith.constant 0 : index
    %277 = vector.load %arg27[%c6_171, %c0_172] : memref<134x128xf32, #tpu.memory_space<vmem>>, vector<128x128xf32>
    %cst_173 = arith.constant 0.000000e+00 : f32
    %278 = vector.shape_cast %56 : vector<128x1xi1> to vector<128x1xi1>
    %279 = vector.broadcast %278 : vector<128x1xi1> to vector<128x128xi1>
    %280 = vector.broadcast %cst_173 : f32 to vector<128x128xf32>
    %281 = arith.select %279, %277, %280 : vector<128x128xi1>, vector<128x128xf32>
    %282 = tpu.concatenate %255, %260, %265, %266, %271, %276, %281 in 1 : vector<128x128xf32>, vector<128x128xf32>, vector<128x128xf32>, vector<128x128xf32>, vector<128x128xf32>, vector<128x128xf32>, vector<128x128xf32> -> vector<128x896xf32>
    %c0_174 = arith.constant 0 : index
    %c0_175 = arith.constant 0 : index
    %283 = vector.load %arg18[%c0_174, %c0_175] : memref<896x128xf32, #tpu.memory_space<vmem>>, vector<896x128xf32>
    %cst_176 = arith.constant dense<0.000000e+00> : vector<128x128xf32>
    %284 = tpu.matmul %282, %283, %cst_176 {dimension_numbers = #tpu.dot_dimension_numbers<[1], [0], [0], [1], [0, 0, 1, 1], [], []>} : vector<128x896xf32>, vector<896x128xf32>, vector<128x128xf32> -> vector<128x128xf32>
    %c0_177 = arith.constant 0 : index
    %c0_178 = arith.constant 0 : index
    %285 = vector.load %arg19[%c0_177, %c0_178] : memref<1x128xf32, #tpu.memory_space<vmem>>, vector<1x128xf32>
    %286 = vector.broadcast %285 : vector<1x128xf32> to vector<128x128xf32>
    %287 = arith.addf %284, %286 : vector<128x128xf32>
    %cst_179 = arith.constant 0.000000e+00 : f32
    %288 = vector.broadcast %cst_179 : f32 to vector<128x128xf32>
    %289 = arith.maximumf %287, %288 : vector<128x128xf32>
    %c3_180 = arith.constant 3 : index
    %c0_181 = arith.constant 0 : index
    %290 = vector.load %arg27[%c3_180, %c0_181] : memref<134x128xf32, #tpu.memory_space<vmem>>, vector<128x128xf32>
    tpu.vector_store %arg27[%c3_180, %c0_181], %289 {strides = array<i32>} : memref<134x128xf32, #tpu.memory_space<vmem>>, vector<128x128xf32>,
    %c1_182 = arith.constant 1 : index
    %c0_183 = arith.constant 0 : index
    %291 = vector.load %arg27[%c1_182, %c0_183] : memref<134x128xf32, #tpu.memory_space<vmem>>, vector<128x128xf32>
    %cst_184 = arith.constant 0.000000e+00 : f32
    %292 = vector.shape_cast %20 : vector<128x1xi1> to vector<128x1xi1>
    %293 = vector.broadcast %292 : vector<128x1xi1> to vector<128x128xi1>
    %294 = vector.broadcast %cst_184 : f32 to vector<128x128xf32>
    %295 = arith.select %293, %291, %294 : vector<128x128xi1>, vector<128x128xf32>
    %c2_185 = arith.constant 2 : index
    %c0_186 = arith.constant 0 : index
    %296 = vector.load %arg27[%c2_185, %c0_186] : memref<134x128xf32, #tpu.memory_space<vmem>>, vector<128x128xf32>
    %cst_187 = arith.constant 0.000000e+00 : f32
    %297 = vector.shape_cast %29 : vector<128x1xi1> to vector<128x1xi1>
    %298 = vector.broadcast %297 : vector<128x1xi1> to vector<128x128xi1>
    %299 = vector.broadcast %cst_187 : f32 to vector<128x128xf32>
    %300 = arith.select %298, %296, %299 : vector<128x128xi1>, vector<128x128xf32>
    %c3_188 = arith.constant 3 : index
    %c0_189 = arith.constant 0 : index
    %301 = vector.load %arg27[%c3_188, %c0_189] : memref<134x128xf32, #tpu.memory_space<vmem>>, vector<128x128xf32>
    %c4_190 = arith.constant 4 : index
    %c0_191 = arith.constant 0 : index
    %302 = vector.load %arg27[%c4_190, %c0_191] : memref<134x128xf32, #tpu.memory_space<vmem>>, vector<128x128xf32>
    %cst_192 = arith.constant 0.000000e+00 : f32
    %303 = vector.shape_cast %38 : vector<128x1xi1> to vector<128x1xi1>
    %304 = vector.broadcast %303 : vector<128x1xi1> to vector<128x128xi1>
    %305 = vector.broadcast %cst_192 : f32 to vector<128x128xf32>
    %306 = arith.select %304, %302, %305 : vector<128x128xi1>, vector<128x128xf32>
    %c5_193 = arith.constant 5 : index
    %c0_194 = arith.constant 0 : index
    %307 = vector.load %arg27[%c5_193, %c0_194] : memref<134x128xf32, #tpu.memory_space<vmem>>, vector<128x128xf32>
    %cst_195 = arith.constant 0.000000e+00 : f32
    %308 = vector.shape_cast %47 : vector<128x1xi1> to vector<128x1xi1>
    %309 = vector.broadcast %308 : vector<128x1xi1> to vector<128x128xi1>
    %310 = vector.broadcast %cst_195 : f32 to vector<128x128xf32>
    %311 = arith.select %309, %307, %310 : vector<128x128xi1>, vector<128x128xf32>
    %312 = tpu.concatenate %295, %300, %301, %306, %311 in 1 : vector<128x128xf32>, vector<128x128xf32>, vector<128x128xf32>, vector<128x128xf32>, vector<128x128xf32> -> vector<128x640xf32>
    %c0_196 = arith.constant 0 : index
    %c0_197 = arith.constant 0 : index
    %313 = vector.load %arg20[%c0_196, %c0_197] : memref<640x128xf32, #tpu.memory_space<vmem>>, vector<640x128xf32>
    %cst_198 = arith.constant dense<0.000000e+00> : vector<128x128xf32>
    %314 = tpu.matmul %312, %313, %cst_198 {dimension_numbers = #tpu.dot_dimension_numbers<[1], [0], [0], [1], [0, 0, 1, 1], [], []>} : vector<128x640xf32>, vector<640x128xf32>, vector<128x128xf32> -> vector<128x128xf32>
    %c0_199 = arith.constant 0 : index
    %c0_200 = arith.constant 0 : index
    %315 = vector.load %arg21[%c0_199, %c0_200] : memref<1x128xf32, #tpu.memory_space<vmem>>, vector<1x128xf32>
    %316 = vector.broadcast %315 : vector<1x128xf32> to vector<128x128xf32>
    %317 = arith.addf %314, %316 : vector<128x128xf32>
    %cst_201 = arith.constant 0.000000e+00 : f32
    %318 = vector.broadcast %cst_201 : f32 to vector<128x128xf32>
    %319 = arith.maximumf %317, %318 : vector<128x128xf32>
    %c3_202 = arith.constant 3 : index
    %c0_203 = arith.constant 0 : index
    %320 = vector.load %arg27[%c3_202, %c0_203] : memref<134x128xf32, #tpu.memory_space<vmem>>, vector<128x128xf32>
    tpu.vector_store %arg27[%c3_202, %c0_203], %319 {strides = array<i32>} : memref<134x128xf32, #tpu.memory_space<vmem>>, vector<128x128xf32>,
    %c2_204 = arith.constant 2 : index
    %c0_205 = arith.constant 0 : index
    %321 = vector.load %arg27[%c2_204, %c0_205] : memref<134x128xf32, #tpu.memory_space<vmem>>, vector<128x128xf32>
    %cst_206 = arith.constant 0.000000e+00 : f32
    %322 = vector.shape_cast %29 : vector<128x1xi1> to vector<128x1xi1>
    %323 = vector.broadcast %322 : vector<128x1xi1> to vector<128x128xi1>
    %324 = vector.broadcast %cst_206 : f32 to vector<128x128xf32>
    %325 = arith.select %323, %321, %324 : vector<128x128xi1>, vector<128x128xf32>
    %c3_207 = arith.constant 3 : index
    %c0_208 = arith.constant 0 : index
    %326 = vector.load %arg27[%c3_207, %c0_208] : memref<134x128xf32, #tpu.memory_space<vmem>>, vector<128x128xf32>
    %c4_209 = arith.constant 4 : index
    %c0_210 = arith.constant 0 : index
    %327 = vector.load %arg27[%c4_209, %c0_210] : memref<134x128xf32, #tpu.memory_space<vmem>>, vector<128x128xf32>
    %cst_211 = arith.constant 0.000000e+00 : f32
    %328 = vector.shape_cast %38 : vector<128x1xi1> to vector<128x1xi1>
    %329 = vector.broadcast %328 : vector<128x1xi1> to vector<128x128xi1>
    %330 = vector.broadcast %cst_211 : f32 to vector<128x128xf32>
    %331 = arith.select %329, %327, %330 : vector<128x128xi1>, vector<128x128xf32>
    %332 = tpu.concatenate %325, %326, %331 in 1 : vector<128x128xf32>, vector<128x128xf32>, vector<128x128xf32> -> vector<128x384xf32>
    %c0_212 = arith.constant 0 : index
    %c0_213 = arith.constant 0 : index
    %333 = vector.load %arg22[%c0_212, %c0_213] : memref<384x128xf32, #tpu.memory_space<vmem>>, vector<384x128xf32>
    %cst_214 = arith.constant dense<0.000000e+00> : vector<128x128xf32>
    %334 = tpu.matmul %332, %333, %cst_214 {dimension_numbers = #tpu.dot_dimension_numbers<[1], [0], [0], [1], [0, 0, 1, 1], [], []>} : vector<128x384xf32>, vector<384x128xf32>, vector<128x128xf32> -> vector<128x128xf32>
    %c0_215 = arith.constant 0 : index
    %c0_216 = arith.constant 0 : index
    %335 = vector.load %arg23[%c0_215, %c0_216] : memref<1x128xf32, #tpu.memory_space<vmem>>, vector<1x128xf32>
    %336 = vector.broadcast %335 : vector<1x128xf32> to vector<128x128xf32>
    %337 = arith.addf %334, %336 : vector<128x128xf32>
    %338 = arith.addf %337, %249 : vector<128x128xf32>
    %cst_217 = arith.constant 0.000000e+00 : f32
    %339 = vector.broadcast %cst_217 : f32 to vector<128x128xf32>
    %340 = arith.maximumf %338, %339 : vector<128x128xf32>
    %341 = vector.shape_cast %340 : vector<128x128xf32> to vector<8x16x128xf32>
    %cst_218 = arith.constant dense<0.000000e+00> : vector<8x128xf32>
    %342 = vector.multi_reduction <add>, %341, %cst_218 [1] : vector<8x16x128xf32> to vector<8x128xf32>
    %cst_219 = arith.constant 1.600000e+01 : f32
    %343 = vector.broadcast %cst_219 : f32 to vector<8x128xf32>
    %344 = arith.divf %342, %343 : vector<8x128xf32>
    %c0_220 = arith.constant 0 : index
    %c0_221 = arith.constant 0 : index
    %345 = vector.load %arg24[%c0_220, %c0_221] : memref<128x5xf32, #tpu.memory_space<vmem>>, vector<128x5xf32>
    %cst_222 = arith.constant dense<0.000000e+00> : vector<8x5xf32>
    %346 = tpu.matmul %344, %345, %cst_222 {dimension_numbers = #tpu.dot_dimension_numbers<[1], [0], [0], [1], [0, 0, 1, 1], [], []>} : vector<8x128xf32>, vector<128x5xf32>, vector<8x5xf32> -> vector<8x5xf32>
    %c0_223 = arith.constant 0 : index
    %c0_224 = arith.constant 0 : index
    %347 = vector.load %arg25[%c0_223, %c0_224] : memref<1x5xf32, #tpu.memory_space<vmem>>, vector<1x5xf32>
    %348 = vector.broadcast %347 : vector<1x5xf32> to vector<8x5xf32>
    %349 = arith.addf %346, %348 : vector<8x5xf32>
    %c0_225 = arith.constant 0 : index
    %c0_226 = arith.constant 0 : index
    %350 = vector.load %arg26[%c0_225, %c0_226] : memref<8x5xf32, #tpu.memory_space<vmem>>, vector<8x5xf32>
    tpu.vector_store %arg26[%c0_225, %c0_226], %349 {strides = array<i32>} : memref<8x5xf32, #tpu.memory_space<vmem>>, vector<8x5xf32>,
    return
  }
  func.func @transform_0(%arg0: i32) -> (i32, i32) {
    %c0_i32 = arith.constant 0 : i32
    %c0_i32_0 = arith.constant 0 : i32
    return %arg0, %c0_i32 : i32, i32
  }
  func.func @transform_1(%arg0: i32) -> (i32, i32) {
    %c0_i32 = arith.constant 0 : i32
    %c0_i32_0 = arith.constant 0 : i32
    %c0_i32_1 = arith.constant 0 : i32
    return %c0_i32, %c0_i32_0 : i32, i32
  }
  func.func @transform_2(%arg0: i32) -> (i32, i32) {
    %c0_i32 = arith.constant 0 : i32
    %c0_i32_0 = arith.constant 0 : i32
    %c0_i32_1 = arith.constant 0 : i32
    return %c0_i32, %c0_i32_0 : i32, i32
  }
  func.func @transform_3(%arg0: i32) -> (i32, i32) {
    %c0_i32 = arith.constant 0 : i32
    %c0_i32_0 = arith.constant 0 : i32
    %c0_i32_1 = arith.constant 0 : i32
    return %c0_i32, %c0_i32_0 : i32, i32
  }
  func.func @transform_4(%arg0: i32) -> (i32, i32) {
    %c0_i32 = arith.constant 0 : i32
    %c0_i32_0 = arith.constant 0 : i32
    %c0_i32_1 = arith.constant 0 : i32
    return %c0_i32, %c0_i32_0 : i32, i32
  }
  func.func @transform_5(%arg0: i32) -> (i32, i32) {
    %c0_i32 = arith.constant 0 : i32
    %c0_i32_0 = arith.constant 0 : i32
    %c0_i32_1 = arith.constant 0 : i32
    return %c0_i32, %c0_i32_0 : i32, i32
  }
  func.func @transform_6(%arg0: i32) -> (i32, i32) {
    %c0_i32 = arith.constant 0 : i32
    %c0_i32_0 = arith.constant 0 : i32
    %c0_i32_1 = arith.constant 0 : i32
    return %c0_i32, %c0_i32_0 : i32, i32
  }
  func.func @transform_7(%arg0: i32) -> (i32, i32) {
    %c0_i32 = arith.constant 0 : i32
    %c0_i32_0 = arith.constant 0 : i32
    %c0_i32_1 = arith.constant 0 : i32
    return %c0_i32, %c0_i32_0 : i32, i32
  }
  func.func @transform_8(%arg0: i32) -> (i32, i32) {
    %c0_i32 = arith.constant 0 : i32
    %c0_i32_0 = arith.constant 0 : i32
    %c0_i32_1 = arith.constant 0 : i32
    return %c0_i32, %c0_i32_0 : i32, i32
  }
  func.func @transform_9(%arg0: i32) -> (i32, i32) {
    %c0_i32 = arith.constant 0 : i32
    %c0_i32_0 = arith.constant 0 : i32
    %c0_i32_1 = arith.constant 0 : i32
    return %c0_i32, %c0_i32_0 : i32, i32
  }
  func.func @transform_10(%arg0: i32) -> (i32, i32) {
    %c0_i32 = arith.constant 0 : i32
    %c0_i32_0 = arith.constant 0 : i32
    %c0_i32_1 = arith.constant 0 : i32
    return %c0_i32, %c0_i32_0 : i32, i32
  }
  func.func @transform_11(%arg0: i32) -> (i32, i32) {
    %c0_i32 = arith.constant 0 : i32
    %c0_i32_0 = arith.constant 0 : i32
    %c0_i32_1 = arith.constant 0 : i32
    return %c0_i32, %c0_i32_0 : i32, i32
  }
  func.func @transform_12(%arg0: i32) -> (i32, i32) {
    %c0_i32 = arith.constant 0 : i32
    %c0_i32_0 = arith.constant 0 : i32
    %c0_i32_1 = arith.constant 0 : i32
    return %c0_i32, %c0_i32_0 : i32, i32
  }
  func.func @transform_13(%arg0: i32) -> (i32, i32) {
    %c0_i32 = arith.constant 0 : i32
    %c0_i32_0 = arith.constant 0 : i32
    %c0_i32_1 = arith.constant 0 : i32
    return %c0_i32, %c0_i32_0 : i32, i32
  }
  func.func @transform_14(%arg0: i32) -> (i32, i32) {
    %c0_i32 = arith.constant 0 : i32
    %c0_i32_0 = arith.constant 0 : i32
    %c0_i32_1 = arith.constant 0 : i32
    return %c0_i32, %c0_i32_0 : i32, i32
  }
  func.func @transform_15(%arg0: i32) -> (i32, i32) {
    %c0_i32 = arith.constant 0 : i32
    %c0_i32_0 = arith.constant 0 : i32
    %c0_i32_1 = arith.constant 0 : i32
    return %c0_i32, %c0_i32_0 : i32, i32
  }
  func.func @transform_16(%arg0: i32) -> (i32, i32) {
    %c0_i32 = arith.constant 0 : i32
    %c0_i32_0 = arith.constant 0 : i32
    %c0_i32_1 = arith.constant 0 : i32
    return %c0_i32, %c0_i32_0 : i32, i32
  }
  func.func @transform_17(%arg0: i32) -> (i32, i32) {
    %c0_i32 = arith.constant 0 : i32
    %c0_i32_0 = arith.constant 0 : i32
    %c0_i32_1 = arith.constant 0 : i32
    return %c0_i32, %c0_i32_0 : i32, i32
  }
  func.func @transform_18(%arg0: i32) -> (i32, i32) {
    %c0_i32 = arith.constant 0 : i32
    %c0_i32_0 = arith.constant 0 : i32
    %c0_i32_1 = arith.constant 0 : i32
    return %c0_i32, %c0_i32_0 : i32, i32
  }
  func.func @transform_19(%arg0: i32) -> (i32, i32) {
    %c0_i32 = arith.constant 0 : i32
    %c0_i32_0 = arith.constant 0 : i32
    %c0_i32_1 = arith.constant 0 : i32
    return %c0_i32, %c0_i32_0 : i32, i32
  }
  func.func @transform_20(%arg0: i32) -> (i32, i32) {
    %c0_i32 = arith.constant 0 : i32
    %c0_i32_0 = arith.constant 0 : i32
    %c0_i32_1 = arith.constant 0 : i32
    return %c0_i32, %c0_i32_0 : i32, i32
  }
  func.func @transform_21(%arg0: i32) -> (i32, i32) {
    %c0_i32 = arith.constant 0 : i32
    %c0_i32_0 = arith.constant 0 : i32
    %c0_i32_1 = arith.constant 0 : i32
    return %c0_i32, %c0_i32_0 : i32, i32
  }
  func.func @transform_22(%arg0: i32) -> (i32, i32) {
    %c0_i32 = arith.constant 0 : i32
    %c0_i32_0 = arith.constant 0 : i32
    %c0_i32_1 = arith.constant 0 : i32
    return %c0_i32, %c0_i32_0 : i32, i32
  }
  func.func @transform_23(%arg0: i32) -> (i32, i32) {
    %c0_i32 = arith.constant 0 : i32
    %c0_i32_0 = arith.constant 0 : i32
    %c0_i32_1 = arith.constant 0 : i32
    return %c0_i32, %c0_i32_0 : i32, i32
  }
  func.func @transform_24(%arg0: i32) -> (i32, i32) {
    %c0_i32 = arith.constant 0 : i32
    %c0_i32_0 = arith.constant 0 : i32
    %c0_i32_1 = arith.constant 0 : i32
    return %c0_i32, %c0_i32_0 : i32, i32
  }
  func.func @transform_25(%arg0: i32) -> (i32, i32) {
    %c0_i32 = arith.constant 0 : i32
    %c0_i32_0 = arith.constant 0 : i32
    return %arg0, %c0_i32 : i32, i32
  }
}

</mosaic_0001>

<llo_original>
// kernel: tpu_custom_call.1
$region0: #{tpu_custom_call.1}
  #allocation0 [shape = 'u32[]', space=smem, size = 0x4, offset = 0x4, fixed_abs, tag = 'smem constant byte address 0x4 - core index']
  #allocation1 [shape = 'u32[144,128]{1,0:T(1,128)}', space=vmem, size = 0x12000, scoped, tag = 'internal scratch']
  #allocation2 [shape = 'f32[134,128]{1,0:T(8,128)}', space=vmem, size = 0x11000, scoped, tag = 'scratch operand']
  %s0 = inlined_call_operand.vmem [shape: f32[256,4], index: 0, kind: input, shape index: {}]
  %s1 = inlined_call_operand.vmem [shape: f32[28,64], index: 1, kind: input, shape index: {}]
  %s2 = inlined_call_operand.vmem [shape: f32[1,64], index: 2, kind: input, shape index: {}]
  %s3 = inlined_call_operand.vmem [shape: f32[320,64], index: 3, kind: input, shape index: {}]
  %s4 = inlined_call_operand.vmem [shape: f32[1,64], index: 4, kind: input, shape index: {}]
  %s5 = inlined_call_operand.vmem [shape: f32[192,64], index: 5, kind: input, shape index: {}]
  %s6 = inlined_call_operand.vmem [shape: f32[1,64], index: 6, kind: input, shape index: {}]
  %s7 = inlined_call_operand.vmem [shape: f32[4,64], index: 7, kind: input, shape index: {}]
  %s8 = inlined_call_operand.vmem [shape: f32[1,64], index: 8, kind: input, shape index: {}]
  %s9 = inlined_call_operand.hbm [shape: f32[448,128], index: 9, kind: input, shape index: {}]
  %s10 = inlined_call_operand.vmem [shape: f32[1,128], index: 10, kind: input, shape index: {}]
  %s11 = inlined_call_operand.hbm [shape: f32[640,128], index: 11, kind: input, shape index: {}]
  %s12 = inlined_call_operand.vmem [shape: f32[1,128], index: 12, kind: input, shape index: {}]
  %s13 = inlined_call_operand.hbm [shape: f32[384,128], index: 13, kind: input, shape index: {}]
  %s14 = inlined_call_operand.vmem [shape: f32[1,128], index: 14, kind: input, shape index: {}]
  %s15 = inlined_call_operand.vmem [shape: f32[64,128], index: 15, kind: input, shape index: {}]
  %s16 = inlined_call_operand.vmem [shape: f32[1,128], index: 16, kind: input, shape index: {}]
  %s17 = inlined_call_operand.vmem [shape: f32[896,128], index: 17, kind: input, shape index: {}]
  %s18 = inlined_call_operand.vmem [shape: f32[1,128], index: 18, kind: input, shape index: {}]
  %s19 = inlined_call_operand.hbm [shape: f32[640,128], index: 19, kind: input, shape index: {}]
  %s20 = inlined_call_operand.vmem [shape: f32[1,128], index: 20, kind: input, shape index: {}]
  %s21 = inlined_call_operand.hbm [shape: f32[384,128], index: 21, kind: input, shape index: {}]
  %s22 = inlined_call_operand.vmem [shape: f32[1,128], index: 22, kind: input, shape index: {}]
  %s23 = inlined_call_operand.vmem [shape: f32[128,5], index: 23, kind: input, shape index: {}]
  %s24 = inlined_call_operand.vmem [shape: f32[1,5], index: 24, kind: input, shape index: {}]
  %s25 = inlined_call_operand.vmem [shape: f32[16,5], index: 25, kind: output, shape index: {}]
  %s26 = sld [smem:[#allocation0]]
  $region153: #{tpu_custom_call.1} parent=0
    _
  %s28 = ssub.s32 1, %s26
  %s29 = scalar_select 0, %s28, %s26
  $region1: #{tpu_custom_call.1} parent=0
    #allocation3 [shape = 'u8[229376]{0}', space=vmem, size = 0x38000, scoped, tag = 'input window, operand 9, single buffered']
    #allocation4 [shape = 's32[2]{0}', space=sflag, size = 0x8, scoped, tag = 'scoped memory for tpu_custom_call.1']
    #allocation5 [shape = 'u8[327680]{0}', space=vmem, size = 0x50000, scoped, tag = 'input window, operand 11, single buffered']
    #allocation6 [shape = 's32[1]{0}', space=sflag, size = 0x4, scoped, tag = 'scoped memory for tpu_custom_call.1']
    #allocation7 [shape = 'u8[196608]{0}', space=vmem, size = 0x30000, scoped, tag = 'input window, operand 13, single buffered']
    #allocation8 [shape = 'u8[327680]{0}', space=vmem, size = 0x50000, scoped, tag = 'input window, operand 19, single buffered']
    #allocation9 [shape = 's32[1]{0}', space=sflag, size = 0x4, scoped, tag = 'scoped memory for tpu_custom_call.1']
    #allocation10 [shape = 'u8[196608]{0}', space=vmem, size = 0x30000, scoped, tag = 'input window, operand 21, single buffered']
    %30 = vsyncpa [#allocation4], 0
    %31 = vsyncpa [#allocation6], 0
    %32 = vsyncpa [#allocation9], 0
    loop: start=0, step=1, limit=4
    $region2: #{tpu_custom_call.1} parent=1 // loop_pre_header
      _
    $region3: #{tpu_custom_call.1} parent=1 // loop_header
      %s34 = sphi 0, %s38
      %p35 = scmp.ge.s32.totalorder %s34, 4
      %s44 = sphi 0, %s46
      %s47 = sphi 0, %s44
      %s48 = sphi 0, %s47
      %s64 = sphi 0, %s48
      %s68 = sphi 0, %s68
      %s70 = sphi 0, %s68
      %s71 = sphi 0, %s70
      %s85 = sphi 0, %s71
      %s89 = sphi 0, %s89
      %s91 = sphi 0, %s89
      %s92 = sphi 0, %s91
      %s106 = sphi 0, %s92
      %s110 = sphi 0, %s110
      %s112 = sphi 0, %s110
      %s113 = sphi 0, %s112
      %s127 = sphi 0, %s113
      %s131 = sphi 0, %s131
      %s133 = sphi 0, %s131
      %s134 = sphi 0, %s133
      %s148 = sphi 0, %s134
      %s152 = sphi 0, %s152
      %s154 = sphi 0, %s152
      %s155 = sphi 0, %s154
      %s169 = sphi 0, %s155
      %s173 = sphi 0, %s173
      %s175 = sphi 0, %s173
      %s176 = sphi 0, %s175
      %s190 = sphi 0, %s176
      %s194 = sphi 0, %s194
      %s196 = sphi 0, %s194
      %s197 = sphi 0, %s196
      %s211 = sphi 0, %s197
      %s215 = sphi 0, %s215
      %s217 = sphi 0, %s215
      %s218 = sphi 0, %s217
      %s232 = sphi 0, %s218
      %s236 = sphi 0, %s236
      %s238 = sphi 0, %s236
      %s239 = sphi 0, %s238
      %s253 = sphi 0, %s239
      %s257 = sphi 0, %s257
      %s259 = sphi 0, %s257
      %s260 = sphi 0, %s259
      %s274 = sphi 0, %s260
      %s278 = sphi 0, %s278
      %s280 = sphi 0, %s278
      %s281 = sphi 0, %s280
      %s295 = sphi 0, %s281
      %s299 = sphi 0, %s299
      %s301 = sphi 0, %s299
      %s302 = sphi 0, %s301
      %s316 = sphi 0, %s302
      %s320 = sphi 0, %s320
      %s322 = sphi 0, %s320
      %s323 = sphi 0, %s322
      %s337 = sphi 0, %s323
      %s341 = sphi 0, %s341
      %s343 = sphi 0, %s341
      %s344 = sphi 0, %s343
      %s358 = sphi 0, %s344
      %s362 = sphi 0, %s362
      %s364 = sphi 0, %s362
      %s365 = sphi 0, %s364
      %s379 = sphi 0, %s365
      %s383 = sphi 0, %s383
      %s385 = sphi 0, %s383
      %s386 = sphi 0, %s385
      %s400 = sphi 0, %s386
      %s404 = sphi 0, %s404
      %s406 = sphi 0, %s404
      %s407 = sphi 0, %s406
      %s421 = sphi 0, %s407
      %s425 = sphi 0, %s425
      %s427 = sphi 0, %s425
      %s428 = sphi 0, %s427
      %s442 = sphi 0, %s428
      %s446 = sphi 0, %s446
      %s448 = sphi 0, %s446
      %s449 = sphi 0, %s448
      %s463 = sphi 0, %s449
      %s467 = sphi 0, %s467
      %s469 = sphi 0, %s467
      %s470 = sphi 0, %s469
      %s484 = sphi 0, %s470
      %s488 = sphi 0, %s488
      %s490 = sphi 0, %s488
      %s491 = sphi 0, %s490
      %s505 = sphi 0, %s491
      %s509 = sphi 0, %s509
      %s511 = sphi 0, %s509
      %s512 = sphi 0, %s511
      %s526 = sphi 0, %s512
      %s530 = sphi 0, %s530
      %s532 = sphi 0, %s530
      %s533 = sphi 0, %s532
      %s547 = sphi 0, %s533
      %s551 = sphi 0, %s551
      %s553 = sphi 0, %s551
      %s554 = sphi 0, %s553
      %s568 = sphi 0, %s554
      %s574 = sphi 0, %s576
      %s577 = sphi 0, %s574
      %s578 = sphi 0, %s577
      %s594 = sphi 0, %s578
    $region4: #{tpu_custom_call.1} parent=1 // loop_header_branch
      %37 = sbr.rel (%p35) target = $region8
    $region5: #{tpu_custom_call.1} parent=1 // loop_body
      %s39 = ssub.s32 %s34, 1
      %s40 = ssub.s32 %s34, 2
      %s41 = sadd.s32 %s34, 1
      %s42 = ssub.s32 %s34, %s41
      %p43 = scmp.eq.s32.totalorder %s42, 0
      %s45 = sadd.s32 %s44, 1
      %s46 = scalar_select %p43, %s44, %s45
      %p49 = pneg %p43
      %p50 = scmp.eq.s32.totalorder %s34, 1
      %p51 = por %p49, %p50
      %p52 = scmp.ne.s32.totalorder %s44, %s47
      %p53 = scmp.eq.s32.totalorder %s34, 0
      %p54 = por %p52, %p53
      %p55 = scmp.ne.s32.totalorder %s44, %s47
      %p56 = scmp.eq.s32.totalorder %s39, 1
      %p57 = por %p55, %p56
      %p58 = scmp.ne.s32.totalorder %s47, %s48
      %p59 = scmp.eq.s32.totalorder %s39, 0
      %p60 = por %p58, %p59
      %p61 = scmp.ne.s32.totalorder %s47, %s48
      %p62 = scmp.eq.s32.totalorder %s40, 1
      %p63 = por %p61, %p62
      %p65 = scmp.ne.s32.totalorder %s48, %s64
      %p66 = scmp.eq.s32.totalorder %s40, 0
      %p67 = por %p65, %p66
      %s69 = sadd.s32 %s68, 1
      %p72 = scmp.eq.s32.totalorder %s34, 1
      %p73 = scmp.ne.s32.totalorder %s68, %s70
      %p74 = scmp.eq.s32.totalorder %s34, 0
      %p75 = por %p73, %p74
      %p76 = scmp.ne.s32.totalorder %s68, %s70
      %p77 = scmp.eq.s32.totalorder %s39, 1
      %p78 = por %p76, %p77
      %p79 = scmp.ne.s32.totalorder %s70, %s71
      %p80 = scmp.eq.s32.totalorder %s39, 0
      %p81 = por %p79, %p80
      %p82 = scmp.ne.s32.totalorder %s70, %s71
      %p83 = scmp.eq.s32.totalorder %s40, 1
      %p84 = por %p82, %p83
      %p86 = scmp.ne.s32.totalorder %s71, %s85
      %p87 = scmp.eq.s32.totalorder %s40, 0
      %p88 = por %p86, %p87
      %s90 = sadd.s32 %s89, 1
      %p93 = scmp.eq.s32.totalorder %s34, 1
      %p94 = scmp.ne.s32.totalorder %s89, %s91
      %p95 = scmp.eq.s32.totalorder %s34, 0
      %p96 = por %p94, %p95
      %p97 = scmp.ne.s32.totalorder %s89, %s91
      %p98 = scmp.eq.s32.totalorder %s39, 1
      %p99 = por %p97, %p98
      %p100 = scmp.ne.s32.totalorder %s91, %s92
      %p101 = scmp.eq.s32.totalorder %s39, 0
      %p102 = por %p100, %p101
      %p103 = scmp.ne.s32.totalorder %s91, %s92
      %p104 = scmp.eq.s32.totalorder %s40, 1
      %p105 = por %p103, %p104
      %p107 = scmp.ne.s32.totalorder %s92, %s106
      %p108 = scmp.eq.s32.totalorder %s40, 0
      %p109 = por %p107, %p108
      %s111 = sadd.s32 %s110, 1
      %p114 = scmp.eq.s32.totalorder %s34, 1
      %p115 = scmp.ne.s32.totalorder %s110, %s112
      %p116 = scmp.eq.s32.totalorder %s34, 0
      %p117 = por %p115, %p116
      %p118 = scmp.ne.s32.totalorder %s110, %s112
      %p119 = scmp.eq.s32.totalorder %s39, 1
      %p120 = por %p118, %p119
      %p121 = scmp.ne.s32.totalorder %s112, %s113
      %p122 = scmp.eq.s32.totalorder %s39, 0
      %p123 = por %p121, %p122
      %p124 = scmp.ne.s32.totalorder %s112, %s113
      %p125 = scmp.eq.s32.totalorder %s40, 1
      %p126 = por %p124, %p125
      %p128 = scmp.ne.s32.totalorder %s113, %s127
      %p129 = scmp.eq.s32.totalorder %s40, 0
      %p130 = por %p128, %p129
      %s132 = sadd.s32 %s131, 1
      %p135 = scmp.eq.s32.totalorder %s34, 1
      %p136 = scmp.ne.s32.totalorder %s131, %s133
      %p137 = scmp.eq.s32.totalorder %s34, 0
      %p138 = por %p136, %p137
      %p139 = scmp.ne.s32.totalorder %s131, %s133
      %p140 = scmp.eq.s32.totalorder %s39, 1
      %p141 = por %p139, %p140
      %p142 = scmp.ne.s32.totalorder %s133, %s134
      %p143 = scmp.eq.s32.totalorder %s39, 0
      %p144 = por %p142, %p143
      %p145 = scmp.ne.s32.totalorder %s133, %s134
      %p146 = scmp.eq.s32.totalorder %s40, 1
      %p147 = por %p145, %p146
      %p149 = scmp.ne.s32.totalorder %s134, %s148
      %p150 = scmp.eq.s32.totalorder %s40, 0
      %p151 = por %p149, %p150
      %s153 = sadd.s32 %s152, 1
      %p156 = scmp.eq.s32.totalorder %s34, 1
      %p157 = scmp.ne.s32.totalorder %s152, %s154
      %p158 = scmp.eq.s32.totalorder %s34, 0
      %p159 = por %p157, %p158
      %p160 = scmp.ne.s32.totalorder %s152, %s154
      %p161 = scmp.eq.s32.totalorder %s39, 1
      %p162 = por %p160, %p161
      %p163 = scmp.ne.s32.totalorder %s154, %s155
      %p164 = scmp.eq.s32.totalorder %s39, 0
      %p165 = por %p163, %p164
      %p166 = scmp.ne.s32.totalorder %s154, %s155
      %p167 = scmp.eq.s32.totalorder %s40, 1
      %p168 = por %p166, %p167
      %p170 = scmp.ne.s32.totalorder %s155, %s169
      %p171 = scmp.eq.s32.totalorder %s40, 0
      %p172 = por %p170, %p171
      %s174 = sadd.s32 %s173, 1
      %p177 = scmp.eq.s32.totalorder %s34, 1
      %p178 = scmp.ne.s32.totalorder %s173, %s175
      %p179 = scmp.eq.s32.totalorder %s34, 0
      %p180 = por %p178, %p179
      %p181 = scmp.ne.s32.totalorder %s173, %s175
      %p182 = scmp.eq.s32.totalorder %s39, 1
      %p183 = por %p181, %p182
      %p184 = scmp.ne.s32.totalorder %s175, %s176
      %p185 = scmp.eq.s32.totalorder %s39, 0
      %p186 = por %p184, %p185
      %p187 = scmp.ne.s32.totalorder %s175, %s176
      %p188 = scmp.eq.s32.totalorder %s40, 1
      %p189 = por %p187, %p188
      %p191 = scmp.ne.s32.totalorder %s176, %s190
      %p192 = scmp.eq.s32.totalorder %s40, 0
      %p193 = por %p191, %p192
      %s195 = sadd.s32 %s194, 1
      %p198 = scmp.eq.s32.totalorder %s34, 1
      %p199 = scmp.ne.s32.totalorder %s194, %s196
      %p200 = scmp.eq.s32.totalorder %s34, 0
      %p201 = por %p199, %p200
      %p202 = scmp.ne.s32.totalorder %s194, %s196
      %p203 = scmp.eq.s32.totalorder %s39, 1
      %p204 = por %p202, %p203
      %p205 = scmp.ne.s32.totalorder %s196, %s197
      %p206 = scmp.eq.s32.totalorder %s39, 0
      %p207 = por %p205, %p206
      %p208 = scmp.ne.s32.totalorder %s196, %s197
      %p209 = scmp.eq.s32.totalorder %s40, 1
      %p210 = por %p208, %p209
      %p212 = scmp.ne.s32.totalorder %s197, %s211
      %p213 = scmp.eq.s32.totalorder %s40, 0
      %p214 = por %p212, %p213
      %s216 = sadd.s32 %s215, 1
      %p219 = scmp.eq.s32.totalorder %s34, 1
      %p220 = scmp.ne.s32.totalorder %s215, %s217
      %p221 = scmp.eq.s32.totalorder %s34, 0
      %p222 = por %p220, %p221
      %p223 = scmp.ne.s32.totalorder %s215, %s217
      %p224 = scmp.eq.s32.totalorder %s39, 1
      %p225 = por %p223, %p224
      %p226 = scmp.ne.s32.totalorder %s217, %s218
      %p227 = scmp.eq.s32.totalorder %s39, 0
      %p228 = por %p226, %p227
      %p229 = scmp.ne.s32.totalorder %s217, %s218
      %p230 = scmp.eq.s32.totalorder %s40, 1
      %p231 = por %p229, %p230
      %p233 = scmp.ne.s32.totalorder %s218, %s232
      %p234 = scmp.eq.s32.totalorder %s40, 0
      %p235 = por %p233, %p234
      %s237 = sadd.s32 %s236, 1
      %p240 = scmp.eq.s32.totalorder %s34, 1
      %p241 = scmp.ne.s32.totalorder %s236, %s238
      %p242 = scmp.eq.s32.totalorder %s34, 0
      %p243 = por %p241, %p242
      %p244 = scmp.ne.s32.totalorder %s236, %s238
      %p245 = scmp.eq.s32.totalorder %s39, 1
      %p246 = por %p244, %p245
      %p247 = scmp.ne.s32.totalorder %s238, %s239
      %p248 = scmp.eq.s32.totalorder %s39, 0
      %p249 = por %p247, %p248
      %p250 = scmp.ne.s32.totalorder %s238, %s239
      %p251 = scmp.eq.s32.totalorder %s40, 1
      %p252 = por %p250, %p251
      %p254 = scmp.ne.s32.totalorder %s239, %s253
      %p255 = scmp.eq.s32.totalorder %s40, 0
      %p256 = por %p254, %p255
      %s258 = sadd.s32 %s257, 1
      %p261 = scmp.eq.s32.totalorder %s34, 1
      %p262 = scmp.ne.s32.totalorder %s257, %s259
      %p263 = scmp.eq.s32.totalorder %s34, 0
      %p264 = por %p262, %p263
      %p265 = scmp.ne.s32.totalorder %s257, %s259
      %p266 = scmp.eq.s32.totalorder %s39, 1
      %p267 = por %p265, %p266
      %p268 = scmp.ne.s32.totalorder %s259, %s260
      %p269 = scmp.eq.s32.totalorder %s39, 0
      %p270 = por %p268, %p269
      %p271 = scmp.ne.s32.totalorder %s259, %s260
      %p272 = scmp.eq.s32.totalorder %s40, 1
      %p273 = por %p271, %p272
      %p275 = scmp.ne.s32.totalorder %s260, %s274
      %p276 = scmp.eq.s32.totalorder %s40, 0
      %p277 = por %p275, %p276
      %s279 = sadd.s32 %s278, 1
      %p282 = scmp.eq.s32.totalorder %s34, 1
      %p283 = scmp.ne.s32.totalorder %s278, %s280
      %p284 = scmp.eq.s32.totalorder %s34, 0
      %p285 = por %p283, %p284
      %p286 = scmp.ne.s32.totalorder %s278, %s280
      %p287 = scmp.eq.s32.totalorder %s39, 1
      %p288 = por %p286, %p287
      %p289 = scmp.ne.s32.totalorder %s280, %s281
      %p290 = scmp.eq.s32.totalorder %s39, 0
      %p291 = por %p289, %p290
      %p292 = scmp.ne.s32.totalorder %s280, %s281
      %p293 = scmp.eq.s32.totalorder %s40, 1
      %p294 = por %p292, %p293
      %p296 = scmp.ne.s32.totalorder %s281, %s295
      %p297 = scmp.eq.s32.totalorder %s40, 0
      %p298 = por %p296, %p297
      %s300 = sadd.s32 %s299, 1
      %p303 = scmp.eq.s32.totalorder %s34, 1
      %p304 = scmp.ne.s32.totalorder %s299, %s301
      %p305 = scmp.eq.s32.totalorder %s34, 0
      %p306 = por %p304, %p305
      %p307 = scmp.ne.s32.totalorder %s299, %s301
      %p308 = scmp.eq.s32.totalorder %s39, 1
      %p309 = por %p307, %p308
      %p310 = scmp.ne.s32.totalorder %s301, %s302
      %p311 = scmp.eq.s32.totalorder %s39, 0
      %p312 = por %p310, %p311
      %p313 = scmp.ne.s32.totalorder %s301, %s302
      %p314 = scmp.eq.s32.totalorder %s40, 1
      %p315 = por %p313, %p314
      %p317 = scmp.ne.s32.totalorder %s302, %s316
      %p318 = scmp.eq.s32.totalorder %s40, 0
      %p319 = por %p317, %p318
      %s321 = sadd.s32 %s320, 1
      %p324 = scmp.eq.s32.totalorder %s34, 1
      %p325 = scmp.ne.s32.totalorder %s320, %s322
      %p326 = scmp.eq.s32.totalorder %s34, 0
      %p327 = por %p325, %p326
      %p328 = scmp.ne.s32.totalorder %s320, %s322
      %p329 = scmp.eq.s32.totalorder %s39, 1
      %p330 = por %p328, %p329
      %p331 = scmp.ne.s32.totalorder %s322, %s323
      %p332 = scmp.eq.s32.totalorder %s39, 0
      %p333 = por %p331, %p332
      %p334 = scmp.ne.s32.totalorder %s322, %s323
      %p335 = scmp.eq.s32.totalorder %s40, 1
      %p336 = por %p334, %p335
      %p338 = scmp.ne.s32.totalorder %s323, %s337
      %p339 = scmp.eq.s32.totalorder %s40, 0
      %p340 = por %p338, %p339
      %s342 = sadd.s32 %s341, 1
      %p345 = scmp.eq.s32.totalorder %s34, 1
      %p346 = scmp.ne.s32.totalorder %s341, %s343
      %p347 = scmp.eq.s32.totalorder %s34, 0
      %p348 = por %p346, %p347
      %p349 = scmp.ne.s32.totalorder %s341, %s343
      %p350 = scmp.eq.s32.totalorder %s39, 1
      %p351 = por %p349, %p350
      %p352 = scmp.ne.s32.totalorder %s343, %s344
      %p353 = scmp.eq.s32.totalorder %s39, 0
      %p354 = por %p352, %p353
      %p355 = scmp.ne.s32.totalorder %s343, %s344
      %p356 = scmp.eq.s32.totalorder %s40, 1
      %p357 = por %p355, %p356
      %p359 = scmp.ne.s32.totalorder %s344, %s358
      %p360 = scmp.eq.s32.totalorder %s40, 0
      %p361 = por %p359, %p360
      %s363 = sadd.s32 %s362, 1
      %p366 = scmp.eq.s32.totalorder %s34, 1
      %p367 = scmp.ne.s32.totalorder %s362, %s364
      %p368 = scmp.eq.s32.totalorder %s34, 0
      %p369 = por %p367, %p368
      %p370 = scmp.ne.s32.totalorder %s362, %s364
      %p371 = scmp.eq.s32.totalorder %s39, 1
      %p372 = por %p370, %p371
      %p373 = scmp.ne.s32.totalorder %s364, %s365
      %p374 = scmp.eq.s32.totalorder %s39, 0
      %p375 = por %p373, %p374
      %p376 = scmp.ne.s32.totalorder %s364, %s365
      %p377 = scmp.eq.s32.totalorder %s40, 1
      %p378 = por %p376, %p377
      %p380 = scmp.ne.s32.totalorder %s365, %s379
      %p381 = scmp.eq.s32.totalorder %s40, 0
      %p382 = por %p380, %p381
      %s384 = sadd.s32 %s383, 1
      %p387 = scmp.eq.s32.totalorder %s34, 1
      %p388 = scmp.ne.s32.totalorder %s383, %s385
      %p389 = scmp.eq.s32.totalorder %s34, 0
      %p390 = por %p388, %p389
      %p391 = scmp.ne.s32.totalorder %s383, %s385
      %p392 = scmp.eq.s32.totalorder %s39, 1
      %p393 = por %p391, %p392
      %p394 = scmp.ne.s32.totalorder %s385, %s386
      %p395 = scmp.eq.s32.totalorder %s39, 0
      %p396 = por %p394, %p395
      %p397 = scmp.ne.s32.totalorder %s385, %s386
      %p398 = scmp.eq.s32.totalorder %s40, 1
      %p399 = por %p397, %p398
      %p401 = scmp.ne.s32.totalorder %s386, %s400
      %p402 = scmp.eq.s32.totalorder %s40, 0
      %p403 = por %p401, %p402
      %s405 = sadd.s32 %s404, 1
      %p408 = scmp.eq.s32.totalorder %s34, 1
      %p409 = scmp.ne.s32.totalorder %s404, %s406
      %p410 = scmp.eq.s32.totalorder %s34, 0
      %p411 = por %p409, %p410
      %p412 = scmp.ne.s32.totalorder %s404, %s406
      %p413 = scmp.eq.s32.totalorder %s39, 1
      %p414 = por %p412, %p413
      %p415 = scmp.ne.s32.totalorder %s406, %s407
      %p416 = scmp.eq.s32.totalorder %s39, 0
      %p417 = por %p415, %p416
      %p418 = scmp.ne.s32.totalorder %s406, %s407
      %p419 = scmp.eq.s32.totalorder %s40, 1
      %p420 = por %p418, %p419
      %p422 = scmp.ne.s32.totalorder %s407, %s421
      %p423 = scmp.eq.s32.totalorder %s40, 0
      %p424 = por %p422, %p423
      %s426 = sadd.s32 %s425, 1
      %p429 = scmp.eq.s32.totalorder %s34, 1
      %p430 = scmp.ne.s32.totalorder %s425, %s427
      %p431 = scmp.eq.s32.totalorder %s34, 0
      %p432 = por %p430, %p431
      %p433 = scmp.ne.s32.totalorder %s425, %s427
      %p434 = scmp.eq.s32.totalorder %s39, 1
      %p435 = por %p433, %p434
      %p436 = scmp.ne.s32.totalorder %s427, %s428
      %p437 = scmp.eq.s32.totalorder %s39, 0
      %p438 = por %p436, %p437
      %p439 = scmp.ne.s32.totalorder %s427, %s428
      %p440 = scmp.eq.s32.totalorder %s40, 1
      %p441 = por %p439, %p440
      %p443 = scmp.ne.s32.totalorder %s428, %s442
      %p444 = scmp.eq.s32.totalorder %s40, 0
      %p445 = por %p443, %p444
      %s447 = sadd.s32 %s446, 1
      %p450 = scmp.eq.s32.totalorder %s34, 1
      %p451 = scmp.ne.s32.totalorder %s446, %s448
      %p452 = scmp.eq.s32.totalorder %s34, 0
      %p453 = por %p451, %p452
      %p454 = scmp.ne.s32.totalorder %s446, %s448
      %p455 = scmp.eq.s32.totalorder %s39, 1
      %p456 = por %p454, %p455
      %p457 = scmp.ne.s32.totalorder %s448, %s449
      %p458 = scmp.eq.s32.totalorder %s39, 0
      %p459 = por %p457, %p458
      %p460 = scmp.ne.s32.totalorder %s448, %s449
      %p461 = scmp.eq.s32.totalorder %s40, 1
      %p462 = por %p460, %p461
      %p464 = scmp.ne.s32.totalorder %s449, %s463
      %p465 = scmp.eq.s32.totalorder %s40, 0
      %p466 = por %p464, %p465
      %s468 = sadd.s32 %s467, 1
      %p471 = scmp.eq.s32.totalorder %s34, 1
      %p472 = scmp.ne.s32.totalorder %s467, %s469
      %p473 = scmp.eq.s32.totalorder %s34, 0
      %p474 = por %p472, %p473
      %p475 = scmp.ne.s32.totalorder %s467, %s469
      %p476 = scmp.eq.s32.totalorder %s39, 1
      %p477 = por %p475, %p476
      %p478 = scmp.ne.s32.totalorder %s469, %s470
      %p479 = scmp.eq.s32.totalorder %s39, 0
      %p480 = por %p478, %p479
      %p481 = scmp.ne.s32.totalorder %s469, %s470
      %p482 = scmp.eq.s32.totalorder %s40, 1
      %p483 = por %p481, %p482
      %p485 = scmp.ne.s32.totalorder %s470, %s484
      %p486 = scmp.eq.s32.totalorder %s40, 0
      %p487 = por %p485, %p486
      %s489 = sadd.s32 %s488, 1
      %p492 = scmp.eq.s32.totalorder %s34, 1
      %p493 = scmp.ne.s32.totalorder %s488, %s490
      %p494 = scmp.eq.s32.totalorder %s34, 0
      %p495 = por %p493, %p494
      %p496 = scmp.ne.s32.totalorder %s488, %s490
      %p497 = scmp.eq.s32.totalorder %s39, 1
      %p498 = por %p496, %p497
      %p499 = scmp.ne.s32.totalorder %s490, %s491
      %p500 = scmp.eq.s32.totalorder %s39, 0
      %p501 = por %p499, %p500
      %p502 = scmp.ne.s32.totalorder %s490, %s491
      %p503 = scmp.eq.s32.totalorder %s40, 1
      %p504 = por %p502, %p503
      %p506 = scmp.ne.s32.totalorder %s491, %s505
      %p507 = scmp.eq.s32.totalorder %s40, 0
      %p508 = por %p506, %p507
      %s510 = sadd.s32 %s509, 1
      %p513 = scmp.eq.s32.totalorder %s34, 1
      %p514 = scmp.ne.s32.totalorder %s509, %s511
      %p515 = scmp.eq.s32.totalorder %s34, 0
      %p516 = por %p514, %p515
      %p517 = scmp.ne.s32.totalorder %s509, %s511
      %p518 = scmp.eq.s32.totalorder %s39, 1
      %p519 = por %p517, %p518
      %p520 = scmp.ne.s32.totalorder %s511, %s512
      %p521 = scmp.eq.s32.totalorder %s39, 0
      %p522 = por %p520, %p521
      %p523 = scmp.ne.s32.totalorder %s511, %s512
      %p524 = scmp.eq.s32.totalorder %s40, 1
      %p525 = por %p523, %p524
      %p527 = scmp.ne.s32.totalorder %s512, %s526
      %p528 = scmp.eq.s32.totalorder %s40, 0
      %p529 = por %p527, %p528
      %s531 = sadd.s32 %s530, 1
      %p534 = scmp.eq.s32.totalorder %s34, 1
      %p535 = scmp.ne.s32.totalorder %s530, %s532
      %p536 = scmp.eq.s32.totalorder %s34, 0
      %p537 = por %p535, %p536
      %p538 = scmp.ne.s32.totalorder %s530, %s532
      %p539 = scmp.eq.s32.totalorder %s39, 1
      %p540 = por %p538, %p539
      %p541 = scmp.ne.s32.totalorder %s532, %s533
      %p542 = scmp.eq.s32.totalorder %s39, 0
      %p543 = por %p541, %p542
      %p544 = scmp.ne.s32.totalorder %s532, %s533
      %p545 = scmp.eq.s32.totalorder %s40, 1
      %p546 = por %p544, %p545
      %p548 = scmp.ne.s32.totalorder %s533, %s547
      %p549 = scmp.eq.s32.totalorder %s40, 0
      %p550 = por %p548, %p549
      %s552 = sadd.s32 %s551, 1
      %p555 = scmp.eq.s32.totalorder %s34, 1
      %p556 = scmp.ne.s32.totalorder %s551, %s553
      %p557 = scmp.eq.s32.totalorder %s34, 0
      %p558 = por %p556, %p557
      %p559 = scmp.ne.s32.totalorder %s551, %s553
      %p560 = scmp.eq.s32.totalorder %s39, 1
      %p561 = por %p559, %p560
      %p562 = scmp.ne.s32.totalorder %s553, %s554
      %p563 = scmp.eq.s32.totalorder %s39, 0
      %p564 = por %p562, %p563
      %p565 = scmp.ne.s32.totalorder %s553, %s554
      %p566 = scmp.eq.s32.totalorder %s40, 1
      %p567 = por %p565, %p566
      %p569 = scmp.ne.s32.totalorder %s554, %s568
      %p570 = scmp.eq.s32.totalorder %s40, 0
      %p571 = por %p569, %p570
      %s572 = ssub.s32 %s34, %s41
      %p573 = scmp.eq.s32.totalorder %s572, 0
      %s575 = sadd.s32 %s574, 1
      %s576 = scalar_select %p573, %s574, %s575
      %p579 = pneg %p573
      %p580 = scmp.eq.s32.totalorder %s34, 1
      %p581 = por %p579, %p580
      %p582 = scmp.ne.s32.totalorder %s574, %s577
      %p583 = scmp.eq.s32.totalorder %s34, 0
      %p584 = por %p582, %p583
      %p585 = scmp.ne.s32.totalorder %s574, %s577
      %p586 = scmp.eq.s32.totalorder %s39, 1
      %p587 = por %p585, %p586
      %p588 = scmp.ne.s32.totalorder %s577, %s578
      %p589 = scmp.eq.s32.totalorder %s39, 0
      %p590 = por %p588, %p589
      %p591 = scmp.ne.s32.totalorder %s577, %s578
      %p592 = scmp.eq.s32.totalorder %s40, 1
      %p593 = por %p591, %p592
      %p595 = scmp.ne.s32.totalorder %s578, %s594
      %p596 = scmp.eq.s32.totalorder %s40, 0
      %p597 = por %p595, %p596
      %p598 = scmp.le.s32.totalorder 1, %s34
      %p599 = scmp.lt.s32.totalorder %s34, 3
      %p600 = pnand %p598, %p599
      %p601 = pneg %p600
      // Predicated region
      $region9: #{tpu_custom_call.1} parent=5 // pred_check
        _
      $region10: #{tpu_custom_call.1} parent=5 // pred_check_branch
        %603 = sbr.rel (%p600) target = $region12
      $region11: #{tpu_custom_call.1} parent=5 // pred_region
        %s604 = ssub.s32 %s34, 1
        // Predicated region
        $region13: #{tpu_custom_call.1} parent=11 // pred_check
          %p605 = pneg %p81
        $region14: #{tpu_custom_call.1} parent=11 // pred_check_branch
          %607 = sbr.rel (%p605) target = $region16
        $region15: #{tpu_custom_call.1} parent=11 // pred_region
          _
        $region16: #{tpu_custom_call.1} parent=11 // pred_fallthru
          _
        // Predicated region
        $region17: #{tpu_custom_call.1} parent=11 // pred_check
          %p608 = pneg %p102
        $region18: #{tpu_custom_call.1} parent=11 // pred_check_branch
          %610 = sbr.rel (%p608) target = $region20
        $region19: #{tpu_custom_call.1} parent=11 // pred_region
          _
        $region20: #{tpu_custom_call.1} parent=11 // pred_fallthru
          _
        // Predicated region
        $region21: #{tpu_custom_call.1} parent=11 // pred_check
          %p611 = pneg %p123
        $region22: #{tpu_custom_call.1} parent=11 // pred_check_branch
          %613 = sbr.rel (%p611) target = $region24
        $region23: #{tpu_custom_call.1} parent=11 // pred_region
          _
        $region24: #{tpu_custom_call.1} parent=11 // pred_fallthru
          _
        // Predicated region
        $region25: #{tpu_custom_call.1} parent=11 // pred_check
          %p614 = pneg %p144
        $region26: #{tpu_custom_call.1} parent=11 // pred_check_branch
          %616 = sbr.rel (%p614) target = $region28
        $region27: #{tpu_custom_call.1} parent=11 // pred_region
          _
        $region28: #{tpu_custom_call.1} parent=11 // pred_fallthru
          _
        // Predicated region
        $region29: #{tpu_custom_call.1} parent=11 // pred_check
          %p617 = pneg %p165
        $region30: #{tpu_custom_call.1} parent=11 // pred_check_branch
          %619 = sbr.rel (%p617) target = $region32
        $region31: #{tpu_custom_call.1} parent=11 // pred_region
          _
        $region32: #{tpu_custom_call.1} parent=11 // pred_fallthru
          _
        // Predicated region
        $region33: #{tpu_custom_call.1} parent=11 // pred_check
          %p620 = pneg %p186
        $region34: #{tpu_custom_call.1} parent=11 // pred_check_branch
          %622 = sbr.rel (%p620) target = $region36
        $region35: #{tpu_custom_call.1} parent=11 // pred_region
          _
        $region36: #{tpu_custom_call.1} parent=11 // pred_fallthru
          _
        // Predicated region
        $region37: #{tpu_custom_call.1} parent=11 // pred_check
          %p623 = pneg %p207
        $region38: #{tpu_custom_call.1} parent=11 // pred_check_branch
          %625 = sbr.rel (%p623) target = $region40
        $region39: #{tpu_custom_call.1} parent=11 // pred_region
          _
        $region40: #{tpu_custom_call.1} parent=11 // pred_fallthru
          _
        // Predicated region
        $region41: #{tpu_custom_call.1} parent=11 // pred_check
          %p626 = pneg %p228
        $region42: #{tpu_custom_call.1} parent=11 // pred_check_branch
          %628 = sbr.rel (%p626) target = $region44
        $region43: #{tpu_custom_call.1} parent=11 // pred_region
          _
        $region44: #{tpu_custom_call.1} parent=11 // pred_fallthru
          _
        // Predicated region
        $region45: #{tpu_custom_call.1} parent=11 // pred_check
          %p629 = pneg %p249
        $region46: #{tpu_custom_call.1} parent=11 // pred_check_branch
          %631 = sbr.rel (%p629) target = $region48
        $region47: #{tpu_custom_call.1} parent=11 // pred_region
          %s633 = ssub.s32 7168, 7168
          %634 = vsyncadd [#allocation4], %s633
          %s635 = sshll.u32 [#allocation3], 4
          %s636 = int_to_ptr.vmem [resolvable:$true] %s635
          %641 = dma.hbm_to_vmem [thread:$0]  %s9, 7168, %s636, [#allocation4], 128, 128, 8
        $region48: #{tpu_custom_call.1} parent=11 // pred_fallthru
          _
        // Predicated region
        $region49: #{tpu_custom_call.1} parent=11 // pred_check
          %p642 = pneg %p270
        $region50: #{tpu_custom_call.1} parent=11 // pred_check_branch
          %644 = sbr.rel (%p642) target = $region52
        $region51: #{tpu_custom_call.1} parent=11 // pred_region
          _
        $region52: #{tpu_custom_call.1} parent=11 // pred_fallthru
          _
        // Predicated region
        $region53: #{tpu_custom_call.1} parent=11 // pred_check
          %p645 = pneg %p291
        $region54: #{tpu_custom_call.1} parent=11 // pred_check_branch
          %647 = sbr.rel (%p645) target = $region56
        $region55: #{tpu_custom_call.1} parent=11 // pred_region
          %s649 = ssub.s32 10240, 10240
          %650 = vsyncadd [#allocation6], %s649
          %s651 = sshll.u32 [#allocation5], 4
          %s652 = int_to_ptr.vmem [resolvable:$true] %s651
          %657 = dma.hbm_to_vmem [thread:$0]  %s11, 10240, %s652, [#allocation6], 128, 128, 8
        $region56: #{tpu_custom_call.1} parent=11 // pred_fallthru
          _
        // Predicated region
        $region57: #{tpu_custom_call.1} parent=11 // pred_check
          %p658 = pneg %p312
        $region58: #{tpu_custom_call.1} parent=11 // pred_check_branch
          %660 = sbr.rel (%p658) target = $region60
        $region59: #{tpu_custom_call.1} parent=11 // pred_region
          _
        $region60: #{tpu_custom_call.1} parent=11 // pred_fallthru
          _
        // Predicated region
        $region61: #{tpu_custom_call.1} parent=11 // pred_check
          %p661 = pneg %p333
        $region62: #{tpu_custom_call.1} parent=11 // pred_check_branch
          %663 = sbr.rel (%p661) target = $region64
        $region63: #{tpu_custom_call.1} parent=11 // pred_region
          %s665 = ssub.s32 6144, 6144
          %666 = vsyncadd [#allocation6], %s665
          %s667 = sshll.u32 [#allocation7], 4
          %s668 = int_to_ptr.vmem [resolvable:$true] %s667
          %673 = dma.hbm_to_vmem [thread:$0]  %s13, 6144, %s668, [#allocation6], 128, 128, 8
        $region64: #{tpu_custom_call.1} parent=11 // pred_fallthru
          _
        // Predicated region
        $region65: #{tpu_custom_call.1} parent=11 // pred_check
          %p674 = pneg %p354
        $region66: #{tpu_custom_call.1} parent=11 // pred_check_branch
          %676 = sbr.rel (%p674) target = $region68
        $region67: #{tpu_custom_call.1} parent=11 // pred_region
          _
        $region68: #{tpu_custom_call.1} parent=11 // pred_fallthru
          _
        // Predicated region
        $region69: #{tpu_custom_call.1} parent=11 // pred_check
          %p677 = pneg %p375
        $region70: #{tpu_custom_call.1} parent=11 // pred_check_branch
          %679 = sbr.rel (%p677) target = $region72
        $region71: #{tpu_custom_call.1} parent=11 // pred_region
          _
        $region72: #{tpu_custom_call.1} parent=11 // pred_fallthru
          _
        // Predicated region
        $region73: #{tpu_custom_call.1} parent=11 // pred_check
          %p680 = pneg %p396
        $region74: #{tpu_custom_call.1} parent=11 // pred_check_branch
          %682 = sbr.rel (%p680) target = $region76
        $region75: #{tpu_custom_call.1} parent=11 // pred_region
          _
        $region76: #{tpu_custom_call.1} parent=11 // pred_fallthru
          _
        // Predicated region
        $region77: #{tpu_custom_call.1} parent=11 // pred_check
          %p683 = pneg %p417
        $region78: #{tpu_custom_call.1} parent=11 // pred_check_branch
          %685 = sbr.rel (%p683) target = $region80
        $region79: #{tpu_custom_call.1} parent=11 // pred_region
          _
        $region80: #{tpu_custom_call.1} parent=11 // pred_fallthru
          _
        // Predicated region
        $region81: #{tpu_custom_call.1} parent=11 // pred_check
          %p686 = pneg %p438
        $region82: #{tpu_custom_call.1} parent=11 // pred_check_branch
          %688 = sbr.rel (%p686) target = $region84
        $region83: #{tpu_custom_call.1} parent=11 // pred_region
          _
        $region84: #{tpu_custom_call.1} parent=11 // pred_fallthru
          _
        // Predicated region
        $region85: #{tpu_custom_call.1} parent=11 // pred_check
          %p689 = pneg %p459
        $region86: #{tpu_custom_call.1} parent=11 // pred_check_branch
          %691 = sbr.rel (%p689) target = $region88
        $region87: #{tpu_custom_call.1} parent=11 // pred_region
          %s693 = ssub.s32 10240, 10240
          %694 = vsyncadd [#allocation9], %s693
          %s695 = sshll.u32 [#allocation8], 4
          %s696 = int_to_ptr.vmem [resolvable:$true] %s695
          %701 = dma.hbm_to_vmem [thread:$0]  %s19, 10240, %s696, [#allocation9], 128, 128, 8
        $region88: #{tpu_custom_call.1} parent=11 // pred_fallthru
          _
        // Predicated region
        $region89: #{tpu_custom_call.1} parent=11 // pred_check
          %p702 = pneg %p480
        $region90: #{tpu_custom_call.1} parent=11 // pred_check_branch
          %704 = sbr.rel (%p702) target = $region92
        $region91: #{tpu_custom_call.1} parent=11 // pred_region
          _
        $region92: #{tpu_custom_call.1} parent=11 // pred_fallthru
          _
        // Predicated region
        $region93: #{tpu_custom_call.1} parent=11 // pred_check
          %p705 = pneg %p501
        $region94: #{tpu_custom_call.1} parent=11 // pred_check_branch
          %707 = sbr.rel (%p705) target = $region96
        $region95: #{tpu_custom_call.1} parent=11 // pred_region
          %s709 = ssub.s32 6144, 6144
          %710 = vsyncadd [#allocation9], %s709
          %s711 = sshll.u32 [#allocation10], 4
          %s712 = int_to_ptr.vmem [resolvable:$true] %s711
          %717 = dma.hbm_to_vmem [thread:$0]  %s21, 6144, %s712, [#allocation9], 128, 128, 8
        $region96: #{tpu_custom_call.1} parent=11 // pred_fallthru
          _
        // Predicated region
        $region97: #{tpu_custom_call.1} parent=11 // pred_check
          %p718 = pneg %p522
        $region98: #{tpu_custom_call.1} parent=11 // pred_check_branch
          %720 = sbr.rel (%p718) target = $region100
        $region99: #{tpu_custom_call.1} parent=11 // pred_region
          _
        $region100: #{tpu_custom_call.1} parent=11 // pred_fallthru
          _
        // Predicated region
        $region101: #{tpu_custom_call.1} parent=11 // pred_check
          %p721 = pneg %p543
        $region102: #{tpu_custom_call.1} parent=11 // pred_check_branch
          %723 = sbr.rel (%p721) target = $region104
        $region103: #{tpu_custom_call.1} parent=11 // pred_region
          _
        $region104: #{tpu_custom_call.1} parent=11 // pred_fallthru
          _
        // Predicated region
        $region105: #{tpu_custom_call.1} parent=11 // pred_check
          %p724 = pneg %p564
        $region106: #{tpu_custom_call.1} parent=11 // pred_check_branch
          %726 = sbr.rel (%p724) target = $region108
        $region107: #{tpu_custom_call.1} parent=11 // pred_region
          _
        $region108: #{tpu_custom_call.1} parent=11 // pred_fallthru
          _
      $region12: #{tpu_custom_call.1} parent=5 // pred_fallthru
        _
      %p727 = scmp.lt.s32.totalorder %s34, 2
      // Predicated region
      $region109: #{tpu_custom_call.1} parent=5 // pred_check
        %p728 = pneg %p727
      $region110: #{tpu_custom_call.1} parent=5 // pred_check_branch
        %730 = sbr.rel (%p728) target = $region112
      $region111: #{tpu_custom_call.1} parent=5 // pred_region
        // Predicated region
        $region113: #{tpu_custom_call.1} parent=111 // pred_check
          %p731 = pneg %p54
        $region114: #{tpu_custom_call.1} parent=111 // pred_check_branch
          %733 = sbr.rel (%p731) target = $region116
        $region115: #{tpu_custom_call.1} parent=111 // pred_region
          %s734 = smul.u32 16, %s34
          %p735 = scmp.lt.s32.totalorder %s734, 31
          %s736 = scalar_select %p735, %s734, 31
          %s737 = smul.addr %s736, 8
          %s738 = scalar_lea.vmem %s0, %s737
          %s739 = smul.u32 16, %s34
        $region116: #{tpu_custom_call.1} parent=111 // pred_fallthru
          _
      $region112: #{tpu_custom_call.1} parent=5 // pred_fallthru
        _
      %p740 = scmp.le.s32.totalorder 1, %s34
      %p741 = scmp.lt.s32.totalorder %s34, 3
      %p742 = pnand %p740, %p741
      %p743 = pneg %p742
      // Predicated region
      $region117: #{tpu_custom_call.1} parent=5 // pred_check
        _
      $region118: #{tpu_custom_call.1} parent=5 // pred_check_branch
        %745 = sbr.rel (%p742) target = $region120
      $region119: #{tpu_custom_call.1} parent=5 // pred_region
        %s746 = ssub.s32 %s34, 1
        // Predicated region
        $region121: #{tpu_custom_call.1} parent=119 // pred_check
          %p747 = pneg %p249
        $region122: #{tpu_custom_call.1} parent=119 // pred_check_branch
          %749 = sbr.rel (%p747) target = $region124
        $region123: #{tpu_custom_call.1} parent=119 // pred_region
          %750 = dma.done [#allocation4], 7168
        $region124: #{tpu_custom_call.1} parent=119 // pred_fallthru
          _
        // Predicated region
        $region125: #{tpu_custom_call.1} parent=119 // pred_check
          %p751 = pneg %p291
        $region126: #{tpu_custom_call.1} parent=119 // pred_check_branch
          %753 = sbr.rel (%p751) target = $region128
        $region127: #{tpu_custom_call.1} parent=119 // pred_region
          %754 = dma.done [#allocation6], 10240
        $region128: #{tpu_custom_call.1} parent=119 // pred_fallthru
          _
        // Predicated region
        $region129: #{tpu_custom_call.1} parent=119 // pred_check
          %p755 = pneg %p333
        $region130: #{tpu_custom_call.1} parent=119 // pred_check_branch
          %757 = sbr.rel (%p755) target = $region132
        $region131: #{tpu_custom_call.1} parent=119 // pred_region
          %758 = dma.done [#allocation6], 6144
        $region132: #{tpu_custom_call.1} parent=119 // pred_fallthru
          _
        // Predicated region
        $region133: #{tpu_custom_call.1} parent=119 // pred_check
          %p759 = pneg %p459
        $region134: #{tpu_custom_call.1} parent=119 // pred_check_branch
          %761 = sbr.rel (%p759) target = $region136
        $region135: #{tpu_custom_call.1} parent=119 // pred_region
          %762 = dma.done [#allocation9], 10240
        $region136: #{tpu_custom_call.1} parent=119 // pred_fallthru
          _
        // Predicated region
        $region137: #{tpu_custom_call.1} parent=119 // pred_check
          %p763 = pneg %p501
        $region138: #{tpu_custom_call.1} parent=119 // pred_check_branch
          %765 = sbr.rel (%p763) target = $region140
        $region139: #{tpu_custom_call.1} parent=119 // pred_region
          %766 = dma.done [#allocation9], 6144
        $region140: #{tpu_custom_call.1} parent=119 // pred_fallthru
          _
        %s767 = smul.u32 16, %s39
        %p768 = scmp.lt.s32.totalorder %s767, 31
        %s769 = scalar_select %p768, %s767, 31
        %s770 = smul.addr %s769, 8
        %s771 = scalar_lea.vmem %s0, %s770
        %p772 = pneg %p60
        %p773 = pneg %p57
        %p774 = pneg %p81
        %p775 = pneg %p78
        %p776 = pneg %p102
        %p777 = pneg %p99
        %p778 = pneg %p123
        %p779 = pneg %p120
        %p780 = pneg %p144
        %p781 = pneg %p141
        %p782 = pneg %p165
        %p783 = pneg %p162
        %p784 = pneg %p186
        %p785 = pneg %p183
        %p786 = pneg %p207
        %p787 = pneg %p204
        %p788 = pneg %p228
        %p789 = pneg %p225
        %p790 = pneg %p249
        %p791 = pneg %p246
        %p792 = pneg %p270
        %p793 = pneg %p267
        %p794 = pneg %p291
        %p795 = pneg %p288
        %p796 = pneg %p312
        %p797 = pneg %p309
        %p798 = pneg %p333
        %p799 = pneg %p330
        %p800 = pneg %p354
        %p801 = pneg %p351
        %p802 = pneg %p375
        %p803 = pneg %p372
        %p804 = pneg %p396
        %p805 = pneg %p393
        %p806 = pneg %p417
        %p807 = pneg %p414
        %p808 = pneg %p438
        %p809 = pneg %p435
        %p810 = pneg %p459
        %p811 = pneg %p456
        %p812 = pneg %p480
        %p813 = pneg %p477
        %p814 = pneg %p501
        %p815 = pneg %p498
        %p816 = pneg %p522
        %p817 = pneg %p519
        %p818 = pneg %p543
        %p819 = pneg %p540
        %p820 = pneg %p564
        %p821 = pneg %p561
        %p822 = pneg %p590
        %p823 = pneg %p587
        %p824 = scmp.lt.s32.totalorder %s39, 1
        %s825 = scalar_select %p824, %s39, 1
        %s826 = smul.addr %s825, 8
        %s827 = scalar_lea.vmem %s25, %s826
        %s828 = smul.u32 16, %s39
        %p829 = scmp.lt.s32.totalorder %s828, 31
        %s830 = scalar_select %p829, %s828, 31
        %s831 = smul.addr %s830, 8
        %s832 = scalar_lea.vmem %s0, %s831
        %s833 = smul.u32 16, %s39
        %p834 = scmp.lt.s32.totalorder %s39, 1
        %s835 = scalar_select %p834, %s39, 1
        %s836 = smul.addr %s835, 8
        %s837 = scalar_lea.vmem %s25, %s836
        %v838 = vlaneseq
        %v839 = vshrl.u32 %v838, 7
        %v840 = vadd.s32 %v839, 8
        %v841 = vadd.s32 %v839, 16
        %v842 = vadd.s32 %v839, 24
        %v843 = vadd.s32 %v839, 32
        %v844 = vadd.s32 %v839, 40
        %v845 = vadd.s32 %v839, 48
        %v846 = vadd.s32 %v839, 56
        %v847 = vadd.s32 %v839, 64
        %v848 = vadd.s32 %v839, 72
        %v849 = vadd.s32 %v839, 80
        %v850 = vadd.s32 %v839, 88
        %v851 = vadd.s32 %v839, 96
        %v852 = vadd.s32 %v839, 104
        %v853 = vadd.s32 %v839, 112
        %v854 = vadd.s32 %v839, 120
        %v855 = vand.u32 %v839, 15
        %v856 = vand.u32 %v840, 15
        %v857 = vand.u32 %v841, 15
        %v858 = vand.u32 %v842, 15
        %v859 = vand.u32 %v843, 15
        %v860 = vand.u32 %v844, 15
        %v861 = vand.u32 %v845, 15
        %v862 = vand.u32 %v846, 15
        %v863 = vand.u32 %v847, 15
        %v864 = vand.u32 %v848, 15
        %v865 = vand.u32 %v849, 15
        %v866 = vand.u32 %v850, 15
        %v867 = vand.u32 %v851, 15
        %v868 = vand.u32 %v852, 15
        %v869 = vand.u32 %v853, 15
        %v870 = vand.u32 %v854, 15
        %v871 = vadd.s32 %v855, 4294967293
        %v872 = vadd.s32 %v856, 4294967293
        %v873 = vadd.s32 %v857, 4294967293
        %v874 = vadd.s32 %v858, 4294967293
        %v875 = vadd.s32 %v859, 4294967293
        %v876 = vadd.s32 %v860, 4294967293
        %v877 = vadd.s32 %v861, 4294967293
        %v878 = vadd.s32 %v862, 4294967293
        %v879 = vadd.s32 %v863, 4294967293
        %v880 = vadd.s32 %v864, 4294967293
        %v881 = vadd.s32 %v865, 4294967293
        %v882 = vadd.s32 %v866, 4294967293
        %v883 = vadd.s32 %v867, 4294967293
        %v884 = vadd.s32 %v868, 4294967293
        %v885 = vadd.s32 %v869, 4294967293
        %v886 = vadd.s32 %v870, 4294967293
        %vm887 = vcmp.ge.s32.totalorder %v871, 0
        %vm888 = vcmp.ge.s32.totalorder %v872, 0
        %vm889 = vcmp.ge.s32.totalorder %v873, 0
        %vm890 = vcmp.ge.s32.totalorder %v874, 0
        %vm891 = vcmp.ge.s32.totalorder %v875, 0
        %vm892 = vcmp.ge.s32.totalorder %v876, 0
        %vm893 = vcmp.ge.s32.totalorder %v877, 0
        %vm894 = vcmp.ge.s32.totalorder %v878, 0
        %vm895 = vcmp.ge.s32.totalorder %v879, 0
        %vm896 = vcmp.ge.s32.totalorder %v880, 0
        %vm897 = vcmp.ge.s32.totalorder %v881, 0
        %vm898 = vcmp.ge.s32.totalorder %v882, 0
        %vm899 = vcmp.ge.s32.totalorder %v883, 0
        %vm900 = vcmp.ge.s32.totalorder %v884, 0
        %vm901 = vcmp.ge.s32.totalorder %v885, 0
        %vm902 = vcmp.ge.s32.totalorder %v886, 0
        %vm903 = vcmp.lt.s32.totalorder %v871, 16
        %vm904 = vcmp.lt.s32.totalorder %v872, 16
        %vm905 = vcmp.lt.s32.totalorder %v873, 16
        %vm906 = vcmp.lt.s32.totalorder %v874, 16
        %vm907 = vcmp.lt.s32.totalorder %v875, 16
        %vm908 = vcmp.lt.s32.totalorder %v876, 16
        %vm909 = vcmp.lt.s32.totalorder %v877, 16
        %vm910 = vcmp.lt.s32.totalorder %v878, 16
        %vm911 = vcmp.lt.s32.totalorder %v879, 16
        %vm912 = vcmp.lt.s32.totalorder %v880, 16
        %vm913 = vcmp.lt.s32.totalorder %v881, 16
        %vm914 = vcmp.lt.s32.totalorder %v882, 16
        %vm915 = vcmp.lt.s32.totalorder %v883, 16
        %vm916 = vcmp.lt.s32.totalorder %v884, 16
        %vm917 = vcmp.lt.s32.totalorder %v885, 16
        %vm918 = vcmp.lt.s32.totalorder %v886, 16
        %vm919 = vmand %vm887, %vm903
        %vm920 = vmand %vm888, %vm904
        %vm921 = vmand %vm889, %vm905
        %vm922 = vmand %vm890, %vm906
        %vm923 = vmand %vm891, %vm907
        %vm924 = vmand %vm892, %vm908
        %vm925 = vmand %vm893, %vm909
        %vm926 = vmand %vm894, %vm910
        %vm927 = vmand %vm895, %vm911
        %vm928 = vmand %vm896, %vm912
        %vm929 = vmand %vm897, %vm913
        %vm930 = vmand %vm898, %vm914
        %vm931 = vmand %vm899, %vm915
        %vm932 = vmand %vm900, %vm916
        %vm933 = vmand %vm901, %vm917
        %vm934 = vmand %vm902, %vm918
        %v935 = vadd.s32 %v855, 4294967294
        %v936 = vadd.s32 %v856, 4294967294
        %v937 = vadd.s32 %v857, 4294967294
        %v938 = vadd.s32 %v858, 4294967294
        %v939 = vadd.s32 %v859, 4294967294
        %v940 = vadd.s32 %v860, 4294967294
        %v941 = vadd.s32 %v861, 4294967294
        %v942 = vadd.s32 %v862, 4294967294
        %v943 = vadd.s32 %v863, 4294967294
        %v944 = vadd.s32 %v864, 4294967294
        %v945 = vadd.s32 %v865, 4294967294
        %v946 = vadd.s32 %v866, 4294967294
        %v947 = vadd.s32 %v867, 4294967294
        %v948 = vadd.s32 %v868, 4294967294
        %v949 = vadd.s32 %v869, 4294967294
        %v950 = vadd.s32 %v870, 4294967294
        %vm951 = vcmp.ge.s32.totalorder %v935, 0
        %vm952 = vcmp.ge.s32.totalorder %v936, 0
        %vm953 = vcmp.ge.s32.totalorder %v937, 0
        %vm954 = vcmp.ge.s32.totalorder %v938, 0
        %vm955 = vcmp.ge.s32.totalorder %v939, 0
        %vm956 = vcmp.ge.s32.totalorder %v940, 0
        %vm957 = vcmp.ge.s32.totalorder %v941, 0
        %vm958 = vcmp.ge.s32.totalorder %v942, 0
        %vm959 = vcmp.ge.s32.totalorder %v943, 0
        %vm960 = vcmp.ge.s32.totalorder %v944, 0
        %vm961 = vcmp.ge.s32.totalorder %v945, 0
        %vm962 = vcmp.ge.s32.totalorder %v946, 0
        %vm963 = vcmp.ge.s32.totalorder %v947, 0
        %vm964 = vcmp.ge.s32.totalorder %v948, 0
        %vm965 = vcmp.ge.s32.totalorder %v949, 0
        %vm966 = vcmp.ge.s32.totalorder %v950, 0
        %vm967 = vcmp.lt.s32.totalorder %v935, 16
        %vm968 = vcmp.lt.s32.totalorder %v936, 16
        %vm969 = vcmp.lt.s32.totalorder %v937, 16
        %vm970 = vcmp.lt.s32.totalorder %v938, 16
        %vm971 = vcmp.lt.s32.totalorder %v939, 16
        %vm972 = vcmp.lt.s32.totalorder %v940, 16
        %vm973 = vcmp.lt.s32.totalorder %v941, 16
        %vm974 = vcmp.lt.s32.totalorder %v942, 16
        %vm975 = vcmp.lt.s32.totalorder %v943, 16
        %vm976 = vcmp.lt.s32.totalorder %v944, 16
        %vm977 = vcmp.lt.s32.totalorder %v945, 16
        %vm978 = vcmp.lt.s32.totalorder %v946, 16
        %vm979 = vcmp.lt.s32.totalorder %v947, 16
        %vm980 = vcmp.lt.s32.totalorder %v948, 16
        %vm981 = vcmp.lt.s32.totalorder %v949, 16
        %vm982 = vcmp.lt.s32.totalorder %v950, 16
        %vm983 = vmand %vm951, %vm967
        %vm984 = vmand %vm952, %vm968
        %vm985 = vmand %vm953, %vm969
        %vm986 = vmand %vm954, %vm970
        %vm987 = vmand %vm955, %vm971
        %vm988 = vmand %vm956, %vm972
        %vm989 = vmand %vm957, %vm973
        %vm990 = vmand %vm958, %vm974
        %vm991 = vmand %vm959, %vm975
        %vm992 = vmand %vm960, %vm976
        %vm993 = vmand %vm961, %vm977
        %vm994 = vmand %vm962, %vm978
        %vm995 = vmand %vm963, %vm979
        %vm996 = vmand %vm964, %vm980
        %vm997 = vmand %vm965, %vm981
        %vm998 = vmand %vm966, %vm982
        %v999 = vadd.s32 %v855, 4294967295
        %v1000 = vadd.s32 %v856, 4294967295
        %v1001 = vadd.s32 %v857, 4294967295
        %v1002 = vadd.s32 %v858, 4294967295
        %v1003 = vadd.s32 %v859, 4294967295
        %v1004 = vadd.s32 %v860, 4294967295
        %v1005 = vadd.s32 %v861, 4294967295
        %v1006 = vadd.s32 %v862, 4294967295
        %v1007 = vadd.s32 %v863, 4294967295
        %v1008 = vadd.s32 %v864, 4294967295
        %v1009 = vadd.s32 %v865, 4294967295
        %v1010 = vadd.s32 %v866, 4294967295
        %v1011 = vadd.s32 %v867, 4294967295
        %v1012 = vadd.s32 %v868, 4294967295
        %v1013 = vadd.s32 %v869, 4294967295
        %v1014 = vadd.s32 %v870, 4294967295
        %vm1015 = vcmp.ge.s32.totalorder %v999, 0
        %vm1016 = vcmp.ge.s32.totalorder %v1000, 0
        %vm1017 = vcmp.ge.s32.totalorder %v1001, 0
        %vm1018 = vcmp.ge.s32.totalorder %v1002, 0
        %vm1019 = vcmp.ge.s32.totalorder %v1003, 0
        %vm1020 = vcmp.ge.s32.totalorder %v1004, 0
        %vm1021 = vcmp.ge.s32.totalorder %v1005, 0
        %vm1022 = vcmp.ge.s32.totalorder %v1006, 0
        %vm1023 = vcmp.ge.s32.totalorder %v1007, 0
        %vm1024 = vcmp.ge.s32.totalorder %v1008, 0
        %vm1025 = vcmp.ge.s32.totalorder %v1009, 0
        %vm1026 = vcmp.ge.s32.totalorder %v1010, 0
        %vm1027 = vcmp.ge.s32.totalorder %v1011, 0
        %vm1028 = vcmp.ge.s32.totalorder %v1012, 0
        %vm1029 = vcmp.ge.s32.totalorder %v1013, 0
        %vm1030 = vcmp.ge.s32.totalorder %v1014, 0
        %vm1031 = vcmp.lt.s32.totalorder %v999, 16
        %vm1032 = vcmp.lt.s32.totalorder %v1000, 16
        %vm1033 = vcmp.lt.s32.totalorder %v1001, 16
        %vm1034 = vcmp.lt.s32.totalorder %v1002, 16
        %vm1035 = vcmp.lt.s32.totalorder %v1003, 16
        %vm1036 = vcmp.lt.s32.totalorder %v1004, 16
        %vm1037 = vcmp.lt.s32.totalorder %v1005, 16
        %vm1038 = vcmp.lt.s32.totalorder %v1006, 16
        %vm1039 = vcmp.lt.s32.totalorder %v1007, 16
        %vm1040 = vcmp.lt.s32.totalorder %v1008, 16
        %vm1041 = vcmp.lt.s32.totalorder %v1009, 16
        %vm1042 = vcmp.lt.s32.totalorder %v1010, 16
        %vm1043 = vcmp.lt.s32.totalorder %v1011, 16
        %vm1044 = vcmp.lt.s32.totalorder %v1012, 16
        %vm1045 = vcmp.lt.s32.totalorder %v1013, 16
        %vm1046 = vcmp.lt.s32.totalorder %v1014, 16
        %vm1047 = vmand %vm1015, %vm1031
        %vm1048 = vmand %vm1016, %vm1032
        %vm1049 = vmand %vm1017, %vm1033
        %vm1050 = vmand %vm1018, %vm1034
        %vm1051 = vmand %vm1019, %vm1035
        %vm1052 = vmand %vm1020, %vm1036
        %vm1053 = vmand %vm1021, %vm1037
        %vm1054 = vmand %vm1022, %vm1038
        %vm1055 = vmand %vm1023, %vm1039
        %vm1056 = vmand %vm1024, %vm1040
        %vm1057 = vmand %vm1025, %vm1041
        %vm1058 = vmand %vm1026, %vm1042
        %vm1059 = vmand %vm1027, %vm1043
        %vm1060 = vmand %vm1028, %vm1044
        %vm1061 = vmand %vm1029, %vm1045
        %vm1062 = vmand %vm1030, %vm1046
        %v1063 = vadd.s32 %v855, 1
        %v1064 = vadd.s32 %v856, 1
        %v1065 = vadd.s32 %v857, 1
        %v1066 = vadd.s32 %v858, 1
        %v1067 = vadd.s32 %v859, 1
        %v1068 = vadd.s32 %v860, 1
        %v1069 = vadd.s32 %v861, 1
        %v1070 = vadd.s32 %v862, 1
        %v1071 = vadd.s32 %v863, 1
        %v1072 = vadd.s32 %v864, 1
        %v1073 = vadd.s32 %v865, 1
        %v1074 = vadd.s32 %v866, 1
        %v1075 = vadd.s32 %v867, 1
        %v1076 = vadd.s32 %v868, 1
        %v1077 = vadd.s32 %v869, 1
        %v1078 = vadd.s32 %v870, 1
        %vm1079 = vcmp.ge.s32.totalorder %v1063, 0
        %vm1080 = vcmp.ge.s32.totalorder %v1064, 0
        %vm1081 = vcmp.ge.s32.totalorder %v1065, 0
        %vm1082 = vcmp.ge.s32.totalorder %v1066, 0
        %vm1083 = vcmp.ge.s32.totalorder %v1067, 0
        %vm1084 = vcmp.ge.s32.totalorder %v1068, 0
        %vm1085 = vcmp.ge.s32.totalorder %v1069, 0
        %vm1086 = vcmp.ge.s32.totalorder %v1070, 0
        %vm1087 = vcmp.ge.s32.totalorder %v1071, 0
        %vm1088 = vcmp.ge.s32.totalorder %v1072, 0
        %vm1089 = vcmp.ge.s32.totalorder %v1073, 0
        %vm1090 = vcmp.ge.s32.totalorder %v1074, 0
        %vm1091 = vcmp.ge.s32.totalorder %v1075, 0
        %vm1092 = vcmp.ge.s32.totalorder %v1076, 0
        %vm1093 = vcmp.ge.s32.totalorder %v1077, 0
        %vm1094 = vcmp.ge.s32.totalorder %v1078, 0
        %vm1095 = vcmp.lt.s32.totalorder %v1063, 16
        %vm1096 = vcmp.lt.s32.totalorder %v1064, 16
        %vm1097 = vcmp.lt.s32.totalorder %v1065, 16
        %vm1098 = vcmp.lt.s32.totalorder %v1066, 16
        %vm1099 = vcmp.lt.s32.totalorder %v1067, 16
        %vm1100 = vcmp.lt.s32.totalorder %v1068, 16
        %vm1101 = vcmp.lt.s32.totalorder %v1069, 16
        %vm1102 = vcmp.lt.s32.totalorder %v1070, 16
        %vm1103 = vcmp.lt.s32.totalorder %v1071, 16
        %vm1104 = vcmp.lt.s32.totalorder %v1072, 16
        %vm1105 = vcmp.lt.s32.totalorder %v1073, 16
        %vm1106 = vcmp.lt.s32.totalorder %v1074, 16
        %vm1107 = vcmp.lt.s32.totalorder %v1075, 16
        %vm1108 = vcmp.lt.s32.totalorder %v1076, 16
        %vm1109 = vcmp.lt.s32.totalorder %v1077, 16
        %vm1110 = vcmp.lt.s32.totalorder %v1078, 16
        %vm1111 = vmand %vm1079, %vm1095
        %vm1112 = vmand %vm1080, %vm1096
        %vm1113 = vmand %vm1081, %vm1097
        %vm1114 = vmand %vm1082, %vm1098
        %vm1115 = vmand %vm1083, %vm1099
        %vm1116 = vmand %vm1084, %vm1100
        %vm1117 = vmand %vm1085, %vm1101
        %vm1118 = vmand %vm1086, %vm1102
        %vm1119 = vmand %vm1087, %vm1103
        %vm1120 = vmand %vm1088, %vm1104
        %vm1121 = vmand %vm1089, %vm1105
        %vm1122 = vmand %vm1090, %vm1106
        %vm1123 = vmand %vm1091, %vm1107
        %vm1124 = vmand %vm1092, %vm1108
        %vm1125 = vmand %vm1093, %vm1109
        %vm1126 = vmand %vm1094, %vm1110
        %v1127 = vadd.s32 %v855, 2
        %v1128 = vadd.s32 %v856, 2
        %v1129 = vadd.s32 %v857, 2
        %v1130 = vadd.s32 %v858, 2
        %v1131 = vadd.s32 %v859, 2
        %v1132 = vadd.s32 %v860, 2
        %v1133 = vadd.s32 %v861, 2
        %v1134 = vadd.s32 %v862, 2
        %v1135 = vadd.s32 %v863, 2
        %v1136 = vadd.s32 %v864, 2
        %v1137 = vadd.s32 %v865, 2
        %v1138 = vadd.s32 %v866, 2
        %v1139 = vadd.s32 %v867, 2
        %v1140 = vadd.s32 %v868, 2
        %v1141 = vadd.s32 %v869, 2
        %v1142 = vadd.s32 %v870, 2
        %vm1143 = vcmp.ge.s32.totalorder %v1127, 0
        %vm1144 = vcmp.ge.s32.totalorder %v1128, 0
        %vm1145 = vcmp.ge.s32.totalorder %v1129, 0
        %vm1146 = vcmp.ge.s32.totalorder %v1130, 0
        %vm1147 = vcmp.ge.s32.totalorder %v1131, 0
        %vm1148 = vcmp.ge.s32.totalorder %v1132, 0
        %vm1149 = vcmp.ge.s32.totalorder %v1133, 0
        %vm1150 = vcmp.ge.s32.totalorder %v1134, 0
        %vm1151 = vcmp.ge.s32.totalorder %v1135, 0
        %vm1152 = vcmp.ge.s32.totalorder %v1136, 0
        %vm1153 = vcmp.ge.s32.totalorder %v1137, 0
        %vm1154 = vcmp.ge.s32.totalorder %v1138, 0
        %vm1155 = vcmp.ge.s32.totalorder %v1139, 0
        %vm1156 = vcmp.ge.s32.totalorder %v1140, 0
        %vm1157 = vcmp.ge.s32.totalorder %v1141, 0
        %vm1158 = vcmp.ge.s32.totalorder %v1142, 0
        %vm1159 = vcmp.lt.s32.totalorder %v1127, 16
        %vm1160 = vcmp.lt.s32.totalorder %v1128, 16
        %vm1161 = vcmp.lt.s32.totalorder %v1129, 16
        %vm1162 = vcmp.lt.s32.totalorder %v1130, 16
        %vm1163 = vcmp.lt.s32.totalorder %v1131, 16
        %vm1164 = vcmp.lt.s32.totalorder %v1132, 16
        %vm1165 = vcmp.lt.s32.totalorder %v1133, 16
        %vm1166 = vcmp.lt.s32.totalorder %v1134, 16
        %vm1167 = vcmp.lt.s32.totalorder %v1135, 16
        %vm1168 = vcmp.lt.s32.totalorder %v1136, 16
        %vm1169 = vcmp.lt.s32.totalorder %v1137, 16
        %vm1170 = vcmp.lt.s32.totalorder %v1138, 16
        %vm1171 = vcmp.lt.s32.totalorder %v1139, 16
        %vm1172 = vcmp.lt.s32.totalorder %v1140, 16
        %vm1173 = vcmp.lt.s32.totalorder %v1141, 16
        %vm1174 = vcmp.lt.s32.totalorder %v1142, 16
        %vm1175 = vmand %vm1143, %vm1159
        %vm1176 = vmand %vm1144, %vm1160
        %vm1177 = vmand %vm1145, %vm1161
        %vm1178 = vmand %vm1146, %vm1162
        %vm1179 = vmand %vm1147, %vm1163
        %vm1180 = vmand %vm1148, %vm1164
        %vm1181 = vmand %vm1149, %vm1165
        %vm1182 = vmand %vm1150, %vm1166
        %vm1183 = vmand %vm1151, %vm1167
        %vm1184 = vmand %vm1152, %vm1168
        %vm1185 = vmand %vm1153, %vm1169
        %vm1186 = vmand %vm1154, %vm1170
        %vm1187 = vmand %vm1155, %vm1171
        %vm1188 = vmand %vm1156, %vm1172
        %vm1189 = vmand %vm1157, %vm1173
        %vm1190 = vmand %vm1158, %vm1174
        %v1191 = vadd.s32 %v855, 3
        %v1192 = vadd.s32 %v856, 3
        %v1193 = vadd.s32 %v857, 3
        %v1194 = vadd.s32 %v858, 3
        %v1195 = vadd.s32 %v859, 3
        %v1196 = vadd.s32 %v860, 3
        %v1197 = vadd.s32 %v861, 3
        %v1198 = vadd.s32 %v862, 3
        %v1199 = vadd.s32 %v863, 3
        %v1200 = vadd.s32 %v864, 3
        %v1201 = vadd.s32 %v865, 3
        %v1202 = vadd.s32 %v866, 3
        %v1203 = vadd.s32 %v867, 3
        %v1204 = vadd.s32 %v868, 3
        %v1205 = vadd.s32 %v869, 3
        %v1206 = vadd.s32 %v870, 3
        %vm1207 = vcmp.ge.s32.totalorder %v1191, 0
        %vm1208 = vcmp.ge.s32.totalorder %v1192, 0
        %vm1209 = vcmp.ge.s32.totalorder %v1193, 0
        %vm1210 = vcmp.ge.s32.totalorder %v1194, 0
        %vm1211 = vcmp.ge.s32.totalorder %v1195, 0
        %vm1212 = vcmp.ge.s32.totalorder %v1196, 0
        %vm1213 = vcmp.ge.s32.totalorder %v1197, 0
        %vm1214 = vcmp.ge.s32.totalorder %v1198, 0
        %vm1215 = vcmp.ge.s32.totalorder %v1199, 0
        %vm1216 = vcmp.ge.s32.totalorder %v1200, 0
        %vm1217 = vcmp.ge.s32.totalorder %v1201, 0
        %vm1218 = vcmp.ge.s32.totalorder %v1202, 0
        %vm1219 = vcmp.ge.s32.totalorder %v1203, 0
        %vm1220 = vcmp.ge.s32.totalorder %v1204, 0
        %vm1221 = vcmp.ge.s32.totalorder %v1205, 0
        %vm1222 = vcmp.ge.s32.totalorder %v1206, 0
        %vm1223 = vcmp.lt.s32.totalorder %v1191, 16
        %vm1224 = vcmp.lt.s32.totalorder %v1192, 16
        %vm1225 = vcmp.lt.s32.totalorder %v1193, 16
        %vm1226 = vcmp.lt.s32.totalorder %v1194, 16
        %vm1227 = vcmp.lt.s32.totalorder %v1195, 16
        %vm1228 = vcmp.lt.s32.totalorder %v1196, 16
        %vm1229 = vcmp.lt.s32.totalorder %v1197, 16
        %vm1230 = vcmp.lt.s32.totalorder %v1198, 16
        %vm1231 = vcmp.lt.s32.totalorder %v1199, 16
        %vm1232 = vcmp.lt.s32.totalorder %v1200, 16
        %vm1233 = vcmp.lt.s32.totalorder %v1201, 16
        %vm1234 = vcmp.lt.s32.totalorder %v1202, 16
        %vm1235 = vcmp.lt.s32.totalorder %v1203, 16
        %vm1236 = vcmp.lt.s32.totalorder %v1204, 16
        %vm1237 = vcmp.lt.s32.totalorder %v1205, 16
        %vm1238 = vcmp.lt.s32.totalorder %v1206, 16
        %vm1239 = vmand %vm1207, %vm1223
        %vm1240 = vmand %vm1208, %vm1224
        %vm1241 = vmand %vm1209, %vm1225
        %vm1242 = vmand %vm1210, %vm1226
        %vm1243 = vmand %vm1211, %vm1227
        %vm1244 = vmand %vm1212, %vm1228
        %vm1245 = vmand %vm1213, %vm1229
        %vm1246 = vmand %vm1214, %vm1230
        %vm1247 = vmand %vm1215, %vm1231
        %vm1248 = vmand %vm1216, %vm1232
        %vm1249 = vmand %vm1217, %vm1233
        %vm1250 = vmand %vm1218, %vm1234
        %vm1251 = vmand %vm1219, %vm1235
        %vm1252 = vmand %vm1220, %vm1236
        %vm1253 = vmand %vm1221, %vm1237
        %vm1254 = vmand %vm1222, %vm1238
        %v1255 = vld [vmem:[%s832] sm:$0xff]
        %v1256 = vld [vmem:[%s832 + $0x8] sm:$0xff]
        %v1257 = vld [vmem:[%s832 + $0x10] sm:$0xff]
        %v1258 = vld [vmem:[%s832 + $0x18] sm:$0xff]
        %v1259 = vld [vmem:[%s832 + $0x20] sm:$0xff]
        %v1260 = vld [vmem:[%s832 + $0x28] sm:$0xff]
        %v1261 = vld [vmem:[%s832 + $0x30] sm:$0xff]
        %v1262 = vld [vmem:[%s832 + $0x38] sm:$0xff]
        %v1263 = vld [vmem:[%s832 + $0x40] sm:$0xff]
        %v1264 = vld [vmem:[%s832 + $0x48] sm:$0xff]
        %v1265 = vld [vmem:[%s832 + $0x50] sm:$0xff]
        %v1266 = vld [vmem:[%s832 + $0x58] sm:$0xff]
        %v1267 = vld [vmem:[%s832 + $0x60] sm:$0xff]
        %v1268 = vld [vmem:[%s832 + $0x68] sm:$0xff]
        %v1269 = vld [vmem:[%s832 + $0x70] sm:$0xff]
        %v1270 = vld [vmem:[%s832 + $0x78] sm:$0xff]
        %vm1271 = vcmask 31744
        %1272 = vst.msk [vmem:[#allocation2 + $0x3] sm:$0xff] %vm1271, %v1255
        %1273 = vst.msk [vmem:[#allocation2 + $0xb] sm:$0xff] %vm1271, %v1256
        %1274 = vst.msk [vmem:[#allocation2 + $0x13] sm:$0xff] %vm1271, %v1257
        %1275 = vst.msk [vmem:[#allocation2 + $0x1b] sm:$0xff] %vm1271, %v1258
        %1276 = vst.msk [vmem:[#allocation2 + $0x23] sm:$0xff] %vm1271, %v1259
        %1277 = vst.msk [vmem:[#allocation2 + $0x2b] sm:$0xff] %vm1271, %v1260
        %1278 = vst.msk [vmem:[#allocation2 + $0x33] sm:$0xff] %vm1271, %v1261
        %1279 = vst.msk [vmem:[#allocation2 + $0x3b] sm:$0xff] %vm1271, %v1262
        %1280 = vst.msk [vmem:[#allocation2 + $0x43] sm:$0xff] %vm1271, %v1263
        %1281 = vst.msk [vmem:[#allocation2 + $0x4b] sm:$0xff] %vm1271, %v1264
        %1282 = vst.msk [vmem:[#allocation2 + $0x53] sm:$0xff] %vm1271, %v1265
        %1283 = vst.msk [vmem:[#allocation2 + $0x5b] sm:$0xff] %vm1271, %v1266
        %1284 = vst.msk [vmem:[#allocation2 + $0x63] sm:$0xff] %vm1271, %v1267
        %1285 = vst.msk [vmem:[#allocation2 + $0x6b] sm:$0xff] %vm1271, %v1268
        %1286 = vst.msk [vmem:[#allocation2 + $0x73] sm:$0xff] %vm1271, %v1269
        %1287 = vst.msk [vmem:[#allocation2 + $0x7b] sm:$0xff] %vm1271, %v1270
        %v1288 = vld [vmem:[#allocation2] sm:$0xff]
        %v1289 = vld [vmem:[#allocation2 + $0x8] sm:$0xff]
        %v1290 = vld [vmem:[#allocation2 + $0x10] sm:$0xff]
        %v1291 = vld [vmem:[#allocation2 + $0x18] sm:$0xff]
        %v1292 = vld [vmem:[#allocation2 + $0x20] sm:$0xff]
        %v1293 = vld [vmem:[#allocation2 + $0x28] sm:$0xff]
        %v1294 = vld [vmem:[#allocation2 + $0x30] sm:$0xff]
        %v1295 = vld [vmem:[#allocation2 + $0x38] sm:$0xff]
        %v1296 = vld [vmem:[#allocation2 + $0x40] sm:$0xff]
        %v1297 = vld [vmem:[#allocation2 + $0x48] sm:$0xff]
        %v1298 = vld [vmem:[#allocation2 + $0x50] sm:$0xff]
        %v1299 = vld [vmem:[#allocation2 + $0x58] sm:$0xff]
        %v1300 = vld [vmem:[#allocation2 + $0x60] sm:$0xff]
        %v1301 = vld [vmem:[#allocation2 + $0x68] sm:$0xff]
        %v1302 = vld [vmem:[#allocation2 + $0x70] sm:$0xff]
        %v1303 = vld [vmem:[#allocation2 + $0x78] sm:$0xff]
        %v1304 = vsel %vm919, 1, 0
        %v1305 = vsel %vm920, 1, 0
        %v1306 = vsel %vm921, 1, 0
        %v1307 = vsel %vm922, 1, 0
        %v1308 = vsel %vm923, 1, 0
        %v1309 = vsel %vm924, 1, 0
        %v1310 = vsel %vm925, 1, 0
        %v1311 = vsel %vm926, 1, 0
        %v1312 = vsel %vm927, 1, 0
        %v1313 = vsel %vm928, 1, 0
        %v1314 = vsel %vm929, 1, 0
        %v1315 = vsel %vm930, 1, 0
        %v1316 = vsel %vm931, 1, 0
        %v1317 = vsel %vm932, 1, 0
        %v1318 = vsel %vm933, 1, 0
        %v1319 = vsel %vm934, 1, 0
        %vm1320 = vcmp.eq.s32.totalorder %v1304, 1
        %vm1321 = vcmp.eq.s32.totalorder %v1305, 1
        %vm1322 = vcmp.eq.s32.totalorder %v1306, 1
        %vm1323 = vcmp.eq.s32.totalorder %v1307, 1
        %vm1324 = vcmp.eq.s32.totalorder %v1308, 1
        %vm1325 = vcmp.eq.s32.totalorder %v1309, 1
        %vm1326 = vcmp.eq.s32.totalorder %v1310, 1
        %vm1327 = vcmp.eq.s32.totalorder %v1311, 1
        %vm1328 = vcmp.eq.s32.totalorder %v1312, 1
        %vm1329 = vcmp.eq.s32.totalorder %v1313, 1
        %vm1330 = vcmp.eq.s32.totalorder %v1314, 1
        %vm1331 = vcmp.eq.s32.totalorder %v1315, 1
        %vm1332 = vcmp.eq.s32.totalorder %v1316, 1
        %vm1333 = vcmp.eq.s32.totalorder %v1317, 1
        %vm1334 = vcmp.eq.s32.totalorder %v1318, 1
        %vm1335 = vcmp.eq.s32.totalorder %v1319, 1
        %v1336 = vsel %vm1320, %v1288, 0.0
        %v1337 = vsel %vm1321, %v1289, 0.0
        %v1338 = vsel %vm1322, %v1290, 0.0
        %v1339 = vsel %vm1323, %v1291, 0.0
        %v1340 = vsel %vm1324, %v1292, 0.0
        %v1341 = vsel %vm1325, %v1293, 0.0
        %v1342 = vsel %vm1326, %v1294, 0.0
        %v1343 = vsel %vm1327, %v1295, 0.0
        %v1344 = vsel %vm1328, %v1296, 0.0
        %v1345 = vsel %vm1329, %v1297, 0.0
        %v1346 = vsel %vm1330, %v1298, 0.0
        %v1347 = vsel %vm1331, %v1299, 0.0
        %v1348 = vsel %vm1332, %v1300, 0.0
        %v1349 = vsel %vm1333, %v1301, 0.0
        %v1350 = vsel %vm1334, %v1302, 0.0
        %v1351 = vsel %vm1335, %v1303, 0.0
        %v1352 = vld [vmem:[#allocation2 + $0x1] sm:$0xff]
        %v1353 = vld [vmem:[#allocation2 + $0x9] sm:$0xff]
        %v1354 = vld [vmem:[#allocation2 + $0x11] sm:$0xff]
        %v1355 = vld [vmem:[#allocation2 + $0x19] sm:$0xff]
        %v1356 = vld [vmem:[#allocation2 + $0x21] sm:$0xff]
        %v1357 = vld [vmem:[#allocation2 + $0x29] sm:$0xff]
        %v1358 = vld [vmem:[#allocation2 + $0x31] sm:$0xff]
        %v1359 = vld [vmem:[#allocation2 + $0x39] sm:$0xff]
        %v1360 = vld [vmem:[#allocation2 + $0x41] sm:$0xff]
        %v1361 = vld [vmem:[#allocation2 + $0x49] sm:$0xff]
        %v1362 = vld [vmem:[#allocation2 + $0x51] sm:$0xff]
        %v1363 = vld [vmem:[#allocation2 + $0x59] sm:$0xff]
        %v1364 = vld [vmem:[#allocation2 + $0x61] sm:$0xff]
        %v1365 = vld [vmem:[#allocation2 + $0x69] sm:$0xff]
        %v1366 = vld [vmem:[#allocation2 + $0x71] sm:$0xff]
        %v1367 = vld [vmem:[#allocation2 + $0x79] sm:$0xff]
        %v1368 = vsel %vm983, 1, 0
        %v1369 = vsel %vm984, 1, 0
        %v1370 = vsel %vm985, 1, 0
        %v1371 = vsel %vm986, 1, 0
        %v1372 = vsel %vm987, 1, 0
        %v1373 = vsel %vm988, 1, 0
        %v1374 = vsel %vm989, 1, 0
        %v1375 = vsel %vm990, 1, 0
        %v1376 = vsel %vm991, 1, 0
        %v1377 = vsel %vm992, 1, 0
        %v1378 = vsel %vm993, 1, 0
        %v1379 = vsel %vm994, 1, 0
        %v1380 = vsel %vm995, 1, 0
        %v1381 = vsel %vm996, 1, 0
        %v1382 = vsel %vm997, 1, 0
        %v1383 = vsel %vm998, 1, 0
        %vm1384 = vcmp.eq.s32.totalorder %v1368, 1
        %vm1385 = vcmp.eq.s32.totalorder %v1369, 1
        %vm1386 = vcmp.eq.s32.totalorder %v1370, 1
        %vm1387 = vcmp.eq.s32.totalorder %v1371, 1
        %vm1388 = vcmp.eq.s32.totalorder %v1372, 1
        %vm1389 = vcmp.eq.s32.totalorder %v1373, 1
        %vm1390 = vcmp.eq.s32.totalorder %v1374, 1
        %vm1391 = vcmp.eq.s32.totalorder %v1375, 1
        %vm1392 = vcmp.eq.s32.totalorder %v1376, 1
        %vm1393 = vcmp.eq.s32.totalorder %v1377, 1
        %vm1394 = vcmp.eq.s32.totalorder %v1378, 1
        %vm1395 = vcmp.eq.s32.totalorder %v1379, 1
        %vm1396 = vcmp.eq.s32.totalorder %v1380, 1
        %vm1397 = vcmp.eq.s32.totalorder %v1381, 1
        %vm1398 = vcmp.eq.s32.totalorder %v1382, 1
        %vm1399 = vcmp.eq.s32.totalorder %v1383, 1
        %v1400 = vsel %vm1384, %v1352, 0.0
        %v1401 = vsel %vm1385, %v1353, 0.0
        %v1402 = vsel %vm1386, %v1354, 0.0
        %v1403 = vsel %vm1387, %v1355, 0.0
        %v1404 = vsel %vm1388, %v1356, 0.0
        %v1405 = vsel %vm1389, %v1357, 0.0
        %v1406 = vsel %vm1390, %v1358, 0.0
        %v1407 = vsel %vm1391, %v1359, 0.0
        %v1408 = vsel %vm1392, %v1360, 0.0
        %v1409 = vsel %vm1393, %v1361, 0.0
        %v1410 = vsel %vm1394, %v1362, 0.0
        %v1411 = vsel %vm1395, %v1363, 0.0
        %v1412 = vsel %vm1396, %v1364, 0.0
        %v1413 = vsel %vm1397, %v1365, 0.0
        %v1414 = vsel %vm1398, %v1366, 0.0
        %v1415 = vsel %vm1399, %v1367, 0.0
        %v1416 = vld [vmem:[#allocation2 + $0x2] sm:$0xff]
        %v1417 = vld [vmem:[#allocation2 + $0xa] sm:$0xff]
        %v1418 = vld [vmem:[#allocation2 + $0x12] sm:$0xff]
        %v1419 = vld [vmem:[#allocation2 + $0x1a] sm:$0xff]
        %v1420 = vld [vmem:[#allocation2 + $0x22] sm:$0xff]
        %v1421 = vld [vmem:[#allocation2 + $0x2a] sm:$0xff]
        %v1422 = vld [vmem:[#allocation2 + $0x32] sm:$0xff]
        %v1423 = vld [vmem:[#allocation2 + $0x3a] sm:$0xff]
        %v1424 = vld [vmem:[#allocation2 + $0x42] sm:$0xff]
        %v1425 = vld [vmem:[#allocation2 + $0x4a] sm:$0xff]
        %v1426 = vld [vmem:[#allocation2 + $0x52] sm:$0xff]
        %v1427 = vld [vmem:[#allocation2 + $0x5a] sm:$0xff]
        %v1428 = vld [vmem:[#allocation2 + $0x62] sm:$0xff]
        %v1429 = vld [vmem:[#allocation2 + $0x6a] sm:$0xff]
        %v1430 = vld [vmem:[#allocation2 + $0x72] sm:$0xff]
        %v1431 = vld [vmem:[#allocation2 + $0x7a] sm:$0xff]
        %v1432 = vsel %vm1047, 1, 0
        %v1433 = vsel %vm1048, 1, 0
        %v1434 = vsel %vm1049, 1, 0
        %v1435 = vsel %vm1050, 1, 0
        %v1436 = vsel %vm1051, 1, 0
        %v1437 = vsel %vm1052, 1, 0
        %v1438 = vsel %vm1053, 1, 0
        %v1439 = vsel %vm1054, 1, 0
        %v1440 = vsel %vm1055, 1, 0
        %v1441 = vsel %vm1056, 1, 0
        %v1442 = vsel %vm1057, 1, 0
        %v1443 = vsel %vm1058, 1, 0
        %v1444 = vsel %vm1059, 1, 0
        %v1445 = vsel %vm1060, 1, 0
        %v1446 = vsel %vm1061, 1, 0
        %v1447 = vsel %vm1062, 1, 0
        %vm1448 = vcmp.eq.s32.totalorder %v1432, 1
        %vm1449 = vcmp.eq.s32.totalorder %v1433, 1
        %vm1450 = vcmp.eq.s32.totalorder %v1434, 1
        %vm1451 = vcmp.eq.s32.totalorder %v1435, 1
        %vm1452 = vcmp.eq.s32.totalorder %v1436, 1
        %vm1453 = vcmp.eq.s32.totalorder %v1437, 1
        %vm1454 = vcmp.eq.s32.totalorder %v1438, 1
        %vm1455 = vcmp.eq.s32.totalorder %v1439, 1
        %vm1456 = vcmp.eq.s32.totalorder %v1440, 1
        %vm1457 = vcmp.eq.s32.totalorder %v1441, 1
        %vm1458 = vcmp.eq.s32.totalorder %v1442, 1
        %vm1459 = vcmp.eq.s32.totalorder %v1443, 1
        %vm1460 = vcmp.eq.s32.totalorder %v1444, 1
        %vm1461 = vcmp.eq.s32.totalorder %v1445, 1
        %vm1462 = vcmp.eq.s32.totalorder %v1446, 1
        %vm1463 = vcmp.eq.s32.totalorder %v1447, 1
        %v1464 = vsel %vm1448, %v1416, 0.0
        %v1465 = vsel %vm1449, %v1417, 0.0
        %v1466 = vsel %vm1450, %v1418, 0.0
        %v1467 = vsel %vm1451, %v1419, 0.0
        %v1468 = vsel %vm1452, %v1420, 0.0
        %v1469 = vsel %vm1453, %v1421, 0.0
        %v1470 = vsel %vm1454, %v1422, 0.0
        %v1471 = vsel %vm1455, %v1423, 0.0
        %v1472 = vsel %vm1456, %v1424, 0.0
        %v1473 = vsel %vm1457, %v1425, 0.0
        %v1474 = vsel %vm1458, %v1426, 0.0
        %v1475 = vsel %vm1459, %v1427, 0.0
        %v1476 = vsel %vm1460, %v1428, 0.0
        %v1477 = vsel %vm1461, %v1429, 0.0
        %v1478 = vsel %vm1462, %v1430, 0.0
        %v1479 = vsel %vm1463, %v1431, 0.0
        %v1480 = vld [vmem:[#allocation2 + $0x3] sm:$0xff]
        %v1481 = vld [vmem:[#allocation2 + $0xb] sm:$0xff]
        %v1482 = vld [vmem:[#allocation2 + $0x13] sm:$0xff]
        %v1483 = vld [vmem:[#allocation2 + $0x1b] sm:$0xff]
        %v1484 = vld [vmem:[#allocation2 + $0x23] sm:$0xff]
        %v1485 = vld [vmem:[#allocation2 + $0x2b] sm:$0xff]
        %v1486 = vld [vmem:[#allocation2 + $0x33] sm:$0xff]
        %v1487 = vld [vmem:[#allocation2 + $0x3b] sm:$0xff]
        %v1488 = vld [vmem:[#allocation2 + $0x43] sm:$0xff]
        %v1489 = vld [vmem:[#allocation2 + $0x4b] sm:$0xff]
        %v1490 = vld [vmem:[#allocation2 + $0x53] sm:$0xff]
        %v1491 = vld [vmem:[#allocation2 + $0x5b] sm:$0xff]
        %v1492 = vld [vmem:[#allocation2 + $0x63] sm:$0xff]
        %v1493 = vld [vmem:[#allocation2 + $0x6b] sm:$0xff]
        %v1494 = vld [vmem:[#allocation2 + $0x73] sm:$0xff]
        %v1495 = vld [vmem:[#allocation2 + $0x7b] sm:$0xff]
        %v1496 = vld [vmem:[#allocation2 + $0x4] sm:$0xff]
        %v1497 = vld [vmem:[#allocation2 + $0xc] sm:$0xff]
        %v1498 = vld [vmem:[#allocation2 + $0x14] sm:$0xff]
        %v1499 = vld [vmem:[#allocation2 + $0x1c] sm:$0xff]
        %v1500 = vld [vmem:[#allocation2 + $0x24] sm:$0xff]
        %v1501 = vld [vmem:[#allocation2 + $0x2c] sm:$0xff]
        %v1502 = vld [vmem:[#allocation2 + $0x34] sm:$0xff]
        %v1503 = vld [vmem:[#allocation2 + $0x3c] sm:$0xff]
        %v1504 = vld [vmem:[#allocation2 + $0x44] sm:$0xff]
        %v1505 = vld [vmem:[#allocation2 + $0x4c] sm:$0xff]
        %v1506 = vld [vmem:[#allocation2 + $0x54] sm:$0xff]
        %v1507 = vld [vmem:[#allocation2 + $0x5c] sm:$0xff]
        %v1508 = vld [vmem:[#allocation2 + $0x64] sm:$0xff]
        %v1509 = vld [vmem:[#allocation2 + $0x6c] sm:$0xff]
        %v1510 = vld [vmem:[#allocation2 + $0x74] sm:$0xff]
        %v1511 = vld [vmem:[#allocation2 + $0x7c] sm:$0xff]
        %v1512 = vsel %vm1111, 1, 0
        %v1513 = vsel %vm1112, 1, 0
        %v1514 = vsel %vm1113, 1, 0
        %v1515 = vsel %vm1114, 1, 0
        %v1516 = vsel %vm1115, 1, 0
        %v1517 = vsel %vm1116, 1, 0
        %v1518 = vsel %vm1117, 1, 0
        %v1519 = vsel %vm1118, 1, 0
        %v1520 = vsel %vm1119, 1, 0
        %v1521 = vsel %vm1120, 1, 0
        %v1522 = vsel %vm1121, 1, 0
        %v1523 = vsel %vm1122, 1, 0
        %v1524 = vsel %vm1123, 1, 0
        %v1525 = vsel %vm1124, 1, 0
        %v1526 = vsel %vm1125, 1, 0
        %v1527 = vsel %vm1126, 1, 0
        %vm1528 = vcmp.eq.s32.totalorder %v1512, 1
        %vm1529 = vcmp.eq.s32.totalorder %v1513, 1
        %vm1530 = vcmp.eq.s32.totalorder %v1514, 1
        %vm1531 = vcmp.eq.s32.totalorder %v1515, 1
        %vm1532 = vcmp.eq.s32.totalorder %v1516, 1
        %vm1533 = vcmp.eq.s32.totalorder %v1517, 1
        %vm1534 = vcmp.eq.s32.totalorder %v1518, 1
        %vm1535 = vcmp.eq.s32.totalorder %v1519, 1
        %vm1536 = vcmp.eq.s32.totalorder %v1520, 1
        %vm1537 = vcmp.eq.s32.totalorder %v1521, 1
        %vm1538 = vcmp.eq.s32.totalorder %v1522, 1
        %vm1539 = vcmp.eq.s32.totalorder %v1523, 1
        %vm1540 = vcmp.eq.s32.totalorder %v1524, 1
        %vm1541 = vcmp.eq.s32.totalorder %v1525, 1
        %vm1542 = vcmp.eq.s32.totalorder %v1526, 1
        %vm1543 = vcmp.eq.s32.totalorder %v1527, 1
        %v1544 = vsel %vm1528, %v1496, 0.0
        %v1545 = vsel %vm1529, %v1497, 0.0
        %v1546 = vsel %vm1530, %v1498, 0.0
        %v1547 = vsel %vm1531, %v1499, 0.0
        %v1548 = vsel %vm1532, %v1500, 0.0
        %v1549 = vsel %vm1533, %v1501, 0.0
        %v1550 = vsel %vm1534, %v1502, 0.0
        %v1551 = vsel %vm1535, %v1503, 0.0
        %v1552 = vsel %vm1536, %v1504, 0.0
        %v1553 = vsel %vm1537, %v1505, 0.0
        %v1554 = vsel %vm1538, %v1506, 0.0
        %v1555 = vsel %vm1539, %v1507, 0.0
        %v1556 = vsel %vm1540, %v1508, 0.0
        %v1557 = vsel %vm1541, %v1509, 0.0
        %v1558 = vsel %vm1542, %v1510, 0.0
        %v1559 = vsel %vm1543, %v1511, 0.0
        %v1560 = vld [vmem:[#allocation2 + $0x5] sm:$0xff]
        %v1561 = vld [vmem:[#allocation2 + $0xd] sm:$0xff]
        %v1562 = vld [vmem:[#allocation2 + $0x15] sm:$0xff]
        %v1563 = vld [vmem:[#allocation2 + $0x1d] sm:$0xff]
        %v1564 = vld [vmem:[#allocation2 + $0x25] sm:$0xff]
        %v1565 = vld [vmem:[#allocation2 + $0x2d] sm:$0xff]
        %v1566 = vld [vmem:[#allocation2 + $0x35] sm:$0xff]
        %v1567 = vld [vmem:[#allocation2 + $0x3d] sm:$0xff]
        %v1568 = vld [vmem:[#allocation2 + $0x45] sm:$0xff]
        %v1569 = vld [vmem:[#allocation2 + $0x4d] sm:$0xff]
        %v1570 = vld [vmem:[#allocation2 + $0x55] sm:$0xff]
        %v1571 = vld [vmem:[#allocation2 + $0x5d] sm:$0xff]
        %v1572 = vld [vmem:[#allocation2 + $0x65] sm:$0xff]
        %v1573 = vld [vmem:[#allocation2 + $0x6d] sm:$0xff]
        %v1574 = vld [vmem:[#allocation2 + $0x75] sm:$0xff]
        %v1575 = vld [vmem:[#allocation2 + $0x7d] sm:$0xff]
        %v1576 = vsel %vm1175, 1, 0
        %v1577 = vsel %vm1176, 1, 0
        %v1578 = vsel %vm1177, 1, 0
        %v1579 = vsel %vm1178, 1, 0
        %v1580 = vsel %vm1179, 1, 0
        %v1581 = vsel %vm1180, 1, 0
        %v1582 = vsel %vm1181, 1, 0
        %v1583 = vsel %vm1182, 1, 0
        %v1584 = vsel %vm1183, 1, 0
        %v1585 = vsel %vm1184, 1, 0
        %v1586 = vsel %vm1185, 1, 0
        %v1587 = vsel %vm1186, 1, 0
        %v1588 = vsel %vm1187, 1, 0
        %v1589 = vsel %vm1188, 1, 0
        %v1590 = vsel %vm1189, 1, 0
        %v1591 = vsel %vm1190, 1, 0
        %vm1592 = vcmp.eq.s32.totalorder %v1576, 1
        %vm1593 = vcmp.eq.s32.totalorder %v1577, 1
        %vm1594 = vcmp.eq.s32.totalorder %v1578, 1
        %vm1595 = vcmp.eq.s32.totalorder %v1579, 1
        %vm1596 = vcmp.eq.s32.totalorder %v1580, 1
        %vm1597 = vcmp.eq.s32.totalorder %v1581, 1
        %vm1598 = vcmp.eq.s32.totalorder %v1582, 1
        %vm1599 = vcmp.eq.s32.totalorder %v1583, 1
        %vm1600 = vcmp.eq.s32.totalorder %v1584, 1
        %vm1601 = vcmp.eq.s32.totalorder %v1585, 1
        %vm1602 = vcmp.eq.s32.totalorder %v1586, 1
        %vm1603 = vcmp.eq.s32.totalorder %v1587, 1
        %vm1604 = vcmp.eq.s32.totalorder %v1588, 1
        %vm1605 = vcmp.eq.s32.totalorder %v1589, 1
        %vm1606 = vcmp.eq.s32.totalorder %v1590, 1
        %vm1607 = vcmp.eq.s32.totalorder %v1591, 1
        %v1608 = vsel %vm1592, %v1560, 0.0
        %v1609 = vsel %vm1593, %v1561, 0.0
        %v1610 = vsel %vm1594, %v1562, 0.0
        %v1611 = vsel %vm1595, %v1563, 0.0
        %v1612 = vsel %vm1596, %v1564, 0.0
        %v1613 = vsel %vm1597, %v1565, 0.0
        %v1614 = vsel %vm1598, %v1566, 0.0
        %v1615 = vsel %vm1599, %v1567, 0.0
        %v1616 = vsel %vm1600, %v1568, 0.0
        %v1617 = vsel %vm1601, %v1569, 0.0
        %v1618 = vsel %vm1602, %v1570, 0.0
        %v1619 = vsel %vm1603, %v1571, 0.0
        %v1620 = vsel %vm1604, %v1572, 0.0
        %v1621 = vsel %vm1605, %v1573, 0.0
        %v1622 = vsel %vm1606, %v1574, 0.0
        %v1623 = vsel %vm1607, %v1575, 0.0
        %v1624 = vld [vmem:[#allocation2 + $0x6] sm:$0xff]
        %v1625 = vld [vmem:[#allocation2 + $0xe] sm:$0xff]
        %v1626 = vld [vmem:[#allocation2 + $0x16] sm:$0xff]
        %v1627 = vld [vmem:[#allocation2 + $0x1e] sm:$0xff]
        %v1628 = vld [vmem:[#allocation2 + $0x26] sm:$0xff]
        %v1629 = vld [vmem:[#allocation2 + $0x2e] sm:$0xff]
        %v1630 = vld [vmem:[#allocation2 + $0x36] sm:$0xff]
        %v1631 = vld [vmem:[#allocation2 + $0x3e] sm:$0xff]
        %v1632 = vld [vmem:[#allocation2 + $0x46] sm:$0xff]
        %v1633 = vld [vmem:[#allocation2 + $0x4e] sm:$0xff]
        %v1634 = vld [vmem:[#allocation2 + $0x56] sm:$0xff]
        %v1635 = vld [vmem:[#allocation2 + $0x5e] sm:$0xff]
        %v1636 = vld [vmem:[#allocation2 + $0x66] sm:$0xff]
        %v1637 = vld [vmem:[#allocation2 + $0x6e] sm:$0xff]
        %v1638 = vld [vmem:[#allocation2 + $0x76] sm:$0xff]
        %v1639 = vld [vmem:[#allocation2 + $0x7e] sm:$0xff]
        %v1640 = vsel %vm1239, 1, 0
        %v1641 = vsel %vm1240, 1, 0
        %v1642 = vsel %vm1241, 1, 0
        %v1643 = vsel %vm1242, 1, 0
        %v1644 = vsel %vm1243, 1, 0
        %v1645 = vsel %vm1244, 1, 0
        %v1646 = vsel %vm1245, 1, 0
        %v1647 = vsel %vm1246, 1, 0
        %v1648 = vsel %vm1247, 1, 0
        %v1649 = vsel %vm1248, 1, 0
        %v1650 = vsel %vm1249, 1, 0
        %v1651 = vsel %vm1250, 1, 0
        %v1652 = vsel %vm1251, 1, 0
        %v1653 = vsel %vm1252, 1, 0
        %v1654 = vsel %vm1253, 1, 0
        %v1655 = vsel %vm1254, 1, 0
        %vm1656 = vcmp.eq.s32.totalorder %v1640, 1
        %vm1657 = vcmp.eq.s32.totalorder %v1641, 1
        %vm1658 = vcmp.eq.s32.totalorder %v1642, 1
        %vm1659 = vcmp.eq.s32.totalorder %v1643, 1
        %vm1660 = vcmp.eq.s32.totalorder %v1644, 1
        %vm1661 = vcmp.eq.s32.totalorder %v1645, 1
        %vm1662 = vcmp.eq.s32.totalorder %v1646, 1
        %vm1663 = vcmp.eq.s32.totalorder %v1647, 1
        %vm1664 = vcmp.eq.s32.totalorder %v1648, 1
        %vm1665 = vcmp.eq.s32.totalorder %v1649, 1
        %vm1666 = vcmp.eq.s32.totalorder %v1650, 1
        %vm1667 = vcmp.eq.s32.totalorder %v1651, 1
        %vm1668 = vcmp.eq.s32.totalorder %v1652, 1
        %vm1669 = vcmp.eq.s32.totalorder %v1653, 1
        %vm1670 = vcmp.eq.s32.totalorder %v1654, 1
        %vm1671 = vcmp.eq.s32.totalorder %v1655, 1
        %v1672 = vsel %vm1656, %v1624, 0.0
        %v1673 = vsel %vm1657, %v1625, 0.0
        %v1674 = vsel %vm1658, %v1626, 0.0
        %v1675 = vsel %vm1659, %v1627, 0.0
        %v1676 = vsel %vm1660, %v1628, 0.0
        %v1677 = vsel %vm1661, %v1629, 0.0
        %v1678 = vsel %vm1662, %v1630, 0.0
        %v1679 = vsel %vm1663, %v1631, 0.0
        %v1680 = vsel %vm1664, %v1632, 0.0
        %v1681 = vsel %vm1665, %v1633, 0.0
        %v1682 = vsel %vm1666, %v1634, 0.0
        %v1683 = vsel %vm1667, %v1635, 0.0
        %v1684 = vsel %vm1668, %v1636, 0.0
        %v1685 = vsel %vm1669, %v1637, 0.0
        %v1686 = vsel %vm1670, %v1638, 0.0
        %v1687 = vsel %vm1671, %v1639, 0.0
        %1704 = vrot.lane.b32.xlu0 %v1400, 4
        %v1705 = vpop.permute.xlu0 %1704
        %1706 = vrot.lane.b32.xlu0 %v1401, 4
        %v1707 = vpop.permute.xlu0 %1706
        %1708 = vrot.lane.b32.xlu0 %v1402, 4
        %v1709 = vpop.permute.xlu0 %1708
        %1710 = vrot.lane.b32.xlu0 %v1403, 4
        %v1711 = vpop.permute.xlu0 %1710
        %1712 = vrot.lane.b32.xlu0 %v1404, 4
        %v1713 = vpop.permute.xlu0 %1712
        %1714 = vrot.lane.b32.xlu0 %v1405, 4
        %v1715 = vpop.permute.xlu0 %1714
        %1716 = vrot.lane.b32.xlu0 %v1406, 4
        %v1717 = vpop.permute.xlu0 %1716
        %1718 = vrot.lane.b32.xlu0 %v1407, 4
        %v1719 = vpop.permute.xlu0 %1718
        %1720 = vrot.lane.b32.xlu0 %v1408, 4
        %v1721 = vpop.permute.xlu0 %1720
        %1722 = vrot.lane.b32.xlu0 %v1409, 4
        %v1723 = vpop.permute.xlu0 %1722
        %1724 = vrot.lane.b32.xlu0 %v1410, 4
        %v1725 = vpop.permute.xlu0 %1724
        %1726 = vrot.lane.b32.xlu0 %v1411, 4
        %v1727 = vpop.permute.xlu0 %1726
        %1728 = vrot.lane.b32.xlu0 %v1412, 4
        %v1729 = vpop.permute.xlu0 %1728
        %1730 = vrot.lane.b32.xlu0 %v1413, 4
        %v1731 = vpop.permute.xlu0 %1730
        %1732 = vrot.lane.b32.xlu0 %v1414, 4
        %v1733 = vpop.permute.xlu0 %1732
        %1734 = vrot.lane.b32.xlu0 %v1415, 4
        %v1735 = vpop.permute.xlu0 %1734
        %1768 = vrot.lane.b32.xlu0 %v1464, 8
        %v1769 = vpop.permute.xlu0 %1768
        %1770 = vrot.lane.b32.xlu0 %v1465, 8
        %v1771 = vpop.permute.xlu0 %1770
        %1772 = vrot.lane.b32.xlu0 %v1466, 8
        %v1773 = vpop.permute.xlu0 %1772
        %1774 = vrot.lane.b32.xlu0 %v1467, 8
        %v1775 = vpop.permute.xlu0 %1774
        %1776 = vrot.lane.b32.xlu0 %v1468, 8
        %v1777 = vpop.permute.xlu0 %1776
        %1778 = vrot.lane.b32.xlu0 %v1469, 8
        %v1779 = vpop.permute.xlu0 %1778
        %1780 = vrot.lane.b32.xlu0 %v1470, 8
        %v1781 = vpop.permute.xlu0 %1780
        %1782 = vrot.lane.b32.xlu0 %v1471, 8
        %v1783 = vpop.permute.xlu0 %1782
        %1784 = vrot.lane.b32.xlu0 %v1472, 8
        %v1785 = vpop.permute.xlu0 %1784
        %1786 = vrot.lane.b32.xlu0 %v1473, 8
        %v1787 = vpop.permute.xlu0 %1786
        %1788 = vrot.lane.b32.xlu0 %v1474, 8
        %v1789 = vpop.permute.xlu0 %1788
        %1790 = vrot.lane.b32.xlu0 %v1475, 8
        %v1791 = vpop.permute.xlu0 %1790
        %1792 = vrot.lane.b32.xlu0 %v1476, 8
        %v1793 = vpop.permute.xlu0 %1792
        %1794 = vrot.lane.b32.xlu0 %v1477, 8
        %v1795 = vpop.permute.xlu0 %1794
        %1796 = vrot.lane.b32.xlu0 %v1478, 8
        %v1797 = vpop.permute.xlu0 %1796
        %1798 = vrot.lane.b32.xlu0 %v1479, 8
        %v1799 = vpop.permute.xlu0 %1798
        %1832 = vrot.lane.b32.xlu0 %v1480, 12
        %v1833 = vpop.permute.xlu0 %1832
        %1834 = vrot.lane.b32.xlu0 %v1481, 12
        %v1835 = vpop.permute.xlu0 %1834
        %1836 = vrot.lane.b32.xlu0 %v1482, 12
        %v1837 = vpop.permute.xlu0 %1836
        %1838 = vrot.lane.b32.xlu0 %v1483, 12
        %v1839 = vpop.permute.xlu0 %1838
        %1840 = vrot.lane.b32.xlu0 %v1484, 12
        %v1841 = vpop.permute.xlu0 %1840
        %1842 = vrot.lane.b32.xlu0 %v1485, 12
        %v1843 = vpop.permute.xlu0 %1842
        %1844 = vrot.lane.b32.xlu0 %v1486, 12
        %v1845 = vpop.permute.xlu0 %1844
        %1846 = vrot.lane.b32.xlu0 %v1487, 12
        %v1847 = vpop.permute.xlu0 %1846
        %1848 = vrot.lane.b32.xlu0 %v1488, 12
        %v1849 = vpop.permute.xlu0 %1848
        %1850 = vrot.lane.b32.xlu0 %v1489, 12
        %v1851 = vpop.permute.xlu0 %1850
        %1852 = vrot.lane.b32.xlu0 %v1490, 12
        %v1853 = vpop.permute.xlu0 %1852
        %1854 = vrot.lane.b32.xlu0 %v1491, 12
        %v1855 = vpop.permute.xlu0 %1854
        %1856 = vrot.lane.b32.xlu0 %v1492, 12
        %v1857 = vpop.permute.xlu0 %1856
        %1858 = vrot.lane.b32.xlu0 %v1493, 12
        %v1859 = vpop.permute.xlu0 %1858
        %1860 = vrot.lane.b32.xlu0 %v1494, 12
        %v1861 = vpop.permute.xlu0 %1860
        %1862 = vrot.lane.b32.xlu0 %v1495, 12
        %v1863 = vpop.permute.xlu0 %1862
        %1896 = vrot.lane.b32.xlu0 %v1544, 16
        %v1897 = vpop.permute.xlu0 %1896
        %1898 = vrot.lane.b32.xlu0 %v1545, 16
        %v1899 = vpop.permute.xlu0 %1898
        %1900 = vrot.lane.b32.xlu0 %v1546, 16
        %v1901 = vpop.permute.xlu0 %1900
        %1902 = vrot.lane.b32.xlu0 %v1547, 16
        %v1903 = vpop.permute.xlu0 %1902
        %1904 = vrot.lane.b32.xlu0 %v1548, 16
        %v1905 = vpop.permute.xlu0 %1904
        %1906 = vrot.lane.b32.xlu0 %v1549, 16
        %v1907 = vpop.permute.xlu0 %1906
        %1908 = vrot.lane.b32.xlu0 %v1550, 16
        %v1909 = vpop.permute.xlu0 %1908
        %1910 = vrot.lane.b32.xlu0 %v1551, 16
        %v1911 = vpop.permute.xlu0 %1910
        %1912 = vrot.lane.b32.xlu0 %v1552, 16
        %v1913 = vpop.permute.xlu0 %1912
        %1914 = vrot.lane.b32.xlu0 %v1553, 16
        %v1915 = vpop.permute.xlu0 %1914
        %1916 = vrot.lane.b32.xlu0 %v1554, 16
        %v1917 = vpop.permute.xlu0 %1916
        %1918 = vrot.lane.b32.xlu0 %v1555, 16
        %v1919 = vpop.permute.xlu0 %1918
        %1920 = vrot.lane.b32.xlu0 %v1556, 16
        %v1921 = vpop.permute.xlu0 %1920
        %1922 = vrot.lane.b32.xlu0 %v1557, 16
        %v1923 = vpop.permute.xlu0 %1922
        %1924 = vrot.lane.b32.xlu0 %v1558, 16
        %v1925 = vpop.permute.xlu0 %1924
        %1926 = vrot.lane.b32.xlu0 %v1559, 16
        %v1927 = vpop.permute.xlu0 %1926
        %1960 = vrot.lane.b32.xlu0 %v1608, 20
        %v1961 = vpop.permute.xlu0 %1960
        %1962 = vrot.lane.b32.xlu0 %v1609, 20
        %v1963 = vpop.permute.xlu0 %1962
        %1964 = vrot.lane.b32.xlu0 %v1610, 20
        %v1965 = vpop.permute.xlu0 %1964
        %1966 = vrot.lane.b32.xlu0 %v1611, 20
        %v1967 = vpop.permute.xlu0 %1966
        %1968 = vrot.lane.b32.xlu0 %v1612, 20
        %v1969 = vpop.permute.xlu0 %1968
        %1970 = vrot.lane.b32.xlu0 %v1613, 20
        %v1971 = vpop.permute.xlu0 %1970
        %1972 = vrot.lane.b32.xlu0 %v1614, 20
        %v1973 = vpop.permute.xlu0 %1972
        %1974 = vrot.lane.b32.xlu0 %v1615, 20
        %v1975 = vpop.permute.xlu0 %1974
        %1976 = vrot.lane.b32.xlu0 %v1616, 20
        %v1977 = vpop.permute.xlu0 %1976
        %1978 = vrot.lane.b32.xlu0 %v1617, 20
        %v1979 = vpop.permute.xlu0 %1978
        %1980 = vrot.lane.b32.xlu0 %v1618, 20
        %v1981 = vpop.permute.xlu0 %1980
        %1982 = vrot.lane.b32.xlu0 %v1619, 20
        %v1983 = vpop.permute.xlu0 %1982
        %1984 = vrot.lane.b32.xlu0 %v1620, 20
        %v1985 = vpop.permute.xlu0 %1984
        %1986 = vrot.lane.b32.xlu0 %v1621, 20
        %v1987 = vpop.permute.xlu0 %1986
        %1988 = vrot.lane.b32.xlu0 %v1622, 20
        %v1989 = vpop.permute.xlu0 %1988
        %1990 = vrot.lane.b32.xlu0 %v1623, 20
        %v1991 = vpop.permute.xlu0 %1990
        %2024 = vrot.lane.b32.xlu0 %v1672, 24
        %v2025 = vpop.permute.xlu0 %2024
        %2026 = vrot.lane.b32.xlu0 %v1673, 24
        %v2027 = vpop.permute.xlu0 %2026
        %2028 = vrot.lane.b32.xlu0 %v1674, 24
        %v2029 = vpop.permute.xlu0 %2028
        %2030 = vrot.lane.b32.xlu0 %v1675, 24
        %v2031 = vpop.permute.xlu0 %2030
        %2032 = vrot.lane.b32.xlu0 %v1676, 24
        %v2033 = vpop.permute.xlu0 %2032
        %2034 = vrot.lane.b32.xlu0 %v1677, 24
        %v2035 = vpop.permute.xlu0 %2034
        %2036 = vrot.lane.b32.xlu0 %v1678, 24
        %v2037 = vpop.permute.xlu0 %2036
        %2038 = vrot.lane.b32.xlu0 %v1679, 24
        %v2039 = vpop.permute.xlu0 %2038
        %2040 = vrot.lane.b32.xlu0 %v1680, 24
        %v2041 = vpop.permute.xlu0 %2040
        %2042 = vrot.lane.b32.xlu0 %v1681, 24
        %v2043 = vpop.permute.xlu0 %2042
        %2044 = vrot.lane.b32.xlu0 %v1682, 24
        %v2045 = vpop.permute.xlu0 %2044
        %2046 = vrot.lane.b32.xlu0 %v1683, 24
        %v2047 = vpop.permute.xlu0 %2046
        %2048 = vrot.lane.b32.xlu0 %v1684, 24
        %v2049 = vpop.permute.xlu0 %2048
        %2050 = vrot.lane.b32.xlu0 %v1685, 24
        %v2051 = vpop.permute.xlu0 %2050
        %2052 = vrot.lane.b32.xlu0 %v1686, 24
        %v2053 = vpop.permute.xlu0 %2052
        %2054 = vrot.lane.b32.xlu0 %v1687, 24
        %v2055 = vpop.permute.xlu0 %2054
        %v2072 = vsel %vm1271, %v1336, %v1705
        %v2073 = vsel %vm1271, %v1337, %v1707
        %v2074 = vsel %vm1271, %v1338, %v1709
        %v2075 = vsel %vm1271, %v1339, %v1711
        %v2076 = vsel %vm1271, %v1340, %v1713
        %v2077 = vsel %vm1271, %v1341, %v1715
        %v2078 = vsel %vm1271, %v1342, %v1717
        %v2079 = vsel %vm1271, %v1343, %v1719
        %v2080 = vsel %vm1271, %v1344, %v1721
        %v2081 = vsel %vm1271, %v1345, %v1723
        %v2082 = vsel %vm1271, %v1346, %v1725
        %v2083 = vsel %vm1271, %v1347, %v1727
        %v2084 = vsel %vm1271, %v1348, %v1729
        %v2085 = vsel %vm1271, %v1349, %v1731
        %v2086 = vsel %vm1271, %v1350, %v1733
        %v2087 = vsel %vm1271, %v1351, %v1735
        %vm2088 = vcmask 64512
        %v2089 = vsel %vm2088, %v2072, %v1769
        %v2090 = vsel %vm2088, %v2073, %v1771
        %v2091 = vsel %vm2088, %v2074, %v1773
        %v2092 = vsel %vm2088, %v2075, %v1775
        %v2093 = vsel %vm2088, %v2076, %v1777
        %v2094 = vsel %vm2088, %v2077, %v1779
        %v2095 = vsel %vm2088, %v2078, %v1781
        %v2096 = vsel %vm2088, %v2079, %v1783
        %v2097 = vsel %vm2088, %v2080, %v1785
        %v2098 = vsel %vm2088, %v2081, %v1787
        %v2099 = vsel %vm2088, %v2082, %v1789
        %v2100 = vsel %vm2088, %v2083, %v1791
        %v2101 = vsel %vm2088, %v2084, %v1793
        %v2102 = vsel %vm2088, %v2085, %v1795
        %v2103 = vsel %vm2088, %v2086, %v1797
        %v2104 = vsel %vm2088, %v2087, %v1799
        %vm2105 = vcmask 97280
        %v2106 = vsel %vm2105, %v2089, %v1833
        %v2107 = vsel %vm2105, %v2090, %v1835
        %v2108 = vsel %vm2105, %v2091, %v1837
        %v2109 = vsel %vm2105, %v2092, %v1839
        %v2110 = vsel %vm2105, %v2093, %v1841
        %v2111 = vsel %vm2105, %v2094, %v1843
        %v2112 = vsel %vm2105, %v2095, %v1845
        %v2113 = vsel %vm2105, %v2096, %v1847
        %v2114 = vsel %vm2105, %v2097, %v1849
        %v2115 = vsel %vm2105, %v2098, %v1851
        %v2116 = vsel %vm2105, %v2099, %v1853
        %v2117 = vsel %vm2105, %v2100, %v1855
        %v2118 = vsel %vm2105, %v2101, %v1857
        %v2119 = vsel %vm2105, %v2102, %v1859
        %v2120 = vsel %vm2105, %v2103, %v1861
        %v2121 = vsel %vm2105, %v2104, %v1863
        %vm2122 = vcmask 130048
        %v2123 = vsel %vm2122, %v2106, %v1897
        %v2124 = vsel %vm2122, %v2107, %v1899
        %v2125 = vsel %vm2122, %v2108, %v1901
        %v2126 = vsel %vm2122, %v2109, %v1903
        %v2127 = vsel %vm2122, %v2110, %v1905
        %v2128 = vsel %vm2122, %v2111, %v1907
        %v2129 = vsel %vm2122, %v2112, %v1909
        %v2130 = vsel %vm2122, %v2113, %v1911
        %v2131 = vsel %vm2122, %v2114, %v1913
        %v2132 = vsel %vm2122, %v2115, %v1915
        %v2133 = vsel %vm2122, %v2116, %v1917
        %v2134 = vsel %vm2122, %v2117, %v1919
        %v2135 = vsel %vm2122, %v2118, %v1921
        %v2136 = vsel %vm2122, %v2119, %v1923
        %v2137 = vsel %vm2122, %v2120, %v1925
        %v2138 = vsel %vm2122, %v2121, %v1927
        %vm2139 = vcmask 162816
        %v2140 = vsel %vm2139, %v2123, %v1961
        %v2141 = vsel %vm2139, %v2124, %v1963
        %v2142 = vsel %vm2139, %v2125, %v1965
        %v2143 = vsel %vm2139, %v2126, %v1967
        %v2144 = vsel %vm2139, %v2127, %v1969
        %v2145 = vsel %vm2139, %v2128, %v1971
        %v2146 = vsel %vm2139, %v2129, %v1973
        %v2147 = vsel %vm2139, %v2130, %v1975
        %v2148 = vsel %vm2139, %v2131, %v1977
        %v2149 = vsel %vm2139, %v2132, %v1979
        %v2150 = vsel %vm2139, %v2133, %v1981
        %v2151 = vsel %vm2139, %v2134, %v1983
        %v2152 = vsel %vm2139, %v2135, %v1985
        %v2153 = vsel %vm2139, %v2136, %v1987
        %v2154 = vsel %vm2139, %v2137, %v1989
        %v2155 = vsel %vm2139, %v2138, %v1991
        %vm2156 = vcmask 195584
        %v2157 = vsel %vm2156, %v2140, %v2025
        %v2158 = vsel %vm2156, %v2141, %v2027
        %v2159 = vsel %vm2156, %v2142, %v2029
        %v2160 = vsel %vm2156, %v2143, %v2031
        %v2161 = vsel %vm2156, %v2144, %v2033
        %v2162 = vsel %vm2156, %v2145, %v2035
        %v2163 = vsel %vm2156, %v2146, %v2037
        %v2164 = vsel %vm2156, %v2147, %v2039
        %v2165 = vsel %vm2156, %v2148, %v2041
        %v2166 = vsel %vm2156, %v2149, %v2043
        %v2167 = vsel %vm2156, %v2150, %v2045
        %v2168 = vsel %vm2156, %v2151, %v2047
        %v2169 = vsel %vm2156, %v2152, %v2049
        %v2170 = vsel %vm2156, %v2153, %v2051
        %v2171 = vsel %vm2156, %v2154, %v2053
        %v2172 = vsel %vm2156, %v2155, %v2055
        %v2173 = vld [vmem:[%s1] sm:$0xff]
        %v2174 = vld [vmem:[%s1 + $0x8] sm:$0xff]
        %v2175 = vld [vmem:[%s1 + $0x10] sm:$0xff]
        %v2176 = vld [vmem:[%s1 + $0x18] sm:$0xf]
        %v2177 = vld [vmem:[%s2] sm:$0x1]
        %v2179 = vlaneseq
        %v2180 = vshrl.u32 %v2179, 7
        %v2181 = vsub.s32 0, %v2180
        %v2182 = vrot.slane %v2177, %v2181
        %vm2184 = vcmask 228352
        %v2186 = vsel %vm2184, %v2157, 0
        %v2189 = vsel %vm2184, %v2158, 0
        %v2192 = vsel %vm2184, %v2159, 0
        %v2195 = vsel %vm2184, %v2160, 0
        %v2198 = vsel %vm2184, %v2161, 0
        %v2201 = vsel %vm2184, %v2162, 0
        %v2204 = vsel %vm2184, %v2163, 0
        %v2207 = vsel %vm2184, %v2164, 0
        %v2210 = vsel %vm2184, %v2165, 0
        %v2213 = vsel %vm2184, %v2166, 0
        %v2216 = vsel %vm2184, %v2167, 0
        %v2219 = vsel %vm2184, %v2168, 0
        %v2222 = vsel %vm2184, %v2169, 0
        %v2225 = vsel %vm2184, %v2170, 0
        %v2228 = vsel %vm2184, %v2171, 0
        %v2231 = vsel %vm2184, %v2172, 0
        %vm2233 = vcmask 1043456
        %v2235 = vsel %vm2233, %v2176, 0
        %2237 = vmatprep.subr.mxu0 0.0
        %2238 = vmatpush1.msra.mxu0 0.0
        %2239 = vmatprep.subr.mxu0 0.0
        %2240 = vmatpush1.msra.mxu0 0.0
        %2241 = vmatprep.subr.mxu0 0.0
        %2242 = vmatpush1.msra.mxu0 0.0
        %2243 = vmatprep.subr.mxu0 0.0
        %2244 = vmatpush1.msra.mxu0 0.0
        %2245 = vmatprep.subr.mxu0 0.0
        %2246 = vmatpush1.msra.mxu0 0.0
        %2247 = vmatprep.subr.mxu0 0.0
        %2248 = vmatpush1.msra.mxu0 0.0
        %2249 = vmatprep.subr.mxu0 0.0
        %2250 = vmatpush1.msra.mxu0 0.0
        %2251 = vmatprep.subr.mxu0 0.0
        %2252 = vmatpush1.msra.mxu0 0.0
        %2253 = vmatprep.subr.mxu0 0.0
        %2254 = vmatpush1.msra.mxu0 0.0
        %2255 = vmatprep.subr.mxu0 0.0
        %2256 = vmatpush1.msra.mxu0 0.0
        %2257 = vmatprep.subr.mxu0 0.0
        %2258 = vmatpush1.msra.mxu0 0.0
        %2259 = vmatprep.subr.mxu0 0.0
        %2260 = vmatpush1.msra.mxu0 0.0
        %2261 = vmatprep.subr.mxu0 0.0
        %2262 = vmatpush1.msra.mxu0 %v2235
        %2263 = vmatprep.subr.mxu0 0.0
        %2264 = vmatpush1.msra.mxu0 %v2175
        %2265 = vmatprep.subr.mxu0 0.0
        %2266 = vmatpush1.msra.mxu0 %v2174
        %2267 = vmatprep.subr.mxu0 0.0
        %2268 = vmatpush1.msra.mxu0 %v2173
        %2269 = vmatprep.subr.mxu0 0.0
        %2270 = vmatpush2.msra.mxu0 0.0
        %2271 = vmatprep.subr.mxu0 0.0
        %2272 = vmatpush2.msra.mxu0 0.0
        %2273 = vmatprep.subr.mxu0 0.0
        %2274 = vmatpush2.msra.mxu0 0.0
        %2275 = vmatprep.subr.mxu0 0.0
        %2276 = vmatpush2.msra.mxu0 0.0
        %2277 = vmatprep.subr.mxu0 0.0
        %2278 = vmatpush2.msra.mxu0 0.0
        %2279 = vmatprep.subr.mxu0 0.0
        %2280 = vmatpush2.msra.mxu0 0.0
        %2281 = vmatprep.subr.mxu0 0.0
        %2282 = vmatpush2.msra.mxu0 0.0
        %2283 = vmatprep.subr.mxu0 0.0
        %2284 = vmatpush2.msra.mxu0 0.0
        %2285 = vmatprep.subr.mxu0 0.0
        %2286 = vmatpush2.msra.mxu0 0.0
        %2287 = vmatprep.subr.mxu0 0.0
        %2288 = vmatpush2.msra.mxu0 0.0
        %2289 = vmatprep.subr.mxu0 0.0
        %2290 = vmatpush2.msra.mxu0 0.0
        %2291 = vmatprep.subr.mxu0 0.0
        %2292 = vmatpush2.msra.mxu0 0.0
        %2293 = vmatprep.subr.mxu0 0.0
        %2294 = vmatpush2.msra.mxu0 0.0
        %2295 = vmatprep.subr.mxu0 0.0
        %2296 = vmatpush2.msra.mxu0 0.0
        %2297 = vmatprep.subr.mxu0 0.0
        %2298 = vmatpush2.msra.mxu0 0.0
        %2299 = vmatprep.subr.mxu0 0.0
        %2300 = vmatpush2.msra.mxu0 0.0
        %2301 = vmatprep.mubr.f32.mxu0 0.0
        %2302 = vmatmul.mubr.f32.gmra.mxu0 %v2186
        %v2303 = vpop.f32.mrf.mxu0
        %v2304 = vadd.f32 %v2182, %v2303
        %v2305 = vpop.f32.mrf.mxu0
        %2306 = vmatprep.mubr.f32.mxu0 0.0
        %2307 = vmatmul.mubr.f32.gmra.mxu0 %v2189
        %v2308 = vpop.f32.mrf.mxu0
        %v2309 = vadd.f32 %v2182, %v2308
        %v2310 = vpop.f32.mrf.mxu0
        %2311 = vmatprep.mubr.f32.mxu0 0.0
        %2312 = vmatmul.mubr.f32.gmra.mxu0 %v2192
        %v2313 = vpop.f32.mrf.mxu0
        %v2314 = vadd.f32 %v2182, %v2313
        %v2315 = vpop.f32.mrf.mxu0
        %2316 = vmatprep.mubr.f32.mxu0 0.0
        %2317 = vmatmul.mubr.f32.gmra.mxu0 %v2195
        %v2318 = vpop.f32.mrf.mxu0
        %v2319 = vadd.f32 %v2182, %v2318
        %v2320 = vpop.f32.mrf.mxu0
        %2321 = vmatprep.mubr.f32.mxu0 0.0
        %2322 = vmatmul.mubr.f32.gmra.mxu0 %v2198
        %v2323 = vpop.f32.mrf.mxu0
        %v2324 = vadd.f32 %v2182, %v2323
        %v2325 = vpop.f32.mrf.mxu0
        %2326 = vmatprep.mubr.f32.mxu0 0.0
        %2327 = vmatmul.mubr.f32.gmra.mxu0 %v2201
        %v2328 = vpop.f32.mrf.mxu0
        %v2329 = vadd.f32 %v2182, %v2328
        %v2330 = vpop.f32.mrf.mxu0
        %2331 = vmatprep.mubr.f32.mxu0 0.0
        %2332 = vmatmul.mubr.f32.gmra.mxu0 %v2204
        %v2333 = vpop.f32.mrf.mxu0
        %v2334 = vadd.f32 %v2182, %v2333
        %v2335 = vpop.f32.mrf.mxu0
        %2336 = vmatprep.mubr.f32.mxu0 0.0
        %2337 = vmatmul.mubr.f32.gmra.mxu0 %v2207
        %v2338 = vpop.f32.mrf.mxu0
        %v2339 = vadd.f32 %v2182, %v2338
        %v2340 = vpop.f32.mrf.mxu0
        %2341 = vmatprep.mubr.f32.mxu0 0.0
        %2342 = vmatmul.mubr.f32.gmra.mxu0 %v2210
        %v2343 = vpop.f32.mrf.mxu0
        %v2344 = vadd.f32 %v2182, %v2343
        %v2345 = vpop.f32.mrf.mxu0
        %2346 = vmatprep.mubr.f32.mxu0 0.0
        %2347 = vmatmul.mubr.f32.gmra.mxu0 %v2213
        %v2348 = vpop.f32.mrf.mxu0
        %v2349 = vadd.f32 %v2182, %v2348
        %v2350 = vpop.f32.mrf.mxu0
        %2351 = vmatprep.mubr.f32.mxu0 0.0
        %2352 = vmatmul.mubr.f32.gmra.mxu0 %v2216
        %v2353 = vpop.f32.mrf.mxu0
        %v2354 = vadd.f32 %v2182, %v2353
        %v2355 = vpop.f32.mrf.mxu0
        %2356 = vmatprep.mubr.f32.mxu0 0.0
        %2357 = vmatmul.mubr.f32.gmra.mxu0 %v2219
        %v2358 = vpop.f32.mrf.mxu0
        %v2359 = vadd.f32 %v2182, %v2358
        %v2360 = vpop.f32.mrf.mxu0
        %2361 = vmatprep.mubr.f32.mxu0 0.0
        %2362 = vmatmul.mubr.f32.gmra.mxu0 %v2222
        %v2363 = vpop.f32.mrf.mxu0
        %v2364 = vadd.f32 %v2182, %v2363
        %v2365 = vpop.f32.mrf.mxu0
        %2366 = vmatprep.mubr.f32.mxu0 0.0
        %2367 = vmatmul.mubr.f32.gmra.mxu0 %v2225
        %v2368 = vpop.f32.mrf.mxu0
        %v2369 = vadd.f32 %v2182, %v2368
        %v2370 = vpop.f32.mrf.mxu0
        %2371 = vmatprep.mubr.f32.mxu0 0.0
        %2372 = vmatmul.mubr.f32.gmra.mxu0 %v2228
        %v2373 = vpop.f32.mrf.mxu0
        %v2374 = vadd.f32 %v2182, %v2373
        %v2375 = vpop.f32.mrf.mxu0
        %2376 = vmatprep.mubr.f32.mxu0 0.0
        %2377 = vmatmul.mubr.f32.gmra.mxu0 %v2231
        %v2378 = vpop.f32.mrf.mxu0
        %v2379 = vadd.f32 %v2182, %v2378
        %v2380 = vpop.f32.mrf.mxu0
        %2381 = vdwg.mxu0
        %v2382 = vmax.f32 %v2304, 0.0
        %v2383 = vmax.f32 %v2309, 0.0
        %v2384 = vmax.f32 %v2314, 0.0
        %v2385 = vmax.f32 %v2319, 0.0
        %v2386 = vmax.f32 %v2324, 0.0
        %v2387 = vmax.f32 %v2329, 0.0
        %v2388 = vmax.f32 %v2334, 0.0
        %v2389 = vmax.f32 %v2339, 0.0
        %v2390 = vmax.f32 %v2344, 0.0
        %v2391 = vmax.f32 %v2349, 0.0
        %v2392 = vmax.f32 %v2354, 0.0
        %v2393 = vmax.f32 %v2359, 0.0
        %v2394 = vmax.f32 %v2364, 0.0
        %v2395 = vmax.f32 %v2369, 0.0
        %v2396 = vmax.f32 %v2374, 0.0
        %v2397 = vmax.f32 %v2379, 0.0
        %vm2398 = vcmask 523264
        %2399 = vst.msk [vmem:[#allocation2 + $0x3] sm:$0xff] %vm2398, %v2382
        %2400 = vst.msk [vmem:[#allocation2 + $0xb] sm:$0xff] %vm2398, %v2383
        %2401 = vst.msk [vmem:[#allocation2 + $0x13] sm:$0xff] %vm2398, %v2384
        %2402 = vst.msk [vmem:[#allocation2 + $0x1b] sm:$0xff] %vm2398, %v2385
        %2403 = vst.msk [vmem:[#allocation2 + $0x23] sm:$0xff] %vm2398, %v2386
        %2404 = vst.msk [vmem:[#allocation2 + $0x2b] sm:$0xff] %vm2398, %v2387
        %2405 = vst.msk [vmem:[#allocation2 + $0x33] sm:$0xff] %vm2398, %v2388
        %2406 = vst.msk [vmem:[#allocation2 + $0x3b] sm:$0xff] %vm2398, %v2389
        %2407 = vst.msk [vmem:[#allocation2 + $0x43] sm:$0xff] %vm2398, %v2390
        %2408 = vst.msk [vmem:[#allocation2 + $0x4b] sm:$0xff] %vm2398, %v2391
        %2409 = vst.msk [vmem:[#allocation2 + $0x53] sm:$0xff] %vm2398, %v2392
        %2410 = vst.msk [vmem:[#allocation2 + $0x5b] sm:$0xff] %vm2398, %v2393
        %2411 = vst.msk [vmem:[#allocation2 + $0x63] sm:$0xff] %vm2398, %v2394
        %2412 = vst.msk [vmem:[#allocation2 + $0x6b] sm:$0xff] %vm2398, %v2395
        %2413 = vst.msk [vmem:[#allocation2 + $0x73] sm:$0xff] %vm2398, %v2396
        %2414 = vst.msk [vmem:[#allocation2 + $0x7b] sm:$0xff] %vm2398, %v2397
        %v2415 = vld [vmem:[#allocation2 + $0x1] sm:$0xff]
        %v2416 = vld [vmem:[#allocation2 + $0x9] sm:$0xff]
        %v2417 = vld [vmem:[#allocation2 + $0x11] sm:$0xff]
        %v2418 = vld [vmem:[#allocation2 + $0x19] sm:$0xff]
        %v2419 = vld [vmem:[#allocation2 + $0x21] sm:$0xff]
        %v2420 = vld [vmem:[#allocation2 + $0x29] sm:$0xff]
        %v2421 = vld [vmem:[#allocation2 + $0x31] sm:$0xff]
        %v2422 = vld [vmem:[#allocation2 + $0x39] sm:$0xff]
        %v2423 = vld [vmem:[#allocation2 + $0x41] sm:$0xff]
        %v2424 = vld [vmem:[#allocation2 + $0x49] sm:$0xff]
        %v2425 = vld [vmem:[#allocation2 + $0x51] sm:$0xff]
        %v2426 = vld [vmem:[#allocation2 + $0x59] sm:$0xff]
        %v2427 = vld [vmem:[#allocation2 + $0x61] sm:$0xff]
        %v2428 = vld [vmem:[#allocation2 + $0x69] sm:$0xff]
        %v2429 = vld [vmem:[#allocation2 + $0x71] sm:$0xff]
        %v2430 = vld [vmem:[#allocation2 + $0x79] sm:$0xff]
        %v2431 = vsel %vm1384, %v2415, 0.0
        %v2432 = vsel %vm1385, %v2416, 0.0
        %v2433 = vsel %vm1386, %v2417, 0.0
        %v2434 = vsel %vm1387, %v2418, 0.0
        %v2435 = vsel %vm1388, %v2419, 0.0
        %v2436 = vsel %vm1389, %v2420, 0.0
        %v2437 = vsel %vm1390, %v2421, 0.0
        %v2438 = vsel %vm1391, %v2422, 0.0
        %v2439 = vsel %vm1392, %v2423, 0.0
        %v2440 = vsel %vm1393, %v2424, 0.0
        %v2441 = vsel %vm1394, %v2425, 0.0
        %v2442 = vsel %vm1395, %v2426, 0.0
        %v2443 = vsel %vm1396, %v2427, 0.0
        %v2444 = vsel %vm1397, %v2428, 0.0
        %v2445 = vsel %vm1398, %v2429, 0.0
        %v2446 = vsel %vm1399, %v2430, 0.0
        %v2447 = vld [vmem:[#allocation2 + $0x2] sm:$0xff]
        %v2448 = vld [vmem:[#allocation2 + $0xa] sm:$0xff]
        %v2449 = vld [vmem:[#allocation2 + $0x12] sm:$0xff]
        %v2450 = vld [vmem:[#allocation2 + $0x1a] sm:$0xff]
        %v2451 = vld [vmem:[#allocation2 + $0x22] sm:$0xff]
        %v2452 = vld [vmem:[#allocation2 + $0x2a] sm:$0xff]
        %v2453 = vld [vmem:[#allocation2 + $0x32] sm:$0xff]
        %v2454 = vld [vmem:[#allocation2 + $0x3a] sm:$0xff]
        %v2455 = vld [vmem:[#allocation2 + $0x42] sm:$0xff]
        %v2456 = vld [vmem:[#allocation2 + $0x4a] sm:$0xff]
        %v2457 = vld [vmem:[#allocation2 + $0x52] sm:$0xff]
        %v2458 = vld [vmem:[#allocation2 + $0x5a] sm:$0xff]
        %v2459 = vld [vmem:[#allocation2 + $0x62] sm:$0xff]
        %v2460 = vld [vmem:[#allocation2 + $0x6a] sm:$0xff]
        %v2461 = vld [vmem:[#allocation2 + $0x72] sm:$0xff]
        %v2462 = vld [vmem:[#allocation2 + $0x7a] sm:$0xff]
        %v2463 = vsel %vm1448, %v2447, 0.0
        %v2464 = vsel %vm1449, %v2448, 0.0
        %v2465 = vsel %vm1450, %v2449, 0.0
        %v2466 = vsel %vm1451, %v2450, 0.0
        %v2467 = vsel %vm1452, %v2451, 0.0
        %v2468 = vsel %vm1453, %v2452, 0.0
        %v2469 = vsel %vm1454, %v2453, 0.0
        %v2470 = vsel %vm1455, %v2454, 0.0
        %v2471 = vsel %vm1456, %v2455, 0.0
        %v2472 = vsel %vm1457, %v2456, 0.0
        %v2473 = vsel %vm1458, %v2457, 0.0
        %v2474 = vsel %vm1459, %v2458, 0.0
        %v2475 = vsel %vm1460, %v2459, 0.0
        %v2476 = vsel %vm1461, %v2460, 0.0
        %v2477 = vsel %vm1462, %v2461, 0.0
        %v2478 = vsel %vm1463, %v2462, 0.0
        %v2479 = vld [vmem:[#allocation2 + $0x3] sm:$0xff]
        %v2480 = vld [vmem:[#allocation2 + $0xb] sm:$0xff]
        %v2481 = vld [vmem:[#allocation2 + $0x13] sm:$0xff]
        %v2482 = vld [vmem:[#allocation2 + $0x1b] sm:$0xff]
        %v2483 = vld [vmem:[#allocation2 + $0x23] sm:$0xff]
        %v2484 = vld [vmem:[#allocation2 + $0x2b] sm:$0xff]
        %v2485 = vld [vmem:[#allocation2 + $0x33] sm:$0xff]
        %v2486 = vld [vmem:[#allocation2 + $0x3b] sm:$0xff]
        %v2487 = vld [vmem:[#allocation2 + $0x43] sm:$0xff]
        %v2488 = vld [vmem:[#allocation2 + $0x4b] sm:$0xff]
        %v2489 = vld [vmem:[#allocation2 + $0x53] sm:$0xff]
        %v2490 = vld [vmem:[#allocation2 + $0x5b] sm:$0xff]
        %v2491 = vld [vmem:[#allocation2 + $0x63] sm:$0xff]
        %v2492 = vld [vmem:[#allocation2 + $0x6b] sm:$0xff]
        %v2493 = vld [vmem:[#allocation2 + $0x73] sm:$0xff]
        %v2494 = vld [vmem:[#allocation2 + $0x7b] sm:$0xff]
        %v2495 = vld [vmem:[#allocation2 + $0x4] sm:$0xff]
        %v2496 = vld [vmem:[#allocation2 + $0xc] sm:$0xff]
        %v2497 = vld [vmem:[#allocation2 + $0x14] sm:$0xff]
        %v2498 = vld [vmem:[#allocation2 + $0x1c] sm:$0xff]
        %v2499 = vld [vmem:[#allocation2 + $0x24] sm:$0xff]
        %v2500 = vld [vmem:[#allocation2 + $0x2c] sm:$0xff]
        %v2501 = vld [vmem:[#allocation2 + $0x34] sm:$0xff]
        %v2502 = vld [vmem:[#allocation2 + $0x3c] sm:$0xff]
        %v2503 = vld [vmem:[#allocation2 + $0x44] sm:$0xff]
        %v2504 = vld [vmem:[#allocation2 + $0x4c] sm:$0xff]
        %v2505 = vld [vmem:[#allocation2 + $0x54] sm:$0xff]
        %v2506 = vld [vmem:[#allocation2 + $0x5c] sm:$0xff]
        %v2507 = vld [vmem:[#allocation2 + $0x64] sm:$0xff]
        %v2508 = vld [vmem:[#allocation2 + $0x6c] sm:$0xff]
        %v2509 = vld [vmem:[#allocation2 + $0x74] sm:$0xff]
        %v2510 = vld [vmem:[#allocation2 + $0x7c] sm:$0xff]
        %v2511 = vsel %vm1528, %v2495, 0.0
        %v2512 = vsel %vm1529, %v2496, 0.0
        %v2513 = vsel %vm1530, %v2497, 0.0
        %v2514 = vsel %vm1531, %v2498, 0.0
        %v2515 = vsel %vm1532, %v2499, 0.0
        %v2516 = vsel %vm1533, %v2500, 0.0
        %v2517 = vsel %vm1534, %v2501, 0.0
        %v2518 = vsel %vm1535, %v2502, 0.0
        %v2519 = vsel %vm1536, %v2503, 0.0
        %v2520 = vsel %vm1537, %v2504, 0.0
        %v2521 = vsel %vm1538, %v2505, 0.0
        %v2522 = vsel %vm1539, %v2506, 0.0
        %v2523 = vsel %vm1540, %v2507, 0.0
        %v2524 = vsel %vm1541, %v2508, 0.0
        %v2525 = vsel %vm1542, %v2509, 0.0
        %v2526 = vsel %vm1543, %v2510, 0.0
        %v2527 = vld [vmem:[#allocation2 + $0x5] sm:$0xff]
        %v2528 = vld [vmem:[#allocation2 + $0xd] sm:$0xff]
        %v2529 = vld [vmem:[#allocation2 + $0x15] sm:$0xff]
        %v2530 = vld [vmem:[#allocation2 + $0x1d] sm:$0xff]
        %v2531 = vld [vmem:[#allocation2 + $0x25] sm:$0xff]
        %v2532 = vld [vmem:[#allocation2 + $0x2d] sm:$0xff]
        %v2533 = vld [vmem:[#allocation2 + $0x35] sm:$0xff]
        %v2534 = vld [vmem:[#allocation2 + $0x3d] sm:$0xff]
        %v2535 = vld [vmem:[#allocation2 + $0x45] sm:$0xff]
        %v2536 = vld [vmem:[#allocation2 + $0x4d] sm:$0xff]
        %v2537 = vld [vmem:[#allocation2 + $0x55] sm:$0xff]
        %v2538 = vld [vmem:[#allocation2 + $0x5d] sm:$0xff]
        %v2539 = vld [vmem:[#allocation2 + $0x65] sm:$0xff]
        %v2540 = vld [vmem:[#allocation2 + $0x6d] sm:$0xff]
        %v2541 = vld [vmem:[#allocation2 + $0x75] sm:$0xff]
        %v2542 = vld [vmem:[#allocation2 + $0x7d] sm:$0xff]
        %v2543 = vsel %vm1592, %v2527, 0.0
        %v2544 = vsel %vm1593, %v2528, 0.0
        %v2545 = vsel %vm1594, %v2529, 0.0
        %v2546 = vsel %vm1595, %v2530, 0.0
        %v2547 = vsel %vm1596, %v2531, 0.0
        %v2548 = vsel %vm1597, %v2532, 0.0
        %v2549 = vsel %vm1598, %v2533, 0.0
        %v2550 = vsel %vm1599, %v2534, 0.0
        %v2551 = vsel %vm1600, %v2535, 0.0
        %v2552 = vsel %vm1601, %v2536, 0.0
        %v2553 = vsel %vm1602, %v2537, 0.0
        %v2554 = vsel %vm1603, %v2538, 0.0
        %v2555 = vsel %vm1604, %v2539, 0.0
        %v2556 = vsel %vm1605, %v2540, 0.0
        %v2557 = vsel %vm1606, %v2541, 0.0
        %v2558 = vsel %vm1607, %v2542, 0.0
        %2575 = vrot.lane.b32.xlu0 %v2463, 64
        %v2576 = vpop.permute.xlu0 %2575
        %2577 = vrot.lane.b32.xlu0 %v2464, 64
        %v2578 = vpop.permute.xlu0 %2577
        %2579 = vrot.lane.b32.xlu0 %v2465, 64
        %v2580 = vpop.permute.xlu0 %2579
        %2581 = vrot.lane.b32.xlu0 %v2466, 64
        %v2582 = vpop.permute.xlu0 %2581
        %2583 = vrot.lane.b32.xlu0 %v2467, 64
        %v2584 = vpop.permute.xlu0 %2583
        %2585 = vrot.lane.b32.xlu0 %v2468, 64
        %v2586 = vpop.permute.xlu0 %2585
        %2587 = vrot.lane.b32.xlu0 %v2469, 64
        %v2588 = vpop.permute.xlu0 %2587
        %2589 = vrot.lane.b32.xlu0 %v2470, 64
        %v2590 = vpop.permute.xlu0 %2589
        %2591 = vrot.lane.b32.xlu0 %v2471, 64
        %v2592 = vpop.permute.xlu0 %2591
        %2593 = vrot.lane.b32.xlu0 %v2472, 64
        %v2594 = vpop.permute.xlu0 %2593
        %2595 = vrot.lane.b32.xlu0 %v2473, 64
        %v2596 = vpop.permute.xlu0 %2595
        %2597 = vrot.lane.b32.xlu0 %v2474, 64
        %v2598 = vpop.permute.xlu0 %2597
        %2599 = vrot.lane.b32.xlu0 %v2475, 64
        %v2600 = vpop.permute.xlu0 %2599
        %2601 = vrot.lane.b32.xlu0 %v2476, 64
        %v2602 = vpop.permute.xlu0 %2601
        %2603 = vrot.lane.b32.xlu0 %v2477, 64
        %v2604 = vpop.permute.xlu0 %2603
        %2605 = vrot.lane.b32.xlu0 %v2478, 64
        %v2606 = vpop.permute.xlu0 %2605
        %2639 = vrot.lane.b32.xlu0 %v2511, 64
        %v2640 = vpop.permute.xlu0 %2639
        %2641 = vrot.lane.b32.xlu0 %v2512, 64
        %v2642 = vpop.permute.xlu0 %2641
        %2643 = vrot.lane.b32.xlu0 %v2513, 64
        %v2644 = vpop.permute.xlu0 %2643
        %2645 = vrot.lane.b32.xlu0 %v2514, 64
        %v2646 = vpop.permute.xlu0 %2645
        %2647 = vrot.lane.b32.xlu0 %v2515, 64
        %v2648 = vpop.permute.xlu0 %2647
        %2649 = vrot.lane.b32.xlu0 %v2516, 64
        %v2650 = vpop.permute.xlu0 %2649
        %2651 = vrot.lane.b32.xlu0 %v2517, 64
        %v2652 = vpop.permute.xlu0 %2651
        %2653 = vrot.lane.b32.xlu0 %v2518, 64
        %v2654 = vpop.permute.xlu0 %2653
        %2655 = vrot.lane.b32.xlu0 %v2519, 64
        %v2656 = vpop.permute.xlu0 %2655
        %2657 = vrot.lane.b32.xlu0 %v2520, 64
        %v2658 = vpop.permute.xlu0 %2657
        %2659 = vrot.lane.b32.xlu0 %v2521, 64
        %v2660 = vpop.permute.xlu0 %2659
        %2661 = vrot.lane.b32.xlu0 %v2522, 64
        %v2662 = vpop.permute.xlu0 %2661
        %2663 = vrot.lane.b32.xlu0 %v2523, 64
        %v2664 = vpop.permute.xlu0 %2663
        %2665 = vrot.lane.b32.xlu0 %v2524, 64
        %v2666 = vpop.permute.xlu0 %2665
        %2667 = vrot.lane.b32.xlu0 %v2525, 64
        %v2668 = vpop.permute.xlu0 %2667
        %2669 = vrot.lane.b32.xlu0 %v2526, 64
        %v2670 = vpop.permute.xlu0 %2669
        %v2687 = vsel %vm2398, %v2431, %v2576
        %v2688 = vsel %vm2398, %v2432, %v2578
        %v2689 = vsel %vm2398, %v2433, %v2580
        %v2690 = vsel %vm2398, %v2434, %v2582
        %v2691 = vsel %vm2398, %v2435, %v2584
        %v2692 = vsel %vm2398, %v2436, %v2586
        %v2693 = vsel %vm2398, %v2437, %v2588
        %v2694 = vsel %vm2398, %v2438, %v2590
        %v2695 = vsel %vm2398, %v2439, %v2592
        %v2696 = vsel %vm2398, %v2440, %v2594
        %v2697 = vsel %vm2398, %v2441, %v2596
        %v2698 = vsel %vm2398, %v2442, %v2598
        %v2699 = vsel %vm2398, %v2443, %v2600
        %v2700 = vsel %vm2398, %v2444, %v2602
        %v2701 = vsel %vm2398, %v2445, %v2604
        %v2702 = vsel %vm2398, %v2446, %v2606
        %v2703 = vsel %vm2398, %v2479, %v2640
        %v2704 = vsel %vm2398, %v2480, %v2642
        %v2705 = vsel %vm2398, %v2481, %v2644
        %v2706 = vsel %vm2398, %v2482, %v2646
        %v2707 = vsel %vm2398, %v2483, %v2648
        %v2708 = vsel %vm2398, %v2484, %v2650
        %v2709 = vsel %vm2398, %v2485, %v2652
        %v2710 = vsel %vm2398, %v2486, %v2654
        %v2711 = vsel %vm2398, %v2487, %v2656
        %v2712 = vsel %vm2398, %v2488, %v2658
        %v2713 = vsel %vm2398, %v2489, %v2660
        %v2714 = vsel %vm2398, %v2490, %v2662
        %v2715 = vsel %vm2398, %v2491, %v2664
        %v2716 = vsel %vm2398, %v2492, %v2666
        %v2717 = vsel %vm2398, %v2493, %v2668
        %v2718 = vsel %vm2398, %v2494, %v2670
        %v2719 = vld [vmem:[%s3] sm:$0xff]
        %v2720 = vld [vmem:[%s3 + $0x8] sm:$0xff]
        %v2721 = vld [vmem:[%s3 + $0x10] sm:$0xff]
        %v2722 = vld [vmem:[%s3 + $0x18] sm:$0xff]
        %v2723 = vld [vmem:[%s3 + $0x20] sm:$0xff]
        %v2724 = vld [vmem:[%s3 + $0x28] sm:$0xff]
        %v2725 = vld [vmem:[%s3 + $0x30] sm:$0xff]
        %v2726 = vld [vmem:[%s3 + $0x38] sm:$0xff]
        %v2727 = vld [vmem:[%s3 + $0x40] sm:$0xff]
        %v2728 = vld [vmem:[%s3 + $0x48] sm:$0xff]
        %v2729 = vld [vmem:[%s3 + $0x50] sm:$0xff]
        %v2730 = vld [vmem:[%s3 + $0x58] sm:$0xff]
        %v2731 = vld [vmem:[%s3 + $0x60] sm:$0xff]
        %v2732 = vld [vmem:[%s3 + $0x68] sm:$0xff]
        %v2733 = vld [vmem:[%s3 + $0x70] sm:$0xff]
        %v2734 = vld [vmem:[%s3 + $0x78] sm:$0xff]
        %v2735 = vld [vmem:[%s3 + $0x80] sm:$0xff]
        %v2736 = vld [vmem:[%s3 + $0x88] sm:$0xff]
        %v2737 = vld [vmem:[%s3 + $0x90] sm:$0xff]
        %v2738 = vld [vmem:[%s3 + $0x98] sm:$0xff]
        %v2739 = vld [vmem:[%s3 + $0xa0] sm:$0xff]
        %v2740 = vld [vmem:[%s3 + $0xa8] sm:$0xff]
        %v2741 = vld [vmem:[%s3 + $0xb0] sm:$0xff]
        %v2742 = vld [vmem:[%s3 + $0xb8] sm:$0xff]
        %v2743 = vld [vmem:[%s3 + $0xc0] sm:$0xff]
        %v2744 = vld [vmem:[%s3 + $0xc8] sm:$0xff]
        %v2745 = vld [vmem:[%s3 + $0xd0] sm:$0xff]
        %v2746 = vld [vmem:[%s3 + $0xd8] sm:$0xff]
        %v2747 = vld [vmem:[%s3 + $0xe0] sm:$0xff]
        %v2748 = vld [vmem:[%s3 + $0xe8] sm:$0xff]
        %v2749 = vld [vmem:[%s3 + $0xf0] sm:$0xff]
        %v2750 = vld [vmem:[%s3 + $0xf8] sm:$0xff]
        %v2751 = vld [vmem:[%s3 + $0x100] sm:$0xff]
        %v2752 = vld [vmem:[%s3 + $0x108] sm:$0xff]
        %v2753 = vld [vmem:[%s3 + $0x110] sm:$0xff]
        %v2754 = vld [vmem:[%s3 + $0x118] sm:$0xff]
        %v2755 = vld [vmem:[%s3 + $0x120] sm:$0xff]
        %v2756 = vld [vmem:[%s3 + $0x128] sm:$0xff]
        %v2757 = vld [vmem:[%s3 + $0x130] sm:$0xff]
        %v2758 = vld [vmem:[%s3 + $0x138] sm:$0xff]
        %v2759 = vld [vmem:[%s4] sm:$0x1]
        %v2761 = vlaneseq
        %v2762 = vshrl.u32 %v2761, 7
        %v2763 = vsub.s32 0, %v2762
        %v2764 = vrot.slane %v2759, %v2763
        %v2767 = vsel %vm2398, %v2543, 0
        %v2770 = vsel %vm2398, %v2544, 0
        %v2773 = vsel %vm2398, %v2545, 0
        %v2776 = vsel %vm2398, %v2546, 0
        %v2779 = vsel %vm2398, %v2547, 0
        %v2782 = vsel %vm2398, %v2548, 0
        %v2785 = vsel %vm2398, %v2549, 0
        %v2788 = vsel %vm2398, %v2550, 0
        %v2791 = vsel %vm2398, %v2551, 0
        %v2794 = vsel %vm2398, %v2552, 0
        %v2797 = vsel %vm2398, %v2553, 0
        %v2800 = vsel %vm2398, %v2554, 0
        %v2803 = vsel %vm2398, %v2555, 0
        %v2806 = vsel %vm2398, %v2556, 0
        %v2809 = vsel %vm2398, %v2557, 0
        %v2812 = vsel %vm2398, %v2558, 0
        %2814 = vmatprep.subr.mxu0 0.0
        %2815 = vmatpush1.msra.mxu0 %v2734
        %2816 = vmatprep.subr.mxu0 0.0
        %2817 = vmatpush1.msra.mxu0 %v2733
        %2818 = vmatprep.subr.mxu0 0.0
        %2819 = vmatpush1.msra.mxu0 %v2732
        %2820 = vmatprep.subr.mxu0 0.0
        %2821 = vmatpush1.msra.mxu0 %v2731
        %2822 = vmatprep.subr.mxu0 0.0
        %2823 = vmatpush1.msra.mxu0 %v2730
        %2824 = vmatprep.subr.mxu0 0.0
        %2825 = vmatpush1.msra.mxu0 %v2729
        %2826 = vmatprep.subr.mxu0 0.0
        %2827 = vmatpush1.msra.mxu0 %v2728
        %2828 = vmatprep.subr.mxu0 0.0
        %2829 = vmatpush1.msra.mxu0 %v2727
        %2830 = vmatprep.subr.mxu0 0.0
        %2831 = vmatpush1.msra.mxu0 %v2726
        %2832 = vmatprep.subr.mxu0 0.0
        %2833 = vmatpush1.msra.mxu0 %v2725
        %2834 = vmatprep.subr.mxu0 0.0
        %2835 = vmatpush1.msra.mxu0 %v2724
        %2836 = vmatprep.subr.mxu0 0.0
        %2837 = vmatpush1.msra.mxu0 %v2723
        %2838 = vmatprep.subr.mxu0 0.0
        %2839 = vmatpush1.msra.mxu0 %v2722
        %2840 = vmatprep.subr.mxu0 0.0
        %2841 = vmatpush1.msra.mxu0 %v2721
        %2842 = vmatprep.subr.mxu0 0.0
        %2843 = vmatpush1.msra.mxu0 %v2720
        %2844 = vmatprep.subr.mxu0 0.0
        %2845 = vmatpush1.msra.mxu0 %v2719
        %2846 = vmatprep.subr.mxu0 0.0
        %2847 = vmatpush2.msra.mxu0 %v2750
        %2848 = vmatprep.subr.mxu0 0.0
        %2849 = vmatpush2.msra.mxu0 %v2749
        %2850 = vmatprep.subr.mxu0 0.0
        %2851 = vmatpush2.msra.mxu0 %v2748
        %2852 = vmatprep.subr.mxu0 0.0
        %2853 = vmatpush2.msra.mxu0 %v2747
        %2854 = vmatprep.subr.mxu0 0.0
        %2855 = vmatpush2.msra.mxu0 %v2746
        %2856 = vmatprep.subr.mxu0 0.0
        %2857 = vmatpush2.msra.mxu0 %v2745
        %2858 = vmatprep.subr.mxu0 0.0
        %2859 = vmatpush2.msra.mxu0 %v2744
        %2860 = vmatprep.subr.mxu0 0.0
        %2861 = vmatpush2.msra.mxu0 %v2743
        %2862 = vmatprep.subr.mxu0 0.0
        %2863 = vmatpush2.msra.mxu0 %v2742
        %2864 = vmatprep.subr.mxu0 0.0
        %2865 = vmatpush2.msra.mxu0 %v2741
        %2866 = vmatprep.subr.mxu0 0.0
        %2867 = vmatpush2.msra.mxu0 %v2740
        %2868 = vmatprep.subr.mxu0 0.0
        %2869 = vmatpush2.msra.mxu0 %v2739
        %2870 = vmatprep.subr.mxu0 0.0
        %2871 = vmatpush2.msra.mxu0 %v2738
        %2872 = vmatprep.subr.mxu0 0.0
        %2873 = vmatpush2.msra.mxu0 %v2737
        %2874 = vmatprep.subr.mxu0 0.0
        %2875 = vmatpush2.msra.mxu0 %v2736
        %2876 = vmatprep.subr.mxu0 0.0
        %2877 = vmatpush2.msra.mxu0 %v2735
        %2878 = vmatprep.mubr.f32.mxu0 %v2703
        %2879 = vmatmul.mubr.f32.gmra.mxu0 %v2687
        %v2880 = vpop.f32.mrf.mxu0
        %v2881 = vadd.f32 %v2764, %v2880
        %v2882 = vpop.f32.mrf.mxu0
        %2883 = vmatprep.mubr.f32.mxu0 %v2704
        %2884 = vmatmul.mubr.f32.gmra.mxu0 %v2688
        %v2885 = vpop.f32.mrf.mxu0
        %v2886 = vadd.f32 %v2764, %v2885
        %v2887 = vpop.f32.mrf.mxu0
        %2888 = vmatprep.mubr.f32.mxu0 %v2705
        %2889 = vmatmul.mubr.f32.gmra.mxu0 %v2689
        %v2890 = vpop.f32.mrf.mxu0
        %v2891 = vadd.f32 %v2764, %v2890
        %v2892 = vpop.f32.mrf.mxu0
        %2893 = vmatprep.mubr.f32.mxu0 %v2706
        %2894 = vmatmul.mubr.f32.gmra.mxu0 %v2690
        %v2895 = vpop.f32.mrf.mxu0
        %v2896 = vadd.f32 %v2764, %v2895
        %v2897 = vpop.f32.mrf.mxu0
        %2898 = vmatprep.mubr.f32.mxu0 %v2707
        %2899 = vmatmul.mubr.f32.gmra.mxu0 %v2691
        %v2900 = vpop.f32.mrf.mxu0
        %v2901 = vadd.f32 %v2764, %v2900
        %v2902 = vpop.f32.mrf.mxu0
        %2903 = vmatprep.mubr.f32.mxu0 %v2708
        %2904 = vmatmul.mubr.f32.gmra.mxu0 %v2692
        %v2905 = vpop.f32.mrf.mxu0
        %v2906 = vadd.f32 %v2764, %v2905
        %v2907 = vpop.f32.mrf.mxu0
        %2908 = vmatprep.mubr.f32.mxu0 %v2709
        %2909 = vmatmul.mubr.f32.gmra.mxu0 %v2693
        %v2910 = vpop.f32.mrf.mxu0
        %v2911 = vadd.f32 %v2764, %v2910
        %v2912 = vpop.f32.mrf.mxu0
        %2913 = vmatprep.mubr.f32.mxu0 %v2710
        %2914 = vmatmul.mubr.f32.gmra.mxu0 %v2694
        %v2915 = vpop.f32.mrf.mxu0
        %v2916 = vadd.f32 %v2764, %v2915
        %v2917 = vpop.f32.mrf.mxu0
        %2918 = vmatprep.mubr.f32.mxu0 %v2711
        %2919 = vmatmul.mubr.f32.gmra.mxu0 %v2695
        %v2920 = vpop.f32.mrf.mxu0
        %v2921 = vadd.f32 %v2764, %v2920
        %v2922 = vpop.f32.mrf.mxu0
        %2923 = vmatprep.mubr.f32.mxu0 %v2712
        %2924 = vmatmul.mubr.f32.gmra.mxu0 %v2696
        %v2925 = vpop.f32.mrf.mxu0
        %v2926 = vadd.f32 %v2764, %v2925
        %v2927 = vpop.f32.mrf.mxu0
        %2928 = vmatprep.mubr.f32.mxu0 %v2713
        %2929 = vmatmul.mubr.f32.gmra.mxu0 %v2697
        %v2930 = vpop.f32.mrf.mxu0
        %v2931 = vadd.f32 %v2764, %v2930
        %v2932 = vpop.f32.mrf.mxu0
        %2933 = vmatprep.mubr.f32.mxu0 %v2714
        %2934 = vmatmul.mubr.f32.gmra.mxu0 %v2698
        %v2935 = vpop.f32.mrf.mxu0
        %v2936 = vadd.f32 %v2764, %v2935
        %v2937 = vpop.f32.mrf.mxu0
        %2938 = vmatprep.mubr.f32.mxu0 %v2715
        %2939 = vmatmul.mubr.f32.gmra.mxu0 %v2699
        %v2940 = vpop.f32.mrf.mxu0
        %v2941 = vadd.f32 %v2764, %v2940
        %v2942 = vpop.f32.mrf.mxu0
        %2943 = vmatprep.mubr.f32.mxu0 %v2716
        %2944 = vmatmul.mubr.f32.gmra.mxu0 %v2700
        %v2945 = vpop.f32.mrf.mxu0
        %v2946 = vadd.f32 %v2764, %v2945
        %v2947 = vpop.f32.mrf.mxu0
        %2948 = vmatprep.mubr.f32.mxu0 %v2717
        %2949 = vmatmul.mubr.f32.gmra.mxu0 %v2701
        %v2950 = vpop.f32.mrf.mxu0
        %v2951 = vadd.f32 %v2764, %v2950
        %v2952 = vpop.f32.mrf.mxu0
        %2953 = vmatprep.mubr.f32.mxu0 %v2718
        %2954 = vmatmul.mubr.f32.gmra.mxu0 %v2702
        %v2955 = vpop.f32.mrf.mxu0
        %v2956 = vadd.f32 %v2764, %v2955
        %v2957 = vpop.f32.mrf.mxu0
        %2958 = vdwg.mxu0
        %2959 = vmatprep.subr.mxu0 0.0
        %2960 = vmatpush1.msra.mxu0 0.0
        %2961 = vmatprep.subr.mxu0 0.0
        %2962 = vmatpush1.msra.mxu0 0.0
        %2963 = vmatprep.subr.mxu0 0.0
        %2964 = vmatpush1.msra.mxu0 0.0
        %2965 = vmatprep.subr.mxu0 0.0
        %2966 = vmatpush1.msra.mxu0 0.0
        %2967 = vmatprep.subr.mxu0 0.0
        %2968 = vmatpush1.msra.mxu0 0.0
        %2969 = vmatprep.subr.mxu0 0.0
        %2970 = vmatpush1.msra.mxu0 0.0
        %2971 = vmatprep.subr.mxu0 0.0
        %2972 = vmatpush1.msra.mxu0 0.0
        %2973 = vmatprep.subr.mxu0 0.0
        %2974 = vmatpush1.msra.mxu0 0.0
        %2975 = vmatprep.subr.mxu0 0.0
        %2976 = vmatpush1.msra.mxu0 %v2758
        %2977 = vmatprep.subr.mxu0 0.0
        %2978 = vmatpush1.msra.mxu0 %v2757
        %2979 = vmatprep.subr.mxu0 0.0
        %2980 = vmatpush1.msra.mxu0 %v2756
        %2981 = vmatprep.subr.mxu0 0.0
        %2982 = vmatpush1.msra.mxu0 %v2755
        %2983 = vmatprep.subr.mxu0 0.0
        %2984 = vmatpush1.msra.mxu0 %v2754
        %2985 = vmatprep.subr.mxu0 0.0
        %2986 = vmatpush1.msra.mxu0 %v2753
        %2987 = vmatprep.subr.mxu0 0.0
        %2988 = vmatpush1.msra.mxu0 %v2752
        %2989 = vmatprep.subr.mxu0 0.0
        %2990 = vmatpush1.msra.mxu0 %v2751
        %2991 = vmatprep.subr.mxu0 0.0
        %2992 = vmatpush2.msra.mxu0 0.0
        %2993 = vmatprep.subr.mxu0 0.0
        %2994 = vmatpush2.msra.mxu0 0.0
        %2995 = vmatprep.subr.mxu0 0.0
        %2996 = vmatpush2.msra.mxu0 0.0
        %2997 = vmatprep.subr.mxu0 0.0
        %2998 = vmatpush2.msra.mxu0 0.0
        %2999 = vmatprep.subr.mxu0 0.0
        %3000 = vmatpush2.msra.mxu0 0.0
        %3001 = vmatprep.subr.mxu0 0.0
        %3002 = vmatpush2.msra.mxu0 0.0
        %3003 = vmatprep.subr.mxu0 0.0
        %3004 = vmatpush2.msra.mxu0 0.0
        %3005 = vmatprep.subr.mxu0 0.0
        %3006 = vmatpush2.msra.mxu0 0.0
        %3007 = vmatprep.subr.mxu0 0.0
        %3008 = vmatpush2.msra.mxu0 0.0
        %3009 = vmatprep.subr.mxu0 0.0
        %3010 = vmatpush2.msra.mxu0 0.0
        %3011 = vmatprep.subr.mxu0 0.0
        %3012 = vmatpush2.msra.mxu0 0.0
        %3013 = vmatprep.subr.mxu0 0.0
        %3014 = vmatpush2.msra.mxu0 0.0
        %3015 = vmatprep.subr.mxu0 0.0
        %3016 = vmatpush2.msra.mxu0 0.0
        %3017 = vmatprep.subr.mxu0 0.0
        %3018 = vmatpush2.msra.mxu0 0.0
        %3019 = vmatprep.subr.mxu0 0.0
        %3020 = vmatpush2.msra.mxu0 0.0
        %3021 = vmatprep.subr.mxu0 0.0
        %3022 = vmatpush2.msra.mxu0 0.0
        %3023 = vmatprep.mubr.f32.mxu0 0.0
        %3024 = vmatmul.mubr.f32.gmra.mxu0 %v2767
        %v3025 = vpop.f32.mrf.mxu0
        %v3026 = vadd.f32 %v2881, %v3025
        %v3027 = vpop.f32.mrf.mxu0
        %3028 = vmatprep.mubr.f32.mxu0 0.0
        %3029 = vmatmul.mubr.f32.gmra.mxu0 %v2770
        %v3030 = vpop.f32.mrf.mxu0
        %v3031 = vadd.f32 %v2886, %v3030
        %v3032 = vpop.f32.mrf.mxu0
        %3033 = vmatprep.mubr.f32.mxu0 0.0
        %3034 = vmatmul.mubr.f32.gmra.mxu0 %v2773
        %v3035 = vpop.f32.mrf.mxu0
        %v3036 = vadd.f32 %v2891, %v3035
        %v3037 = vpop.f32.mrf.mxu0
        %3038 = vmatprep.mubr.f32.mxu0 0.0
        %3039 = vmatmul.mubr.f32.gmra.mxu0 %v2776
        %v3040 = vpop.f32.mrf.mxu0
        %v3041 = vadd.f32 %v2896, %v3040
        %v3042 = vpop.f32.mrf.mxu0
        %3043 = vmatprep.mubr.f32.mxu0 0.0
        %3044 = vmatmul.mubr.f32.gmra.mxu0 %v2779
        %v3045 = vpop.f32.mrf.mxu0
        %v3046 = vadd.f32 %v2901, %v3045
        %v3047 = vpop.f32.mrf.mxu0
        %3048 = vmatprep.mubr.f32.mxu0 0.0
        %3049 = vmatmul.mubr.f32.gmra.mxu0 %v2782
        %v3050 = vpop.f32.mrf.mxu0
        %v3051 = vadd.f32 %v2906, %v3050
        %v3052 = vpop.f32.mrf.mxu0
        %3053 = vmatprep.mubr.f32.mxu0 0.0
        %3054 = vmatmul.mubr.f32.gmra.mxu0 %v2785
        %v3055 = vpop.f32.mrf.mxu0
        %v3056 = vadd.f32 %v2911, %v3055
        %v3057 = vpop.f32.mrf.mxu0
        %3058 = vmatprep.mubr.f32.mxu0 0.0
        %3059 = vmatmul.mubr.f32.gmra.mxu0 %v2788
        %v3060 = vpop.f32.mrf.mxu0
        %v3061 = vadd.f32 %v2916, %v3060
        %v3062 = vpop.f32.mrf.mxu0
        %3063 = vmatprep.mubr.f32.mxu0 0.0
        %3064 = vmatmul.mubr.f32.gmra.mxu0 %v2791
        %v3065 = vpop.f32.mrf.mxu0
        %v3066 = vadd.f32 %v2921, %v3065
        %v3067 = vpop.f32.mrf.mxu0
        %3068 = vmatprep.mubr.f32.mxu0 0.0
        %3069 = vmatmul.mubr.f32.gmra.mxu0 %v2794
        %v3070 = vpop.f32.mrf.mxu0
        %v3071 = vadd.f32 %v2926, %v3070
        %v3072 = vpop.f32.mrf.mxu0
        %3073 = vmatprep.mubr.f32.mxu0 0.0
        %3074 = vmatmul.mubr.f32.gmra.mxu0 %v2797
        %v3075 = vpop.f32.mrf.mxu0
        %v3076 = vadd.f32 %v2931, %v3075
        %v3077 = vpop.f32.mrf.mxu0
        %3078 = vmatprep.mubr.f32.mxu0 0.0
        %3079 = vmatmul.mubr.f32.gmra.mxu0 %v2800
        %v3080 = vpop.f32.mrf.mxu0
        %v3081 = vadd.f32 %v2936, %v3080
        %v3082 = vpop.f32.mrf.mxu0
        %3083 = vmatprep.mubr.f32.mxu0 0.0
        %3084 = vmatmul.mubr.f32.gmra.mxu0 %v2803
        %v3085 = vpop.f32.mrf.mxu0
        %v3086 = vadd.f32 %v2941, %v3085
        %v3087 = vpop.f32.mrf.mxu0
        %3088 = vmatprep.mubr.f32.mxu0 0.0
        %3089 = vmatmul.mubr.f32.gmra.mxu0 %v2806
        %v3090 = vpop.f32.mrf.mxu0
        %v3091 = vadd.f32 %v2946, %v3090
        %v3092 = vpop.f32.mrf.mxu0
        %3093 = vmatprep.mubr.f32.mxu0 0.0
        %3094 = vmatmul.mubr.f32.gmra.mxu0 %v2809
        %v3095 = vpop.f32.mrf.mxu0
        %v3096 = vadd.f32 %v2951, %v3095
        %v3097 = vpop.f32.mrf.mxu0
        %3098 = vmatprep.mubr.f32.mxu0 0.0
        %3099 = vmatmul.mubr.f32.gmra.mxu0 %v2812
        %v3100 = vpop.f32.mrf.mxu0
        %v3101 = vadd.f32 %v2956, %v3100
        %v3102 = vpop.f32.mrf.mxu0
        %3103 = vdwg.mxu0
        %v3104 = vmax.f32 %v3026, 0.0
        %v3105 = vmax.f32 %v3031, 0.0
        %v3106 = vmax.f32 %v3036, 0.0
        %v3107 = vmax.f32 %v3041, 0.0
        %v3108 = vmax.f32 %v3046, 0.0
        %v3109 = vmax.f32 %v3051, 0.0
        %v3110 = vmax.f32 %v3056, 0.0
        %v3111 = vmax.f32 %v3061, 0.0
        %v3112 = vmax.f32 %v3066, 0.0
        %v3113 = vmax.f32 %v3071, 0.0
        %v3114 = vmax.f32 %v3076, 0.0
        %v3115 = vmax.f32 %v3081, 0.0
        %v3116 = vmax.f32 %v3086, 0.0
        %v3117 = vmax.f32 %v3091, 0.0
        %v3118 = vmax.f32 %v3096, 0.0
        %v3119 = vmax.f32 %v3101, 0.0
        %3120 = vst.msk [vmem:[#allocation2 + $0x3] sm:$0xff] %vm2398, %v3104
        %3121 = vst.msk [vmem:[#allocation2 + $0xb] sm:$0xff] %vm2398, %v3105
        %3122 = vst.msk [vmem:[#allocation2 + $0x13] sm:$0xff] %vm2398, %v3106
        %3123 = vst.msk [vmem:[#allocation2 + $0x1b] sm:$0xff] %vm2398, %v3107
        %3124 = vst.msk [vmem:[#allocation2 + $0x23] sm:$0xff] %vm2398, %v3108
        %3125 = vst.msk [vmem:[#allocation2 + $0x2b] sm:$0xff] %vm2398, %v3109
        %3126 = vst.msk [vmem:[#allocation2 + $0x33] sm:$0xff] %vm2398, %v3110
        %3127 = vst.msk [vmem:[#allocation2 + $0x3b] sm:$0xff] %vm2398, %v3111
        %3128 = vst.msk [vmem:[#allocation2 + $0x43] sm:$0xff] %vm2398, %v3112
        %3129 = vst.msk [vmem:[#allocation2 + $0x4b] sm:$0xff] %vm2398, %v3113
        %3130 = vst.msk [vmem:[#allocation2 + $0x53] sm:$0xff] %vm2398, %v3114
        %3131 = vst.msk [vmem:[#allocation2 + $0x5b] sm:$0xff] %vm2398, %v3115
        %3132 = vst.msk [vmem:[#allocation2 + $0x63] sm:$0xff] %vm2398, %v3116
        %3133 = vst.msk [vmem:[#allocation2 + $0x6b] sm:$0xff] %vm2398, %v3117
        %3134 = vst.msk [vmem:[#allocation2 + $0x73] sm:$0xff] %vm2398, %v3118
        %3135 = vst.msk [vmem:[#allocation2 + $0x7b] sm:$0xff] %vm2398, %v3119
        %v3136 = vld [vmem:[#allocation2 + $0x2] sm:$0xff]
        %v3137 = vld [vmem:[#allocation2 + $0xa] sm:$0xff]
        %v3138 = vld [vmem:[#allocation2 + $0x12] sm:$0xff]
        %v3139 = vld [vmem:[#allocation2 + $0x1a] sm:$0xff]
        %v3140 = vld [vmem:[#allocation2 + $0x22] sm:$0xff]
        %v3141 = vld [vmem:[#allocation2 + $0x2a] sm:$0xff]
        %v3142 = vld [vmem:[#allocation2 + $0x32] sm:$0xff]
        %v3143 = vld [vmem:[#allocation2 + $0x3a] sm:$0xff]
        %v3144 = vld [vmem:[#allocation2 + $0x42] sm:$0xff]
        %v3145 = vld [vmem:[#allocation2 + $0x4a] sm:$0xff]
        %v3146 = vld [vmem:[#allocation2 + $0x52] sm:$0xff]
        %v3147 = vld [vmem:[#allocation2 + $0x5a] sm:$0xff]
        %v3148 = vld [vmem:[#allocation2 + $0x62] sm:$0xff]
        %v3149 = vld [vmem:[#allocation2 + $0x6a] sm:$0xff]
        %v3150 = vld [vmem:[#allocation2 + $0x72] sm:$0xff]
        %v3151 = vld [vmem:[#allocation2 + $0x7a] sm:$0xff]
        %v3152 = vsel %vm1448, %v3136, 0.0
        %v3153 = vsel %vm1449, %v3137, 0.0
        %v3154 = vsel %vm1450, %v3138, 0.0
        %v3155 = vsel %vm1451, %v3139, 0.0
        %v3156 = vsel %vm1452, %v3140, 0.0
        %v3157 = vsel %vm1453, %v3141, 0.0
        %v3158 = vsel %vm1454, %v3142, 0.0
        %v3159 = vsel %vm1455, %v3143, 0.0
        %v3160 = vsel %vm1456, %v3144, 0.0
        %v3161 = vsel %vm1457, %v3145, 0.0
        %v3162 = vsel %vm1458, %v3146, 0.0
        %v3163 = vsel %vm1459, %v3147, 0.0
        %v3164 = vsel %vm1460, %v3148, 0.0
        %v3165 = vsel %vm1461, %v3149, 0.0
        %v3166 = vsel %vm1462, %v3150, 0.0
        %v3167 = vsel %vm1463, %v3151, 0.0
        %v3168 = vld [vmem:[#allocation2 + $0x3] sm:$0xff]
        %v3169 = vld [vmem:[#allocation2 + $0xb] sm:$0xff]
        %v3170 = vld [vmem:[#allocation2 + $0x13] sm:$0xff]
        %v3171 = vld [vmem:[#allocation2 + $0x1b] sm:$0xff]
        %v3172 = vld [vmem:[#allocation2 + $0x23] sm:$0xff]
        %v3173 = vld [vmem:[#allocation2 + $0x2b] sm:$0xff]
        %v3174 = vld [vmem:[#allocation2 + $0x33] sm:$0xff]
        %v3175 = vld [vmem:[#allocation2 + $0x3b] sm:$0xff]
        %v3176 = vld [vmem:[#allocation2 + $0x43] sm:$0xff]
        %v3177 = vld [vmem:[#allocation2 + $0x4b] sm:$0xff]
        %v3178 = vld [vmem:[#allocation2 + $0x53] sm:$0xff]
        %v3179 = vld [vmem:[#allocation2 + $0x5b] sm:$0xff]
        %v3180 = vld [vmem:[#allocation2 + $0x63] sm:$0xff]
        %v3181 = vld [vmem:[#allocation2 + $0x6b] sm:$0xff]
        %v3182 = vld [vmem:[#allocation2 + $0x73] sm:$0xff]
        %v3183 = vld [vmem:[#allocation2 + $0x7b] sm:$0xff]
        %v3184 = vld [vmem:[#allocation2 + $0x4] sm:$0xff]
        %v3185 = vld [vmem:[#allocation2 + $0xc] sm:$0xff]
        %v3186 = vld [vmem:[#allocation2 + $0x14] sm:$0xff]
        %v3187 = vld [vmem:[#allocation2 + $0x1c] sm:$0xff]
        %v3188 = vld [vmem:[#allocation2 + $0x24] sm:$0xff]
        %v3189 = vld [vmem:[#allocation2 + $0x2c] sm:$0xff]
        %v3190 = vld [vmem:[#allocation2 + $0x34] sm:$0xff]
        %v3191 = vld [vmem:[#allocation2 + $0x3c] sm:$0xff]
        %v3192 = vld [vmem:[#allocation2 + $0x44] sm:$0xff]
        %v3193 = vld [vmem:[#allocation2 + $0x4c] sm:$0xff]
        %v3194 = vld [vmem:[#allocation2 + $0x54] sm:$0xff]
        %v3195 = vld [vmem:[#allocation2 + $0x5c] sm:$0xff]
        %v3196 = vld [vmem:[#allocation2 + $0x64] sm:$0xff]
        %v3197 = vld [vmem:[#allocation2 + $0x6c] sm:$0xff]
        %v3198 = vld [vmem:[#allocation2 + $0x74] sm:$0xff]
        %v3199 = vld [vmem:[#allocation2 + $0x7c] sm:$0xff]
        %v3200 = vsel %vm1528, %v3184, 0.0
        %v3201 = vsel %vm1529, %v3185, 0.0
        %v3202 = vsel %vm1530, %v3186, 0.0
        %v3203 = vsel %vm1531, %v3187, 0.0
        %v3204 = vsel %vm1532, %v3188, 0.0
        %v3205 = vsel %vm1533, %v3189, 0.0
        %v3206 = vsel %vm1534, %v3190, 0.0
        %v3207 = vsel %vm1535, %v3191, 0.0
        %v3208 = vsel %vm1536, %v3192, 0.0
        %v3209 = vsel %vm1537, %v3193, 0.0
        %v3210 = vsel %vm1538, %v3194, 0.0
        %v3211 = vsel %vm1539, %v3195, 0.0
        %v3212 = vsel %vm1540, %v3196, 0.0
        %v3213 = vsel %vm1541, %v3197, 0.0
        %v3214 = vsel %vm1542, %v3198, 0.0
        %v3215 = vsel %vm1543, %v3199, 0.0
        %3232 = vrot.lane.b32.xlu0 %v3168, 64
        %v3233 = vpop.permute.xlu0 %3232
        %3234 = vrot.lane.b32.xlu0 %v3169, 64
        %v3235 = vpop.permute.xlu0 %3234
        %3236 = vrot.lane.b32.xlu0 %v3170, 64
        %v3237 = vpop.permute.xlu0 %3236
        %3238 = vrot.lane.b32.xlu0 %v3171, 64
        %v3239 = vpop.permute.xlu0 %3238
        %3240 = vrot.lane.b32.xlu0 %v3172, 64
        %v3241 = vpop.permute.xlu0 %3240
        %3242 = vrot.lane.b32.xlu0 %v3173, 64
        %v3243 = vpop.permute.xlu0 %3242
        %3244 = vrot.lane.b32.xlu0 %v3174, 64
        %v3245 = vpop.permute.xlu0 %3244
        %3246 = vrot.lane.b32.xlu0 %v3175, 64
        %v3247 = vpop.permute.xlu0 %3246
        %3248 = vrot.lane.b32.xlu0 %v3176, 64
        %v3249 = vpop.permute.xlu0 %3248
        %3250 = vrot.lane.b32.xlu0 %v3177, 64
        %v3251 = vpop.permute.xlu0 %3250
        %3252 = vrot.lane.b32.xlu0 %v3178, 64
        %v3253 = vpop.permute.xlu0 %3252
        %3254 = vrot.lane.b32.xlu0 %v3179, 64
        %v3255 = vpop.permute.xlu0 %3254
        %3256 = vrot.lane.b32.xlu0 %v3180, 64
        %v3257 = vpop.permute.xlu0 %3256
        %3258 = vrot.lane.b32.xlu0 %v3181, 64
        %v3259 = vpop.permute.xlu0 %3258
        %3260 = vrot.lane.b32.xlu0 %v3182, 64
        %v3261 = vpop.permute.xlu0 %3260
        %3262 = vrot.lane.b32.xlu0 %v3183, 64
        %v3263 = vpop.permute.xlu0 %3262
        %v3280 = vsel %vm2398, %v3152, %v3233
        %v3281 = vsel %vm2398, %v3153, %v3235
        %v3282 = vsel %vm2398, %v3154, %v3237
        %v3283 = vsel %vm2398, %v3155, %v3239
        %v3284 = vsel %vm2398, %v3156, %v3241
        %v3285 = vsel %vm2398, %v3157, %v3243
        %v3286 = vsel %vm2398, %v3158, %v3245
        %v3287 = vsel %vm2398, %v3159, %v3247
        %v3288 = vsel %vm2398, %v3160, %v3249
        %v3289 = vsel %vm2398, %v3161, %v3251
        %v3290 = vsel %vm2398, %v3162, %v3253
        %v3291 = vsel %vm2398, %v3163, %v3255
        %v3292 = vsel %vm2398, %v3164, %v3257
        %v3293 = vsel %vm2398, %v3165, %v3259
        %v3294 = vsel %vm2398, %v3166, %v3261
        %v3295 = vsel %vm2398, %v3167, %v3263
        %v3296 = vld [vmem:[%s5] sm:$0xff]
        %v3297 = vld [vmem:[%s5 + $0x8] sm:$0xff]
        %v3298 = vld [vmem:[%s5 + $0x10] sm:$0xff]
        %v3299 = vld [vmem:[%s5 + $0x18] sm:$0xff]
        %v3300 = vld [vmem:[%s5 + $0x20] sm:$0xff]
        %v3301 = vld [vmem:[%s5 + $0x28] sm:$0xff]
        %v3302 = vld [vmem:[%s5 + $0x30] sm:$0xff]
        %v3303 = vld [vmem:[%s5 + $0x38] sm:$0xff]
        %v3304 = vld [vmem:[%s5 + $0x40] sm:$0xff]
        %v3305 = vld [vmem:[%s5 + $0x48] sm:$0xff]
        %v3306 = vld [vmem:[%s5 + $0x50] sm:$0xff]
        %v3307 = vld [vmem:[%s5 + $0x58] sm:$0xff]
        %v3308 = vld [vmem:[%s5 + $0x60] sm:$0xff]
        %v3309 = vld [vmem:[%s5 + $0x68] sm:$0xff]
        %v3310 = vld [vmem:[%s5 + $0x70] sm:$0xff]
        %v3311 = vld [vmem:[%s5 + $0x78] sm:$0xff]
        %v3312 = vld [vmem:[%s5 + $0x80] sm:$0xff]
        %v3313 = vld [vmem:[%s5 + $0x88] sm:$0xff]
        %v3314 = vld [vmem:[%s5 + $0x90] sm:$0xff]
        %v3315 = vld [vmem:[%s5 + $0x98] sm:$0xff]
        %v3316 = vld [vmem:[%s5 + $0xa0] sm:$0xff]
        %v3317 = vld [vmem:[%s5 + $0xa8] sm:$0xff]
        %v3318 = vld [vmem:[%s5 + $0xb0] sm:$0xff]
        %v3319 = vld [vmem:[%s5 + $0xb8] sm:$0xff]
        %v3320 = vld [vmem:[%s6] sm:$0x1]
        %v3322 = vlaneseq
        %v3323 = vshrl.u32 %v3322, 7
        %v3324 = vsub.s32 0, %v3323
        %v3325 = vrot.slane %v3320, %v3324
        %v3328 = vsel %vm2398, %v3200, 0
        %v3331 = vsel %vm2398, %v3201, 0
        %v3334 = vsel %vm2398, %v3202, 0
        %v3337 = vsel %vm2398, %v3203, 0
        %v3340 = vsel %vm2398, %v3204, 0
        %v3343 = vsel %vm2398, %v3205, 0
        %v3346 = vsel %vm2398, %v3206, 0
        %v3349 = vsel %vm2398, %v3207, 0
        %v3352 = vsel %vm2398, %v3208, 0
        %v3355 = vsel %vm2398, %v3209, 0
        %v3358 = vsel %vm2398, %v3210, 0
        %v3361 = vsel %vm2398, %v3211, 0
        %v3364 = vsel %vm2398, %v3212, 0
        %v3367 = vsel %vm2398, %v3213, 0
        %v3370 = vsel %vm2398, %v3214, 0
        %v3373 = vsel %vm2398, %v3215, 0
        %3375 = vmatprep.subr.mxu0 0.0
        %3376 = vmatpush1.msra.mxu0 %v3311
        %3377 = vmatprep.subr.mxu0 0.0
        %3378 = vmatpush1.msra.mxu0 %v3310
        %3379 = vmatprep.subr.mxu0 0.0
        %3380 = vmatpush1.msra.mxu0 %v3309
        %3381 = vmatprep.subr.mxu0 0.0
        %3382 = vmatpush1.msra.mxu0 %v3308
        %3383 = vmatprep.subr.mxu0 0.0
        %3384 = vmatpush1.msra.mxu0 %v3307
        %3385 = vmatprep.subr.mxu0 0.0
        %3386 = vmatpush1.msra.mxu0 %v3306
        %3387 = vmatprep.subr.mxu0 0.0
        %3388 = vmatpush1.msra.mxu0 %v3305
        %3389 = vmatprep.subr.mxu0 0.0
        %3390 = vmatpush1.msra.mxu0 %v3304
        %3391 = vmatprep.subr.mxu0 0.0
        %3392 = vmatpush1.msra.mxu0 %v3303
        %3393 = vmatprep.subr.mxu0 0.0
        %3394 = vmatpush1.msra.mxu0 %v3302
        %3395 = vmatprep.subr.mxu0 0.0
        %3396 = vmatpush1.msra.mxu0 %v3301
        %3397 = vmatprep.subr.mxu0 0.0
        %3398 = vmatpush1.msra.mxu0 %v3300
        %3399 = vmatprep.subr.mxu0 0.0
        %3400 = vmatpush1.msra.mxu0 %v3299
        %3401 = vmatprep.subr.mxu0 0.0
        %3402 = vmatpush1.msra.mxu0 %v3298
        %3403 = vmatprep.subr.mxu0 0.0
        %3404 = vmatpush1.msra.mxu0 %v3297
        %3405 = vmatprep.subr.mxu0 0.0
        %3406 = vmatpush1.msra.mxu0 %v3296
        %3407 = vmatprep.subr.mxu0 0.0
        %3408 = vmatpush2.msra.mxu0 0.0
        %3409 = vmatprep.subr.mxu0 0.0
        %3410 = vmatpush2.msra.mxu0 0.0
        %3411 = vmatprep.subr.mxu0 0.0
        %3412 = vmatpush2.msra.mxu0 0.0
        %3413 = vmatprep.subr.mxu0 0.0
        %3414 = vmatpush2.msra.mxu0 0.0
        %3415 = vmatprep.subr.mxu0 0.0
        %3416 = vmatpush2.msra.mxu0 0.0
        %3417 = vmatprep.subr.mxu0 0.0
        %3418 = vmatpush2.msra.mxu0 0.0
        %3419 = vmatprep.subr.mxu0 0.0
        %3420 = vmatpush2.msra.mxu0 0.0
        %3421 = vmatprep.subr.mxu0 0.0
        %3422 = vmatpush2.msra.mxu0 0.0
        %3423 = vmatprep.subr.mxu0 0.0
        %3424 = vmatpush2.msra.mxu0 %v3319
        %3425 = vmatprep.subr.mxu0 0.0
        %3426 = vmatpush2.msra.mxu0 %v3318
        %3427 = vmatprep.subr.mxu0 0.0
        %3428 = vmatpush2.msra.mxu0 %v3317
        %3429 = vmatprep.subr.mxu0 0.0
        %3430 = vmatpush2.msra.mxu0 %v3316
        %3431 = vmatprep.subr.mxu0 0.0
        %3432 = vmatpush2.msra.mxu0 %v3315
        %3433 = vmatprep.subr.mxu0 0.0
        %3434 = vmatpush2.msra.mxu0 %v3314
        %3435 = vmatprep.subr.mxu0 0.0
        %3436 = vmatpush2.msra.mxu0 %v3313
        %3437 = vmatprep.subr.mxu0 0.0
        %3438 = vmatpush2.msra.mxu0 %v3312
        %3439 = vmatprep.mubr.f32.mxu0 %v3328
        %3440 = vmatmul.mubr.f32.gmra.mxu0 %v3280
        %v3441 = vpop.f32.mrf.mxu0
        %v3442 = vadd.f32 %v3325, %v3441
        %v3443 = vpop.f32.mrf.mxu0
        %3444 = vmatprep.mubr.f32.mxu0 %v3331
        %3445 = vmatmul.mubr.f32.gmra.mxu0 %v3281
        %v3446 = vpop.f32.mrf.mxu0
        %v3447 = vadd.f32 %v3325, %v3446
        %v3448 = vpop.f32.mrf.mxu0
        %3449 = vmatprep.mubr.f32.mxu0 %v3334
        %3450 = vmatmul.mubr.f32.gmra.mxu0 %v3282
        %v3451 = vpop.f32.mrf.mxu0
        %v3452 = vadd.f32 %v3325, %v3451
        %v3453 = vpop.f32.mrf.mxu0
        %3454 = vmatprep.mubr.f32.mxu0 %v3337
        %3455 = vmatmul.mubr.f32.gmra.mxu0 %v3283
        %v3456 = vpop.f32.mrf.mxu0
        %v3457 = vadd.f32 %v3325, %v3456
        %v3458 = vpop.f32.mrf.mxu0
        %3459 = vmatprep.mubr.f32.mxu0 %v3340
        %3460 = vmatmul.mubr.f32.gmra.mxu0 %v3284
        %v3461 = vpop.f32.mrf.mxu0
        %v3462 = vadd.f32 %v3325, %v3461
        %v3463 = vpop.f32.mrf.mxu0
        %3464 = vmatprep.mubr.f32.mxu0 %v3343
        %3465 = vmatmul.mubr.f32.gmra.mxu0 %v3285
        %v3466 = vpop.f32.mrf.mxu0
        %v3467 = vadd.f32 %v3325, %v3466
        %v3468 = vpop.f32.mrf.mxu0
        %3469 = vmatprep.mubr.f32.mxu0 %v3346
        %3470 = vmatmul.mubr.f32.gmra.mxu0 %v3286
        %v3471 = vpop.f32.mrf.mxu0
        %v3472 = vadd.f32 %v3325, %v3471
        %v3473 = vpop.f32.mrf.mxu0
        %3474 = vmatprep.mubr.f32.mxu0 %v3349
        %3475 = vmatmul.mubr.f32.gmra.mxu0 %v3287
        %v3476 = vpop.f32.mrf.mxu0
        %v3477 = vadd.f32 %v3325, %v3476
        %v3478 = vpop.f32.mrf.mxu0
        %3479 = vmatprep.mubr.f32.mxu0 %v3352
        %3480 = vmatmul.mubr.f32.gmra.mxu0 %v3288
        %v3481 = vpop.f32.mrf.mxu0
        %v3482 = vadd.f32 %v3325, %v3481
        %v3483 = vpop.f32.mrf.mxu0
        %3484 = vmatprep.mubr.f32.mxu0 %v3355
        %3485 = vmatmul.mubr.f32.gmra.mxu0 %v3289
        %v3486 = vpop.f32.mrf.mxu0
        %v3487 = vadd.f32 %v3325, %v3486
        %v3488 = vpop.f32.mrf.mxu0
        %3489 = vmatprep.mubr.f32.mxu0 %v3358
        %3490 = vmatmul.mubr.f32.gmra.mxu0 %v3290
        %v3491 = vpop.f32.mrf.mxu0
        %v3492 = vadd.f32 %v3325, %v3491
        %v3493 = vpop.f32.mrf.mxu0
        %3494 = vmatprep.mubr.f32.mxu0 %v3361
        %3495 = vmatmul.mubr.f32.gmra.mxu0 %v3291
        %v3496 = vpop.f32.mrf.mxu0
        %v3497 = vadd.f32 %v3325, %v3496
        %v3498 = vpop.f32.mrf.mxu0
        %3499 = vmatprep.mubr.f32.mxu0 %v3364
        %3500 = vmatmul.mubr.f32.gmra.mxu0 %v3292
        %v3501 = vpop.f32.mrf.mxu0
        %v3502 = vadd.f32 %v3325, %v3501
        %v3503 = vpop.f32.mrf.mxu0
        %3504 = vmatprep.mubr.f32.mxu0 %v3367
        %3505 = vmatmul.mubr.f32.gmra.mxu0 %v3293
        %v3506 = vpop.f32.mrf.mxu0
        %v3507 = vadd.f32 %v3325, %v3506
        %v3508 = vpop.f32.mrf.mxu0
        %3509 = vmatprep.mubr.f32.mxu0 %v3370
        %3510 = vmatmul.mubr.f32.gmra.mxu0 %v3294
        %v3511 = vpop.f32.mrf.mxu0
        %v3512 = vadd.f32 %v3325, %v3511
        %v3513 = vpop.f32.mrf.mxu0
        %3514 = vmatprep.mubr.f32.mxu0 %v3373
        %3515 = vmatmul.mubr.f32.gmra.mxu0 %v3295
        %v3516 = vpop.f32.mrf.mxu0
        %v3517 = vadd.f32 %v3325, %v3516
        %v3518 = vpop.f32.mrf.mxu0
        %3519 = vdwg.mxu0
        %v3520 = vld [vmem:[%s7] sm:$0xf]
        %v3521 = vld [vmem:[%s8] sm:$0x1]
        %v3523 = vlaneseq
        %v3524 = vshrl.u32 %v3523, 7
        %v3525 = vsub.s32 0, %v3524
        %v3526 = vrot.slane %v3521, %v3525
        %v3529 = vsel %vm1271, %v1255, 0
        %v3532 = vsel %vm1271, %v1256, 0
        %v3535 = vsel %vm1271, %v1257, 0
        %v3538 = vsel %vm1271, %v1258, 0
        %v3541 = vsel %vm1271, %v1259, 0
        %v3544 = vsel %vm1271, %v1260, 0
        %v3547 = vsel %vm1271, %v1261, 0
        %v3550 = vsel %vm1271, %v1262, 0
        %v3553 = vsel %vm1271, %v1263, 0
        %v3556 = vsel %vm1271, %v1264, 0
        %v3559 = vsel %vm1271, %v1265, 0
        %v3562 = vsel %vm1271, %v1266, 0
        %v3565 = vsel %vm1271, %v1267, 0
        %v3568 = vsel %vm1271, %v1268, 0
        %v3571 = vsel %vm1271, %v1269, 0
        %v3574 = vsel %vm1271, %v1270, 0
        %v3577 = vsel %vm2233, %v3520, 0
        %3579 = vmatprep.subr.mxu0 0.0
        %3580 = vmatpush1.msra.mxu0 0.0
        %3581 = vmatprep.subr.mxu0 0.0
        %3582 = vmatpush1.msra.mxu0 0.0
        %3583 = vmatprep.subr.mxu0 0.0
        %3584 = vmatpush1.msra.mxu0 0.0
        %3585 = vmatprep.subr.mxu0 0.0
        %3586 = vmatpush1.msra.mxu0 0.0
        %3587 = vmatprep.subr.mxu0 0.0
        %3588 = vmatpush1.msra.mxu0 0.0
        %3589 = vmatprep.subr.mxu0 0.0
        %3590 = vmatpush1.msra.mxu0 0.0
        %3591 = vmatprep.subr.mxu0 0.0
        %3592 = vmatpush1.msra.mxu0 0.0
        %3593 = vmatprep.subr.mxu0 0.0
        %3594 = vmatpush1.msra.mxu0 0.0
        %3595 = vmatprep.subr.mxu0 0.0
        %3596 = vmatpush1.msra.mxu0 0.0
        %3597 = vmatprep.subr.mxu0 0.0
        %3598 = vmatpush1.msra.mxu0 0.0
        %3599 = vmatprep.subr.mxu0 0.0
        %3600 = vmatpush1.msra.mxu0 0.0
        %3601 = vmatprep.subr.mxu0 0.0
        %3602 = vmatpush1.msra.mxu0 0.0
        %3603 = vmatprep.subr.mxu0 0.0
        %3604 = vmatpush1.msra.mxu0 0.0
        %3605 = vmatprep.subr.mxu0 0.0
        %3606 = vmatpush1.msra.mxu0 0.0
        %3607 = vmatprep.subr.mxu0 0.0
        %3608 = vmatpush1.msra.mxu0 0.0
        %3609 = vmatprep.subr.mxu0 0.0
        %3610 = vmatpush1.msra.mxu0 %v3577
        %3611 = vmatprep.subr.mxu0 0.0
        %3612 = vmatpush2.msra.mxu0 0.0
        %3613 = vmatprep.subr.mxu0 0.0
        %3614 = vmatpush2.msra.mxu0 0.0
        %3615 = vmatprep.subr.mxu0 0.0
        %3616 = vmatpush2.msra.mxu0 0.0
        %3617 = vmatprep.subr.mxu0 0.0
        %3618 = vmatpush2.msra.mxu0 0.0
        %3619 = vmatprep.subr.mxu0 0.0
        %3620 = vmatpush2.msra.mxu0 0.0
        %3621 = vmatprep.subr.mxu0 0.0
        %3622 = vmatpush2.msra.mxu0 0.0
        %3623 = vmatprep.subr.mxu0 0.0
        %3624 = vmatpush2.msra.mxu0 0.0
        %3625 = vmatprep.subr.mxu0 0.0
        %3626 = vmatpush2.msra.mxu0 0.0
        %3627 = vmatprep.subr.mxu0 0.0
        %3628 = vmatpush2.msra.mxu0 0.0
        %3629 = vmatprep.subr.mxu0 0.0
        %3630 = vmatpush2.msra.mxu0 0.0
        %3631 = vmatprep.subr.mxu0 0.0
        %3632 = vmatpush2.msra.mxu0 0.0
        %3633 = vmatprep.subr.mxu0 0.0
        %3634 = vmatpush2.msra.mxu0 0.0
        %3635 = vmatprep.subr.mxu0 0.0
        %3636 = vmatpush2.msra.mxu0 0.0
        %3637 = vmatprep.subr.mxu0 0.0
        %3638 = vmatpush2.msra.mxu0 0.0
        %3639 = vmatprep.subr.mxu0 0.0
        %3640 = vmatpush2.msra.mxu0 0.0
        %3641 = vmatprep.subr.mxu0 0.0
        %3642 = vmatpush2.msra.mxu0 0.0
        %3643 = vmatprep.mubr.f32.mxu0 0.0
        %3644 = vmatmul.mubr.f32.gmra.mxu0 %v3529
        %v3645 = vpop.f32.mrf.mxu0
        %v3646 = vadd.f32 %v3526, %v3645
        %v3647 = vpop.f32.mrf.mxu0
        %3648 = vmatprep.mubr.f32.mxu0 0.0
        %3649 = vmatmul.mubr.f32.gmra.mxu0 %v3532
        %v3650 = vpop.f32.mrf.mxu0
        %v3651 = vadd.f32 %v3526, %v3650
        %v3652 = vpop.f32.mrf.mxu0
        %3653 = vmatprep.mubr.f32.mxu0 0.0
        %3654 = vmatmul.mubr.f32.gmra.mxu0 %v3535
        %v3655 = vpop.f32.mrf.mxu0
        %v3656 = vadd.f32 %v3526, %v3655
        %v3657 = vpop.f32.mrf.mxu0
        %3658 = vmatprep.mubr.f32.mxu0 0.0
        %3659 = vmatmul.mubr.f32.gmra.mxu0 %v3538
        %v3660 = vpop.f32.mrf.mxu0
        %v3661 = vadd.f32 %v3526, %v3660
        %v3662 = vpop.f32.mrf.mxu0
        %3663 = vmatprep.mubr.f32.mxu0 0.0
        %3664 = vmatmul.mubr.f32.gmra.mxu0 %v3541
        %v3665 = vpop.f32.mrf.mxu0
        %v3666 = vadd.f32 %v3526, %v3665
        %v3667 = vpop.f32.mrf.mxu0
        %3668 = vmatprep.mubr.f32.mxu0 0.0
        %3669 = vmatmul.mubr.f32.gmra.mxu0 %v3544
        %v3670 = vpop.f32.mrf.mxu0
        %v3671 = vadd.f32 %v3526, %v3670
        %v3672 = vpop.f32.mrf.mxu0
        %3673 = vmatprep.mubr.f32.mxu0 0.0
        %3674 = vmatmul.mubr.f32.gmra.mxu0 %v3547
        %v3675 = vpop.f32.mrf.mxu0
        %v3676 = vadd.f32 %v3526, %v3675
        %v3677 = vpop.f32.mrf.mxu0
        %3678 = vmatprep.mubr.f32.mxu0 0.0
        %3679 = vmatmul.mubr.f32.gmra.mxu0 %v3550
        %v3680 = vpop.f32.mrf.mxu0
        %v3681 = vadd.f32 %v3526, %v3680
        %v3682 = vpop.f32.mrf.mxu0
        %3683 = vmatprep.mubr.f32.mxu0 0.0
        %3684 = vmatmul.mubr.f32.gmra.mxu0 %v3553
        %v3685 = vpop.f32.mrf.mxu0
        %v3686 = vadd.f32 %v3526, %v3685
        %v3687 = vpop.f32.mrf.mxu0
        %3688 = vmatprep.mubr.f32.mxu0 0.0
        %3689 = vmatmul.mubr.f32.gmra.mxu0 %v3556
        %v3690 = vpop.f32.mrf.mxu0
        %v3691 = vadd.f32 %v3526, %v3690
        %v3692 = vpop.f32.mrf.mxu0
        %3693 = vmatprep.mubr.f32.mxu0 0.0
        %3694 = vmatmul.mubr.f32.gmra.mxu0 %v3559
        %v3695 = vpop.f32.mrf.mxu0
        %v3696 = vadd.f32 %v3526, %v3695
        %v3697 = vpop.f32.mrf.mxu0
        %3698 = vmatprep.mubr.f32.mxu0 0.0
        %3699 = vmatmul.mubr.f32.gmra.mxu0 %v3562
        %v3700 = vpop.f32.mrf.mxu0
        %v3701 = vadd.f32 %v3526, %v3700
        %v3702 = vpop.f32.mrf.mxu0
        %3703 = vmatprep.mubr.f32.mxu0 0.0
        %3704 = vmatmul.mubr.f32.gmra.mxu0 %v3565
        %v3705 = vpop.f32.mrf.mxu0
        %v3706 = vadd.f32 %v3526, %v3705
        %v3707 = vpop.f32.mrf.mxu0
        %3708 = vmatprep.mubr.f32.mxu0 0.0
        %3709 = vmatmul.mubr.f32.gmra.mxu0 %v3568
        %v3710 = vpop.f32.mrf.mxu0
        %v3711 = vadd.f32 %v3526, %v3710
        %v3712 = vpop.f32.mrf.mxu0
        %3713 = vmatprep.mubr.f32.mxu0 0.0
        %3714 = vmatmul.mubr.f32.gmra.mxu0 %v3571
        %v3715 = vpop.f32.mrf.mxu0
        %v3716 = vadd.f32 %v3526, %v3715
        %v3717 = vpop.f32.mrf.mxu0
        %3718 = vmatprep.mubr.f32.mxu0 0.0
        %3719 = vmatmul.mubr.f32.gmra.mxu0 %v3574
        %v3720 = vpop.f32.mrf.mxu0
        %v3721 = vadd.f32 %v3526, %v3720
        %v3722 = vpop.f32.mrf.mxu0
        %3723 = vdwg.mxu0
        %v3724 = vadd.f32 %v3442, %v3646
        %v3725 = vadd.f32 %v3447, %v3651
        %v3726 = vadd.f32 %v3452, %v3656
        %v3727 = vadd.f32 %v3457, %v3661
        %v3728 = vadd.f32 %v3462, %v3666
        %v3729 = vadd.f32 %v3467, %v3671
        %v3730 = vadd.f32 %v3472, %v3676
        %v3731 = vadd.f32 %v3477, %v3681
        %v3732 = vadd.f32 %v3482, %v3686
        %v3733 = vadd.f32 %v3487, %v3691
        %v3734 = vadd.f32 %v3492, %v3696
        %v3735 = vadd.f32 %v3497, %v3701
        %v3736 = vadd.f32 %v3502, %v3706
        %v3737 = vadd.f32 %v3507, %v3711
        %v3738 = vadd.f32 %v3512, %v3716
        %v3739 = vadd.f32 %v3517, %v3721
        %v3740 = vmax.f32 %v3724, 0.0
        %v3741 = vmax.f32 %v3725, 0.0
        %v3742 = vmax.f32 %v3726, 0.0
        %v3743 = vmax.f32 %v3727, 0.0
        %v3744 = vmax.f32 %v3728, 0.0
        %v3745 = vmax.f32 %v3729, 0.0
        %v3746 = vmax.f32 %v3730, 0.0
        %v3747 = vmax.f32 %v3731, 0.0
        %v3748 = vmax.f32 %v3732, 0.0
        %v3749 = vmax.f32 %v3733, 0.0
        %v3750 = vmax.f32 %v3734, 0.0
        %v3751 = vmax.f32 %v3735, 0.0
        %v3752 = vmax.f32 %v3736, 0.0
        %v3753 = vmax.f32 %v3737, 0.0
        %v3754 = vmax.f32 %v3738, 0.0
        %v3755 = vmax.f32 %v3739, 0.0
        %3756 = vst.msk [vmem:[#allocation2 + $0x3] sm:$0xff] %vm2398, %v3740
        %3757 = vst.msk [vmem:[#allocation2 + $0xb] sm:$0xff] %vm2398, %v3741
        %3758 = vst.msk [vmem:[#allocation2 + $0x13] sm:$0xff] %vm2398, %v3742
        %3759 = vst.msk [vmem:[#allocation2 + $0x1b] sm:$0xff] %vm2398, %v3743
        %3760 = vst.msk [vmem:[#allocation2 + $0x23] sm:$0xff] %vm2398, %v3744
        %3761 = vst.msk [vmem:[#allocation2 + $0x2b] sm:$0xff] %vm2398, %v3745
        %3762 = vst.msk [vmem:[#allocation2 + $0x33] sm:$0xff] %vm2398, %v3746
        %3763 = vst.msk [vmem:[#allocation2 + $0x3b] sm:$0xff] %vm2398, %v3747
        %3764 = vst.msk [vmem:[#allocation2 + $0x43] sm:$0xff] %vm2398, %v3748
        %3765 = vst.msk [vmem:[#allocation2 + $0x4b] sm:$0xff] %vm2398, %v3749
        %3766 = vst.msk [vmem:[#allocation2 + $0x53] sm:$0xff] %vm2398, %v3750
        %3767 = vst.msk [vmem:[#allocation2 + $0x5b] sm:$0xff] %vm2398, %v3751
        %3768 = vst.msk [vmem:[#allocation2 + $0x63] sm:$0xff] %vm2398, %v3752
        %3769 = vst.msk [vmem:[#allocation2 + $0x6b] sm:$0xff] %vm2398, %v3753
        %3770 = vst.msk [vmem:[#allocation2 + $0x73] sm:$0xff] %vm2398, %v3754
        %3771 = vst.msk [vmem:[#allocation2 + $0x7b] sm:$0xff] %vm2398, %v3755
        %v3772 = vld [vmem:[#allocation2] sm:$0xff]
        %v3773 = vld [vmem:[#allocation2 + $0x8] sm:$0xff]
        %v3774 = vld [vmem:[#allocation2 + $0x10] sm:$0xff]
        %v3775 = vld [vmem:[#allocation2 + $0x18] sm:$0xff]
        %v3776 = vld [vmem:[#allocation2 + $0x20] sm:$0xff]
        %v3777 = vld [vmem:[#allocation2 + $0x28] sm:$0xff]
        %v3778 = vld [vmem:[#allocation2 + $0x30] sm:$0xff]
        %v3779 = vld [vmem:[#allocation2 + $0x38] sm:$0xff]
        %v3780 = vld [vmem:[#allocation2 + $0x40] sm:$0xff]
        %v3781 = vld [vmem:[#allocation2 + $0x48] sm:$0xff]
        %v3782 = vld [vmem:[#allocation2 + $0x50] sm:$0xff]
        %v3783 = vld [vmem:[#allocation2 + $0x58] sm:$0xff]
        %v3784 = vld [vmem:[#allocation2 + $0x60] sm:$0xff]
        %v3785 = vld [vmem:[#allocation2 + $0x68] sm:$0xff]
        %v3786 = vld [vmem:[#allocation2 + $0x70] sm:$0xff]
        %v3787 = vld [vmem:[#allocation2 + $0x78] sm:$0xff]
        %v3788 = vsel %vm1320, %v3772, 0.0
        %v3789 = vsel %vm1321, %v3773, 0.0
        %v3790 = vsel %vm1322, %v3774, 0.0
        %v3791 = vsel %vm1323, %v3775, 0.0
        %v3792 = vsel %vm1324, %v3776, 0.0
        %v3793 = vsel %vm1325, %v3777, 0.0
        %v3794 = vsel %vm1326, %v3778, 0.0
        %v3795 = vsel %vm1327, %v3779, 0.0
        %v3796 = vsel %vm1328, %v3780, 0.0
        %v3797 = vsel %vm1329, %v3781, 0.0
        %v3798 = vsel %vm1330, %v3782, 0.0
        %v3799 = vsel %vm1331, %v3783, 0.0
        %v3800 = vsel %vm1332, %v3784, 0.0
        %v3801 = vsel %vm1333, %v3785, 0.0
        %v3802 = vsel %vm1334, %v3786, 0.0
        %v3803 = vsel %vm1335, %v3787, 0.0
        %v3804 = vld [vmem:[#allocation2 + $0x1] sm:$0xff]
        %v3805 = vld [vmem:[#allocation2 + $0x9] sm:$0xff]
        %v3806 = vld [vmem:[#allocation2 + $0x11] sm:$0xff]
        %v3807 = vld [vmem:[#allocation2 + $0x19] sm:$0xff]
        %v3808 = vld [vmem:[#allocation2 + $0x21] sm:$0xff]
        %v3809 = vld [vmem:[#allocation2 + $0x29] sm:$0xff]
        %v3810 = vld [vmem:[#allocation2 + $0x31] sm:$0xff]
        %v3811 = vld [vmem:[#allocation2 + $0x39] sm:$0xff]
        %v3812 = vld [vmem:[#allocation2 + $0x41] sm:$0xff]
        %v3813 = vld [vmem:[#allocation2 + $0x49] sm:$0xff]
        %v3814 = vld [vmem:[#allocation2 + $0x51] sm:$0xff]
        %v3815 = vld [vmem:[#allocation2 + $0x59] sm:$0xff]
        %v3816 = vld [vmem:[#allocation2 + $0x61] sm:$0xff]
        %v3817 = vld [vmem:[#allocation2 + $0x69] sm:$0xff]
        %v3818 = vld [vmem:[#allocation2 + $0x71] sm:$0xff]
        %v3819 = vld [vmem:[#allocation2 + $0x79] sm:$0xff]
        %v3820 = vsel %vm1384, %v3804, 0.0
        %v3821 = vsel %vm1385, %v3805, 0.0
        %v3822 = vsel %vm1386, %v3806, 0.0
        %v3823 = vsel %vm1387, %v3807, 0.0
        %v3824 = vsel %vm1388, %v3808, 0.0
        %v3825 = vsel %vm1389, %v3809, 0.0
        %v3826 = vsel %vm1390, %v3810, 0.0
        %v3827 = vsel %vm1391, %v3811, 0.0
        %v3828 = vsel %vm1392, %v3812, 0.0
        %v3829 = vsel %vm1393, %v3813, 0.0
        %v3830 = vsel %vm1394, %v3814, 0.0
        %v3831 = vsel %vm1395, %v3815, 0.0
        %v3832 = vsel %vm1396, %v3816, 0.0
        %v3833 = vsel %vm1397, %v3817, 0.0
        %v3834 = vsel %vm1398, %v3818, 0.0
        %v3835 = vsel %vm1399, %v3819, 0.0
        %v3836 = vld [vmem:[#allocation2 + $0x2] sm:$0xff]
        %v3837 = vld [vmem:[#allocation2 + $0xa] sm:$0xff]
        %v3838 = vld [vmem:[#allocation2 + $0x12] sm:$0xff]
        %v3839 = vld [vmem:[#allocation2 + $0x1a] sm:$0xff]
        %v3840 = vld [vmem:[#allocation2 + $0x22] sm:$0xff]
        %v3841 = vld [vmem:[#allocation2 + $0x2a] sm:$0xff]
        %v3842 = vld [vmem:[#allocation2 + $0x32] sm:$0xff]
        %v3843 = vld [vmem:[#allocation2 + $0x3a] sm:$0xff]
        %v3844 = vld [vmem:[#allocation2 + $0x42] sm:$0xff]
        %v3845 = vld [vmem:[#allocation2 + $0x4a] sm:$0xff]
        %v3846 = vld [vmem:[#allocation2 + $0x52] sm:$0xff]
        %v3847 = vld [vmem:[#allocation2 + $0x5a] sm:$0xff]
        %v3848 = vld [vmem:[#allocation2 + $0x62] sm:$0xff]
        %v3849 = vld [vmem:[#allocation2 + $0x6a] sm:$0xff]
        %v3850 = vld [vmem:[#allocation2 + $0x72] sm:$0xff]
        %v3851 = vld [vmem:[#allocation2 + $0x7a] sm:$0xff]
        %v3852 = vsel %vm1448, %v3836, 0.0
        %v3853 = vsel %vm1449, %v3837, 0.0
        %v3854 = vsel %vm1450, %v3838, 0.0
        %v3855 = vsel %vm1451, %v3839, 0.0
        %v3856 = vsel %vm1452, %v3840, 0.0
        %v3857 = vsel %vm1453, %v3841, 0.0
        %v3858 = vsel %vm1454, %v3842, 0.0
        %v3859 = vsel %vm1455, %v3843, 0.0
        %v3860 = vsel %vm1456, %v3844, 0.0
        %v3861 = vsel %vm1457, %v3845, 0.0
        %v3862 = vsel %vm1458, %v3846, 0.0
        %v3863 = vsel %vm1459, %v3847, 0.0
        %v3864 = vsel %vm1460, %v3848, 0.0
        %v3865 = vsel %vm1461, %v3849, 0.0
        %v3866 = vsel %vm1462, %v3850, 0.0
        %v3867 = vsel %vm1463, %v3851, 0.0
        %v3868 = vld [vmem:[#allocation2 + $0x3] sm:$0xff]
        %v3869 = vld [vmem:[#allocation2 + $0xb] sm:$0xff]
        %v3870 = vld [vmem:[#allocation2 + $0x13] sm:$0xff]
        %v3871 = vld [vmem:[#allocation2 + $0x1b] sm:$0xff]
        %v3872 = vld [vmem:[#allocation2 + $0x23] sm:$0xff]
        %v3873 = vld [vmem:[#allocation2 + $0x2b] sm:$0xff]
        %v3874 = vld [vmem:[#allocation2 + $0x33] sm:$0xff]
        %v3875 = vld [vmem:[#allocation2 + $0x3b] sm:$0xff]
        %v3876 = vld [vmem:[#allocation2 + $0x43] sm:$0xff]
        %v3877 = vld [vmem:[#allocation2 + $0x4b] sm:$0xff]
        %v3878 = vld [vmem:[#allocation2 + $0x53] sm:$0xff]
        %v3879 = vld [vmem:[#allocation2 + $0x5b] sm:$0xff]
        %v3880 = vld [vmem:[#allocation2 + $0x63] sm:$0xff]
        %v3881 = vld [vmem:[#allocation2 + $0x6b] sm:$0xff]
        %v3882 = vld [vmem:[#allocation2 + $0x73] sm:$0xff]
        %v3883 = vld [vmem:[#allocation2 + $0x7b] sm:$0xff]
        %v3884 = vld [vmem:[#allocation2 + $0x4] sm:$0xff]
        %v3885 = vld [vmem:[#allocation2 + $0xc] sm:$0xff]
        %v3886 = vld [vmem:[#allocation2 + $0x14] sm:$0xff]
        %v3887 = vld [vmem:[#allocation2 + $0x1c] sm:$0xff]
        %v3888 = vld [vmem:[#allocation2 + $0x24] sm:$0xff]
        %v3889 = vld [vmem:[#allocation2 + $0x2c] sm:$0xff]
        %v3890 = vld [vmem:[#allocation2 + $0x34] sm:$0xff]
        %v3891 = vld [vmem:[#allocation2 + $0x3c] sm:$0xff]
        %v3892 = vld [vmem:[#allocation2 + $0x44] sm:$0xff]
        %v3893 = vld [vmem:[#allocation2 + $0x4c] sm:$0xff]
        %v3894 = vld [vmem:[#allocation2 + $0x54] sm:$0xff]
        %v3895 = vld [vmem:[#allocation2 + $0x5c] sm:$0xff]
        %v3896 = vld [vmem:[#allocation2 + $0x64] sm:$0xff]
        %v3897 = vld [vmem:[#allocation2 + $0x6c] sm:$0xff]
        %v3898 = vld [vmem:[#allocation2 + $0x74] sm:$0xff]
        %v3899 = vld [vmem:[#allocation2 + $0x7c] sm:$0xff]
        %v3900 = vsel %vm1528, %v3884, 0.0
        %v3901 = vsel %vm1529, %v3885, 0.0
        %v3902 = vsel %vm1530, %v3886, 0.0
        %v3903 = vsel %vm1531, %v3887, 0.0
        %v3904 = vsel %vm1532, %v3888, 0.0
        %v3905 = vsel %vm1533, %v3889, 0.0
        %v3906 = vsel %vm1534, %v3890, 0.0
        %v3907 = vsel %vm1535, %v3891, 0.0
        %v3908 = vsel %vm1536, %v3892, 0.0
        %v3909 = vsel %vm1537, %v3893, 0.0
        %v3910 = vsel %vm1538, %v3894, 0.0
        %v3911 = vsel %vm1539, %v3895, 0.0
        %v3912 = vsel %vm1540, %v3896, 0.0
        %v3913 = vsel %vm1541, %v3897, 0.0
        %v3914 = vsel %vm1542, %v3898, 0.0
        %v3915 = vsel %vm1543, %v3899, 0.0
        %v3916 = vld [vmem:[#allocation2 + $0x5] sm:$0xff]
        %v3917 = vld [vmem:[#allocation2 + $0xd] sm:$0xff]
        %v3918 = vld [vmem:[#allocation2 + $0x15] sm:$0xff]
        %v3919 = vld [vmem:[#allocation2 + $0x1d] sm:$0xff]
        %v3920 = vld [vmem:[#allocation2 + $0x25] sm:$0xff]
        %v3921 = vld [vmem:[#allocation2 + $0x2d] sm:$0xff]
        %v3922 = vld [vmem:[#allocation2 + $0x35] sm:$0xff]
        %v3923 = vld [vmem:[#allocation2 + $0x3d] sm:$0xff]
        %v3924 = vld [vmem:[#allocation2 + $0x45] sm:$0xff]
        %v3925 = vld [vmem:[#allocation2 + $0x4d] sm:$0xff]
        %v3926 = vld [vmem:[#allocation2 + $0x55] sm:$0xff]
        %v3927 = vld [vmem:[#allocation2 + $0x5d] sm:$0xff]
        %v3928 = vld [vmem:[#allocation2 + $0x65] sm:$0xff]
        %v3929 = vld [vmem:[#allocation2 + $0x6d] sm:$0xff]
        %v3930 = vld [vmem:[#allocation2 + $0x75] sm:$0xff]
        %v3931 = vld [vmem:[#allocation2 + $0x7d] sm:$0xff]
        %v3932 = vsel %vm1592, %v3916, 0.0
        %v3933 = vsel %vm1593, %v3917, 0.0
        %v3934 = vsel %vm1594, %v3918, 0.0
        %v3935 = vsel %vm1595, %v3919, 0.0
        %v3936 = vsel %vm1596, %v3920, 0.0
        %v3937 = vsel %vm1597, %v3921, 0.0
        %v3938 = vsel %vm1598, %v3922, 0.0
        %v3939 = vsel %vm1599, %v3923, 0.0
        %v3940 = vsel %vm1600, %v3924, 0.0
        %v3941 = vsel %vm1601, %v3925, 0.0
        %v3942 = vsel %vm1602, %v3926, 0.0
        %v3943 = vsel %vm1603, %v3927, 0.0
        %v3944 = vsel %vm1604, %v3928, 0.0
        %v3945 = vsel %vm1605, %v3929, 0.0
        %v3946 = vsel %vm1606, %v3930, 0.0
        %v3947 = vsel %vm1607, %v3931, 0.0
        %v3948 = vld [vmem:[#allocation2 + $0x6] sm:$0xff]
        %v3949 = vld [vmem:[#allocation2 + $0xe] sm:$0xff]
        %v3950 = vld [vmem:[#allocation2 + $0x16] sm:$0xff]
        %v3951 = vld [vmem:[#allocation2 + $0x1e] sm:$0xff]
        %v3952 = vld [vmem:[#allocation2 + $0x26] sm:$0xff]
        %v3953 = vld [vmem:[#allocation2 + $0x2e] sm:$0xff]
        %v3954 = vld [vmem:[#allocation2 + $0x36] sm:$0xff]
        %v3955 = vld [vmem:[#allocation2 + $0x3e] sm:$0xff]
        %v3956 = vld [vmem:[#allocation2 + $0x46] sm:$0xff]
        %v3957 = vld [vmem:[#allocation2 + $0x4e] sm:$0xff]
        %v3958 = vld [vmem:[#allocation2 + $0x56] sm:$0xff]
        %v3959 = vld [vmem:[#allocation2 + $0x5e] sm:$0xff]
        %v3960 = vld [vmem:[#allocation2 + $0x66] sm:$0xff]
        %v3961 = vld [vmem:[#allocation2 + $0x6e] sm:$0xff]
        %v3962 = vld [vmem:[#allocation2 + $0x76] sm:$0xff]
        %v3963 = vld [vmem:[#allocation2 + $0x7e] sm:$0xff]
        %v3964 = vsel %vm1656, %v3948, 0.0
        %v3965 = vsel %vm1657, %v3949, 0.0
        %v3966 = vsel %vm1658, %v3950, 0.0
        %v3967 = vsel %vm1659, %v3951, 0.0
        %v3968 = vsel %vm1660, %v3952, 0.0
        %v3969 = vsel %vm1661, %v3953, 0.0
        %v3970 = vsel %vm1662, %v3954, 0.0
        %v3971 = vsel %vm1663, %v3955, 0.0
        %v3972 = vsel %vm1664, %v3956, 0.0
        %v3973 = vsel %vm1665, %v3957, 0.0
        %v3974 = vsel %vm1666, %v3958, 0.0
        %v3975 = vsel %vm1667, %v3959, 0.0
        %v3976 = vsel %vm1668, %v3960, 0.0
        %v3977 = vsel %vm1669, %v3961, 0.0
        %v3978 = vsel %vm1670, %v3962, 0.0
        %v3979 = vsel %vm1671, %v3963, 0.0
        %3996 = vrot.lane.b32.xlu0 %v3820, 64
        %v3997 = vpop.permute.xlu0 %3996
        %3998 = vrot.lane.b32.xlu0 %v3821, 64
        %v3999 = vpop.permute.xlu0 %3998
        %4000 = vrot.lane.b32.xlu0 %v3822, 64
        %v4001 = vpop.permute.xlu0 %4000
        %4002 = vrot.lane.b32.xlu0 %v3823, 64
        %v4003 = vpop.permute.xlu0 %4002
        %4004 = vrot.lane.b32.xlu0 %v3824, 64
        %v4005 = vpop.permute.xlu0 %4004
        %4006 = vrot.lane.b32.xlu0 %v3825, 64
        %v4007 = vpop.permute.xlu0 %4006
        %4008 = vrot.lane.b32.xlu0 %v3826, 64
        %v4009 = vpop.permute.xlu0 %4008
        %4010 = vrot.lane.b32.xlu0 %v3827, 64
        %v4011 = vpop.permute.xlu0 %4010
        %4012 = vrot.lane.b32.xlu0 %v3828, 64
        %v4013 = vpop.permute.xlu0 %4012
        %4014 = vrot.lane.b32.xlu0 %v3829, 64
        %v4015 = vpop.permute.xlu0 %4014
        %4016 = vrot.lane.b32.xlu0 %v3830, 64
        %v4017 = vpop.permute.xlu0 %4016
        %4018 = vrot.lane.b32.xlu0 %v3831, 64
        %v4019 = vpop.permute.xlu0 %4018
        %4020 = vrot.lane.b32.xlu0 %v3832, 64
        %v4021 = vpop.permute.xlu0 %4020
        %4022 = vrot.lane.b32.xlu0 %v3833, 64
        %v4023 = vpop.permute.xlu0 %4022
        %4024 = vrot.lane.b32.xlu0 %v3834, 64
        %v4025 = vpop.permute.xlu0 %4024
        %4026 = vrot.lane.b32.xlu0 %v3835, 64
        %v4027 = vpop.permute.xlu0 %4026
        %4060 = vrot.lane.b32.xlu0 %v3868, 64
        %v4061 = vpop.permute.xlu0 %4060
        %4062 = vrot.lane.b32.xlu0 %v3869, 64
        %v4063 = vpop.permute.xlu0 %4062
        %4064 = vrot.lane.b32.xlu0 %v3870, 64
        %v4065 = vpop.permute.xlu0 %4064
        %4066 = vrot.lane.b32.xlu0 %v3871, 64
        %v4067 = vpop.permute.xlu0 %4066
        %4068 = vrot.lane.b32.xlu0 %v3872, 64
        %v4069 = vpop.permute.xlu0 %4068
        %4070 = vrot.lane.b32.xlu0 %v3873, 64
        %v4071 = vpop.permute.xlu0 %4070
        %4072 = vrot.lane.b32.xlu0 %v3874, 64
        %v4073 = vpop.permute.xlu0 %4072
        %4074 = vrot.lane.b32.xlu0 %v3875, 64
        %v4075 = vpop.permute.xlu0 %4074
        %4076 = vrot.lane.b32.xlu0 %v3876, 64
        %v4077 = vpop.permute.xlu0 %4076
        %4078 = vrot.lane.b32.xlu0 %v3877, 64
        %v4079 = vpop.permute.xlu0 %4078
        %4080 = vrot.lane.b32.xlu0 %v3878, 64
        %v4081 = vpop.permute.xlu0 %4080
        %4082 = vrot.lane.b32.xlu0 %v3879, 64
        %v4083 = vpop.permute.xlu0 %4082
        %4084 = vrot.lane.b32.xlu0 %v3880, 64
        %v4085 = vpop.permute.xlu0 %4084
        %4086 = vrot.lane.b32.xlu0 %v3881, 64
        %v4087 = vpop.permute.xlu0 %4086
        %4088 = vrot.lane.b32.xlu0 %v3882, 64
        %v4089 = vpop.permute.xlu0 %4088
        %4090 = vrot.lane.b32.xlu0 %v3883, 64
        %v4091 = vpop.permute.xlu0 %4090
        %4124 = vrot.lane.b32.xlu0 %v3932, 64
        %v4125 = vpop.permute.xlu0 %4124
        %4126 = vrot.lane.b32.xlu0 %v3933, 64
        %v4127 = vpop.permute.xlu0 %4126
        %4128 = vrot.lane.b32.xlu0 %v3934, 64
        %v4129 = vpop.permute.xlu0 %4128
        %4130 = vrot.lane.b32.xlu0 %v3935, 64
        %v4131 = vpop.permute.xlu0 %4130
        %4132 = vrot.lane.b32.xlu0 %v3936, 64
        %v4133 = vpop.permute.xlu0 %4132
        %4134 = vrot.lane.b32.xlu0 %v3937, 64
        %v4135 = vpop.permute.xlu0 %4134
        %4136 = vrot.lane.b32.xlu0 %v3938, 64
        %v4137 = vpop.permute.xlu0 %4136
        %4138 = vrot.lane.b32.xlu0 %v3939, 64
        %v4139 = vpop.permute.xlu0 %4138
        %4140 = vrot.lane.b32.xlu0 %v3940, 64
        %v4141 = vpop.permute.xlu0 %4140
        %4142 = vrot.lane.b32.xlu0 %v3941, 64
        %v4143 = vpop.permute.xlu0 %4142
        %4144 = vrot.lane.b32.xlu0 %v3942, 64
        %v4145 = vpop.permute.xlu0 %4144
        %4146 = vrot.lane.b32.xlu0 %v3943, 64
        %v4147 = vpop.permute.xlu0 %4146
        %4148 = vrot.lane.b32.xlu0 %v3944, 64
        %v4149 = vpop.permute.xlu0 %4148
        %4150 = vrot.lane.b32.xlu0 %v3945, 64
        %v4151 = vpop.permute.xlu0 %4150
        %4152 = vrot.lane.b32.xlu0 %v3946, 64
        %v4153 = vpop.permute.xlu0 %4152
        %4154 = vrot.lane.b32.xlu0 %v3947, 64
        %v4155 = vpop.permute.xlu0 %4154
        %v4172 = vsel %vm2398, %v3788, %v3997
        %v4173 = vsel %vm2398, %v3789, %v3999
        %v4174 = vsel %vm2398, %v3790, %v4001
        %v4175 = vsel %vm2398, %v3791, %v4003
        %v4176 = vsel %vm2398, %v3792, %v4005
        %v4177 = vsel %vm2398, %v3793, %v4007
        %v4178 = vsel %vm2398, %v3794, %v4009
        %v4179 = vsel %vm2398, %v3795, %v4011
        %v4180 = vsel %vm2398, %v3796, %v4013
        %v4181 = vsel %vm2398, %v3797, %v4015
        %v4182 = vsel %vm2398, %v3798, %v4017
        %v4183 = vsel %vm2398, %v3799, %v4019
        %v4184 = vsel %vm2398, %v3800, %v4021
        %v4185 = vsel %vm2398, %v3801, %v4023
        %v4186 = vsel %vm2398, %v3802, %v4025
        %v4187 = vsel %vm2398, %v3803, %v4027
        %v4188 = vsel %vm2398, %v3852, %v4061
        %v4189 = vsel %vm2398, %v3853, %v4063
        %v4190 = vsel %vm2398, %v3854, %v4065
        %v4191 = vsel %vm2398, %v3855, %v4067
        %v4192 = vsel %vm2398, %v3856, %v4069
        %v4193 = vsel %vm2398, %v3857, %v4071
        %v4194 = vsel %vm2398, %v3858, %v4073
        %v4195 = vsel %vm2398, %v3859, %v4075
        %v4196 = vsel %vm2398, %v3860, %v4077
        %v4197 = vsel %vm2398, %v3861, %v4079
        %v4198 = vsel %vm2398, %v3862, %v4081
        %v4199 = vsel %vm2398, %v3863, %v4083
        %v4200 = vsel %vm2398, %v3864, %v4085
        %v4201 = vsel %vm2398, %v3865, %v4087
        %v4202 = vsel %vm2398, %v3866, %v4089
        %v4203 = vsel %vm2398, %v3867, %v4091
        %v4204 = vsel %vm2398, %v3900, %v4125
        %v4205 = vsel %vm2398, %v3901, %v4127
        %v4206 = vsel %vm2398, %v3902, %v4129
        %v4207 = vsel %vm2398, %v3903, %v4131
        %v4208 = vsel %vm2398, %v3904, %v4133
        %v4209 = vsel %vm2398, %v3905, %v4135
        %v4210 = vsel %vm2398, %v3906, %v4137
        %v4211 = vsel %vm2398, %v3907, %v4139
        %v4212 = vsel %vm2398, %v3908, %v4141
        %v4213 = vsel %vm2398, %v3909, %v4143
        %v4214 = vsel %vm2398, %v3910, %v4145
        %v4215 = vsel %vm2398, %v3911, %v4147
        %v4216 = vsel %vm2398, %v3912, %v4149
        %v4217 = vsel %vm2398, %v3913, %v4151
        %v4218 = vsel %vm2398, %v3914, %v4153
        %v4219 = vsel %vm2398, %v3915, %v4155
        %v4220 = vld [vmem:[#allocation3] sm:$0xff]
        %v4221 = vld [vmem:[#allocation3 + $0x8] sm:$0xff]
        %v4222 = vld [vmem:[#allocation3 + $0x10] sm:$0xff]
        %v4223 = vld [vmem:[#allocation3 + $0x18] sm:$0xff]
        %v4224 = vld [vmem:[#allocation3 + $0x20] sm:$0xff]
        %v4225 = vld [vmem:[#allocation3 + $0x28] sm:$0xff]
        %v4226 = vld [vmem:[#allocation3 + $0x30] sm:$0xff]
        %v4227 = vld [vmem:[#allocation3 + $0x38] sm:$0xff]
        %v4228 = vld [vmem:[#allocation3 + $0x40] sm:$0xff]
        %v4229 = vld [vmem:[#allocation3 + $0x48] sm:$0xff]
        %v4230 = vld [vmem:[#allocation3 + $0x50] sm:$0xff]
        %v4231 = vld [vmem:[#allocation3 + $0x58] sm:$0xff]
        %v4232 = vld [vmem:[#allocation3 + $0x60] sm:$0xff]
        %v4233 = vld [vmem:[#allocation3 + $0x68] sm:$0xff]
        %v4234 = vld [vmem:[#allocation3 + $0x70] sm:$0xff]
        %v4235 = vld [vmem:[#allocation3 + $0x78] sm:$0xff]
        %v4236 = vld [vmem:[#allocation3 + $0x80] sm:$0xff]
        %v4237 = vld [vmem:[#allocation3 + $0x88] sm:$0xff]
        %v4238 = vld [vmem:[#allocation3 + $0x90] sm:$0xff]
        %v4239 = vld [vmem:[#allocation3 + $0x98] sm:$0xff]
        %v4240 = vld [vmem:[#allocation3 + $0xa0] sm:$0xff]
        %v4241 = vld [vmem:[#allocation3 + $0xa8] sm:$0xff]
        %v4242 = vld [vmem:[#allocation3 + $0xb0] sm:$0xff]
        %v4243 = vld [vmem:[#allocation3 + $0xb8] sm:$0xff]
        %v4244 = vld [vmem:[#allocation3 + $0xc0] sm:$0xff]
        %v4245 = vld [vmem:[#allocation3 + $0xc8] sm:$0xff]
        %v4246 = vld [vmem:[#allocation3 + $0xd0] sm:$0xff]
        %v4247 = vld [vmem:[#allocation3 + $0xd8] sm:$0xff]
        %v4248 = vld [vmem:[#allocation3 + $0xe0] sm:$0xff]
        %v4249 = vld [vmem:[#allocation3 + $0xe8] sm:$0xff]
        %v4250 = vld [vmem:[#allocation3 + $0xf0] sm:$0xff]
        %v4251 = vld [vmem:[#allocation3 + $0xf8] sm:$0xff]
        %v4252 = vld [vmem:[#allocation3 + $0x100] sm:$0xff]
        %v4253 = vld [vmem:[#allocation3 + $0x108] sm:$0xff]
        %v4254 = vld [vmem:[#allocation3 + $0x110] sm:$0xff]
        %v4255 = vld [vmem:[#allocation3 + $0x118] sm:$0xff]
        %v4256 = vld [vmem:[#allocation3 + $0x120] sm:$0xff]
        %v4257 = vld [vmem:[#allocation3 + $0x128] sm:$0xff]
        %v4258 = vld [vmem:[#allocation3 + $0x130] sm:$0xff]
        %v4259 = vld [vmem:[#allocation3 + $0x138] sm:$0xff]
        %v4260 = vld [vmem:[#allocation3 + $0x140] sm:$0xff]
        %v4261 = vld [vmem:[#allocation3 + $0x148] sm:$0xff]
        %v4262 = vld [vmem:[#allocation3 + $0x150] sm:$0xff]
        %v4263 = vld [vmem:[#allocation3 + $0x158] sm:$0xff]
        %v4264 = vld [vmem:[#allocation3 + $0x160] sm:$0xff]
        %v4265 = vld [vmem:[#allocation3 + $0x168] sm:$0xff]
        %v4266 = vld [vmem:[#allocation3 + $0x170] sm:$0xff]
        %v4267 = vld [vmem:[#allocation3 + $0x178] sm:$0xff]
        %v4268 = vld [vmem:[#allocation3 + $0x180] sm:$0xff]
        %v4269 = vld [vmem:[#allocation3 + $0x188] sm:$0xff]
        %v4270 = vld [vmem:[#allocation3 + $0x190] sm:$0xff]
        %v4271 = vld [vmem:[#allocation3 + $0x198] sm:$0xff]
        %v4272 = vld [vmem:[#allocation3 + $0x1a0] sm:$0xff]
        %v4273 = vld [vmem:[#allocation3 + $0x1a8] sm:$0xff]
        %v4274 = vld [vmem:[#allocation3 + $0x1b0] sm:$0xff]
        %v4275 = vld [vmem:[#allocation3 + $0x1b8] sm:$0xff]
        %v4276 = vld [vmem:[%s10] sm:$0x1]
        %v4278 = vlaneseq
        %v4279 = vshrl.u32 %v4278, 7
        %v4280 = vsub.s32 0, %v4279
        %v4281 = vrot.slane %v4276, %v4280
        %v4284 = vsel %vm2398, %v3964, 0
        %v4287 = vsel %vm2398, %v3965, 0
        %v4290 = vsel %vm2398, %v3966, 0
        %v4293 = vsel %vm2398, %v3967, 0
        %v4296 = vsel %vm2398, %v3968, 0
        %v4299 = vsel %vm2398, %v3969, 0
        %v4302 = vsel %vm2398, %v3970, 0
        %v4305 = vsel %vm2398, %v3971, 0
        %v4308 = vsel %vm2398, %v3972, 0
        %v4311 = vsel %vm2398, %v3973, 0
        %v4314 = vsel %vm2398, %v3974, 0
        %v4317 = vsel %vm2398, %v3975, 0
        %v4320 = vsel %vm2398, %v3976, 0
        %v4323 = vsel %vm2398, %v3977, 0
        %v4326 = vsel %vm2398, %v3978, 0
        %v4329 = vsel %vm2398, %v3979, 0
        %4331 = vmatprep.subr.mxu0 0.0
        %4332 = vmatpush1.msra.mxu0 %v4235
        %4333 = vmatprep.subr.mxu0 0.0
        %4334 = vmatpush1.msra.mxu0 %v4234
        %4335 = vmatprep.subr.mxu0 0.0
        %4336 = vmatpush1.msra.mxu0 %v4233
        %4337 = vmatprep.subr.mxu0 0.0
        %4338 = vmatpush1.msra.mxu0 %v4232
        %4339 = vmatprep.subr.mxu0 0.0
        %4340 = vmatpush1.msra.mxu0 %v4231
        %4341 = vmatprep.subr.mxu0 0.0
        %4342 = vmatpush1.msra.mxu0 %v4230
        %4343 = vmatprep.subr.mxu0 0.0
        %4344 = vmatpush1.msra.mxu0 %v4229
        %4345 = vmatprep.subr.mxu0 0.0
        %4346 = vmatpush1.msra.mxu0 %v4228
        %4347 = vmatprep.subr.mxu0 0.0
        %4348 = vmatpush1.msra.mxu0 %v4227
        %4349 = vmatprep.subr.mxu0 0.0
        %4350 = vmatpush1.msra.mxu0 %v4226
        %4351 = vmatprep.subr.mxu0 0.0
        %4352 = vmatpush1.msra.mxu0 %v4225
        %4353 = vmatprep.subr.mxu0 0.0
        %4354 = vmatpush1.msra.mxu0 %v4224
        %4355 = vmatprep.subr.mxu0 0.0
        %4356 = vmatpush1.msra.mxu0 %v4223
        %4357 = vmatprep.subr.mxu0 0.0
        %4358 = vmatpush1.msra.mxu0 %v4222
        %4359 = vmatprep.subr.mxu0 0.0
        %4360 = vmatpush1.msra.mxu0 %v4221
        %4361 = vmatprep.subr.mxu0 0.0
        %4362 = vmatpush1.msra.mxu0 %v4220
        %4363 = vmatprep.subr.mxu0 0.0
        %4364 = vmatpush2.msra.mxu0 %v4251
        %4365 = vmatprep.subr.mxu0 0.0
        %4366 = vmatpush2.msra.mxu0 %v4250
        %4367 = vmatprep.subr.mxu0 0.0
        %4368 = vmatpush2.msra.mxu0 %v4249
        %4369 = vmatprep.subr.mxu0 0.0
        %4370 = vmatpush2.msra.mxu0 %v4248
        %4371 = vmatprep.subr.mxu0 0.0
        %4372 = vmatpush2.msra.mxu0 %v4247
        %4373 = vmatprep.subr.mxu0 0.0
        %4374 = vmatpush2.msra.mxu0 %v4246
        %4375 = vmatprep.subr.mxu0 0.0
        %4376 = vmatpush2.msra.mxu0 %v4245
        %4377 = vmatprep.subr.mxu0 0.0
        %4378 = vmatpush2.msra.mxu0 %v4244
        %4379 = vmatprep.subr.mxu0 0.0
        %4380 = vmatpush2.msra.mxu0 %v4243
        %4381 = vmatprep.subr.mxu0 0.0
        %4382 = vmatpush2.msra.mxu0 %v4242
        %4383 = vmatprep.subr.mxu0 0.0
        %4384 = vmatpush2.msra.mxu0 %v4241
        %4385 = vmatprep.subr.mxu0 0.0
        %4386 = vmatpush2.msra.mxu0 %v4240
        %4387 = vmatprep.subr.mxu0 0.0
        %4388 = vmatpush2.msra.mxu0 %v4239
        %4389 = vmatprep.subr.mxu0 0.0
        %4390 = vmatpush2.msra.mxu0 %v4238
        %4391 = vmatprep.subr.mxu0 0.0
        %4392 = vmatpush2.msra.mxu0 %v4237
        %4393 = vmatprep.subr.mxu0 0.0
        %4394 = vmatpush2.msra.mxu0 %v4236
        %4395 = vmatprep.mubr.f32.mxu0 %v4188
        %4396 = vmatmul.mubr.f32.gmra.mxu0 %v4172
        %v4397 = vpop.f32.mrf.mxu0
        %v4398 = vadd.f32 %v4281, %v4397
        %v4399 = vpop.f32.mrf.mxu0
        %4400 = vmatprep.mubr.f32.mxu0 %v4189
        %4401 = vmatmul.mubr.f32.gmra.mxu0 %v4173
        %v4402 = vpop.f32.mrf.mxu0
        %v4403 = vadd.f32 %v4281, %v4402
        %v4404 = vpop.f32.mrf.mxu0
        %4405 = vmatprep.mubr.f32.mxu0 %v4190
        %4406 = vmatmul.mubr.f32.gmra.mxu0 %v4174
        %v4407 = vpop.f32.mrf.mxu0
        %v4408 = vadd.f32 %v4281, %v4407
        %v4409 = vpop.f32.mrf.mxu0
        %4410 = vmatprep.mubr.f32.mxu0 %v4191
        %4411 = vmatmul.mubr.f32.gmra.mxu0 %v4175
        %v4412 = vpop.f32.mrf.mxu0
        %v4413 = vadd.f32 %v4281, %v4412
        %v4414 = vpop.f32.mrf.mxu0
        %4415 = vmatprep.mubr.f32.mxu0 %v4192
        %4416 = vmatmul.mubr.f32.gmra.mxu0 %v4176
        %v4417 = vpop.f32.mrf.mxu0
        %v4418 = vadd.f32 %v4281, %v4417
        %v4419 = vpop.f32.mrf.mxu0
        %4420 = vmatprep.mubr.f32.mxu0 %v4193
        %4421 = vmatmul.mubr.f32.gmra.mxu0 %v4177
        %v4422 = vpop.f32.mrf.mxu0
        %v4423 = vadd.f32 %v4281, %v4422
        %v4424 = vpop.f32.mrf.mxu0
        %4425 = vmatprep.mubr.f32.mxu0 %v4194
        %4426 = vmatmul.mubr.f32.gmra.mxu0 %v4178
        %v4427 = vpop.f32.mrf.mxu0
        %v4428 = vadd.f32 %v4281, %v4427
        %v4429 = vpop.f32.mrf.mxu0
        %4430 = vmatprep.mubr.f32.mxu0 %v4195
        %4431 = vmatmul.mubr.f32.gmra.mxu0 %v4179
        %v4432 = vpop.f32.mrf.mxu0
        %v4433 = vadd.f32 %v4281, %v4432
        %v4434 = vpop.f32.mrf.mxu0
        %4435 = vmatprep.mubr.f32.mxu0 %v4196
        %4436 = vmatmul.mubr.f32.gmra.mxu0 %v4180
        %v4437 = vpop.f32.mrf.mxu0
        %v4438 = vadd.f32 %v4281, %v4437
        %v4439 = vpop.f32.mrf.mxu0
        %4440 = vmatprep.mubr.f32.mxu0 %v4197
        %4441 = vmatmul.mubr.f32.gmra.mxu0 %v4181
        %v4442 = vpop.f32.mrf.mxu0
        %v4443 = vadd.f32 %v4281, %v4442
        %v4444 = vpop.f32.mrf.mxu0
        %4445 = vmatprep.mubr.f32.mxu0 %v4198
        %4446 = vmatmul.mubr.f32.gmra.mxu0 %v4182
        %v4447 = vpop.f32.mrf.mxu0
        %v4448 = vadd.f32 %v4281, %v4447
        %v4449 = vpop.f32.mrf.mxu0
        %4450 = vmatprep.mubr.f32.mxu0 %v4199
        %4451 = vmatmul.mubr.f32.gmra.mxu0 %v4183
        %v4452 = vpop.f32.mrf.mxu0
        %v4453 = vadd.f32 %v4281, %v4452
        %v4454 = vpop.f32.mrf.mxu0
        %4455 = vmatprep.mubr.f32.mxu0 %v4200
        %4456 = vmatmul.mubr.f32.gmra.mxu0 %v4184
        %v4457 = vpop.f32.mrf.mxu0
        %v4458 = vadd.f32 %v4281, %v4457
        %v4459 = vpop.f32.mrf.mxu0
        %4460 = vmatprep.mubr.f32.mxu0 %v4201
        %4461 = vmatmul.mubr.f32.gmra.mxu0 %v4185
        %v4462 = vpop.f32.mrf.mxu0
        %v4463 = vadd.f32 %v4281, %v4462
        %v4464 = vpop.f32.mrf.mxu0
        %4465 = vmatprep.mubr.f32.mxu0 %v4202
        %4466 = vmatmul.mubr.f32.gmra.mxu0 %v4186
        %v4467 = vpop.f32.mrf.mxu0
        %v4468 = vadd.f32 %v4281, %v4467
        %v4469 = vpop.f32.mrf.mxu0
        %4470 = vmatprep.mubr.f32.mxu0 %v4203
        %4471 = vmatmul.mubr.f32.gmra.mxu0 %v4187
        %v4472 = vpop.f32.mrf.mxu0
        %v4473 = vadd.f32 %v4281, %v4472
        %v4474 = vpop.f32.mrf.mxu0
        %4475 = vdwg.mxu0
        %4476 = vmatprep.subr.mxu0 0.0
        %4477 = vmatpush1.msra.mxu0 %v4267
        %4478 = vmatprep.subr.mxu0 0.0
        %4479 = vmatpush1.msra.mxu0 %v4266
        %4480 = vmatprep.subr.mxu0 0.0
        %4481 = vmatpush1.msra.mxu0 %v4265
        %4482 = vmatprep.subr.mxu0 0.0
        %4483 = vmatpush1.msra.mxu0 %v4264
        %4484 = vmatprep.subr.mxu0 0.0
        %4485 = vmatpush1.msra.mxu0 %v4263
        %4486 = vmatprep.subr.mxu0 0.0
        %4487 = vmatpush1.msra.mxu0 %v4262
        %4488 = vmatprep.subr.mxu0 0.0
        %4489 = vmatpush1.msra.mxu0 %v4261
        %4490 = vmatprep.subr.mxu0 0.0
        %4491 = vmatpush1.msra.mxu0 %v4260
        %4492 = vmatprep.subr.mxu0 0.0
        %4493 = vmatpush1.msra.mxu0 %v4259
        %4494 = vmatprep.subr.mxu0 0.0
        %4495 = vmatpush1.msra.mxu0 %v4258
        %4496 = vmatprep.subr.mxu0 0.0
        %4497 = vmatpush1.msra.mxu0 %v4257
        %4498 = vmatprep.subr.mxu0 0.0
        %4499 = vmatpush1.msra.mxu0 %v4256
        %4500 = vmatprep.subr.mxu0 0.0
        %4501 = vmatpush1.msra.mxu0 %v4255
        %4502 = vmatprep.subr.mxu0 0.0
        %4503 = vmatpush1.msra.mxu0 %v4254
        %4504 = vmatprep.subr.mxu0 0.0
        %4505 = vmatpush1.msra.mxu0 %v4253
        %4506 = vmatprep.subr.mxu0 0.0
        %4507 = vmatpush1.msra.mxu0 %v4252
        %4508 = vmatprep.subr.mxu0 0.0
        %4509 = vmatpush2.msra.mxu0 0.0
        %4510 = vmatprep.subr.mxu0 0.0
        %4511 = vmatpush2.msra.mxu0 0.0
        %4512 = vmatprep.subr.mxu0 0.0
        %4513 = vmatpush2.msra.mxu0 0.0
        %4514 = vmatprep.subr.mxu0 0.0
        %4515 = vmatpush2.msra.mxu0 0.0
        %4516 = vmatprep.subr.mxu0 0.0
        %4517 = vmatpush2.msra.mxu0 0.0
        %4518 = vmatprep.subr.mxu0 0.0
        %4519 = vmatpush2.msra.mxu0 0.0
        %4520 = vmatprep.subr.mxu0 0.0
        %4521 = vmatpush2.msra.mxu0 0.0
        %4522 = vmatprep.subr.mxu0 0.0
        %4523 = vmatpush2.msra.mxu0 0.0
        %4524 = vmatprep.subr.mxu0 0.0
        %4525 = vmatpush2.msra.mxu0 %v4275
        %4526 = vmatprep.subr.mxu0 0.0
        %4527 = vmatpush2.msra.mxu0 %v4274
        %4528 = vmatprep.subr.mxu0 0.0
        %4529 = vmatpush2.msra.mxu0 %v4273
        %4530 = vmatprep.subr.mxu0 0.0
        %4531 = vmatpush2.msra.mxu0 %v4272
        %4532 = vmatprep.subr.mxu0 0.0
        %4533 = vmatpush2.msra.mxu0 %v4271
        %4534 = vmatprep.subr.mxu0 0.0
        %4535 = vmatpush2.msra.mxu0 %v4270
        %4536 = vmatprep.subr.mxu0 0.0
        %4537 = vmatpush2.msra.mxu0 %v4269
        %4538 = vmatprep.subr.mxu0 0.0
        %4539 = vmatpush2.msra.mxu0 %v4268
        %4540 = vmatprep.mubr.f32.mxu0 %v4284
        %4541 = vmatmul.mubr.f32.gmra.mxu0 %v4204
        %v4542 = vpop.f32.mrf.mxu0
        %v4543 = vadd.f32 %v4398, %v4542
        %v4544 = vpop.f32.mrf.mxu0
        %4545 = vmatprep.mubr.f32.mxu0 %v4287
        %4546 = vmatmul.mubr.f32.gmra.mxu0 %v4205
        %v4547 = vpop.f32.mrf.mxu0
        %v4548 = vadd.f32 %v4403, %v4547
        %v4549 = vpop.f32.mrf.mxu0
        %4550 = vmatprep.mubr.f32.mxu0 %v4290
        %4551 = vmatmul.mubr.f32.gmra.mxu0 %v4206
        %v4552 = vpop.f32.mrf.mxu0
        %v4553 = vadd.f32 %v4408, %v4552
        %v4554 = vpop.f32.mrf.mxu0
        %4555 = vmatprep.mubr.f32.mxu0 %v4293
        %4556 = vmatmul.mubr.f32.gmra.mxu0 %v4207
        %v4557 = vpop.f32.mrf.mxu0
        %v4558 = vadd.f32 %v4413, %v4557
        %v4559 = vpop.f32.mrf.mxu0
        %4560 = vmatprep.mubr.f32.mxu0 %v4296
        %4561 = vmatmul.mubr.f32.gmra.mxu0 %v4208
        %v4562 = vpop.f32.mrf.mxu0
        %v4563 = vadd.f32 %v4418, %v4562
        %v4564 = vpop.f32.mrf.mxu0
        %4565 = vmatprep.mubr.f32.mxu0 %v4299
        %4566 = vmatmul.mubr.f32.gmra.mxu0 %v4209
        %v4567 = vpop.f32.mrf.mxu0
        %v4568 = vadd.f32 %v4423, %v4567
        %v4569 = vpop.f32.mrf.mxu0
        %4570 = vmatprep.mubr.f32.mxu0 %v4302
        %4571 = vmatmul.mubr.f32.gmra.mxu0 %v4210
        %v4572 = vpop.f32.mrf.mxu0
        %v4573 = vadd.f32 %v4428, %v4572
        %v4574 = vpop.f32.mrf.mxu0
        %4575 = vmatprep.mubr.f32.mxu0 %v4305
        %4576 = vmatmul.mubr.f32.gmra.mxu0 %v4211
        %v4577 = vpop.f32.mrf.mxu0
        %v4578 = vadd.f32 %v4433, %v4577
        %v4579 = vpop.f32.mrf.mxu0
        %4580 = vmatprep.mubr.f32.mxu0 %v4308
        %4581 = vmatmul.mubr.f32.gmra.mxu0 %v4212
        %v4582 = vpop.f32.mrf.mxu0
        %v4583 = vadd.f32 %v4438, %v4582
        %v4584 = vpop.f32.mrf.mxu0
        %4585 = vmatprep.mubr.f32.mxu0 %v4311
        %4586 = vmatmul.mubr.f32.gmra.mxu0 %v4213
        %v4587 = vpop.f32.mrf.mxu0
        %v4588 = vadd.f32 %v4443, %v4587
        %v4589 = vpop.f32.mrf.mxu0
        %4590 = vmatprep.mubr.f32.mxu0 %v4314
        %4591 = vmatmul.mubr.f32.gmra.mxu0 %v4214
        %v4592 = vpop.f32.mrf.mxu0
        %v4593 = vadd.f32 %v4448, %v4592
        %v4594 = vpop.f32.mrf.mxu0
        %4595 = vmatprep.mubr.f32.mxu0 %v4317
        %4596 = vmatmul.mubr.f32.gmra.mxu0 %v4215
        %v4597 = vpop.f32.mrf.mxu0
        %v4598 = vadd.f32 %v4453, %v4597
        %v4599 = vpop.f32.mrf.mxu0
        %4600 = vmatprep.mubr.f32.mxu0 %v4320
        %4601 = vmatmul.mubr.f32.gmra.mxu0 %v4216
        %v4602 = vpop.f32.mrf.mxu0
        %v4603 = vadd.f32 %v4458, %v4602
        %v4604 = vpop.f32.mrf.mxu0
        %4605 = vmatprep.mubr.f32.mxu0 %v4323
        %4606 = vmatmul.mubr.f32.gmra.mxu0 %v4217
        %v4607 = vpop.f32.mrf.mxu0
        %v4608 = vadd.f32 %v4463, %v4607
        %v4609 = vpop.f32.mrf.mxu0
        %4610 = vmatprep.mubr.f32.mxu0 %v4326
        %4611 = vmatmul.mubr.f32.gmra.mxu0 %v4218
        %v4612 = vpop.f32.mrf.mxu0
        %v4613 = vadd.f32 %v4468, %v4612
        %v4614 = vpop.f32.mrf.mxu0
        %4615 = vmatprep.mubr.f32.mxu0 %v4329
        %4616 = vmatmul.mubr.f32.gmra.mxu0 %v4219
        %v4617 = vpop.f32.mrf.mxu0
        %v4618 = vadd.f32 %v4473, %v4617
        %v4619 = vpop.f32.mrf.mxu0
        %4620 = vdwg.mxu0
        %v4621 = vmax.f32 %v4543, 0.0
        %v4622 = vmax.f32 %v4548, 0.0
        %v4623 = vmax.f32 %v4553, 0.0
        %v4624 = vmax.f32 %v4558, 0.0
        %v4625 = vmax.f32 %v4563, 0.0
        %v4626 = vmax.f32 %v4568, 0.0
        %v4627 = vmax.f32 %v4573, 0.0
        %v4628 = vmax.f32 %v4578, 0.0
        %v4629 = vmax.f32 %v4583, 0.0
        %v4630 = vmax.f32 %v4588, 0.0
        %v4631 = vmax.f32 %v4593, 0.0
        %v4632 = vmax.f32 %v4598, 0.0
        %v4633 = vmax.f32 %v4603, 0.0
        %v4634 = vmax.f32 %v4608, 0.0
        %v4635 = vmax.f32 %v4613, 0.0
        %v4636 = vmax.f32 %v4618, 0.0
        %4637 = vst [vmem:[#allocation2 + $0x3] sm:$0xff] %v4621
        %4638 = vst [vmem:[#allocation2 + $0xb] sm:$0xff] %v4622
        %4639 = vst [vmem:[#allocation2 + $0x13] sm:$0xff] %v4623
        %4640 = vst [vmem:[#allocation2 + $0x1b] sm:$0xff] %v4624
        %4641 = vst [vmem:[#allocation2 + $0x23] sm:$0xff] %v4625
        %4642 = vst [vmem:[#allocation2 + $0x2b] sm:$0xff] %v4626
        %4643 = vst [vmem:[#allocation2 + $0x33] sm:$0xff] %v4627
        %4644 = vst [vmem:[#allocation2 + $0x3b] sm:$0xff] %v4628
        %4645 = vst [vmem:[#allocation2 + $0x43] sm:$0xff] %v4629
        %4646 = vst [vmem:[#allocation2 + $0x4b] sm:$0xff] %v4630
        %4647 = vst [vmem:[#allocation2 + $0x53] sm:$0xff] %v4631
        %4648 = vst [vmem:[#allocation2 + $0x5b] sm:$0xff] %v4632
        %4649 = vst [vmem:[#allocation2 + $0x63] sm:$0xff] %v4633
        %4650 = vst [vmem:[#allocation2 + $0x6b] sm:$0xff] %v4634
        %4651 = vst [vmem:[#allocation2 + $0x73] sm:$0xff] %v4635
        %4652 = vst [vmem:[#allocation2 + $0x7b] sm:$0xff] %v4636
        %v4653 = vld [vmem:[#allocation2 + $0x1] sm:$0xff]
        %v4654 = vld [vmem:[#allocation2 + $0x9] sm:$0xff]
        %v4655 = vld [vmem:[#allocation2 + $0x11] sm:$0xff]
        %v4656 = vld [vmem:[#allocation2 + $0x19] sm:$0xff]
        %v4657 = vld [vmem:[#allocation2 + $0x21] sm:$0xff]
        %v4658 = vld [vmem:[#allocation2 + $0x29] sm:$0xff]
        %v4659 = vld [vmem:[#allocation2 + $0x31] sm:$0xff]
        %v4660 = vld [vmem:[#allocation2 + $0x39] sm:$0xff]
        %v4661 = vld [vmem:[#allocation2 + $0x41] sm:$0xff]
        %v4662 = vld [vmem:[#allocation2 + $0x49] sm:$0xff]
        %v4663 = vld [vmem:[#allocation2 + $0x51] sm:$0xff]
        %v4664 = vld [vmem:[#allocation2 + $0x59] sm:$0xff]
        %v4665 = vld [vmem:[#allocation2 + $0x61] sm:$0xff]
        %v4666 = vld [vmem:[#allocation2 + $0x69] sm:$0xff]
        %v4667 = vld [vmem:[#allocation2 + $0x71] sm:$0xff]
        %v4668 = vld [vmem:[#allocation2 + $0x79] sm:$0xff]
        %v4669 = vsel %vm1384, %v4653, 0.0
        %v4670 = vsel %vm1385, %v4654, 0.0
        %v4671 = vsel %vm1386, %v4655, 0.0
        %v4672 = vsel %vm1387, %v4656, 0.0
        %v4673 = vsel %vm1388, %v4657, 0.0
        %v4674 = vsel %vm1389, %v4658, 0.0
        %v4675 = vsel %vm1390, %v4659, 0.0
        %v4676 = vsel %vm1391, %v4660, 0.0
        %v4677 = vsel %vm1392, %v4661, 0.0
        %v4678 = vsel %vm1393, %v4662, 0.0
        %v4679 = vsel %vm1394, %v4663, 0.0
        %v4680 = vsel %vm1395, %v4664, 0.0
        %v4681 = vsel %vm1396, %v4665, 0.0
        %v4682 = vsel %vm1397, %v4666, 0.0
        %v4683 = vsel %vm1398, %v4667, 0.0
        %v4684 = vsel %vm1399, %v4668, 0.0
        %v4685 = vld [vmem:[#allocation2 + $0x2] sm:$0xff]
        %v4686 = vld [vmem:[#allocation2 + $0xa] sm:$0xff]
        %v4687 = vld [vmem:[#allocation2 + $0x12] sm:$0xff]
        %v4688 = vld [vmem:[#allocation2 + $0x1a] sm:$0xff]
        %v4689 = vld [vmem:[#allocation2 + $0x22] sm:$0xff]
        %v4690 = vld [vmem:[#allocation2 + $0x2a] sm:$0xff]
        %v4691 = vld [vmem:[#allocation2 + $0x32] sm:$0xff]
        %v4692 = vld [vmem:[#allocation2 + $0x3a] sm:$0xff]
        %v4693 = vld [vmem:[#allocation2 + $0x42] sm:$0xff]
        %v4694 = vld [vmem:[#allocation2 + $0x4a] sm:$0xff]
        %v4695 = vld [vmem:[#allocation2 + $0x52] sm:$0xff]
        %v4696 = vld [vmem:[#allocation2 + $0x5a] sm:$0xff]
        %v4697 = vld [vmem:[#allocation2 + $0x62] sm:$0xff]
        %v4698 = vld [vmem:[#allocation2 + $0x6a] sm:$0xff]
        %v4699 = vld [vmem:[#allocation2 + $0x72] sm:$0xff]
        %v4700 = vld [vmem:[#allocation2 + $0x7a] sm:$0xff]
        %v4701 = vsel %vm1448, %v4685, 0.0
        %v4702 = vsel %vm1449, %v4686, 0.0
        %v4703 = vsel %vm1450, %v4687, 0.0
        %v4704 = vsel %vm1451, %v4688, 0.0
        %v4705 = vsel %vm1452, %v4689, 0.0
        %v4706 = vsel %vm1453, %v4690, 0.0
        %v4707 = vsel %vm1454, %v4691, 0.0
        %v4708 = vsel %vm1455, %v4692, 0.0
        %v4709 = vsel %vm1456, %v4693, 0.0
        %v4710 = vsel %vm1457, %v4694, 0.0
        %v4711 = vsel %vm1458, %v4695, 0.0
        %v4712 = vsel %vm1459, %v4696, 0.0
        %v4713 = vsel %vm1460, %v4697, 0.0
        %v4714 = vsel %vm1461, %v4698, 0.0
        %v4715 = vsel %vm1462, %v4699, 0.0
        %v4716 = vsel %vm1463, %v4700, 0.0
        %v4717 = vld [vmem:[#allocation2 + $0x3] sm:$0xff]
        %v4718 = vld [vmem:[#allocation2 + $0xb] sm:$0xff]
        %v4719 = vld [vmem:[#allocation2 + $0x13] sm:$0xff]
        %v4720 = vld [vmem:[#allocation2 + $0x1b] sm:$0xff]
        %v4721 = vld [vmem:[#allocation2 + $0x23] sm:$0xff]
        %v4722 = vld [vmem:[#allocation2 + $0x2b] sm:$0xff]
        %v4723 = vld [vmem:[#allocation2 + $0x33] sm:$0xff]
        %v4724 = vld [vmem:[#allocation2 + $0x3b] sm:$0xff]
        %v4725 = vld [vmem:[#allocation2 + $0x43] sm:$0xff]
        %v4726 = vld [vmem:[#allocation2 + $0x4b] sm:$0xff]
        %v4727 = vld [vmem:[#allocation2 + $0x53] sm:$0xff]
        %v4728 = vld [vmem:[#allocation2 + $0x5b] sm:$0xff]
        %v4729 = vld [vmem:[#allocation2 + $0x63] sm:$0xff]
        %v4730 = vld [vmem:[#allocation2 + $0x6b] sm:$0xff]
        %v4731 = vld [vmem:[#allocation2 + $0x73] sm:$0xff]
        %v4732 = vld [vmem:[#allocation2 + $0x7b] sm:$0xff]
        %v4733 = vld [vmem:[#allocation2 + $0x4] sm:$0xff]
        %v4734 = vld [vmem:[#allocation2 + $0xc] sm:$0xff]
        %v4735 = vld [vmem:[#allocation2 + $0x14] sm:$0xff]
        %v4736 = vld [vmem:[#allocation2 + $0x1c] sm:$0xff]
        %v4737 = vld [vmem:[#allocation2 + $0x24] sm:$0xff]
        %v4738 = vld [vmem:[#allocation2 + $0x2c] sm:$0xff]
        %v4739 = vld [vmem:[#allocation2 + $0x34] sm:$0xff]
        %v4740 = vld [vmem:[#allocation2 + $0x3c] sm:$0xff]
        %v4741 = vld [vmem:[#allocation2 + $0x44] sm:$0xff]
        %v4742 = vld [vmem:[#allocation2 + $0x4c] sm:$0xff]
        %v4743 = vld [vmem:[#allocation2 + $0x54] sm:$0xff]
        %v4744 = vld [vmem:[#allocation2 + $0x5c] sm:$0xff]
        %v4745 = vld [vmem:[#allocation2 + $0x64] sm:$0xff]
        %v4746 = vld [vmem:[#allocation2 + $0x6c] sm:$0xff]
        %v4747 = vld [vmem:[#allocation2 + $0x74] sm:$0xff]
        %v4748 = vld [vmem:[#allocation2 + $0x7c] sm:$0xff]
        %v4749 = vsel %vm1528, %v4733, 0.0
        %v4750 = vsel %vm1529, %v4734, 0.0
        %v4751 = vsel %vm1530, %v4735, 0.0
        %v4752 = vsel %vm1531, %v4736, 0.0
        %v4753 = vsel %vm1532, %v4737, 0.0
        %v4754 = vsel %vm1533, %v4738, 0.0
        %v4755 = vsel %vm1534, %v4739, 0.0
        %v4756 = vsel %vm1535, %v4740, 0.0
        %v4757 = vsel %vm1536, %v4741, 0.0
        %v4758 = vsel %vm1537, %v4742, 0.0
        %v4759 = vsel %vm1538, %v4743, 0.0
        %v4760 = vsel %vm1539, %v4744, 0.0
        %v4761 = vsel %vm1540, %v4745, 0.0
        %v4762 = vsel %vm1541, %v4746, 0.0
        %v4763 = vsel %vm1542, %v4747, 0.0
        %v4764 = vsel %vm1543, %v4748, 0.0
        %v4765 = vld [vmem:[#allocation2 + $0x5] sm:$0xff]
        %v4766 = vld [vmem:[#allocation2 + $0xd] sm:$0xff]
        %v4767 = vld [vmem:[#allocation2 + $0x15] sm:$0xff]
        %v4768 = vld [vmem:[#allocation2 + $0x1d] sm:$0xff]
        %v4769 = vld [vmem:[#allocation2 + $0x25] sm:$0xff]
        %v4770 = vld [vmem:[#allocation2 + $0x2d] sm:$0xff]
        %v4771 = vld [vmem:[#allocation2 + $0x35] sm:$0xff]
        %v4772 = vld [vmem:[#allocation2 + $0x3d] sm:$0xff]
        %v4773 = vld [vmem:[#allocation2 + $0x45] sm:$0xff]
        %v4774 = vld [vmem:[#allocation2 + $0x4d] sm:$0xff]
        %v4775 = vld [vmem:[#allocation2 + $0x55] sm:$0xff]
        %v4776 = vld [vmem:[#allocation2 + $0x5d] sm:$0xff]
        %v4777 = vld [vmem:[#allocation2 + $0x65] sm:$0xff]
        %v4778 = vld [vmem:[#allocation2 + $0x6d] sm:$0xff]
        %v4779 = vld [vmem:[#allocation2 + $0x75] sm:$0xff]
        %v4780 = vld [vmem:[#allocation2 + $0x7d] sm:$0xff]
        %v4781 = vsel %vm1592, %v4765, 0.0
        %v4782 = vsel %vm1593, %v4766, 0.0
        %v4783 = vsel %vm1594, %v4767, 0.0
        %v4784 = vsel %vm1595, %v4768, 0.0
        %v4785 = vsel %vm1596, %v4769, 0.0
        %v4786 = vsel %vm1597, %v4770, 0.0
        %v4787 = vsel %vm1598, %v4771, 0.0
        %v4788 = vsel %vm1599, %v4772, 0.0
        %v4789 = vsel %vm1600, %v4773, 0.0
        %v4790 = vsel %vm1601, %v4774, 0.0
        %v4791 = vsel %vm1602, %v4775, 0.0
        %v4792 = vsel %vm1603, %v4776, 0.0
        %v4793 = vsel %vm1604, %v4777, 0.0
        %v4794 = vsel %vm1605, %v4778, 0.0
        %v4795 = vsel %vm1606, %v4779, 0.0
        %v4796 = vsel %vm1607, %v4780, 0.0
        %v4797 = vld [vmem:[#allocation5] sm:$0xff]
        %v4798 = vld [vmem:[#allocation5 + $0x8] sm:$0xff]
        %v4799 = vld [vmem:[#allocation5 + $0x10] sm:$0xff]
        %v4800 = vld [vmem:[#allocation5 + $0x18] sm:$0xff]
        %v4801 = vld [vmem:[#allocation5 + $0x20] sm:$0xff]
        %v4802 = vld [vmem:[#allocation5 + $0x28] sm:$0xff]
        %v4803 = vld [vmem:[#allocation5 + $0x30] sm:$0xff]
        %v4804 = vld [vmem:[#allocation5 + $0x38] sm:$0xff]
        %v4805 = vld [vmem:[#allocation5 + $0x40] sm:$0xff]
        %v4806 = vld [vmem:[#allocation5 + $0x48] sm:$0xff]
        %v4807 = vld [vmem:[#allocation5 + $0x50] sm:$0xff]
        %v4808 = vld [vmem:[#allocation5 + $0x58] sm:$0xff]
        %v4809 = vld [vmem:[#allocation5 + $0x60] sm:$0xff]
        %v4810 = vld [vmem:[#allocation5 + $0x68] sm:$0xff]
        %v4811 = vld [vmem:[#allocation5 + $0x70] sm:$0xff]
        %v4812 = vld [vmem:[#allocation5 + $0x78] sm:$0xff]
        %v4813 = vld [vmem:[#allocation5 + $0x80] sm:$0xff]
        %v4814 = vld [vmem:[#allocation5 + $0x88] sm:$0xff]
        %v4815 = vld [vmem:[#allocation5 + $0x90] sm:$0xff]
        %v4816 = vld [vmem:[#allocation5 + $0x98] sm:$0xff]
        %v4817 = vld [vmem:[#allocation5 + $0xa0] sm:$0xff]
        %v4818 = vld [vmem:[#allocation5 + $0xa8] sm:$0xff]
        %v4819 = vld [vmem:[#allocation5 + $0xb0] sm:$0xff]
        %v4820 = vld [vmem:[#allocation5 + $0xb8] sm:$0xff]
        %v4821 = vld [vmem:[#allocation5 + $0xc0] sm:$0xff]
        %v4822 = vld [vmem:[#allocation5 + $0xc8] sm:$0xff]
        %v4823 = vld [vmem:[#allocation5 + $0xd0] sm:$0xff]
        %v4824 = vld [vmem:[#allocation5 + $0xd8] sm:$0xff]
        %v4825 = vld [vmem:[#allocation5 + $0xe0] sm:$0xff]
        %v4826 = vld [vmem:[#allocation5 + $0xe8] sm:$0xff]
        %v4827 = vld [vmem:[#allocation5 + $0xf0] sm:$0xff]
        %v4828 = vld [vmem:[#allocation5 + $0xf8] sm:$0xff]
        %v4829 = vld [vmem:[#allocation5 + $0x100] sm:$0xff]
        %v4830 = vld [vmem:[#allocation5 + $0x108] sm:$0xff]
        %v4831 = vld [vmem:[#allocation5 + $0x110] sm:$0xff]
        %v4832 = vld [vmem:[#allocation5 + $0x118] sm:$0xff]
        %v4833 = vld [vmem:[#allocation5 + $0x120] sm:$0xff]
        %v4834 = vld [vmem:[#allocation5 + $0x128] sm:$0xff]
        %v4835 = vld [vmem:[#allocation5 + $0x130] sm:$0xff]
        %v4836 = vld [vmem:[#allocation5 + $0x138] sm:$0xff]
        %v4837 = vld [vmem:[#allocation5 + $0x140] sm:$0xff]
        %v4838 = vld [vmem:[#allocation5 + $0x148] sm:$0xff]
        %v4839 = vld [vmem:[#allocation5 + $0x150] sm:$0xff]
        %v4840 = vld [vmem:[#allocation5 + $0x158] sm:$0xff]
        %v4841 = vld [vmem:[#allocation5 + $0x160] sm:$0xff]
        %v4842 = vld [vmem:[#allocation5 + $0x168] sm:$0xff]
        %v4843 = vld [vmem:[#allocation5 + $0x170] sm:$0xff]
        %v4844 = vld [vmem:[#allocation5 + $0x178] sm:$0xff]
        %v4845 = vld [vmem:[#allocation5 + $0x180] sm:$0xff]
        %v4846 = vld [vmem:[#allocation5 + $0x188] sm:$0xff]
        %v4847 = vld [vmem:[#allocation5 + $0x190] sm:$0xff]
        %v4848 = vld [vmem:[#allocation5 + $0x198] sm:$0xff]
        %v4849 = vld [vmem:[#allocation5 + $0x1a0] sm:$0xff]
        %v4850 = vld [vmem:[#allocation5 + $0x1a8] sm:$0xff]
        %v4851 = vld [vmem:[#allocation5 + $0x1b0] sm:$0xff]
        %v4852 = vld [vmem:[#allocation5 + $0x1b8] sm:$0xff]
        %v4853 = vld [vmem:[#allocation5 + $0x1c0] sm:$0xff]
        %v4854 = vld [vmem:[#allocation5 + $0x1c8] sm:$0xff]
        %v4855 = vld [vmem:[#allocation5 + $0x1d0] sm:$0xff]
        %v4856 = vld [vmem:[#allocation5 + $0x1d8] sm:$0xff]
        %v4857 = vld [vmem:[#allocation5 + $0x1e0] sm:$0xff]
        %v4858 = vld [vmem:[#allocation5 + $0x1e8] sm:$0xff]
        %v4859 = vld [vmem:[#allocation5 + $0x1f0] sm:$0xff]
        %v4860 = vld [vmem:[#allocation5 + $0x1f8] sm:$0xff]
        %v4861 = vld [vmem:[#allocation5 + $0x200] sm:$0xff]
        %v4862 = vld [vmem:[#allocation5 + $0x208] sm:$0xff]
        %v4863 = vld [vmem:[#allocation5 + $0x210] sm:$0xff]
        %v4864 = vld [vmem:[#allocation5 + $0x218] sm:$0xff]
        %v4865 = vld [vmem:[#allocation5 + $0x220] sm:$0xff]
        %v4866 = vld [vmem:[#allocation5 + $0x228] sm:$0xff]
        %v4867 = vld [vmem:[#allocation5 + $0x230] sm:$0xff]
        %v4868 = vld [vmem:[#allocation5 + $0x238] sm:$0xff]
        %v4869 = vld [vmem:[#allocation5 + $0x240] sm:$0xff]
        %v4870 = vld [vmem:[#allocation5 + $0x248] sm:$0xff]
        %v4871 = vld [vmem:[#allocation5 + $0x250] sm:$0xff]
        %v4872 = vld [vmem:[#allocation5 + $0x258] sm:$0xff]
        %v4873 = vld [vmem:[#allocation5 + $0x260] sm:$0xff]
        %v4874 = vld [vmem:[#allocation5 + $0x268] sm:$0xff]
        %v4875 = vld [vmem:[#allocation5 + $0x270] sm:$0xff]
        %v4876 = vld [vmem:[#allocation5 + $0x278] sm:$0xff]
        %v4877 = vld [vmem:[%s12] sm:$0x1]
        %v4879 = vlaneseq
        %v4880 = vshrl.u32 %v4879, 7
        %v4881 = vsub.s32 0, %v4880
        %v4882 = vrot.slane %v4877, %v4881
        %4884 = vmatprep.subr.mxu0 0.0
        %4885 = vmatpush1.msra.mxu0 %v4812
        %4886 = vmatprep.subr.mxu0 0.0
        %4887 = vmatpush1.msra.mxu0 %v4811
        %4888 = vmatprep.subr.mxu0 0.0
        %4889 = vmatpush1.msra.mxu0 %v4810
        %4890 = vmatprep.subr.mxu0 0.0
        %4891 = vmatpush1.msra.mxu0 %v4809
        %4892 = vmatprep.subr.mxu0 0.0
        %4893 = vmatpush1.msra.mxu0 %v4808
        %4894 = vmatprep.subr.mxu0 0.0
        %4895 = vmatpush1.msra.mxu0 %v4807
        %4896 = vmatprep.subr.mxu0 0.0
        %4897 = vmatpush1.msra.mxu0 %v4806
        %4898 = vmatprep.subr.mxu0 0.0
        %4899 = vmatpush1.msra.mxu0 %v4805
        %4900 = vmatprep.subr.mxu0 0.0
        %4901 = vmatpush1.msra.mxu0 %v4804
        %4902 = vmatprep.subr.mxu0 0.0
        %4903 = vmatpush1.msra.mxu0 %v4803
        %4904 = vmatprep.subr.mxu0 0.0
        %4905 = vmatpush1.msra.mxu0 %v4802
        %4906 = vmatprep.subr.mxu0 0.0
        %4907 = vmatpush1.msra.mxu0 %v4801
        %4908 = vmatprep.subr.mxu0 0.0
        %4909 = vmatpush1.msra.mxu0 %v4800
        %4910 = vmatprep.subr.mxu0 0.0
        %4911 = vmatpush1.msra.mxu0 %v4799
        %4912 = vmatprep.subr.mxu0 0.0
        %4913 = vmatpush1.msra.mxu0 %v4798
        %4914 = vmatprep.subr.mxu0 0.0
        %4915 = vmatpush1.msra.mxu0 %v4797
        %4916 = vmatprep.subr.mxu0 0.0
        %4917 = vmatpush2.msra.mxu0 %v4828
        %4918 = vmatprep.subr.mxu0 0.0
        %4919 = vmatpush2.msra.mxu0 %v4827
        %4920 = vmatprep.subr.mxu0 0.0
        %4921 = vmatpush2.msra.mxu0 %v4826
        %4922 = vmatprep.subr.mxu0 0.0
        %4923 = vmatpush2.msra.mxu0 %v4825
        %4924 = vmatprep.subr.mxu0 0.0
        %4925 = vmatpush2.msra.mxu0 %v4824
        %4926 = vmatprep.subr.mxu0 0.0
        %4927 = vmatpush2.msra.mxu0 %v4823
        %4928 = vmatprep.subr.mxu0 0.0
        %4929 = vmatpush2.msra.mxu0 %v4822
        %4930 = vmatprep.subr.mxu0 0.0
        %4931 = vmatpush2.msra.mxu0 %v4821
        %4932 = vmatprep.subr.mxu0 0.0
        %4933 = vmatpush2.msra.mxu0 %v4820
        %4934 = vmatprep.subr.mxu0 0.0
        %4935 = vmatpush2.msra.mxu0 %v4819
        %4936 = vmatprep.subr.mxu0 0.0
        %4937 = vmatpush2.msra.mxu0 %v4818
        %4938 = vmatprep.subr.mxu0 0.0
        %4939 = vmatpush2.msra.mxu0 %v4817
        %4940 = vmatprep.subr.mxu0 0.0
        %4941 = vmatpush2.msra.mxu0 %v4816
        %4942 = vmatprep.subr.mxu0 0.0
        %4943 = vmatpush2.msra.mxu0 %v4815
        %4944 = vmatprep.subr.mxu0 0.0
        %4945 = vmatpush2.msra.mxu0 %v4814
        %4946 = vmatprep.subr.mxu0 0.0
        %4947 = vmatpush2.msra.mxu0 %v4813
        %4948 = vmatprep.mubr.f32.mxu0 %v4701
        %4949 = vmatmul.mubr.f32.gmra.mxu0 %v4669
        %v4950 = vpop.f32.mrf.mxu0
        %v4951 = vadd.f32 %v4882, %v4950
        %v4952 = vpop.f32.mrf.mxu0
        %4953 = vmatprep.mubr.f32.mxu0 %v4702
        %4954 = vmatmul.mubr.f32.gmra.mxu0 %v4670
        %v4955 = vpop.f32.mrf.mxu0
        %v4956 = vadd.f32 %v4882, %v4955
        %v4957 = vpop.f32.mrf.mxu0
        %4958 = vmatprep.mubr.f32.mxu0 %v4703
        %4959 = vmatmul.mubr.f32.gmra.mxu0 %v4671
        %v4960 = vpop.f32.mrf.mxu0
        %v4961 = vadd.f32 %v4882, %v4960
        %v4962 = vpop.f32.mrf.mxu0
        %4963 = vmatprep.mubr.f32.mxu0 %v4704
        %4964 = vmatmul.mubr.f32.gmra.mxu0 %v4672
        %v4965 = vpop.f32.mrf.mxu0
        %v4966 = vadd.f32 %v4882, %v4965
        %v4967 = vpop.f32.mrf.mxu0
        %4968 = vmatprep.mubr.f32.mxu0 %v4705
        %4969 = vmatmul.mubr.f32.gmra.mxu0 %v4673
        %v4970 = vpop.f32.mrf.mxu0
        %v4971 = vadd.f32 %v4882, %v4970
        %v4972 = vpop.f32.mrf.mxu0
        %4973 = vmatprep.mubr.f32.mxu0 %v4706
        %4974 = vmatmul.mubr.f32.gmra.mxu0 %v4674
        %v4975 = vpop.f32.mrf.mxu0
        %v4976 = vadd.f32 %v4882, %v4975
        %v4977 = vpop.f32.mrf.mxu0
        %4978 = vmatprep.mubr.f32.mxu0 %v4707
        %4979 = vmatmul.mubr.f32.gmra.mxu0 %v4675
        %v4980 = vpop.f32.mrf.mxu0
        %v4981 = vadd.f32 %v4882, %v4980
        %v4982 = vpop.f32.mrf.mxu0
        %4983 = vmatprep.mubr.f32.mxu0 %v4708
        %4984 = vmatmul.mubr.f32.gmra.mxu0 %v4676
        %v4985 = vpop.f32.mrf.mxu0
        %v4986 = vadd.f32 %v4882, %v4985
        %v4987 = vpop.f32.mrf.mxu0
        %4988 = vmatprep.mubr.f32.mxu0 %v4709
        %4989 = vmatmul.mubr.f32.gmra.mxu0 %v4677
        %v4990 = vpop.f32.mrf.mxu0
        %v4991 = vadd.f32 %v4882, %v4990
        %v4992 = vpop.f32.mrf.mxu0
        %4993 = vmatprep.mubr.f32.mxu0 %v4710
        %4994 = vmatmul.mubr.f32.gmra.mxu0 %v4678
        %v4995 = vpop.f32.mrf.mxu0
        %v4996 = vadd.f32 %v4882, %v4995
        %v4997 = vpop.f32.mrf.mxu0
        %4998 = vmatprep.mubr.f32.mxu0 %v4711
        %4999 = vmatmul.mubr.f32.gmra.mxu0 %v4679
        %v5000 = vpop.f32.mrf.mxu0
        %v5001 = vadd.f32 %v4882, %v5000
        %v5002 = vpop.f32.mrf.mxu0
        %5003 = vmatprep.mubr.f32.mxu0 %v4712
        %5004 = vmatmul.mubr.f32.gmra.mxu0 %v4680
        %v5005 = vpop.f32.mrf.mxu0
        %v5006 = vadd.f32 %v4882, %v5005
        %v5007 = vpop.f32.mrf.mxu0
        %5008 = vmatprep.mubr.f32.mxu0 %v4713
        %5009 = vmatmul.mubr.f32.gmra.mxu0 %v4681
        %v5010 = vpop.f32.mrf.mxu0
        %v5011 = vadd.f32 %v4882, %v5010
        %v5012 = vpop.f32.mrf.mxu0
        %5013 = vmatprep.mubr.f32.mxu0 %v4714
        %5014 = vmatmul.mubr.f32.gmra.mxu0 %v4682
        %v5015 = vpop.f32.mrf.mxu0
        %v5016 = vadd.f32 %v4882, %v5015
        %v5017 = vpop.f32.mrf.mxu0
        %5018 = vmatprep.mubr.f32.mxu0 %v4715
        %5019 = vmatmul.mubr.f32.gmra.mxu0 %v4683
        %v5020 = vpop.f32.mrf.mxu0
        %v5021 = vadd.f32 %v4882, %v5020
        %v5022 = vpop.f32.mrf.mxu0
        %5023 = vmatprep.mubr.f32.mxu0 %v4716
        %5024 = vmatmul.mubr.f32.gmra.mxu0 %v4684
        %v5025 = vpop.f32.mrf.mxu0
        %v5026 = vadd.f32 %v4882, %v5025
        %v5027 = vpop.f32.mrf.mxu0
        %5028 = vdwg.mxu0
        %5029 = vmatprep.subr.mxu0 0.0
        %5030 = vmatpush1.msra.mxu0 %v4844
        %5031 = vmatprep.subr.mxu0 0.0
        %5032 = vmatpush1.msra.mxu0 %v4843
        %5033 = vmatprep.subr.mxu0 0.0
        %5034 = vmatpush1.msra.mxu0 %v4842
        %5035 = vmatprep.subr.mxu0 0.0
        %5036 = vmatpush1.msra.mxu0 %v4841
        %5037 = vmatprep.subr.mxu0 0.0
        %5038 = vmatpush1.msra.mxu0 %v4840
        %5039 = vmatprep.subr.mxu0 0.0
        %5040 = vmatpush1.msra.mxu0 %v4839
        %5041 = vmatprep.subr.mxu0 0.0
        %5042 = vmatpush1.msra.mxu0 %v4838
        %5043 = vmatprep.subr.mxu0 0.0
        %5044 = vmatpush1.msra.mxu0 %v4837
        %5045 = vmatprep.subr.mxu0 0.0
        %5046 = vmatpush1.msra.mxu0 %v4836
        %5047 = vmatprep.subr.mxu0 0.0
        %5048 = vmatpush1.msra.mxu0 %v4835
        %5049 = vmatprep.subr.mxu0 0.0
        %5050 = vmatpush1.msra.mxu0 %v4834
        %5051 = vmatprep.subr.mxu0 0.0
        %5052 = vmatpush1.msra.mxu0 %v4833
        %5053 = vmatprep.subr.mxu0 0.0
        %5054 = vmatpush1.msra.mxu0 %v4832
        %5055 = vmatprep.subr.mxu0 0.0
        %5056 = vmatpush1.msra.mxu0 %v4831
        %5057 = vmatprep.subr.mxu0 0.0
        %5058 = vmatpush1.msra.mxu0 %v4830
        %5059 = vmatprep.subr.mxu0 0.0
        %5060 = vmatpush1.msra.mxu0 %v4829
        %5061 = vmatprep.subr.mxu0 0.0
        %5062 = vmatpush2.msra.mxu0 %v4860
        %5063 = vmatprep.subr.mxu0 0.0
        %5064 = vmatpush2.msra.mxu0 %v4859
        %5065 = vmatprep.subr.mxu0 0.0
        %5066 = vmatpush2.msra.mxu0 %v4858
        %5067 = vmatprep.subr.mxu0 0.0
        %5068 = vmatpush2.msra.mxu0 %v4857
        %5069 = vmatprep.subr.mxu0 0.0
        %5070 = vmatpush2.msra.mxu0 %v4856
        %5071 = vmatprep.subr.mxu0 0.0
        %5072 = vmatpush2.msra.mxu0 %v4855
        %5073 = vmatprep.subr.mxu0 0.0
        %5074 = vmatpush2.msra.mxu0 %v4854
        %5075 = vmatprep.subr.mxu0 0.0
        %5076 = vmatpush2.msra.mxu0 %v4853
        %5077 = vmatprep.subr.mxu0 0.0
        %5078 = vmatpush2.msra.mxu0 %v4852
        %5079 = vmatprep.subr.mxu0 0.0
        %5080 = vmatpush2.msra.mxu0 %v4851
        %5081 = vmatprep.subr.mxu0 0.0
        %5082 = vmatpush2.msra.mxu0 %v4850
        %5083 = vmatprep.subr.mxu0 0.0
        %5084 = vmatpush2.msra.mxu0 %v4849
        %5085 = vmatprep.subr.mxu0 0.0
        %5086 = vmatpush2.msra.mxu0 %v4848
        %5087 = vmatprep.subr.mxu0 0.0
        %5088 = vmatpush2.msra.mxu0 %v4847
        %5089 = vmatprep.subr.mxu0 0.0
        %5090 = vmatpush2.msra.mxu0 %v4846
        %5091 = vmatprep.subr.mxu0 0.0
        %5092 = vmatpush2.msra.mxu0 %v4845
        %5093 = vmatprep.mubr.f32.mxu0 %v4749
        %5094 = vmatmul.mubr.f32.gmra.mxu0 %v4717
        %v5095 = vpop.f32.mrf.mxu0
        %v5096 = vadd.f32 %v4951, %v5095
        %v5097 = vpop.f32.mrf.mxu0
        %5098 = vmatprep.mubr.f32.mxu0 %v4750
        %5099 = vmatmul.mubr.f32.gmra.mxu0 %v4718
        %v5100 = vpop.f32.mrf.mxu0
        %v5101 = vadd.f32 %v4956, %v5100
        %v5102 = vpop.f32.mrf.mxu0
        %5103 = vmatprep.mubr.f32.mxu0 %v4751
        %5104 = vmatmul.mubr.f32.gmra.mxu0 %v4719
        %v5105 = vpop.f32.mrf.mxu0
        %v5106 = vadd.f32 %v4961, %v5105
        %v5107 = vpop.f32.mrf.mxu0
        %5108 = vmatprep.mubr.f32.mxu0 %v4752
        %5109 = vmatmul.mubr.f32.gmra.mxu0 %v4720
        %v5110 = vpop.f32.mrf.mxu0
        %v5111 = vadd.f32 %v4966, %v5110
        %v5112 = vpop.f32.mrf.mxu0
        %5113 = vmatprep.mubr.f32.mxu0 %v4753
        %5114 = vmatmul.mubr.f32.gmra.mxu0 %v4721
        %v5115 = vpop.f32.mrf.mxu0
        %v5116 = vadd.f32 %v4971, %v5115
        %v5117 = vpop.f32.mrf.mxu0
        %5118 = vmatprep.mubr.f32.mxu0 %v4754
        %5119 = vmatmul.mubr.f32.gmra.mxu0 %v4722
        %v5120 = vpop.f32.mrf.mxu0
        %v5121 = vadd.f32 %v4976, %v5120
        %v5122 = vpop.f32.mrf.mxu0
        %5123 = vmatprep.mubr.f32.mxu0 %v4755
        %5124 = vmatmul.mubr.f32.gmra.mxu0 %v4723
        %v5125 = vpop.f32.mrf.mxu0
        %v5126 = vadd.f32 %v4981, %v5125
        %v5127 = vpop.f32.mrf.mxu0
        %5128 = vmatprep.mubr.f32.mxu0 %v4756
        %5129 = vmatmul.mubr.f32.gmra.mxu0 %v4724
        %v5130 = vpop.f32.mrf.mxu0
        %v5131 = vadd.f32 %v4986, %v5130
        %v5132 = vpop.f32.mrf.mxu0
        %5133 = vmatprep.mubr.f32.mxu0 %v4757
        %5134 = vmatmul.mubr.f32.gmra.mxu0 %v4725
        %v5135 = vpop.f32.mrf.mxu0
        %v5136 = vadd.f32 %v4991, %v5135
        %v5137 = vpop.f32.mrf.mxu0
        %5138 = vmatprep.mubr.f32.mxu0 %v4758
        %5139 = vmatmul.mubr.f32.gmra.mxu0 %v4726
        %v5140 = vpop.f32.mrf.mxu0
        %v5141 = vadd.f32 %v4996, %v5140
        %v5142 = vpop.f32.mrf.mxu0
        %5143 = vmatprep.mubr.f32.mxu0 %v4759
        %5144 = vmatmul.mubr.f32.gmra.mxu0 %v4727
        %v5145 = vpop.f32.mrf.mxu0
        %v5146 = vadd.f32 %v5001, %v5145
        %v5147 = vpop.f32.mrf.mxu0
        %5148 = vmatprep.mubr.f32.mxu0 %v4760
        %5149 = vmatmul.mubr.f32.gmra.mxu0 %v4728
        %v5150 = vpop.f32.mrf.mxu0
        %v5151 = vadd.f32 %v5006, %v5150
        %v5152 = vpop.f32.mrf.mxu0
        %5153 = vmatprep.mubr.f32.mxu0 %v4761
        %5154 = vmatmul.mubr.f32.gmra.mxu0 %v4729
        %v5155 = vpop.f32.mrf.mxu0
        %v5156 = vadd.f32 %v5011, %v5155
        %v5157 = vpop.f32.mrf.mxu0
        %5158 = vmatprep.mubr.f32.mxu0 %v4762
        %5159 = vmatmul.mubr.f32.gmra.mxu0 %v4730
        %v5160 = vpop.f32.mrf.mxu0
        %v5161 = vadd.f32 %v5016, %v5160
        %v5162 = vpop.f32.mrf.mxu0
        %5163 = vmatprep.mubr.f32.mxu0 %v4763
        %5164 = vmatmul.mubr.f32.gmra.mxu0 %v4731
        %v5165 = vpop.f32.mrf.mxu0
        %v5166 = vadd.f32 %v5021, %v5165
        %v5167 = vpop.f32.mrf.mxu0
        %5168 = vmatprep.mubr.f32.mxu0 %v4764
        %5169 = vmatmul.mubr.f32.gmra.mxu0 %v4732
        %v5170 = vpop.f32.mrf.mxu0
        %v5171 = vadd.f32 %v5026, %v5170
        %v5172 = vpop.f32.mrf.mxu0
        %5173 = vdwg.mxu0
        %5174 = vmatprep.subr.mxu0 0.0
        %5175 = vmatpush1.msra.mxu0 %v4876
        %5176 = vmatprep.subr.mxu0 0.0
        %5177 = vmatpush1.msra.mxu0 %v4875
        %5178 = vmatprep.subr.mxu0 0.0
        %5179 = vmatpush1.msra.mxu0 %v4874
        %5180 = vmatprep.subr.mxu0 0.0
        %5181 = vmatpush1.msra.mxu0 %v4873
        %5182 = vmatprep.subr.mxu0 0.0
        %5183 = vmatpush1.msra.mxu0 %v4872
        %5184 = vmatprep.subr.mxu0 0.0
        %5185 = vmatpush1.msra.mxu0 %v4871
        %5186 = vmatprep.subr.mxu0 0.0
        %5187 = vmatpush1.msra.mxu0 %v4870
        %5188 = vmatprep.subr.mxu0 0.0
        %5189 = vmatpush1.msra.mxu0 %v4869
        %5190 = vmatprep.subr.mxu0 0.0
        %5191 = vmatpush1.msra.mxu0 %v4868
        %5192 = vmatprep.subr.mxu0 0.0
        %5193 = vmatpush1.msra.mxu0 %v4867
        %5194 = vmatprep.subr.mxu0 0.0
        %5195 = vmatpush1.msra.mxu0 %v4866
        %5196 = vmatprep.subr.mxu0 0.0
        %5197 = vmatpush1.msra.mxu0 %v4865
        %5198 = vmatprep.subr.mxu0 0.0
        %5199 = vmatpush1.msra.mxu0 %v4864
        %5200 = vmatprep.subr.mxu0 0.0
        %5201 = vmatpush1.msra.mxu0 %v4863
        %5202 = vmatprep.subr.mxu0 0.0
        %5203 = vmatpush1.msra.mxu0 %v4862
        %5204 = vmatprep.subr.mxu0 0.0
        %5205 = vmatpush1.msra.mxu0 %v4861
        %5206 = vmatprep.subr.mxu0 0.0
        %5207 = vmatpush2.msra.mxu0 0.0
        %5208 = vmatprep.subr.mxu0 0.0
        %5209 = vmatpush2.msra.mxu0 0.0
        %5210 = vmatprep.subr.mxu0 0.0
        %5211 = vmatpush2.msra.mxu0 0.0
        %5212 = vmatprep.subr.mxu0 0.0
        %5213 = vmatpush2.msra.mxu0 0.0
        %5214 = vmatprep.subr.mxu0 0.0
        %5215 = vmatpush2.msra.mxu0 0.0
        %5216 = vmatprep.subr.mxu0 0.0
        %5217 = vmatpush2.msra.mxu0 0.0
        %5218 = vmatprep.subr.mxu0 0.0
        %5219 = vmatpush2.msra.mxu0 0.0
        %5220 = vmatprep.subr.mxu0 0.0
        %5221 = vmatpush2.msra.mxu0 0.0
        %5222 = vmatprep.subr.mxu0 0.0
        %5223 = vmatpush2.msra.mxu0 0.0
        %5224 = vmatprep.subr.mxu0 0.0
        %5225 = vmatpush2.msra.mxu0 0.0
        %5226 = vmatprep.subr.mxu0 0.0
        %5227 = vmatpush2.msra.mxu0 0.0
        %5228 = vmatprep.subr.mxu0 0.0
        %5229 = vmatpush2.msra.mxu0 0.0
        %5230 = vmatprep.subr.mxu0 0.0
        %5231 = vmatpush2.msra.mxu0 0.0
        %5232 = vmatprep.subr.mxu0 0.0
        %5233 = vmatpush2.msra.mxu0 0.0
        %5234 = vmatprep.subr.mxu0 0.0
        %5235 = vmatpush2.msra.mxu0 0.0
        %5236 = vmatprep.subr.mxu0 0.0
        %5237 = vmatpush2.msra.mxu0 0.0
        %5238 = vmatprep.mubr.f32.mxu0 0.0
        %5239 = vmatmul.mubr.f32.gmra.mxu0 %v4781
        %v5240 = vpop.f32.mrf.mxu0
        %v5241 = vadd.f32 %v5096, %v5240
        %v5242 = vpop.f32.mrf.mxu0
        %5243 = vmatprep.mubr.f32.mxu0 0.0
        %5244 = vmatmul.mubr.f32.gmra.mxu0 %v4782
        %v5245 = vpop.f32.mrf.mxu0
        %v5246 = vadd.f32 %v5101, %v5245
        %v5247 = vpop.f32.mrf.mxu0
        %5248 = vmatprep.mubr.f32.mxu0 0.0
        %5249 = vmatmul.mubr.f32.gmra.mxu0 %v4783
        %v5250 = vpop.f32.mrf.mxu0
        %v5251 = vadd.f32 %v5106, %v5250
        %v5252 = vpop.f32.mrf.mxu0
        %5253 = vmatprep.mubr.f32.mxu0 0.0
        %5254 = vmatmul.mubr.f32.gmra.mxu0 %v4784
        %v5255 = vpop.f32.mrf.mxu0
        %v5256 = vadd.f32 %v5111, %v5255
        %v5257 = vpop.f32.mrf.mxu0
        %5258 = vmatprep.mubr.f32.mxu0 0.0
        %5259 = vmatmul.mubr.f32.gmra.mxu0 %v4785
        %v5260 = vpop.f32.mrf.mxu0
        %v5261 = vadd.f32 %v5116, %v5260
        %v5262 = vpop.f32.mrf.mxu0
        %5263 = vmatprep.mubr.f32.mxu0 0.0
        %5264 = vmatmul.mubr.f32.gmra.mxu0 %v4786
        %v5265 = vpop.f32.mrf.mxu0
        %v5266 = vadd.f32 %v5121, %v5265
        %v5267 = vpop.f32.mrf.mxu0
        %5268 = vmatprep.mubr.f32.mxu0 0.0
        %5269 = vmatmul.mubr.f32.gmra.mxu0 %v4787
        %v5270 = vpop.f32.mrf.mxu0
        %v5271 = vadd.f32 %v5126, %v5270
        %v5272 = vpop.f32.mrf.mxu0
        %5273 = vmatprep.mubr.f32.mxu0 0.0
        %5274 = vmatmul.mubr.f32.gmra.mxu0 %v4788
        %v5275 = vpop.f32.mrf.mxu0
        %v5276 = vadd.f32 %v5131, %v5275
        %v5277 = vpop.f32.mrf.mxu0
        %5278 = vmatprep.mubr.f32.mxu0 0.0
        %5279 = vmatmul.mubr.f32.gmra.mxu0 %v4789
        %v5280 = vpop.f32.mrf.mxu0
        %v5281 = vadd.f32 %v5136, %v5280
        %v5282 = vpop.f32.mrf.mxu0
        %5283 = vmatprep.mubr.f32.mxu0 0.0
        %5284 = vmatmul.mubr.f32.gmra.mxu0 %v4790
        %v5285 = vpop.f32.mrf.mxu0
        %v5286 = vadd.f32 %v5141, %v5285
        %v5287 = vpop.f32.mrf.mxu0
        %5288 = vmatprep.mubr.f32.mxu0 0.0
        %5289 = vmatmul.mubr.f32.gmra.mxu0 %v4791
        %v5290 = vpop.f32.mrf.mxu0
        %v5291 = vadd.f32 %v5146, %v5290
        %v5292 = vpop.f32.mrf.mxu0
        %5293 = vmatprep.mubr.f32.mxu0 0.0
        %5294 = vmatmul.mubr.f32.gmra.mxu0 %v4792
        %v5295 = vpop.f32.mrf.mxu0
        %v5296 = vadd.f32 %v5151, %v5295
        %v5297 = vpop.f32.mrf.mxu0
        %5298 = vmatprep.mubr.f32.mxu0 0.0
        %5299 = vmatmul.mubr.f32.gmra.mxu0 %v4793
        %v5300 = vpop.f32.mrf.mxu0
        %v5301 = vadd.f32 %v5156, %v5300
        %v5302 = vpop.f32.mrf.mxu0
        %5303 = vmatprep.mubr.f32.mxu0 0.0
        %5304 = vmatmul.mubr.f32.gmra.mxu0 %v4794
        %v5305 = vpop.f32.mrf.mxu0
        %v5306 = vadd.f32 %v5161, %v5305
        %v5307 = vpop.f32.mrf.mxu0
        %5308 = vmatprep.mubr.f32.mxu0 0.0
        %5309 = vmatmul.mubr.f32.gmra.mxu0 %v4795
        %v5310 = vpop.f32.mrf.mxu0
        %v5311 = vadd.f32 %v5166, %v5310
        %v5312 = vpop.f32.mrf.mxu0
        %5313 = vmatprep.mubr.f32.mxu0 0.0
        %5314 = vmatmul.mubr.f32.gmra.mxu0 %v4796
        %v5315 = vpop.f32.mrf.mxu0
        %v5316 = vadd.f32 %v5171, %v5315
        %v5317 = vpop.f32.mrf.mxu0
        %5318 = vdwg.mxu0
        %v5319 = vmax.f32 %v5241, 0.0
        %v5320 = vmax.f32 %v5246, 0.0
        %v5321 = vmax.f32 %v5251, 0.0
        %v5322 = vmax.f32 %v5256, 0.0
        %v5323 = vmax.f32 %v5261, 0.0
        %v5324 = vmax.f32 %v5266, 0.0
        %v5325 = vmax.f32 %v5271, 0.0
        %v5326 = vmax.f32 %v5276, 0.0
        %v5327 = vmax.f32 %v5281, 0.0
        %v5328 = vmax.f32 %v5286, 0.0
        %v5329 = vmax.f32 %v5291, 0.0
        %v5330 = vmax.f32 %v5296, 0.0
        %v5331 = vmax.f32 %v5301, 0.0
        %v5332 = vmax.f32 %v5306, 0.0
        %v5333 = vmax.f32 %v5311, 0.0
        %v5334 = vmax.f32 %v5316, 0.0
        %5335 = vst [vmem:[#allocation2 + $0x3] sm:$0xff] %v5319
        %5336 = vst [vmem:[#allocation2 + $0xb] sm:$0xff] %v5320
        %5337 = vst [vmem:[#allocation2 + $0x13] sm:$0xff] %v5321
        %5338 = vst [vmem:[#allocation2 + $0x1b] sm:$0xff] %v5322
        %5339 = vst [vmem:[#allocation2 + $0x23] sm:$0xff] %v5323
        %5340 = vst [vmem:[#allocation2 + $0x2b] sm:$0xff] %v5324
        %5341 = vst [vmem:[#allocation2 + $0x33] sm:$0xff] %v5325
        %5342 = vst [vmem:[#allocation2 + $0x3b] sm:$0xff] %v5326
        %5343 = vst [vmem:[#allocation2 + $0x43] sm:$0xff] %v5327
        %5344 = vst [vmem:[#allocation2 + $0x4b] sm:$0xff] %v5328
        %5345 = vst [vmem:[#allocation2 + $0x53] sm:$0xff] %v5329
        %5346 = vst [vmem:[#allocation2 + $0x5b] sm:$0xff] %v5330
        %5347 = vst [vmem:[#allocation2 + $0x63] sm:$0xff] %v5331
        %5348 = vst [vmem:[#allocation2 + $0x6b] sm:$0xff] %v5332
        %5349 = vst [vmem:[#allocation2 + $0x73] sm:$0xff] %v5333
        %5350 = vst [vmem:[#allocation2 + $0x7b] sm:$0xff] %v5334
        %v5351 = vld [vmem:[#allocation2 + $0x2] sm:$0xff]
        %v5352 = vld [vmem:[#allocation2 + $0xa] sm:$0xff]
        %v5353 = vld [vmem:[#allocation2 + $0x12] sm:$0xff]
        %v5354 = vld [vmem:[#allocation2 + $0x1a] sm:$0xff]
        %v5355 = vld [vmem:[#allocation2 + $0x22] sm:$0xff]
        %v5356 = vld [vmem:[#allocation2 + $0x2a] sm:$0xff]
        %v5357 = vld [vmem:[#allocation2 + $0x32] sm:$0xff]
        %v5358 = vld [vmem:[#allocation2 + $0x3a] sm:$0xff]
        %v5359 = vld [vmem:[#allocation2 + $0x42] sm:$0xff]
        %v5360 = vld [vmem:[#allocation2 + $0x4a] sm:$0xff]
        %v5361 = vld [vmem:[#allocation2 + $0x52] sm:$0xff]
        %v5362 = vld [vmem:[#allocation2 + $0x5a] sm:$0xff]
        %v5363 = vld [vmem:[#allocation2 + $0x62] sm:$0xff]
        %v5364 = vld [vmem:[#allocation2 + $0x6a] sm:$0xff]
        %v5365 = vld [vmem:[#allocation2 + $0x72] sm:$0xff]
        %v5366 = vld [vmem:[#allocation2 + $0x7a] sm:$0xff]
        %v5367 = vsel %vm1448, %v5351, 0.0
        %v5368 = vsel %vm1449, %v5352, 0.0
        %v5369 = vsel %vm1450, %v5353, 0.0
        %v5370 = vsel %vm1451, %v5354, 0.0
        %v5371 = vsel %vm1452, %v5355, 0.0
        %v5372 = vsel %vm1453, %v5356, 0.0
        %v5373 = vsel %vm1454, %v5357, 0.0
        %v5374 = vsel %vm1455, %v5358, 0.0
        %v5375 = vsel %vm1456, %v5359, 0.0
        %v5376 = vsel %vm1457, %v5360, 0.0
        %v5377 = vsel %vm1458, %v5361, 0.0
        %v5378 = vsel %vm1459, %v5362, 0.0
        %v5379 = vsel %vm1460, %v5363, 0.0
        %v5380 = vsel %vm1461, %v5364, 0.0
        %v5381 = vsel %vm1462, %v5365, 0.0
        %v5382 = vsel %vm1463, %v5366, 0.0
        %v5383 = vld [vmem:[#allocation2 + $0x3] sm:$0xff]
        %v5384 = vld [vmem:[#allocation2 + $0xb] sm:$0xff]
        %v5385 = vld [vmem:[#allocation2 + $0x13] sm:$0xff]
        %v5386 = vld [vmem:[#allocation2 + $0x1b] sm:$0xff]
        %v5387 = vld [vmem:[#allocation2 + $0x23] sm:$0xff]
        %v5388 = vld [vmem:[#allocation2 + $0x2b] sm:$0xff]
        %v5389 = vld [vmem:[#allocation2 + $0x33] sm:$0xff]
        %v5390 = vld [vmem:[#allocation2 + $0x3b] sm:$0xff]
        %v5391 = vld [vmem:[#allocation2 + $0x43] sm:$0xff]
        %v5392 = vld [vmem:[#allocation2 + $0x4b] sm:$0xff]
        %v5393 = vld [vmem:[#allocation2 + $0x53] sm:$0xff]
        %v5394 = vld [vmem:[#allocation2 + $0x5b] sm:$0xff]
        %v5395 = vld [vmem:[#allocation2 + $0x63] sm:$0xff]
        %v5396 = vld [vmem:[#allocation2 + $0x6b] sm:$0xff]
        %v5397 = vld [vmem:[#allocation2 + $0x73] sm:$0xff]
        %v5398 = vld [vmem:[#allocation2 + $0x7b] sm:$0xff]
        %v5399 = vld [vmem:[#allocation2 + $0x4] sm:$0xff]
        %v5400 = vld [vmem:[#allocation2 + $0xc] sm:$0xff]
        %v5401 = vld [vmem:[#allocation2 + $0x14] sm:$0xff]
        %v5402 = vld [vmem:[#allocation2 + $0x1c] sm:$0xff]
        %v5403 = vld [vmem:[#allocation2 + $0x24] sm:$0xff]
        %v5404 = vld [vmem:[#allocation2 + $0x2c] sm:$0xff]
        %v5405 = vld [vmem:[#allocation2 + $0x34] sm:$0xff]
        %v5406 = vld [vmem:[#allocation2 + $0x3c] sm:$0xff]
        %v5407 = vld [vmem:[#allocation2 + $0x44] sm:$0xff]
        %v5408 = vld [vmem:[#allocation2 + $0x4c] sm:$0xff]
        %v5409 = vld [vmem:[#allocation2 + $0x54] sm:$0xff]
        %v5410 = vld [vmem:[#allocation2 + $0x5c] sm:$0xff]
        %v5411 = vld [vmem:[#allocation2 + $0x64] sm:$0xff]
        %v5412 = vld [vmem:[#allocation2 + $0x6c] sm:$0xff]
        %v5413 = vld [vmem:[#allocation2 + $0x74] sm:$0xff]
        %v5414 = vld [vmem:[#allocation2 + $0x7c] sm:$0xff]
        %v5415 = vsel %vm1528, %v5399, 0.0
        %v5416 = vsel %vm1529, %v5400, 0.0
        %v5417 = vsel %vm1530, %v5401, 0.0
        %v5418 = vsel %vm1531, %v5402, 0.0
        %v5419 = vsel %vm1532, %v5403, 0.0
        %v5420 = vsel %vm1533, %v5404, 0.0
        %v5421 = vsel %vm1534, %v5405, 0.0
        %v5422 = vsel %vm1535, %v5406, 0.0
        %v5423 = vsel %vm1536, %v5407, 0.0
        %v5424 = vsel %vm1537, %v5408, 0.0
        %v5425 = vsel %vm1538, %v5409, 0.0
        %v5426 = vsel %vm1539, %v5410, 0.0
        %v5427 = vsel %vm1540, %v5411, 0.0
        %v5428 = vsel %vm1541, %v5412, 0.0
        %v5429 = vsel %vm1542, %v5413, 0.0
        %v5430 = vsel %vm1543, %v5414, 0.0
        %v5431 = vld [vmem:[#allocation7] sm:$0xff]
        %v5432 = vld [vmem:[#allocation7 + $0x8] sm:$0xff]
        %v5433 = vld [vmem:[#allocation7 + $0x10] sm:$0xff]
        %v5434 = vld [vmem:[#allocation7 + $0x18] sm:$0xff]
        %v5435 = vld [vmem:[#allocation7 + $0x20] sm:$0xff]
        %v5436 = vld [vmem:[#allocation7 + $0x28] sm:$0xff]
        %v5437 = vld [vmem:[#allocation7 + $0x30] sm:$0xff]
        %v5438 = vld [vmem:[#allocation7 + $0x38] sm:$0xff]
        %v5439 = vld [vmem:[#allocation7 + $0x40] sm:$0xff]
        %v5440 = vld [vmem:[#allocation7 + $0x48] sm:$0xff]
        %v5441 = vld [vmem:[#allocation7 + $0x50] sm:$0xff]
        %v5442 = vld [vmem:[#allocation7 + $0x58] sm:$0xff]
        %v5443 = vld [vmem:[#allocation7 + $0x60] sm:$0xff]
        %v5444 = vld [vmem:[#allocation7 + $0x68] sm:$0xff]
        %v5445 = vld [vmem:[#allocation7 + $0x70] sm:$0xff]
        %v5446 = vld [vmem:[#allocation7 + $0x78] sm:$0xff]
        %v5447 = vld [vmem:[#allocation7 + $0x80] sm:$0xff]
        %v5448 = vld [vmem:[#allocation7 + $0x88] sm:$0xff]
        %v5449 = vld [vmem:[#allocation7 + $0x90] sm:$0xff]
        %v5450 = vld [vmem:[#allocation7 + $0x98] sm:$0xff]
        %v5451 = vld [vmem:[#allocation7 + $0xa0] sm:$0xff]
        %v5452 = vld [vmem:[#allocation7 + $0xa8] sm:$0xff]
        %v5453 = vld [vmem:[#allocation7 + $0xb0] sm:$0xff]
        %v5454 = vld [vmem:[#allocation7 + $0xb8] sm:$0xff]
        %v5455 = vld [vmem:[#allocation7 + $0xc0] sm:$0xff]
        %v5456 = vld [vmem:[#allocation7 + $0xc8] sm:$0xff]
        %v5457 = vld [vmem:[#allocation7 + $0xd0] sm:$0xff]
        %v5458 = vld [vmem:[#allocation7 + $0xd8] sm:$0xff]
        %v5459 = vld [vmem:[#allocation7 + $0xe0] sm:$0xff]
        %v5460 = vld [vmem:[#allocation7 + $0xe8] sm:$0xff]
        %v5461 = vld [vmem:[#allocation7 + $0xf0] sm:$0xff]
        %v5462 = vld [vmem:[#allocation7 + $0xf8] sm:$0xff]
        %v5463 = vld [vmem:[#allocation7 + $0x100] sm:$0xff]
        %v5464 = vld [vmem:[#allocation7 + $0x108] sm:$0xff]
        %v5465 = vld [vmem:[#allocation7 + $0x110] sm:$0xff]
        %v5466 = vld [vmem:[#allocation7 + $0x118] sm:$0xff]
        %v5467 = vld [vmem:[#allocation7 + $0x120] sm:$0xff]
        %v5468 = vld [vmem:[#allocation7 + $0x128] sm:$0xff]
        %v5469 = vld [vmem:[#allocation7 + $0x130] sm:$0xff]
        %v5470 = vld [vmem:[#allocation7 + $0x138] sm:$0xff]
        %v5471 = vld [vmem:[#allocation7 + $0x140] sm:$0xff]
        %v5472 = vld [vmem:[#allocation7 + $0x148] sm:$0xff]
        %v5473 = vld [vmem:[#allocation7 + $0x150] sm:$0xff]
        %v5474 = vld [vmem:[#allocation7 + $0x158] sm:$0xff]
        %v5475 = vld [vmem:[#allocation7 + $0x160] sm:$0xff]
        %v5476 = vld [vmem:[#allocation7 + $0x168] sm:$0xff]
        %v5477 = vld [vmem:[#allocation7 + $0x170] sm:$0xff]
        %v5478 = vld [vmem:[#allocation7 + $0x178] sm:$0xff]
        %v5479 = vld [vmem:[%s14] sm:$0x1]
        %v5481 = vlaneseq
        %v5482 = vshrl.u32 %v5481, 7
        %v5483 = vsub.s32 0, %v5482
        %v5484 = vrot.slane %v5479, %v5483
        %5486 = vmatprep.subr.mxu0 0.0
        %5487 = vmatpush1.msra.mxu0 %v5446
        %5488 = vmatprep.subr.mxu0 0.0
        %5489 = vmatpush1.msra.mxu0 %v5445
        %5490 = vmatprep.subr.mxu0 0.0
        %5491 = vmatpush1.msra.mxu0 %v5444
        %5492 = vmatprep.subr.mxu0 0.0
        %5493 = vmatpush1.msra.mxu0 %v5443
        %5494 = vmatprep.subr.mxu0 0.0
        %5495 = vmatpush1.msra.mxu0 %v5442
        %5496 = vmatprep.subr.mxu0 0.0
        %5497 = vmatpush1.msra.mxu0 %v5441
        %5498 = vmatprep.subr.mxu0 0.0
        %5499 = vmatpush1.msra.mxu0 %v5440
        %5500 = vmatprep.subr.mxu0 0.0
        %5501 = vmatpush1.msra.mxu0 %v5439
        %5502 = vmatprep.subr.mxu0 0.0
        %5503 = vmatpush1.msra.mxu0 %v5438
        %5504 = vmatprep.subr.mxu0 0.0
        %5505 = vmatpush1.msra.mxu0 %v5437
        %5506 = vmatprep.subr.mxu0 0.0
        %5507 = vmatpush1.msra.mxu0 %v5436
        %5508 = vmatprep.subr.mxu0 0.0
        %5509 = vmatpush1.msra.mxu0 %v5435
        %5510 = vmatprep.subr.mxu0 0.0
        %5511 = vmatpush1.msra.mxu0 %v5434
        %5512 = vmatprep.subr.mxu0 0.0
        %5513 = vmatpush1.msra.mxu0 %v5433
        %5514 = vmatprep.subr.mxu0 0.0
        %5515 = vmatpush1.msra.mxu0 %v5432
        %5516 = vmatprep.subr.mxu0 0.0
        %5517 = vmatpush1.msra.mxu0 %v5431
        %5518 = vmatprep.subr.mxu0 0.0
        %5519 = vmatpush2.msra.mxu0 %v5462
        %5520 = vmatprep.subr.mxu0 0.0
        %5521 = vmatpush2.msra.mxu0 %v5461
        %5522 = vmatprep.subr.mxu0 0.0
        %5523 = vmatpush2.msra.mxu0 %v5460
        %5524 = vmatprep.subr.mxu0 0.0
        %5525 = vmatpush2.msra.mxu0 %v5459
        %5526 = vmatprep.subr.mxu0 0.0
        %5527 = vmatpush2.msra.mxu0 %v5458
        %5528 = vmatprep.subr.mxu0 0.0
        %5529 = vmatpush2.msra.mxu0 %v5457
        %5530 = vmatprep.subr.mxu0 0.0
        %5531 = vmatpush2.msra.mxu0 %v5456
        %5532 = vmatprep.subr.mxu0 0.0
        %5533 = vmatpush2.msra.mxu0 %v5455
        %5534 = vmatprep.subr.mxu0 0.0
        %5535 = vmatpush2.msra.mxu0 %v5454
        %5536 = vmatprep.subr.mxu0 0.0
        %5537 = vmatpush2.msra.mxu0 %v5453
        %5538 = vmatprep.subr.mxu0 0.0
        %5539 = vmatpush2.msra.mxu0 %v5452
        %5540 = vmatprep.subr.mxu0 0.0
        %5541 = vmatpush2.msra.mxu0 %v5451
        %5542 = vmatprep.subr.mxu0 0.0
        %5543 = vmatpush2.msra.mxu0 %v5450
        %5544 = vmatprep.subr.mxu0 0.0
        %5545 = vmatpush2.msra.mxu0 %v5449
        %5546 = vmatprep.subr.mxu0 0.0
        %5547 = vmatpush2.msra.mxu0 %v5448
        %5548 = vmatprep.subr.mxu0 0.0
        %5549 = vmatpush2.msra.mxu0 %v5447
        %5550 = vmatprep.mubr.f32.mxu0 %v5383
        %5551 = vmatmul.mubr.f32.gmra.mxu0 %v5367
        %v5552 = vpop.f32.mrf.mxu0
        %v5553 = vadd.f32 %v5484, %v5552
        %v5554 = vpop.f32.mrf.mxu0
        %5555 = vmatprep.mubr.f32.mxu0 %v5384
        %5556 = vmatmul.mubr.f32.gmra.mxu0 %v5368
        %v5557 = vpop.f32.mrf.mxu0
        %v5558 = vadd.f32 %v5484, %v5557
        %v5559 = vpop.f32.mrf.mxu0
        %5560 = vmatprep.mubr.f32.mxu0 %v5385
        %5561 = vmatmul.mubr.f32.gmra.mxu0 %v5369
        %v5562 = vpop.f32.mrf.mxu0
        %v5563 = vadd.f32 %v5484, %v5562
        %v5564 = vpop.f32.mrf.mxu0
        %5565 = vmatprep.mubr.f32.mxu0 %v5386
        %5566 = vmatmul.mubr.f32.gmra.mxu0 %v5370
        %v5567 = vpop.f32.mrf.mxu0
        %v5568 = vadd.f32 %v5484, %v5567
        %v5569 = vpop.f32.mrf.mxu0
        %5570 = vmatprep.mubr.f32.mxu0 %v5387
        %5571 = vmatmul.mubr.f32.gmra.mxu0 %v5371
        %v5572 = vpop.f32.mrf.mxu0
        %v5573 = vadd.f32 %v5484, %v5572
        %v5574 = vpop.f32.mrf.mxu0
        %5575 = vmatprep.mubr.f32.mxu0 %v5388
        %5576 = vmatmul.mubr.f32.gmra.mxu0 %v5372
        %v5577 = vpop.f32.mrf.mxu0
        %v5578 = vadd.f32 %v5484, %v5577
        %v5579 = vpop.f32.mrf.mxu0
        %5580 = vmatprep.mubr.f32.mxu0 %v5389
        %5581 = vmatmul.mubr.f32.gmra.mxu0 %v5373
        %v5582 = vpop.f32.mrf.mxu0
        %v5583 = vadd.f32 %v5484, %v5582
        %v5584 = vpop.f32.mrf.mxu0
        %5585 = vmatprep.mubr.f32.mxu0 %v5390
        %5586 = vmatmul.mubr.f32.gmra.mxu0 %v5374
        %v5587 = vpop.f32.mrf.mxu0
        %v5588 = vadd.f32 %v5484, %v5587
        %v5589 = vpop.f32.mrf.mxu0
        %5590 = vmatprep.mubr.f32.mxu0 %v5391
        %5591 = vmatmul.mubr.f32.gmra.mxu0 %v5375
        %v5592 = vpop.f32.mrf.mxu0
        %v5593 = vadd.f32 %v5484, %v5592
        %v5594 = vpop.f32.mrf.mxu0
        %5595 = vmatprep.mubr.f32.mxu0 %v5392
        %5596 = vmatmul.mubr.f32.gmra.mxu0 %v5376
        %v5597 = vpop.f32.mrf.mxu0
        %v5598 = vadd.f32 %v5484, %v5597
        %v5599 = vpop.f32.mrf.mxu0
        %5600 = vmatprep.mubr.f32.mxu0 %v5393
        %5601 = vmatmul.mubr.f32.gmra.mxu0 %v5377
        %v5602 = vpop.f32.mrf.mxu0
        %v5603 = vadd.f32 %v5484, %v5602
        %v5604 = vpop.f32.mrf.mxu0
        %5605 = vmatprep.mubr.f32.mxu0 %v5394
        %5606 = vmatmul.mubr.f32.gmra.mxu0 %v5378
        %v5607 = vpop.f32.mrf.mxu0
        %v5608 = vadd.f32 %v5484, %v5607
        %v5609 = vpop.f32.mrf.mxu0
        %5610 = vmatprep.mubr.f32.mxu0 %v5395
        %5611 = vmatmul.mubr.f32.gmra.mxu0 %v5379
        %v5612 = vpop.f32.mrf.mxu0
        %v5613 = vadd.f32 %v5484, %v5612
        %v5614 = vpop.f32.mrf.mxu0
        %5615 = vmatprep.mubr.f32.mxu0 %v5396
        %5616 = vmatmul.mubr.f32.gmra.mxu0 %v5380
        %v5617 = vpop.f32.mrf.mxu0
        %v5618 = vadd.f32 %v5484, %v5617
        %v5619 = vpop.f32.mrf.mxu0
        %5620 = vmatprep.mubr.f32.mxu0 %v5397
        %5621 = vmatmul.mubr.f32.gmra.mxu0 %v5381
        %v5622 = vpop.f32.mrf.mxu0
        %v5623 = vadd.f32 %v5484, %v5622
        %v5624 = vpop.f32.mrf.mxu0
        %5625 = vmatprep.mubr.f32.mxu0 %v5398
        %5626 = vmatmul.mubr.f32.gmra.mxu0 %v5382
        %v5627 = vpop.f32.mrf.mxu0
        %v5628 = vadd.f32 %v5484, %v5627
        %v5629 = vpop.f32.mrf.mxu0
        %5630 = vdwg.mxu0
        %5631 = vmatprep.subr.mxu0 0.0
        %5632 = vmatpush1.msra.mxu0 %v5478
        %5633 = vmatprep.subr.mxu0 0.0
        %5634 = vmatpush1.msra.mxu0 %v5477
        %5635 = vmatprep.subr.mxu0 0.0
        %5636 = vmatpush1.msra.mxu0 %v5476
        %5637 = vmatprep.subr.mxu0 0.0
        %5638 = vmatpush1.msra.mxu0 %v5475
        %5639 = vmatprep.subr.mxu0 0.0
        %5640 = vmatpush1.msra.mxu0 %v5474
        %5641 = vmatprep.subr.mxu0 0.0
        %5642 = vmatpush1.msra.mxu0 %v5473
        %5643 = vmatprep.subr.mxu0 0.0
        %5644 = vmatpush1.msra.mxu0 %v5472
        %5645 = vmatprep.subr.mxu0 0.0
        %5646 = vmatpush1.msra.mxu0 %v5471
        %5647 = vmatprep.subr.mxu0 0.0
        %5648 = vmatpush1.msra.mxu0 %v5470
        %5649 = vmatprep.subr.mxu0 0.0
        %5650 = vmatpush1.msra.mxu0 %v5469
        %5651 = vmatprep.subr.mxu0 0.0
        %5652 = vmatpush1.msra.mxu0 %v5468
        %5653 = vmatprep.subr.mxu0 0.0
        %5654 = vmatpush1.msra.mxu0 %v5467
        %5655 = vmatprep.subr.mxu0 0.0
        %5656 = vmatpush1.msra.mxu0 %v5466
        %5657 = vmatprep.subr.mxu0 0.0
        %5658 = vmatpush1.msra.mxu0 %v5465
        %5659 = vmatprep.subr.mxu0 0.0
        %5660 = vmatpush1.msra.mxu0 %v5464
        %5661 = vmatprep.subr.mxu0 0.0
        %5662 = vmatpush1.msra.mxu0 %v5463
        %5663 = vmatprep.subr.mxu0 0.0
        %5664 = vmatpush2.msra.mxu0 0.0
        %5665 = vmatprep.subr.mxu0 0.0
        %5666 = vmatpush2.msra.mxu0 0.0
        %5667 = vmatprep.subr.mxu0 0.0
        %5668 = vmatpush2.msra.mxu0 0.0
        %5669 = vmatprep.subr.mxu0 0.0
        %5670 = vmatpush2.msra.mxu0 0.0
        %5671 = vmatprep.subr.mxu0 0.0
        %5672 = vmatpush2.msra.mxu0 0.0
        %5673 = vmatprep.subr.mxu0 0.0
        %5674 = vmatpush2.msra.mxu0 0.0
        %5675 = vmatprep.subr.mxu0 0.0
        %5676 = vmatpush2.msra.mxu0 0.0
        %5677 = vmatprep.subr.mxu0 0.0
        %5678 = vmatpush2.msra.mxu0 0.0
        %5679 = vmatprep.subr.mxu0 0.0
        %5680 = vmatpush2.msra.mxu0 0.0
        %5681 = vmatprep.subr.mxu0 0.0
        %5682 = vmatpush2.msra.mxu0 0.0
        %5683 = vmatprep.subr.mxu0 0.0
        %5684 = vmatpush2.msra.mxu0 0.0
        %5685 = vmatprep.subr.mxu0 0.0
        %5686 = vmatpush2.msra.mxu0 0.0
        %5687 = vmatprep.subr.mxu0 0.0
        %5688 = vmatpush2.msra.mxu0 0.0
        %5689 = vmatprep.subr.mxu0 0.0
        %5690 = vmatpush2.msra.mxu0 0.0
        %5691 = vmatprep.subr.mxu0 0.0
        %5692 = vmatpush2.msra.mxu0 0.0
        %5693 = vmatprep.subr.mxu0 0.0
        %5694 = vmatpush2.msra.mxu0 0.0
        %5695 = vmatprep.mubr.f32.mxu0 0.0
        %5696 = vmatmul.mubr.f32.gmra.mxu0 %v5415
        %v5697 = vpop.f32.mrf.mxu0
        %v5698 = vadd.f32 %v5553, %v5697
        %v5699 = vpop.f32.mrf.mxu0
        %5700 = vmatprep.mubr.f32.mxu0 0.0
        %5701 = vmatmul.mubr.f32.gmra.mxu0 %v5416
        %v5702 = vpop.f32.mrf.mxu0
        %v5703 = vadd.f32 %v5558, %v5702
        %v5704 = vpop.f32.mrf.mxu0
        %5705 = vmatprep.mubr.f32.mxu0 0.0
        %5706 = vmatmul.mubr.f32.gmra.mxu0 %v5417
        %v5707 = vpop.f32.mrf.mxu0
        %v5708 = vadd.f32 %v5563, %v5707
        %v5709 = vpop.f32.mrf.mxu0
        %5710 = vmatprep.mubr.f32.mxu0 0.0
        %5711 = vmatmul.mubr.f32.gmra.mxu0 %v5418
        %v5712 = vpop.f32.mrf.mxu0
        %v5713 = vadd.f32 %v5568, %v5712
        %v5714 = vpop.f32.mrf.mxu0
        %5715 = vmatprep.mubr.f32.mxu0 0.0
        %5716 = vmatmul.mubr.f32.gmra.mxu0 %v5419
        %v5717 = vpop.f32.mrf.mxu0
        %v5718 = vadd.f32 %v5573, %v5717
        %v5719 = vpop.f32.mrf.mxu0
        %5720 = vmatprep.mubr.f32.mxu0 0.0
        %5721 = vmatmul.mubr.f32.gmra.mxu0 %v5420
        %v5722 = vpop.f32.mrf.mxu0
        %v5723 = vadd.f32 %v5578, %v5722
        %v5724 = vpop.f32.mrf.mxu0
        %5725 = vmatprep.mubr.f32.mxu0 0.0
        %5726 = vmatmul.mubr.f32.gmra.mxu0 %v5421
        %v5727 = vpop.f32.mrf.mxu0
        %v5728 = vadd.f32 %v5583, %v5727
        %v5729 = vpop.f32.mrf.mxu0
        %5730 = vmatprep.mubr.f32.mxu0 0.0
        %5731 = vmatmul.mubr.f32.gmra.mxu0 %v5422
        %v5732 = vpop.f32.mrf.mxu0
        %v5733 = vadd.f32 %v5588, %v5732
        %v5734 = vpop.f32.mrf.mxu0
        %5735 = vmatprep.mubr.f32.mxu0 0.0
        %5736 = vmatmul.mubr.f32.gmra.mxu0 %v5423
        %v5737 = vpop.f32.mrf.mxu0
        %v5738 = vadd.f32 %v5593, %v5737
        %v5739 = vpop.f32.mrf.mxu0
        %5740 = vmatprep.mubr.f32.mxu0 0.0
        %5741 = vmatmul.mubr.f32.gmra.mxu0 %v5424
        %v5742 = vpop.f32.mrf.mxu0
        %v5743 = vadd.f32 %v5598, %v5742
        %v5744 = vpop.f32.mrf.mxu0
        %5745 = vmatprep.mubr.f32.mxu0 0.0
        %5746 = vmatmul.mubr.f32.gmra.mxu0 %v5425
        %v5747 = vpop.f32.mrf.mxu0
        %v5748 = vadd.f32 %v5603, %v5747
        %v5749 = vpop.f32.mrf.mxu0
        %5750 = vmatprep.mubr.f32.mxu0 0.0
        %5751 = vmatmul.mubr.f32.gmra.mxu0 %v5426
        %v5752 = vpop.f32.mrf.mxu0
        %v5753 = vadd.f32 %v5608, %v5752
        %v5754 = vpop.f32.mrf.mxu0
        %5755 = vmatprep.mubr.f32.mxu0 0.0
        %5756 = vmatmul.mubr.f32.gmra.mxu0 %v5427
        %v5757 = vpop.f32.mrf.mxu0
        %v5758 = vadd.f32 %v5613, %v5757
        %v5759 = vpop.f32.mrf.mxu0
        %5760 = vmatprep.mubr.f32.mxu0 0.0
        %5761 = vmatmul.mubr.f32.gmra.mxu0 %v5428
        %v5762 = vpop.f32.mrf.mxu0
        %v5763 = vadd.f32 %v5618, %v5762
        %v5764 = vpop.f32.mrf.mxu0
        %5765 = vmatprep.mubr.f32.mxu0 0.0
        %5766 = vmatmul.mubr.f32.gmra.mxu0 %v5429
        %v5767 = vpop.f32.mrf.mxu0
        %v5768 = vadd.f32 %v5623, %v5767
        %v5769 = vpop.f32.mrf.mxu0
        %5770 = vmatprep.mubr.f32.mxu0 0.0
        %5771 = vmatmul.mubr.f32.gmra.mxu0 %v5430
        %v5772 = vpop.f32.mrf.mxu0
        %v5773 = vadd.f32 %v5628, %v5772
        %v5774 = vpop.f32.mrf.mxu0
        %5775 = vdwg.mxu0
        %v5776 = vld [vmem:[%s15] sm:$0xff]
        %v5777 = vld [vmem:[%s15 + $0x8] sm:$0xff]
        %v5778 = vld [vmem:[%s15 + $0x10] sm:$0xff]
        %v5779 = vld [vmem:[%s15 + $0x18] sm:$0xff]
        %v5780 = vld [vmem:[%s15 + $0x20] sm:$0xff]
        %v5781 = vld [vmem:[%s15 + $0x28] sm:$0xff]
        %v5782 = vld [vmem:[%s15 + $0x30] sm:$0xff]
        %v5783 = vld [vmem:[%s15 + $0x38] sm:$0xff]
        %v5784 = vld [vmem:[%s16] sm:$0x1]
        %v5786 = vlaneseq
        %v5787 = vshrl.u32 %v5786, 7
        %v5788 = vsub.s32 0, %v5787
        %v5789 = vrot.slane %v5784, %v5788
        %v5792 = vsel %vm2398, %v3740, 0
        %v5795 = vsel %vm2398, %v3741, 0
        %v5798 = vsel %vm2398, %v3742, 0
        %v5801 = vsel %vm2398, %v3743, 0
        %v5804 = vsel %vm2398, %v3744, 0
        %v5807 = vsel %vm2398, %v3745, 0
        %v5810 = vsel %vm2398, %v3746, 0
        %v5813 = vsel %vm2398, %v3747, 0
        %v5816 = vsel %vm2398, %v3748, 0
        %v5819 = vsel %vm2398, %v3749, 0
        %v5822 = vsel %vm2398, %v3750, 0
        %v5825 = vsel %vm2398, %v3751, 0
        %v5828 = vsel %vm2398, %v3752, 0
        %v5831 = vsel %vm2398, %v3753, 0
        %v5834 = vsel %vm2398, %v3754, 0
        %v5837 = vsel %vm2398, %v3755, 0
        %5839 = vmatprep.subr.mxu0 0.0
        %5840 = vmatpush1.msra.mxu0 0.0
        %5841 = vmatprep.subr.mxu0 0.0
        %5842 = vmatpush1.msra.mxu0 0.0
        %5843 = vmatprep.subr.mxu0 0.0
        %5844 = vmatpush1.msra.mxu0 0.0
        %5845 = vmatprep.subr.mxu0 0.0
        %5846 = vmatpush1.msra.mxu0 0.0
        %5847 = vmatprep.subr.mxu0 0.0
        %5848 = vmatpush1.msra.mxu0 0.0
        %5849 = vmatprep.subr.mxu0 0.0
        %5850 = vmatpush1.msra.mxu0 0.0
        %5851 = vmatprep.subr.mxu0 0.0
        %5852 = vmatpush1.msra.mxu0 0.0
        %5853 = vmatprep.subr.mxu0 0.0
        %5854 = vmatpush1.msra.mxu0 0.0
        %5855 = vmatprep.subr.mxu0 0.0
        %5856 = vmatpush1.msra.mxu0 %v5783
        %5857 = vmatprep.subr.mxu0 0.0
        %5858 = vmatpush1.msra.mxu0 %v5782
        %5859 = vmatprep.subr.mxu0 0.0
        %5860 = vmatpush1.msra.mxu0 %v5781
        %5861 = vmatprep.subr.mxu0 0.0
        %5862 = vmatpush1.msra.mxu0 %v5780
        %5863 = vmatprep.subr.mxu0 0.0
        %5864 = vmatpush1.msra.mxu0 %v5779
        %5865 = vmatprep.subr.mxu0 0.0
        %5866 = vmatpush1.msra.mxu0 %v5778
        %5867 = vmatprep.subr.mxu0 0.0
        %5868 = vmatpush1.msra.mxu0 %v5777
        %5869 = vmatprep.subr.mxu0 0.0
        %5870 = vmatpush1.msra.mxu0 %v5776
        %5871 = vmatprep.subr.mxu0 0.0
        %5872 = vmatpush2.msra.mxu0 0.0
        %5873 = vmatprep.subr.mxu0 0.0
        %5874 = vmatpush2.msra.mxu0 0.0
        %5875 = vmatprep.subr.mxu0 0.0
        %5876 = vmatpush2.msra.mxu0 0.0
        %5877 = vmatprep.subr.mxu0 0.0
        %5878 = vmatpush2.msra.mxu0 0.0
        %5879 = vmatprep.subr.mxu0 0.0
        %5880 = vmatpush2.msra.mxu0 0.0
        %5881 = vmatprep.subr.mxu0 0.0
        %5882 = vmatpush2.msra.mxu0 0.0
        %5883 = vmatprep.subr.mxu0 0.0
        %5884 = vmatpush2.msra.mxu0 0.0
        %5885 = vmatprep.subr.mxu0 0.0
        %5886 = vmatpush2.msra.mxu0 0.0
        %5887 = vmatprep.subr.mxu0 0.0
        %5888 = vmatpush2.msra.mxu0 0.0
        %5889 = vmatprep.subr.mxu0 0.0
        %5890 = vmatpush2.msra.mxu0 0.0
        %5891 = vmatprep.subr.mxu0 0.0
        %5892 = vmatpush2.msra.mxu0 0.0
        %5893 = vmatprep.subr.mxu0 0.0
        %5894 = vmatpush2.msra.mxu0 0.0
        %5895 = vmatprep.subr.mxu0 0.0
        %5896 = vmatpush2.msra.mxu0 0.0
        %5897 = vmatprep.subr.mxu0 0.0
        %5898 = vmatpush2.msra.mxu0 0.0
        %5899 = vmatprep.subr.mxu0 0.0
        %5900 = vmatpush2.msra.mxu0 0.0
        %5901 = vmatprep.subr.mxu0 0.0
        %5902 = vmatpush2.msra.mxu0 0.0
        %5903 = vmatprep.mubr.f32.mxu0 0.0
        %5904 = vmatmul.mubr.f32.gmra.mxu0 %v5792
        %v5905 = vpop.f32.mrf.mxu0
        %v5906 = vadd.f32 %v5789, %v5905
        %v5907 = vpop.f32.mrf.mxu0
        %5908 = vmatprep.mubr.f32.mxu0 0.0
        %5909 = vmatmul.mubr.f32.gmra.mxu0 %v5795
        %v5910 = vpop.f32.mrf.mxu0
        %v5911 = vadd.f32 %v5789, %v5910
        %v5912 = vpop.f32.mrf.mxu0
        %5913 = vmatprep.mubr.f32.mxu0 0.0
        %5914 = vmatmul.mubr.f32.gmra.mxu0 %v5798
        %v5915 = vpop.f32.mrf.mxu0
        %v5916 = vadd.f32 %v5789, %v5915
        %v5917 = vpop.f32.mrf.mxu0
        %5918 = vmatprep.mubr.f32.mxu0 0.0
        %5919 = vmatmul.mubr.f32.gmra.mxu0 %v5801
        %v5920 = vpop.f32.mrf.mxu0
        %v5921 = vadd.f32 %v5789, %v5920
        %v5922 = vpop.f32.mrf.mxu0
        %5923 = vmatprep.mubr.f32.mxu0 0.0
        %5924 = vmatmul.mubr.f32.gmra.mxu0 %v5804
        %v5925 = vpop.f32.mrf.mxu0
        %v5926 = vadd.f32 %v5789, %v5925
        %v5927 = vpop.f32.mrf.mxu0
        %5928 = vmatprep.mubr.f32.mxu0 0.0
        %5929 = vmatmul.mubr.f32.gmra.mxu0 %v5807
        %v5930 = vpop.f32.mrf.mxu0
        %v5931 = vadd.f32 %v5789, %v5930
        %v5932 = vpop.f32.mrf.mxu0
        %5933 = vmatprep.mubr.f32.mxu0 0.0
        %5934 = vmatmul.mubr.f32.gmra.mxu0 %v5810
        %v5935 = vpop.f32.mrf.mxu0
        %v5936 = vadd.f32 %v5789, %v5935
        %v5937 = vpop.f32.mrf.mxu0
        %5938 = vmatprep.mubr.f32.mxu0 0.0
        %5939 = vmatmul.mubr.f32.gmra.mxu0 %v5813
        %v5940 = vpop.f32.mrf.mxu0
        %v5941 = vadd.f32 %v5789, %v5940
        %v5942 = vpop.f32.mrf.mxu0
        %5943 = vmatprep.mubr.f32.mxu0 0.0
        %5944 = vmatmul.mubr.f32.gmra.mxu0 %v5816
        %v5945 = vpop.f32.mrf.mxu0
        %v5946 = vadd.f32 %v5789, %v5945
        %v5947 = vpop.f32.mrf.mxu0
        %5948 = vmatprep.mubr.f32.mxu0 0.0
        %5949 = vmatmul.mubr.f32.gmra.mxu0 %v5819
        %v5950 = vpop.f32.mrf.mxu0
        %v5951 = vadd.f32 %v5789, %v5950
        %v5952 = vpop.f32.mrf.mxu0
        %5953 = vmatprep.mubr.f32.mxu0 0.0
        %5954 = vmatmul.mubr.f32.gmra.mxu0 %v5822
        %v5955 = vpop.f32.mrf.mxu0
        %v5956 = vadd.f32 %v5789, %v5955
        %v5957 = vpop.f32.mrf.mxu0
        %5958 = vmatprep.mubr.f32.mxu0 0.0
        %5959 = vmatmul.mubr.f32.gmra.mxu0 %v5825
        %v5960 = vpop.f32.mrf.mxu0
        %v5961 = vadd.f32 %v5789, %v5960
        %v5962 = vpop.f32.mrf.mxu0
        %5963 = vmatprep.mubr.f32.mxu0 0.0
        %5964 = vmatmul.mubr.f32.gmra.mxu0 %v5828
        %v5965 = vpop.f32.mrf.mxu0
        %v5966 = vadd.f32 %v5789, %v5965
        %v5967 = vpop.f32.mrf.mxu0
        %5968 = vmatprep.mubr.f32.mxu0 0.0
        %5969 = vmatmul.mubr.f32.gmra.mxu0 %v5831
        %v5970 = vpop.f32.mrf.mxu0
        %v5971 = vadd.f32 %v5789, %v5970
        %v5972 = vpop.f32.mrf.mxu0
        %5973 = vmatprep.mubr.f32.mxu0 0.0
        %5974 = vmatmul.mubr.f32.gmra.mxu0 %v5834
        %v5975 = vpop.f32.mrf.mxu0
        %v5976 = vadd.f32 %v5789, %v5975
        %v5977 = vpop.f32.mrf.mxu0
        %5978 = vmatprep.mubr.f32.mxu0 0.0
        %5979 = vmatmul.mubr.f32.gmra.mxu0 %v5837
        %v5980 = vpop.f32.mrf.mxu0
        %v5981 = vadd.f32 %v5789, %v5980
        %v5982 = vpop.f32.mrf.mxu0
        %5983 = vdwg.mxu0
        %v5984 = vadd.f32 %v5698, %v5906
        %v5985 = vadd.f32 %v5703, %v5911
        %v5986 = vadd.f32 %v5708, %v5916
        %v5987 = vadd.f32 %v5713, %v5921
        %v5988 = vadd.f32 %v5718, %v5926
        %v5989 = vadd.f32 %v5723, %v5931
        %v5990 = vadd.f32 %v5728, %v5936
        %v5991 = vadd.f32 %v5733, %v5941
        %v5992 = vadd.f32 %v5738, %v5946
        %v5993 = vadd.f32 %v5743, %v5951
        %v5994 = vadd.f32 %v5748, %v5956
        %v5995 = vadd.f32 %v5753, %v5961
        %v5996 = vadd.f32 %v5758, %v5966
        %v5997 = vadd.f32 %v5763, %v5971
        %v5998 = vadd.f32 %v5768, %v5976
        %v5999 = vadd.f32 %v5773, %v5981
        %v6000 = vmax.f32 %v5984, 0.0
        %v6001 = vmax.f32 %v5985, 0.0
        %v6002 = vmax.f32 %v5986, 0.0
        %v6003 = vmax.f32 %v5987, 0.0
        %v6004 = vmax.f32 %v5988, 0.0
        %v6005 = vmax.f32 %v5989, 0.0
        %v6006 = vmax.f32 %v5990, 0.0
        %v6007 = vmax.f32 %v5991, 0.0
        %v6008 = vmax.f32 %v5992, 0.0
        %v6009 = vmax.f32 %v5993, 0.0
        %v6010 = vmax.f32 %v5994, 0.0
        %v6011 = vmax.f32 %v5995, 0.0
        %v6012 = vmax.f32 %v5996, 0.0
        %v6013 = vmax.f32 %v5997, 0.0
        %v6014 = vmax.f32 %v5998, 0.0
        %v6015 = vmax.f32 %v5999, 0.0
        %6016 = vst [vmem:[#allocation2 + $0x3] sm:$0xff] %v6000
        %6017 = vst [vmem:[#allocation2 + $0xb] sm:$0xff] %v6001
        %6018 = vst [vmem:[#allocation2 + $0x13] sm:$0xff] %v6002
        %6019 = vst [vmem:[#allocation2 + $0x1b] sm:$0xff] %v6003
        %6020 = vst [vmem:[#allocation2 + $0x23] sm:$0xff] %v6004
        %6021 = vst [vmem:[#allocation2 + $0x2b] sm:$0xff] %v6005
        %6022 = vst [vmem:[#allocation2 + $0x33] sm:$0xff] %v6006
        %6023 = vst [vmem:[#allocation2 + $0x3b] sm:$0xff] %v6007
        %6024 = vst [vmem:[#allocation2 + $0x43] sm:$0xff] %v6008
        %6025 = vst [vmem:[#allocation2 + $0x4b] sm:$0xff] %v6009
        %6026 = vst [vmem:[#allocation2 + $0x53] sm:$0xff] %v6010
        %6027 = vst [vmem:[#allocation2 + $0x5b] sm:$0xff] %v6011
        %6028 = vst [vmem:[#allocation2 + $0x63] sm:$0xff] %v6012
        %6029 = vst [vmem:[#allocation2 + $0x6b] sm:$0xff] %v6013
        %6030 = vst [vmem:[#allocation2 + $0x73] sm:$0xff] %v6014
        %6031 = vst [vmem:[#allocation2 + $0x7b] sm:$0xff] %v6015
        %v6032 = vld [vmem:[#allocation2] sm:$0xff]
        %v6033 = vld [vmem:[#allocation2 + $0x8] sm:$0xff]
        %v6034 = vld [vmem:[#allocation2 + $0x10] sm:$0xff]
        %v6035 = vld [vmem:[#allocation2 + $0x18] sm:$0xff]
        %v6036 = vld [vmem:[#allocation2 + $0x20] sm:$0xff]
        %v6037 = vld [vmem:[#allocation2 + $0x28] sm:$0xff]
        %v6038 = vld [vmem:[#allocation2 + $0x30] sm:$0xff]
        %v6039 = vld [vmem:[#allocation2 + $0x38] sm:$0xff]
        %v6040 = vld [vmem:[#allocation2 + $0x40] sm:$0xff]
        %v6041 = vld [vmem:[#allocation2 + $0x48] sm:$0xff]
        %v6042 = vld [vmem:[#allocation2 + $0x50] sm:$0xff]
        %v6043 = vld [vmem:[#allocation2 + $0x58] sm:$0xff]
        %v6044 = vld [vmem:[#allocation2 + $0x60] sm:$0xff]
        %v6045 = vld [vmem:[#allocation2 + $0x68] sm:$0xff]
        %v6046 = vld [vmem:[#allocation2 + $0x70] sm:$0xff]
        %v6047 = vld [vmem:[#allocation2 + $0x78] sm:$0xff]
        %v6048 = vsel %vm1320, %v6032, 0.0
        %v6049 = vsel %vm1321, %v6033, 0.0
        %v6050 = vsel %vm1322, %v6034, 0.0
        %v6051 = vsel %vm1323, %v6035, 0.0
        %v6052 = vsel %vm1324, %v6036, 0.0
        %v6053 = vsel %vm1325, %v6037, 0.0
        %v6054 = vsel %vm1326, %v6038, 0.0
        %v6055 = vsel %vm1327, %v6039, 0.0
        %v6056 = vsel %vm1328, %v6040, 0.0
        %v6057 = vsel %vm1329, %v6041, 0.0
        %v6058 = vsel %vm1330, %v6042, 0.0
        %v6059 = vsel %vm1331, %v6043, 0.0
        %v6060 = vsel %vm1332, %v6044, 0.0
        %v6061 = vsel %vm1333, %v6045, 0.0
        %v6062 = vsel %vm1334, %v6046, 0.0
        %v6063 = vsel %vm1335, %v6047, 0.0
        %v6064 = vld [vmem:[#allocation2 + $0x1] sm:$0xff]
        %v6065 = vld [vmem:[#allocation2 + $0x9] sm:$0xff]
        %v6066 = vld [vmem:[#allocation2 + $0x11] sm:$0xff]
        %v6067 = vld [vmem:[#allocation2 + $0x19] sm:$0xff]
        %v6068 = vld [vmem:[#allocation2 + $0x21] sm:$0xff]
        %v6069 = vld [vmem:[#allocation2 + $0x29] sm:$0xff]
        %v6070 = vld [vmem:[#allocation2 + $0x31] sm:$0xff]
        %v6071 = vld [vmem:[#allocation2 + $0x39] sm:$0xff]
        %v6072 = vld [vmem:[#allocation2 + $0x41] sm:$0xff]
        %v6073 = vld [vmem:[#allocation2 + $0x49] sm:$0xff]
        %v6074 = vld [vmem:[#allocation2 + $0x51] sm:$0xff]
        %v6075 = vld [vmem:[#allocation2 + $0x59] sm:$0xff]
        %v6076 = vld [vmem:[#allocation2 + $0x61] sm:$0xff]
        %v6077 = vld [vmem:[#allocation2 + $0x69] sm:$0xff]
        %v6078 = vld [vmem:[#allocation2 + $0x71] sm:$0xff]
        %v6079 = vld [vmem:[#allocation2 + $0x79] sm:$0xff]
        %v6080 = vsel %vm1384, %v6064, 0.0
        %v6081 = vsel %vm1385, %v6065, 0.0
        %v6082 = vsel %vm1386, %v6066, 0.0
        %v6083 = vsel %vm1387, %v6067, 0.0
        %v6084 = vsel %vm1388, %v6068, 0.0
        %v6085 = vsel %vm1389, %v6069, 0.0
        %v6086 = vsel %vm1390, %v6070, 0.0
        %v6087 = vsel %vm1391, %v6071, 0.0
        %v6088 = vsel %vm1392, %v6072, 0.0
        %v6089 = vsel %vm1393, %v6073, 0.0
        %v6090 = vsel %vm1394, %v6074, 0.0
        %v6091 = vsel %vm1395, %v6075, 0.0
        %v6092 = vsel %vm1396, %v6076, 0.0
        %v6093 = vsel %vm1397, %v6077, 0.0
        %v6094 = vsel %vm1398, %v6078, 0.0
        %v6095 = vsel %vm1399, %v6079, 0.0
        %v6096 = vld [vmem:[#allocation2 + $0x2] sm:$0xff]
        %v6097 = vld [vmem:[#allocation2 + $0xa] sm:$0xff]
        %v6098 = vld [vmem:[#allocation2 + $0x12] sm:$0xff]
        %v6099 = vld [vmem:[#allocation2 + $0x1a] sm:$0xff]
        %v6100 = vld [vmem:[#allocation2 + $0x22] sm:$0xff]
        %v6101 = vld [vmem:[#allocation2 + $0x2a] sm:$0xff]
        %v6102 = vld [vmem:[#allocation2 + $0x32] sm:$0xff]
        %v6103 = vld [vmem:[#allocation2 + $0x3a] sm:$0xff]
        %v6104 = vld [vmem:[#allocation2 + $0x42] sm:$0xff]
        %v6105 = vld [vmem:[#allocation2 + $0x4a] sm:$0xff]
        %v6106 = vld [vmem:[#allocation2 + $0x52] sm:$0xff]
        %v6107 = vld [vmem:[#allocation2 + $0x5a] sm:$0xff]
        %v6108 = vld [vmem:[#allocation2 + $0x62] sm:$0xff]
        %v6109 = vld [vmem:[#allocation2 + $0x6a] sm:$0xff]
        %v6110 = vld [vmem:[#allocation2 + $0x72] sm:$0xff]
        %v6111 = vld [vmem:[#allocation2 + $0x7a] sm:$0xff]
        %v6112 = vsel %vm1448, %v6096, 0.0
        %v6113 = vsel %vm1449, %v6097, 0.0
        %v6114 = vsel %vm1450, %v6098, 0.0
        %v6115 = vsel %vm1451, %v6099, 0.0
        %v6116 = vsel %vm1452, %v6100, 0.0
        %v6117 = vsel %vm1453, %v6101, 0.0
        %v6118 = vsel %vm1454, %v6102, 0.0
        %v6119 = vsel %vm1455, %v6103, 0.0
        %v6120 = vsel %vm1456, %v6104, 0.0
        %v6121 = vsel %vm1457, %v6105, 0.0
        %v6122 = vsel %vm1458, %v6106, 0.0
        %v6123 = vsel %vm1459, %v6107, 0.0
        %v6124 = vsel %vm1460, %v6108, 0.0
        %v6125 = vsel %vm1461, %v6109, 0.0
        %v6126 = vsel %vm1462, %v6110, 0.0
        %v6127 = vsel %vm1463, %v6111, 0.0
        %v6128 = vld [vmem:[#allocation2 + $0x3] sm:$0xff]
        %v6129 = vld [vmem:[#allocation2 + $0xb] sm:$0xff]
        %v6130 = vld [vmem:[#allocation2 + $0x13] sm:$0xff]
        %v6131 = vld [vmem:[#allocation2 + $0x1b] sm:$0xff]
        %v6132 = vld [vmem:[#allocation2 + $0x23] sm:$0xff]
        %v6133 = vld [vmem:[#allocation2 + $0x2b] sm:$0xff]
        %v6134 = vld [vmem:[#allocation2 + $0x33] sm:$0xff]
        %v6135 = vld [vmem:[#allocation2 + $0x3b] sm:$0xff]
        %v6136 = vld [vmem:[#allocation2 + $0x43] sm:$0xff]
        %v6137 = vld [vmem:[#allocation2 + $0x4b] sm:$0xff]
        %v6138 = vld [vmem:[#allocation2 + $0x53] sm:$0xff]
        %v6139 = vld [vmem:[#allocation2 + $0x5b] sm:$0xff]
        %v6140 = vld [vmem:[#allocation2 + $0x63] sm:$0xff]
        %v6141 = vld [vmem:[#allocation2 + $0x6b] sm:$0xff]
        %v6142 = vld [vmem:[#allocation2 + $0x73] sm:$0xff]
        %v6143 = vld [vmem:[#allocation2 + $0x7b] sm:$0xff]
        %v6144 = vld [vmem:[#allocation2 + $0x4] sm:$0xff]
        %v6145 = vld [vmem:[#allocation2 + $0xc] sm:$0xff]
        %v6146 = vld [vmem:[#allocation2 + $0x14] sm:$0xff]
        %v6147 = vld [vmem:[#allocation2 + $0x1c] sm:$0xff]
        %v6148 = vld [vmem:[#allocation2 + $0x24] sm:$0xff]
        %v6149 = vld [vmem:[#allocation2 + $0x2c] sm:$0xff]
        %v6150 = vld [vmem:[#allocation2 + $0x34] sm:$0xff]
        %v6151 = vld [vmem:[#allocation2 + $0x3c] sm:$0xff]
        %v6152 = vld [vmem:[#allocation2 + $0x44] sm:$0xff]
        %v6153 = vld [vmem:[#allocation2 + $0x4c] sm:$0xff]
        %v6154 = vld [vmem:[#allocation2 + $0x54] sm:$0xff]
        %v6155 = vld [vmem:[#allocation2 + $0x5c] sm:$0xff]
        %v6156 = vld [vmem:[#allocation2 + $0x64] sm:$0xff]
        %v6157 = vld [vmem:[#allocation2 + $0x6c] sm:$0xff]
        %v6158 = vld [vmem:[#allocation2 + $0x74] sm:$0xff]
        %v6159 = vld [vmem:[#allocation2 + $0x7c] sm:$0xff]
        %v6160 = vsel %vm1528, %v6144, 0.0
        %v6161 = vsel %vm1529, %v6145, 0.0
        %v6162 = vsel %vm1530, %v6146, 0.0
        %v6163 = vsel %vm1531, %v6147, 0.0
        %v6164 = vsel %vm1532, %v6148, 0.0
        %v6165 = vsel %vm1533, %v6149, 0.0
        %v6166 = vsel %vm1534, %v6150, 0.0
        %v6167 = vsel %vm1535, %v6151, 0.0
        %v6168 = vsel %vm1536, %v6152, 0.0
        %v6169 = vsel %vm1537, %v6153, 0.0
        %v6170 = vsel %vm1538, %v6154, 0.0
        %v6171 = vsel %vm1539, %v6155, 0.0
        %v6172 = vsel %vm1540, %v6156, 0.0
        %v6173 = vsel %vm1541, %v6157, 0.0
        %v6174 = vsel %vm1542, %v6158, 0.0
        %v6175 = vsel %vm1543, %v6159, 0.0
        %v6176 = vld [vmem:[#allocation2 + $0x5] sm:$0xff]
        %v6177 = vld [vmem:[#allocation2 + $0xd] sm:$0xff]
        %v6178 = vld [vmem:[#allocation2 + $0x15] sm:$0xff]
        %v6179 = vld [vmem:[#allocation2 + $0x1d] sm:$0xff]
        %v6180 = vld [vmem:[#allocation2 + $0x25] sm:$0xff]
        %v6181 = vld [vmem:[#allocation2 + $0x2d] sm:$0xff]
        %v6182 = vld [vmem:[#allocation2 + $0x35] sm:$0xff]
        %v6183 = vld [vmem:[#allocation2 + $0x3d] sm:$0xff]
        %v6184 = vld [vmem:[#allocation2 + $0x45] sm:$0xff]
        %v6185 = vld [vmem:[#allocation2 + $0x4d] sm:$0xff]
        %v6186 = vld [vmem:[#allocation2 + $0x55] sm:$0xff]
        %v6187 = vld [vmem:[#allocation2 + $0x5d] sm:$0xff]
        %v6188 = vld [vmem:[#allocation2 + $0x65] sm:$0xff]
        %v6189 = vld [vmem:[#allocation2 + $0x6d] sm:$0xff]
        %v6190 = vld [vmem:[#allocation2 + $0x75] sm:$0xff]
        %v6191 = vld [vmem:[#allocation2 + $0x7d] sm:$0xff]
        %v6192 = vsel %vm1592, %v6176, 0.0
        %v6193 = vsel %vm1593, %v6177, 0.0
        %v6194 = vsel %vm1594, %v6178, 0.0
        %v6195 = vsel %vm1595, %v6179, 0.0
        %v6196 = vsel %vm1596, %v6180, 0.0
        %v6197 = vsel %vm1597, %v6181, 0.0
        %v6198 = vsel %vm1598, %v6182, 0.0
        %v6199 = vsel %vm1599, %v6183, 0.0
        %v6200 = vsel %vm1600, %v6184, 0.0
        %v6201 = vsel %vm1601, %v6185, 0.0
        %v6202 = vsel %vm1602, %v6186, 0.0
        %v6203 = vsel %vm1603, %v6187, 0.0
        %v6204 = vsel %vm1604, %v6188, 0.0
        %v6205 = vsel %vm1605, %v6189, 0.0
        %v6206 = vsel %vm1606, %v6190, 0.0
        %v6207 = vsel %vm1607, %v6191, 0.0
        %v6208 = vld [vmem:[#allocation2 + $0x6] sm:$0xff]
        %v6209 = vld [vmem:[#allocation2 + $0xe] sm:$0xff]
        %v6210 = vld [vmem:[#allocation2 + $0x16] sm:$0xff]
        %v6211 = vld [vmem:[#allocation2 + $0x1e] sm:$0xff]
        %v6212 = vld [vmem:[#allocation2 + $0x26] sm:$0xff]
        %v6213 = vld [vmem:[#allocation2 + $0x2e] sm:$0xff]
        %v6214 = vld [vmem:[#allocation2 + $0x36] sm:$0xff]
        %v6215 = vld [vmem:[#allocation2 + $0x3e] sm:$0xff]
        %v6216 = vld [vmem:[#allocation2 + $0x46] sm:$0xff]
        %v6217 = vld [vmem:[#allocation2 + $0x4e] sm:$0xff]
        %v6218 = vld [vmem:[#allocation2 + $0x56] sm:$0xff]
        %v6219 = vld [vmem:[#allocation2 + $0x5e] sm:$0xff]
        %v6220 = vld [vmem:[#allocation2 + $0x66] sm:$0xff]
        %v6221 = vld [vmem:[#allocation2 + $0x6e] sm:$0xff]
        %v6222 = vld [vmem:[#allocation2 + $0x76] sm:$0xff]
        %v6223 = vld [vmem:[#allocation2 + $0x7e] sm:$0xff]
        %v6224 = vsel %vm1656, %v6208, 0.0
        %v6225 = vsel %vm1657, %v6209, 0.0
        %v6226 = vsel %vm1658, %v6210, 0.0
        %v6227 = vsel %vm1659, %v6211, 0.0
        %v6228 = vsel %vm1660, %v6212, 0.0
        %v6229 = vsel %vm1661, %v6213, 0.0
        %v6230 = vsel %vm1662, %v6214, 0.0
        %v6231 = vsel %vm1663, %v6215, 0.0
        %v6232 = vsel %vm1664, %v6216, 0.0
        %v6233 = vsel %vm1665, %v6217, 0.0
        %v6234 = vsel %vm1666, %v6218, 0.0
        %v6235 = vsel %vm1667, %v6219, 0.0
        %v6236 = vsel %vm1668, %v6220, 0.0
        %v6237 = vsel %vm1669, %v6221, 0.0
        %v6238 = vsel %vm1670, %v6222, 0.0
        %v6239 = vsel %vm1671, %v6223, 0.0
        %v6240 = vld [vmem:[%s17] sm:$0xff]
        %v6241 = vld [vmem:[%s17 + $0x8] sm:$0xff]
        %v6242 = vld [vmem:[%s17 + $0x10] sm:$0xff]
        %v6243 = vld [vmem:[%s17 + $0x18] sm:$0xff]
        %v6244 = vld [vmem:[%s17 + $0x20] sm:$0xff]
        %v6245 = vld [vmem:[%s17 + $0x28] sm:$0xff]
        %v6246 = vld [vmem:[%s17 + $0x30] sm:$0xff]
        %v6247 = vld [vmem:[%s17 + $0x38] sm:$0xff]
        %v6248 = vld [vmem:[%s17 + $0x40] sm:$0xff]
        %v6249 = vld [vmem:[%s17 + $0x48] sm:$0xff]
        %v6250 = vld [vmem:[%s17 + $0x50] sm:$0xff]
        %v6251 = vld [vmem:[%s17 + $0x58] sm:$0xff]
        %v6252 = vld [vmem:[%s17 + $0x60] sm:$0xff]
        %v6253 = vld [vmem:[%s17 + $0x68] sm:$0xff]
        %v6254 = vld [vmem:[%s17 + $0x70] sm:$0xff]
        %v6255 = vld [vmem:[%s17 + $0x78] sm:$0xff]
        %v6256 = vld [vmem:[%s17 + $0x80] sm:$0xff]
        %v6257 = vld [vmem:[%s17 + $0x88] sm:$0xff]
        %v6258 = vld [vmem:[%s17 + $0x90] sm:$0xff]
        %v6259 = vld [vmem:[%s17 + $0x98] sm:$0xff]
        %v6260 = vld [vmem:[%s17 + $0xa0] sm:$0xff]
        %v6261 = vld [vmem:[%s17 + $0xa8] sm:$0xff]
        %v6262 = vld [vmem:[%s17 + $0xb0] sm:$0xff]
        %v6263 = vld [vmem:[%s17 + $0xb8] sm:$0xff]
        %v6264 = vld [vmem:[%s17 + $0xc0] sm:$0xff]
        %v6265 = vld [vmem:[%s17 + $0xc8] sm:$0xff]
        %v6266 = vld [vmem:[%s17 + $0xd0] sm:$0xff]
        %v6267 = vld [vmem:[%s17 + $0xd8] sm:$0xff]
        %v6268 = vld [vmem:[%s17 + $0xe0] sm:$0xff]
        %v6269 = vld [vmem:[%s17 + $0xe8] sm:$0xff]
        %v6270 = vld [vmem:[%s17 + $0xf0] sm:$0xff]
        %v6271 = vld [vmem:[%s17 + $0xf8] sm:$0xff]
        %v6272 = vld [vmem:[%s17 + $0x100] sm:$0xff]
        %v6273 = vld [vmem:[%s17 + $0x108] sm:$0xff]
        %v6274 = vld [vmem:[%s17 + $0x110] sm:$0xff]
        %v6275 = vld [vmem:[%s17 + $0x118] sm:$0xff]
        %v6276 = vld [vmem:[%s17 + $0x120] sm:$0xff]
        %v6277 = vld [vmem:[%s17 + $0x128] sm:$0xff]
        %v6278 = vld [vmem:[%s17 + $0x130] sm:$0xff]
        %v6279 = vld [vmem:[%s17 + $0x138] sm:$0xff]
        %v6280 = vld [vmem:[%s17 + $0x140] sm:$0xff]
        %v6281 = vld [vmem:[%s17 + $0x148] sm:$0xff]
        %v6282 = vld [vmem:[%s17 + $0x150] sm:$0xff]
        %v6283 = vld [vmem:[%s17 + $0x158] sm:$0xff]
        %v6284 = vld [vmem:[%s17 + $0x160] sm:$0xff]
        %v6285 = vld [vmem:[%s17 + $0x168] sm:$0xff]
        %v6286 = vld [vmem:[%s17 + $0x170] sm:$0xff]
        %v6287 = vld [vmem:[%s17 + $0x178] sm:$0xff]
        %v6288 = vld [vmem:[%s17 + $0x180] sm:$0xff]
        %v6289 = vld [vmem:[%s17 + $0x188] sm:$0xff]
        %v6290 = vld [vmem:[%s17 + $0x190] sm:$0xff]
        %v6291 = vld [vmem:[%s17 + $0x198] sm:$0xff]
        %v6292 = vld [vmem:[%s17 + $0x1a0] sm:$0xff]
        %v6293 = vld [vmem:[%s17 + $0x1a8] sm:$0xff]
        %v6294 = vld [vmem:[%s17 + $0x1b0] sm:$0xff]
        %v6295 = vld [vmem:[%s17 + $0x1b8] sm:$0xff]
        %v6296 = vld [vmem:[%s17 + $0x1c0] sm:$0xff]
        %v6297 = vld [vmem:[%s17 + $0x1c8] sm:$0xff]
        %v6298 = vld [vmem:[%s17 + $0x1d0] sm:$0xff]
        %v6299 = vld [vmem:[%s17 + $0x1d8] sm:$0xff]
        %v6300 = vld [vmem:[%s17 + $0x1e0] sm:$0xff]
        %v6301 = vld [vmem:[%s17 + $0x1e8] sm:$0xff]
        %v6302 = vld [vmem:[%s17 + $0x1f0] sm:$0xff]
        %v6303 = vld [vmem:[%s17 + $0x1f8] sm:$0xff]
        %v6304 = vld [vmem:[%s17 + $0x200] sm:$0xff]
        %v6305 = vld [vmem:[%s17 + $0x208] sm:$0xff]
        %v6306 = vld [vmem:[%s17 + $0x210] sm:$0xff]
        %v6307 = vld [vmem:[%s17 + $0x218] sm:$0xff]
        %v6308 = vld [vmem:[%s17 + $0x220] sm:$0xff]
        %v6309 = vld [vmem:[%s17 + $0x228] sm:$0xff]
        %v6310 = vld [vmem:[%s17 + $0x230] sm:$0xff]
        %v6311 = vld [vmem:[%s17 + $0x238] sm:$0xff]
        %v6312 = vld [vmem:[%s17 + $0x240] sm:$0xff]
        %v6313 = vld [vmem:[%s17 + $0x248] sm:$0xff]
        %v6314 = vld [vmem:[%s17 + $0x250] sm:$0xff]
        %v6315 = vld [vmem:[%s17 + $0x258] sm:$0xff]
        %v6316 = vld [vmem:[%s17 + $0x260] sm:$0xff]
        %v6317 = vld [vmem:[%s17 + $0x268] sm:$0xff]
        %v6318 = vld [vmem:[%s17 + $0x270] sm:$0xff]
        %v6319 = vld [vmem:[%s17 + $0x278] sm:$0xff]
        %v6320 = vld [vmem:[%s17 + $0x280] sm:$0xff]
        %v6321 = vld [vmem:[%s17 + $0x288] sm:$0xff]
        %v6322 = vld [vmem:[%s17 + $0x290] sm:$0xff]
        %v6323 = vld [vmem:[%s17 + $0x298] sm:$0xff]
        %v6324 = vld [vmem:[%s17 + $0x2a0] sm:$0xff]
        %v6325 = vld [vmem:[%s17 + $0x2a8] sm:$0xff]
        %v6326 = vld [vmem:[%s17 + $0x2b0] sm:$0xff]
        %v6327 = vld [vmem:[%s17 + $0x2b8] sm:$0xff]
        %v6328 = vld [vmem:[%s17 + $0x2c0] sm:$0xff]
        %v6329 = vld [vmem:[%s17 + $0x2c8] sm:$0xff]
        %v6330 = vld [vmem:[%s17 + $0x2d0] sm:$0xff]
        %v6331 = vld [vmem:[%s17 + $0x2d8] sm:$0xff]
        %v6332 = vld [vmem:[%s17 + $0x2e0] sm:$0xff]
        %v6333 = vld [vmem:[%s17 + $0x2e8] sm:$0xff]
        %v6334 = vld [vmem:[%s17 + $0x2f0] sm:$0xff]
        %v6335 = vld [vmem:[%s17 + $0x2f8] sm:$0xff]
        %v6336 = vld [vmem:[%s17 + $0x300] sm:$0xff]
        %v6337 = vld [vmem:[%s17 + $0x308] sm:$0xff]
        %v6338 = vld [vmem:[%s17 + $0x310] sm:$0xff]
        %v6339 = vld [vmem:[%s17 + $0x318] sm:$0xff]
        %v6340 = vld [vmem:[%s17 + $0x320] sm:$0xff]
        %v6341 = vld [vmem:[%s17 + $0x328] sm:$0xff]
        %v6342 = vld [vmem:[%s17 + $0x330] sm:$0xff]
        %v6343 = vld [vmem:[%s17 + $0x338] sm:$0xff]
        %v6344 = vld [vmem:[%s17 + $0x340] sm:$0xff]
        %v6345 = vld [vmem:[%s17 + $0x348] sm:$0xff]
        %v6346 = vld [vmem:[%s17 + $0x350] sm:$0xff]
        %v6347 = vld [vmem:[%s17 + $0x358] sm:$0xff]
        %v6348 = vld [vmem:[%s17 + $0x360] sm:$0xff]
        %v6349 = vld [vmem:[%s17 + $0x368] sm:$0xff]
        %v6350 = vld [vmem:[%s17 + $0x370] sm:$0xff]
        %v6351 = vld [vmem:[%s17 + $0x378] sm:$0xff]
        %v6352 = vld [vmem:[%s18] sm:$0x1]
        %v6354 = vlaneseq
        %v6355 = vshrl.u32 %v6354, 7
        %v6356 = vsub.s32 0, %v6355
        %v6357 = vrot.slane %v6352, %v6356
        %6359 = vmatprep.subr.mxu0 0.0
        %6360 = vmatpush1.msra.mxu0 %v6255
        %6361 = vmatprep.subr.mxu0 0.0
        %6362 = vmatpush1.msra.mxu0 %v6254
        %6363 = vmatprep.subr.mxu0 0.0
        %6364 = vmatpush1.msra.mxu0 %v6253
        %6365 = vmatprep.subr.mxu0 0.0
        %6366 = vmatpush1.msra.mxu0 %v6252
        %6367 = vmatprep.subr.mxu0 0.0
        %6368 = vmatpush1.msra.mxu0 %v6251
        %6369 = vmatprep.subr.mxu0 0.0
        %6370 = vmatpush1.msra.mxu0 %v6250
        %6371 = vmatprep.subr.mxu0 0.0
        %6372 = vmatpush1.msra.mxu0 %v6249
        %6373 = vmatprep.subr.mxu0 0.0
        %6374 = vmatpush1.msra.mxu0 %v6248
        %6375 = vmatprep.subr.mxu0 0.0
        %6376 = vmatpush1.msra.mxu0 %v6247
        %6377 = vmatprep.subr.mxu0 0.0
        %6378 = vmatpush1.msra.mxu0 %v6246
        %6379 = vmatprep.subr.mxu0 0.0
        %6380 = vmatpush1.msra.mxu0 %v6245
        %6381 = vmatprep.subr.mxu0 0.0
        %6382 = vmatpush1.msra.mxu0 %v6244
        %6383 = vmatprep.subr.mxu0 0.0
        %6384 = vmatpush1.msra.mxu0 %v6243
        %6385 = vmatprep.subr.mxu0 0.0
        %6386 = vmatpush1.msra.mxu0 %v6242
        %6387 = vmatprep.subr.mxu0 0.0
        %6388 = vmatpush1.msra.mxu0 %v6241
        %6389 = vmatprep.subr.mxu0 0.0
        %6390 = vmatpush1.msra.mxu0 %v6240
        %6391 = vmatprep.subr.mxu0 0.0
        %6392 = vmatpush2.msra.mxu0 %v6271
        %6393 = vmatprep.subr.mxu0 0.0
        %6394 = vmatpush2.msra.mxu0 %v6270
        %6395 = vmatprep.subr.mxu0 0.0
        %6396 = vmatpush2.msra.mxu0 %v6269
        %6397 = vmatprep.subr.mxu0 0.0
        %6398 = vmatpush2.msra.mxu0 %v6268
        %6399 = vmatprep.subr.mxu0 0.0
        %6400 = vmatpush2.msra.mxu0 %v6267
        %6401 = vmatprep.subr.mxu0 0.0
        %6402 = vmatpush2.msra.mxu0 %v6266
        %6403 = vmatprep.subr.mxu0 0.0
        %6404 = vmatpush2.msra.mxu0 %v6265
        %6405 = vmatprep.subr.mxu0 0.0
        %6406 = vmatpush2.msra.mxu0 %v6264
        %6407 = vmatprep.subr.mxu0 0.0
        %6408 = vmatpush2.msra.mxu0 %v6263
        %6409 = vmatprep.subr.mxu0 0.0
        %6410 = vmatpush2.msra.mxu0 %v6262
        %6411 = vmatprep.subr.mxu0 0.0
        %6412 = vmatpush2.msra.mxu0 %v6261
        %6413 = vmatprep.subr.mxu0 0.0
        %6414 = vmatpush2.msra.mxu0 %v6260
        %6415 = vmatprep.subr.mxu0 0.0
        %6416 = vmatpush2.msra.mxu0 %v6259
        %6417 = vmatprep.subr.mxu0 0.0
        %6418 = vmatpush2.msra.mxu0 %v6258
        %6419 = vmatprep.subr.mxu0 0.0
        %6420 = vmatpush2.msra.mxu0 %v6257
        %6421 = vmatprep.subr.mxu0 0.0
        %6422 = vmatpush2.msra.mxu0 %v6256
        %6423 = vmatprep.mubr.f32.mxu0 %v6080
        %6424 = vmatmul.mubr.f32.gmra.mxu0 %v6048
        %v6425 = vpop.f32.mrf.mxu0
        %v6426 = vadd.f32 %v6357, %v6425
        %v6427 = vpop.f32.mrf.mxu0
        %6428 = vmatprep.mubr.f32.mxu0 %v6081
        %6429 = vmatmul.mubr.f32.gmra.mxu0 %v6049
        %v6430 = vpop.f32.mrf.mxu0
        %v6431 = vadd.f32 %v6357, %v6430
        %v6432 = vpop.f32.mrf.mxu0
        %6433 = vmatprep.mubr.f32.mxu0 %v6082
        %6434 = vmatmul.mubr.f32.gmra.mxu0 %v6050
        %v6435 = vpop.f32.mrf.mxu0
        %v6436 = vadd.f32 %v6357, %v6435
        %v6437 = vpop.f32.mrf.mxu0
        %6438 = vmatprep.mubr.f32.mxu0 %v6083
        %6439 = vmatmul.mubr.f32.gmra.mxu0 %v6051
        %v6440 = vpop.f32.mrf.mxu0
        %v6441 = vadd.f32 %v6357, %v6440
        %v6442 = vpop.f32.mrf.mxu0
        %6443 = vmatprep.mubr.f32.mxu0 %v6084
        %6444 = vmatmul.mubr.f32.gmra.mxu0 %v6052
        %v6445 = vpop.f32.mrf.mxu0
        %v6446 = vadd.f32 %v6357, %v6445
        %v6447 = vpop.f32.mrf.mxu0
        %6448 = vmatprep.mubr.f32.mxu0 %v6085
        %6449 = vmatmul.mubr.f32.gmra.mxu0 %v6053
        %v6450 = vpop.f32.mrf.mxu0
        %v6451 = vadd.f32 %v6357, %v6450
        %v6452 = vpop.f32.mrf.mxu0
        %6453 = vmatprep.mubr.f32.mxu0 %v6086
        %6454 = vmatmul.mubr.f32.gmra.mxu0 %v6054
        %v6455 = vpop.f32.mrf.mxu0
        %v6456 = vadd.f32 %v6357, %v6455
        %v6457 = vpop.f32.mrf.mxu0
        %6458 = vmatprep.mubr.f32.mxu0 %v6087
        %6459 = vmatmul.mubr.f32.gmra.mxu0 %v6055
        %v6460 = vpop.f32.mrf.mxu0
        %v6461 = vadd.f32 %v6357, %v6460
        %v6462 = vpop.f32.mrf.mxu0
        %6463 = vmatprep.mubr.f32.mxu0 %v6088
        %6464 = vmatmul.mubr.f32.gmra.mxu0 %v6056
        %v6465 = vpop.f32.mrf.mxu0
        %v6466 = vadd.f32 %v6357, %v6465
        %v6467 = vpop.f32.mrf.mxu0
        %6468 = vmatprep.mubr.f32.mxu0 %v6089
        %6469 = vmatmul.mubr.f32.gmra.mxu0 %v6057
        %v6470 = vpop.f32.mrf.mxu0
        %v6471 = vadd.f32 %v6357, %v6470
        %v6472 = vpop.f32.mrf.mxu0
        %6473 = vmatprep.mubr.f32.mxu0 %v6090
        %6474 = vmatmul.mubr.f32.gmra.mxu0 %v6058
        %v6475 = vpop.f32.mrf.mxu0
        %v6476 = vadd.f32 %v6357, %v6475
        %v6477 = vpop.f32.mrf.mxu0
        %6478 = vmatprep.mubr.f32.mxu0 %v6091
        %6479 = vmatmul.mubr.f32.gmra.mxu0 %v6059
        %v6480 = vpop.f32.mrf.mxu0
        %v6481 = vadd.f32 %v6357, %v6480
        %v6482 = vpop.f32.mrf.mxu0
        %6483 = vmatprep.mubr.f32.mxu0 %v6092
        %6484 = vmatmul.mubr.f32.gmra.mxu0 %v6060
        %v6485 = vpop.f32.mrf.mxu0
        %v6486 = vadd.f32 %v6357, %v6485
        %v6487 = vpop.f32.mrf.mxu0
        %6488 = vmatprep.mubr.f32.mxu0 %v6093
        %6489 = vmatmul.mubr.f32.gmra.mxu0 %v6061
        %v6490 = vpop.f32.mrf.mxu0
        %v6491 = vadd.f32 %v6357, %v6490
        %v6492 = vpop.f32.mrf.mxu0
        %6493 = vmatprep.mubr.f32.mxu0 %v6094
        %6494 = vmatmul.mubr.f32.gmra.mxu0 %v6062
        %v6495 = vpop.f32.mrf.mxu0
        %v6496 = vadd.f32 %v6357, %v6495
        %v6497 = vpop.f32.mrf.mxu0
        %6498 = vmatprep.mubr.f32.mxu0 %v6095
        %6499 = vmatmul.mubr.f32.gmra.mxu0 %v6063
        %v6500 = vpop.f32.mrf.mxu0
        %v6501 = vadd.f32 %v6357, %v6500
        %v6502 = vpop.f32.mrf.mxu0
        %6503 = vdwg.mxu0
        %6504 = vmatprep.subr.mxu0 0.0
        %6505 = vmatpush1.msra.mxu0 %v6287
        %6506 = vmatprep.subr.mxu0 0.0
        %6507 = vmatpush1.msra.mxu0 %v6286
        %6508 = vmatprep.subr.mxu0 0.0
        %6509 = vmatpush1.msra.mxu0 %v6285
        %6510 = vmatprep.subr.mxu0 0.0
        %6511 = vmatpush1.msra.mxu0 %v6284
        %6512 = vmatprep.subr.mxu0 0.0
        %6513 = vmatpush1.msra.mxu0 %v6283
        %6514 = vmatprep.subr.mxu0 0.0
        %6515 = vmatpush1.msra.mxu0 %v6282
        %6516 = vmatprep.subr.mxu0 0.0
        %6517 = vmatpush1.msra.mxu0 %v6281
        %6518 = vmatprep.subr.mxu0 0.0
        %6519 = vmatpush1.msra.mxu0 %v6280
        %6520 = vmatprep.subr.mxu0 0.0
        %6521 = vmatpush1.msra.mxu0 %v6279
        %6522 = vmatprep.subr.mxu0 0.0
        %6523 = vmatpush1.msra.mxu0 %v6278
        %6524 = vmatprep.subr.mxu0 0.0
        %6525 = vmatpush1.msra.mxu0 %v6277
        %6526 = vmatprep.subr.mxu0 0.0
        %6527 = vmatpush1.msra.mxu0 %v6276
        %6528 = vmatprep.subr.mxu0 0.0
        %6529 = vmatpush1.msra.mxu0 %v6275
        %6530 = vmatprep.subr.mxu0 0.0
        %6531 = vmatpush1.msra.mxu0 %v6274
        %6532 = vmatprep.subr.mxu0 0.0
        %6533 = vmatpush1.msra.mxu0 %v6273
        %6534 = vmatprep.subr.mxu0 0.0
        %6535 = vmatpush1.msra.mxu0 %v6272
        %6536 = vmatprep.subr.mxu0 0.0
        %6537 = vmatpush2.msra.mxu0 %v6303
        %6538 = vmatprep.subr.mxu0 0.0
        %6539 = vmatpush2.msra.mxu0 %v6302
        %6540 = vmatprep.subr.mxu0 0.0
        %6541 = vmatpush2.msra.mxu0 %v6301
        %6542 = vmatprep.subr.mxu0 0.0
        %6543 = vmatpush2.msra.mxu0 %v6300
        %6544 = vmatprep.subr.mxu0 0.0
        %6545 = vmatpush2.msra.mxu0 %v6299
        %6546 = vmatprep.subr.mxu0 0.0
        %6547 = vmatpush2.msra.mxu0 %v6298
        %6548 = vmatprep.subr.mxu0 0.0
        %6549 = vmatpush2.msra.mxu0 %v6297
        %6550 = vmatprep.subr.mxu0 0.0
        %6551 = vmatpush2.msra.mxu0 %v6296
        %6552 = vmatprep.subr.mxu0 0.0
        %6553 = vmatpush2.msra.mxu0 %v6295
        %6554 = vmatprep.subr.mxu0 0.0
        %6555 = vmatpush2.msra.mxu0 %v6294
        %6556 = vmatprep.subr.mxu0 0.0
        %6557 = vmatpush2.msra.mxu0 %v6293
        %6558 = vmatprep.subr.mxu0 0.0
        %6559 = vmatpush2.msra.mxu0 %v6292
        %6560 = vmatprep.subr.mxu0 0.0
        %6561 = vmatpush2.msra.mxu0 %v6291
        %6562 = vmatprep.subr.mxu0 0.0
        %6563 = vmatpush2.msra.mxu0 %v6290
        %6564 = vmatprep.subr.mxu0 0.0
        %6565 = vmatpush2.msra.mxu0 %v6289
        %6566 = vmatprep.subr.mxu0 0.0
        %6567 = vmatpush2.msra.mxu0 %v6288
        %6568 = vmatprep.mubr.f32.mxu0 %v6128
        %6569 = vmatmul.mubr.f32.gmra.mxu0 %v6112
        %v6570 = vpop.f32.mrf.mxu0
        %v6571 = vadd.f32 %v6426, %v6570
        %v6572 = vpop.f32.mrf.mxu0
        %6573 = vmatprep.mubr.f32.mxu0 %v6129
        %6574 = vmatmul.mubr.f32.gmra.mxu0 %v6113
        %v6575 = vpop.f32.mrf.mxu0
        %v6576 = vadd.f32 %v6431, %v6575
        %v6577 = vpop.f32.mrf.mxu0
        %6578 = vmatprep.mubr.f32.mxu0 %v6130
        %6579 = vmatmul.mubr.f32.gmra.mxu0 %v6114
        %v6580 = vpop.f32.mrf.mxu0
        %v6581 = vadd.f32 %v6436, %v6580
        %v6582 = vpop.f32.mrf.mxu0
        %6583 = vmatprep.mubr.f32.mxu0 %v6131
        %6584 = vmatmul.mubr.f32.gmra.mxu0 %v6115
        %v6585 = vpop.f32.mrf.mxu0
        %v6586 = vadd.f32 %v6441, %v6585
        %v6587 = vpop.f32.mrf.mxu0
        %6588 = vmatprep.mubr.f32.mxu0 %v6132
        %6589 = vmatmul.mubr.f32.gmra.mxu0 %v6116
        %v6590 = vpop.f32.mrf.mxu0
        %v6591 = vadd.f32 %v6446, %v6590
        %v6592 = vpop.f32.mrf.mxu0
        %6593 = vmatprep.mubr.f32.mxu0 %v6133
        %6594 = vmatmul.mubr.f32.gmra.mxu0 %v6117
        %v6595 = vpop.f32.mrf.mxu0
        %v6596 = vadd.f32 %v6451, %v6595
        %v6597 = vpop.f32.mrf.mxu0
        %6598 = vmatprep.mubr.f32.mxu0 %v6134
        %6599 = vmatmul.mubr.f32.gmra.mxu0 %v6118
        %v6600 = vpop.f32.mrf.mxu0
        %v6601 = vadd.f32 %v6456, %v6600
        %v6602 = vpop.f32.mrf.mxu0
        %6603 = vmatprep.mubr.f32.mxu0 %v6135
        %6604 = vmatmul.mubr.f32.gmra.mxu0 %v6119
        %v6605 = vpop.f32.mrf.mxu0
        %v6606 = vadd.f32 %v6461, %v6605
        %v6607 = vpop.f32.mrf.mxu0
        %6608 = vmatprep.mubr.f32.mxu0 %v6136
        %6609 = vmatmul.mubr.f32.gmra.mxu0 %v6120
        %v6610 = vpop.f32.mrf.mxu0
        %v6611 = vadd.f32 %v6466, %v6610
        %v6612 = vpop.f32.mrf.mxu0
        %6613 = vmatprep.mubr.f32.mxu0 %v6137
        %6614 = vmatmul.mubr.f32.gmra.mxu0 %v6121
        %v6615 = vpop.f32.mrf.mxu0
        %v6616 = vadd.f32 %v6471, %v6615
        %v6617 = vpop.f32.mrf.mxu0
        %6618 = vmatprep.mubr.f32.mxu0 %v6138
        %6619 = vmatmul.mubr.f32.gmra.mxu0 %v6122
        %v6620 = vpop.f32.mrf.mxu0
        %v6621 = vadd.f32 %v6476, %v6620
        %v6622 = vpop.f32.mrf.mxu0
        %6623 = vmatprep.mubr.f32.mxu0 %v6139
        %6624 = vmatmul.mubr.f32.gmra.mxu0 %v6123
        %v6625 = vpop.f32.mrf.mxu0
        %v6626 = vadd.f32 %v6481, %v6625
        %v6627 = vpop.f32.mrf.mxu0
        %6628 = vmatprep.mubr.f32.mxu0 %v6140
        %6629 = vmatmul.mubr.f32.gmra.mxu0 %v6124
        %v6630 = vpop.f32.mrf.mxu0
        %v6631 = vadd.f32 %v6486, %v6630
        %v6632 = vpop.f32.mrf.mxu0
        %6633 = vmatprep.mubr.f32.mxu0 %v6141
        %6634 = vmatmul.mubr.f32.gmra.mxu0 %v6125
        %v6635 = vpop.f32.mrf.mxu0
        %v6636 = vadd.f32 %v6491, %v6635
        %v6637 = vpop.f32.mrf.mxu0
        %6638 = vmatprep.mubr.f32.mxu0 %v6142
        %6639 = vmatmul.mubr.f32.gmra.mxu0 %v6126
        %v6640 = vpop.f32.mrf.mxu0
        %v6641 = vadd.f32 %v6496, %v6640
        %v6642 = vpop.f32.mrf.mxu0
        %6643 = vmatprep.mubr.f32.mxu0 %v6143
        %6644 = vmatmul.mubr.f32.gmra.mxu0 %v6127
        %v6645 = vpop.f32.mrf.mxu0
        %v6646 = vadd.f32 %v6501, %v6645
        %v6647 = vpop.f32.mrf.mxu0
        %6648 = vdwg.mxu0
        %6649 = vmatprep.subr.mxu0 0.0
        %6650 = vmatpush1.msra.mxu0 %v6319
        %6651 = vmatprep.subr.mxu0 0.0
        %6652 = vmatpush1.msra.mxu0 %v6318
        %6653 = vmatprep.subr.mxu0 0.0
        %6654 = vmatpush1.msra.mxu0 %v6317
        %6655 = vmatprep.subr.mxu0 0.0
        %6656 = vmatpush1.msra.mxu0 %v6316
        %6657 = vmatprep.subr.mxu0 0.0
        %6658 = vmatpush1.msra.mxu0 %v6315
        %6659 = vmatprep.subr.mxu0 0.0
        %6660 = vmatpush1.msra.mxu0 %v6314
        %6661 = vmatprep.subr.mxu0 0.0
        %6662 = vmatpush1.msra.mxu0 %v6313
        %6663 = vmatprep.subr.mxu0 0.0
        %6664 = vmatpush1.msra.mxu0 %v6312
        %6665 = vmatprep.subr.mxu0 0.0
        %6666 = vmatpush1.msra.mxu0 %v6311
        %6667 = vmatprep.subr.mxu0 0.0
        %6668 = vmatpush1.msra.mxu0 %v6310
        %6669 = vmatprep.subr.mxu0 0.0
        %6670 = vmatpush1.msra.mxu0 %v6309
        %6671 = vmatprep.subr.mxu0 0.0
        %6672 = vmatpush1.msra.mxu0 %v6308
        %6673 = vmatprep.subr.mxu0 0.0
        %6674 = vmatpush1.msra.mxu0 %v6307
        %6675 = vmatprep.subr.mxu0 0.0
        %6676 = vmatpush1.msra.mxu0 %v6306
        %6677 = vmatprep.subr.mxu0 0.0
        %6678 = vmatpush1.msra.mxu0 %v6305
        %6679 = vmatprep.subr.mxu0 0.0
        %6680 = vmatpush1.msra.mxu0 %v6304
        %6681 = vmatprep.subr.mxu0 0.0
        %6682 = vmatpush2.msra.mxu0 %v6335
        %6683 = vmatprep.subr.mxu0 0.0
        %6684 = vmatpush2.msra.mxu0 %v6334
        %6685 = vmatprep.subr.mxu0 0.0
        %6686 = vmatpush2.msra.mxu0 %v6333
        %6687 = vmatprep.subr.mxu0 0.0
        %6688 = vmatpush2.msra.mxu0 %v6332
        %6689 = vmatprep.subr.mxu0 0.0
        %6690 = vmatpush2.msra.mxu0 %v6331
        %6691 = vmatprep.subr.mxu0 0.0
        %6692 = vmatpush2.msra.mxu0 %v6330
        %6693 = vmatprep.subr.mxu0 0.0
        %6694 = vmatpush2.msra.mxu0 %v6329
        %6695 = vmatprep.subr.mxu0 0.0
        %6696 = vmatpush2.msra.mxu0 %v6328
        %6697 = vmatprep.subr.mxu0 0.0
        %6698 = vmatpush2.msra.mxu0 %v6327
        %6699 = vmatprep.subr.mxu0 0.0
        %6700 = vmatpush2.msra.mxu0 %v6326
        %6701 = vmatprep.subr.mxu0 0.0
        %6702 = vmatpush2.msra.mxu0 %v6325
        %6703 = vmatprep.subr.mxu0 0.0
        %6704 = vmatpush2.msra.mxu0 %v6324
        %6705 = vmatprep.subr.mxu0 0.0
        %6706 = vmatpush2.msra.mxu0 %v6323
        %6707 = vmatprep.subr.mxu0 0.0
        %6708 = vmatpush2.msra.mxu0 %v6322
        %6709 = vmatprep.subr.mxu0 0.0
        %6710 = vmatpush2.msra.mxu0 %v6321
        %6711 = vmatprep.subr.mxu0 0.0
        %6712 = vmatpush2.msra.mxu0 %v6320
        %6713 = vmatprep.mubr.f32.mxu0 %v6192
        %6714 = vmatmul.mubr.f32.gmra.mxu0 %v6160
        %v6715 = vpop.f32.mrf.mxu0
        %v6716 = vadd.f32 %v6571, %v6715
        %v6717 = vpop.f32.mrf.mxu0
        %6718 = vmatprep.mubr.f32.mxu0 %v6193
        %6719 = vmatmul.mubr.f32.gmra.mxu0 %v6161
        %v6720 = vpop.f32.mrf.mxu0
        %v6721 = vadd.f32 %v6576, %v6720
        %v6722 = vpop.f32.mrf.mxu0
        %6723 = vmatprep.mubr.f32.mxu0 %v6194
        %6724 = vmatmul.mubr.f32.gmra.mxu0 %v6162
        %v6725 = vpop.f32.mrf.mxu0
        %v6726 = vadd.f32 %v6581, %v6725
        %v6727 = vpop.f32.mrf.mxu0
        %6728 = vmatprep.mubr.f32.mxu0 %v6195
        %6729 = vmatmul.mubr.f32.gmra.mxu0 %v6163
        %v6730 = vpop.f32.mrf.mxu0
        %v6731 = vadd.f32 %v6586, %v6730
        %v6732 = vpop.f32.mrf.mxu0
        %6733 = vmatprep.mubr.f32.mxu0 %v6196
        %6734 = vmatmul.mubr.f32.gmra.mxu0 %v6164
        %v6735 = vpop.f32.mrf.mxu0
        %v6736 = vadd.f32 %v6591, %v6735
        %v6737 = vpop.f32.mrf.mxu0
        %6738 = vmatprep.mubr.f32.mxu0 %v6197
        %6739 = vmatmul.mubr.f32.gmra.mxu0 %v6165
        %v6740 = vpop.f32.mrf.mxu0
        %v6741 = vadd.f32 %v6596, %v6740
        %v6742 = vpop.f32.mrf.mxu0
        %6743 = vmatprep.mubr.f32.mxu0 %v6198
        %6744 = vmatmul.mubr.f32.gmra.mxu0 %v6166
        %v6745 = vpop.f32.mrf.mxu0
        %v6746 = vadd.f32 %v6601, %v6745
        %v6747 = vpop.f32.mrf.mxu0
        %6748 = vmatprep.mubr.f32.mxu0 %v6199
        %6749 = vmatmul.mubr.f32.gmra.mxu0 %v6167
        %v6750 = vpop.f32.mrf.mxu0
        %v6751 = vadd.f32 %v6606, %v6750
        %v6752 = vpop.f32.mrf.mxu0
        %6753 = vmatprep.mubr.f32.mxu0 %v6200
        %6754 = vmatmul.mubr.f32.gmra.mxu0 %v6168
        %v6755 = vpop.f32.mrf.mxu0
        %v6756 = vadd.f32 %v6611, %v6755
        %v6757 = vpop.f32.mrf.mxu0
        %6758 = vmatprep.mubr.f32.mxu0 %v6201
        %6759 = vmatmul.mubr.f32.gmra.mxu0 %v6169
        %v6760 = vpop.f32.mrf.mxu0
        %v6761 = vadd.f32 %v6616, %v6760
        %v6762 = vpop.f32.mrf.mxu0
        %6763 = vmatprep.mubr.f32.mxu0 %v6202
        %6764 = vmatmul.mubr.f32.gmra.mxu0 %v6170
        %v6765 = vpop.f32.mrf.mxu0
        %v6766 = vadd.f32 %v6621, %v6765
        %v6767 = vpop.f32.mrf.mxu0
        %6768 = vmatprep.mubr.f32.mxu0 %v6203
        %6769 = vmatmul.mubr.f32.gmra.mxu0 %v6171
        %v6770 = vpop.f32.mrf.mxu0
        %v6771 = vadd.f32 %v6626, %v6770
        %v6772 = vpop.f32.mrf.mxu0
        %6773 = vmatprep.mubr.f32.mxu0 %v6204
        %6774 = vmatmul.mubr.f32.gmra.mxu0 %v6172
        %v6775 = vpop.f32.mrf.mxu0
        %v6776 = vadd.f32 %v6631, %v6775
        %v6777 = vpop.f32.mrf.mxu0
        %6778 = vmatprep.mubr.f32.mxu0 %v6205
        %6779 = vmatmul.mubr.f32.gmra.mxu0 %v6173
        %v6780 = vpop.f32.mrf.mxu0
        %v6781 = vadd.f32 %v6636, %v6780
        %v6782 = vpop.f32.mrf.mxu0
        %6783 = vmatprep.mubr.f32.mxu0 %v6206
        %6784 = vmatmul.mubr.f32.gmra.mxu0 %v6174
        %v6785 = vpop.f32.mrf.mxu0
        %v6786 = vadd.f32 %v6641, %v6785
        %v6787 = vpop.f32.mrf.mxu0
        %6788 = vmatprep.mubr.f32.mxu0 %v6207
        %6789 = vmatmul.mubr.f32.gmra.mxu0 %v6175
        %v6790 = vpop.f32.mrf.mxu0
        %v6791 = vadd.f32 %v6646, %v6790
        %v6792 = vpop.f32.mrf.mxu0
        %6793 = vdwg.mxu0
        %6794 = vmatprep.subr.mxu0 0.0
        %6795 = vmatpush1.msra.mxu0 %v6351
        %6796 = vmatprep.subr.mxu0 0.0
        %6797 = vmatpush1.msra.mxu0 %v6350
        %6798 = vmatprep.subr.mxu0 0.0
        %6799 = vmatpush1.msra.mxu0 %v6349
        %6800 = vmatprep.subr.mxu0 0.0
        %6801 = vmatpush1.msra.mxu0 %v6348
        %6802 = vmatprep.subr.mxu0 0.0
        %6803 = vmatpush1.msra.mxu0 %v6347
        %6804 = vmatprep.subr.mxu0 0.0
        %6805 = vmatpush1.msra.mxu0 %v6346
        %6806 = vmatprep.subr.mxu0 0.0
        %6807 = vmatpush1.msra.mxu0 %v6345
        %6808 = vmatprep.subr.mxu0 0.0
        %6809 = vmatpush1.msra.mxu0 %v6344
        %6810 = vmatprep.subr.mxu0 0.0
        %6811 = vmatpush1.msra.mxu0 %v6343
        %6812 = vmatprep.subr.mxu0 0.0
        %6813 = vmatpush1.msra.mxu0 %v6342
        %6814 = vmatprep.subr.mxu0 0.0
        %6815 = vmatpush1.msra.mxu0 %v6341
        %6816 = vmatprep.subr.mxu0 0.0
        %6817 = vmatpush1.msra.mxu0 %v6340
        %6818 = vmatprep.subr.mxu0 0.0
        %6819 = vmatpush1.msra.mxu0 %v6339
        %6820 = vmatprep.subr.mxu0 0.0
        %6821 = vmatpush1.msra.mxu0 %v6338
        %6822 = vmatprep.subr.mxu0 0.0
        %6823 = vmatpush1.msra.mxu0 %v6337
        %6824 = vmatprep.subr.mxu0 0.0
        %6825 = vmatpush1.msra.mxu0 %v6336
        %6826 = vmatprep.subr.mxu0 0.0
        %6827 = vmatpush2.msra.mxu0 0.0
        %6828 = vmatprep.subr.mxu0 0.0
        %6829 = vmatpush2.msra.mxu0 0.0
        %6830 = vmatprep.subr.mxu0 0.0
        %6831 = vmatpush2.msra.mxu0 0.0
        %6832 = vmatprep.subr.mxu0 0.0
        %6833 = vmatpush2.msra.mxu0 0.0
        %6834 = vmatprep.subr.mxu0 0.0
        %6835 = vmatpush2.msra.mxu0 0.0
        %6836 = vmatprep.subr.mxu0 0.0
        %6837 = vmatpush2.msra.mxu0 0.0
        %6838 = vmatprep.subr.mxu0 0.0
        %6839 = vmatpush2.msra.mxu0 0.0
        %6840 = vmatprep.subr.mxu0 0.0
        %6841 = vmatpush2.msra.mxu0 0.0
        %6842 = vmatprep.subr.mxu0 0.0
        %6843 = vmatpush2.msra.mxu0 0.0
        %6844 = vmatprep.subr.mxu0 0.0
        %6845 = vmatpush2.msra.mxu0 0.0
        %6846 = vmatprep.subr.mxu0 0.0
        %6847 = vmatpush2.msra.mxu0 0.0
        %6848 = vmatprep.subr.mxu0 0.0
        %6849 = vmatpush2.msra.mxu0 0.0
        %6850 = vmatprep.subr.mxu0 0.0
        %6851 = vmatpush2.msra.mxu0 0.0
        %6852 = vmatprep.subr.mxu0 0.0
        %6853 = vmatpush2.msra.mxu0 0.0
        %6854 = vmatprep.subr.mxu0 0.0
        %6855 = vmatpush2.msra.mxu0 0.0
        %6856 = vmatprep.subr.mxu0 0.0
        %6857 = vmatpush2.msra.mxu0 0.0
        %6858 = vmatprep.mubr.f32.mxu0 0.0
        %6859 = vmatmul.mubr.f32.gmra.mxu0 %v6224
        %v6860 = vpop.f32.mrf.mxu0
        %v6861 = vadd.f32 %v6716, %v6860
        %v6862 = vpop.f32.mrf.mxu0
        %6863 = vmatprep.mubr.f32.mxu0 0.0
        %6864 = vmatmul.mubr.f32.gmra.mxu0 %v6225
        %v6865 = vpop.f32.mrf.mxu0
        %v6866 = vadd.f32 %v6721, %v6865
        %v6867 = vpop.f32.mrf.mxu0
        %6868 = vmatprep.mubr.f32.mxu0 0.0
        %6869 = vmatmul.mubr.f32.gmra.mxu0 %v6226
        %v6870 = vpop.f32.mrf.mxu0
        %v6871 = vadd.f32 %v6726, %v6870
        %v6872 = vpop.f32.mrf.mxu0
        %6873 = vmatprep.mubr.f32.mxu0 0.0
        %6874 = vmatmul.mubr.f32.gmra.mxu0 %v6227
        %v6875 = vpop.f32.mrf.mxu0
        %v6876 = vadd.f32 %v6731, %v6875
        %v6877 = vpop.f32.mrf.mxu0
        %6878 = vmatprep.mubr.f32.mxu0 0.0
        %6879 = vmatmul.mubr.f32.gmra.mxu0 %v6228
        %v6880 = vpop.f32.mrf.mxu0
        %v6881 = vadd.f32 %v6736, %v6880
        %v6882 = vpop.f32.mrf.mxu0
        %6883 = vmatprep.mubr.f32.mxu0 0.0
        %6884 = vmatmul.mubr.f32.gmra.mxu0 %v6229
        %v6885 = vpop.f32.mrf.mxu0
        %v6886 = vadd.f32 %v6741, %v6885
        %v6887 = vpop.f32.mrf.mxu0
        %6888 = vmatprep.mubr.f32.mxu0 0.0
        %6889 = vmatmul.mubr.f32.gmra.mxu0 %v6230
        %v6890 = vpop.f32.mrf.mxu0
        %v6891 = vadd.f32 %v6746, %v6890
        %v6892 = vpop.f32.mrf.mxu0
        %6893 = vmatprep.mubr.f32.mxu0 0.0
        %6894 = vmatmul.mubr.f32.gmra.mxu0 %v6231
        %v6895 = vpop.f32.mrf.mxu0
        %v6896 = vadd.f32 %v6751, %v6895
        %v6897 = vpop.f32.mrf.mxu0
        %6898 = vmatprep.mubr.f32.mxu0 0.0
        %6899 = vmatmul.mubr.f32.gmra.mxu0 %v6232
        %v6900 = vpop.f32.mrf.mxu0
        %v6901 = vadd.f32 %v6756, %v6900
        %v6902 = vpop.f32.mrf.mxu0
        %6903 = vmatprep.mubr.f32.mxu0 0.0
        %6904 = vmatmul.mubr.f32.gmra.mxu0 %v6233
        %v6905 = vpop.f32.mrf.mxu0
        %v6906 = vadd.f32 %v6761, %v6905
        %v6907 = vpop.f32.mrf.mxu0
        %6908 = vmatprep.mubr.f32.mxu0 0.0
        %6909 = vmatmul.mubr.f32.gmra.mxu0 %v6234
        %v6910 = vpop.f32.mrf.mxu0
        %v6911 = vadd.f32 %v6766, %v6910
        %v6912 = vpop.f32.mrf.mxu0
        %6913 = vmatprep.mubr.f32.mxu0 0.0
        %6914 = vmatmul.mubr.f32.gmra.mxu0 %v6235
        %v6915 = vpop.f32.mrf.mxu0
        %v6916 = vadd.f32 %v6771, %v6915
        %v6917 = vpop.f32.mrf.mxu0
        %6918 = vmatprep.mubr.f32.mxu0 0.0
        %6919 = vmatmul.mubr.f32.gmra.mxu0 %v6236
        %v6920 = vpop.f32.mrf.mxu0
        %v6921 = vadd.f32 %v6776, %v6920
        %v6922 = vpop.f32.mrf.mxu0
        %6923 = vmatprep.mubr.f32.mxu0 0.0
        %6924 = vmatmul.mubr.f32.gmra.mxu0 %v6237
        %v6925 = vpop.f32.mrf.mxu0
        %v6926 = vadd.f32 %v6781, %v6925
        %v6927 = vpop.f32.mrf.mxu0
        %6928 = vmatprep.mubr.f32.mxu0 0.0
        %6929 = vmatmul.mubr.f32.gmra.mxu0 %v6238
        %v6930 = vpop.f32.mrf.mxu0
        %v6931 = vadd.f32 %v6786, %v6930
        %v6932 = vpop.f32.mrf.mxu0
        %6933 = vmatprep.mubr.f32.mxu0 0.0
        %6934 = vmatmul.mubr.f32.gmra.mxu0 %v6239
        %v6935 = vpop.f32.mrf.mxu0
        %v6936 = vadd.f32 %v6791, %v6935
        %v6937 = vpop.f32.mrf.mxu0
        %6938 = vdwg.mxu0
        %v6939 = vmax.f32 %v6861, 0.0
        %v6940 = vmax.f32 %v6866, 0.0
        %v6941 = vmax.f32 %v6871, 0.0
        %v6942 = vmax.f32 %v6876, 0.0
        %v6943 = vmax.f32 %v6881, 0.0
        %v6944 = vmax.f32 %v6886, 0.0
        %v6945 = vmax.f32 %v6891, 0.0
        %v6946 = vmax.f32 %v6896, 0.0
        %v6947 = vmax.f32 %v6901, 0.0
        %v6948 = vmax.f32 %v6906, 0.0
        %v6949 = vmax.f32 %v6911, 0.0
        %v6950 = vmax.f32 %v6916, 0.0
        %v6951 = vmax.f32 %v6921, 0.0
        %v6952 = vmax.f32 %v6926, 0.0
        %v6953 = vmax.f32 %v6931, 0.0
        %v6954 = vmax.f32 %v6936, 0.0
        %6955 = vst [vmem:[#allocation2 + $0x3] sm:$0xff] %v6939
        %6956 = vst [vmem:[#allocation2 + $0xb] sm:$0xff] %v6940
        %6957 = vst [vmem:[#allocation2 + $0x13] sm:$0xff] %v6941
        %6958 = vst [vmem:[#allocation2 + $0x1b] sm:$0xff] %v6942
        %6959 = vst [vmem:[#allocation2 + $0x23] sm:$0xff] %v6943
        %6960 = vst [vmem:[#allocation2 + $0x2b] sm:$0xff] %v6944
        %6961 = vst [vmem:[#allocation2 + $0x33] sm:$0xff] %v6945
        %6962 = vst [vmem:[#allocation2 + $0x3b] sm:$0xff] %v6946
        %6963 = vst [vmem:[#allocation2 + $0x43] sm:$0xff] %v6947
        %6964 = vst [vmem:[#allocation2 + $0x4b] sm:$0xff] %v6948
        %6965 = vst [vmem:[#allocation2 + $0x53] sm:$0xff] %v6949
        %6966 = vst [vmem:[#allocation2 + $0x5b] sm:$0xff] %v6950
        %6967 = vst [vmem:[#allocation2 + $0x63] sm:$0xff] %v6951
        %6968 = vst [vmem:[#allocation2 + $0x6b] sm:$0xff] %v6952
        %6969 = vst [vmem:[#allocation2 + $0x73] sm:$0xff] %v6953
        %6970 = vst [vmem:[#allocation2 + $0x7b] sm:$0xff] %v6954
        %v6971 = vld [vmem:[#allocation2 + $0x1] sm:$0xff]
        %v6972 = vld [vmem:[#allocation2 + $0x9] sm:$0xff]
        %v6973 = vld [vmem:[#allocation2 + $0x11] sm:$0xff]
        %v6974 = vld [vmem:[#allocation2 + $0x19] sm:$0xff]
        %v6975 = vld [vmem:[#allocation2 + $0x21] sm:$0xff]
        %v6976 = vld [vmem:[#allocation2 + $0x29] sm:$0xff]
        %v6977 = vld [vmem:[#allocation2 + $0x31] sm:$0xff]
        %v6978 = vld [vmem:[#allocation2 + $0x39] sm:$0xff]
        %v6979 = vld [vmem:[#allocation2 + $0x41] sm:$0xff]
        %v6980 = vld [vmem:[#allocation2 + $0x49] sm:$0xff]
        %v6981 = vld [vmem:[#allocation2 + $0x51] sm:$0xff]
        %v6982 = vld [vmem:[#allocation2 + $0x59] sm:$0xff]
        %v6983 = vld [vmem:[#allocation2 + $0x61] sm:$0xff]
        %v6984 = vld [vmem:[#allocation2 + $0x69] sm:$0xff]
        %v6985 = vld [vmem:[#allocation2 + $0x71] sm:$0xff]
        %v6986 = vld [vmem:[#allocation2 + $0x79] sm:$0xff]
        %v6987 = vsel %vm1384, %v6971, 0.0
        %v6988 = vsel %vm1385, %v6972, 0.0
        %v6989 = vsel %vm1386, %v6973, 0.0
        %v6990 = vsel %vm1387, %v6974, 0.0
        %v6991 = vsel %vm1388, %v6975, 0.0
        %v6992 = vsel %vm1389, %v6976, 0.0
        %v6993 = vsel %vm1390, %v6977, 0.0
        %v6994 = vsel %vm1391, %v6978, 0.0
        %v6995 = vsel %vm1392, %v6979, 0.0
        %v6996 = vsel %vm1393, %v6980, 0.0
        %v6997 = vsel %vm1394, %v6981, 0.0
        %v6998 = vsel %vm1395, %v6982, 0.0
        %v6999 = vsel %vm1396, %v6983, 0.0
        %v7000 = vsel %vm1397, %v6984, 0.0
        %v7001 = vsel %vm1398, %v6985, 0.0
        %v7002 = vsel %vm1399, %v6986, 0.0
        %v7003 = vld [vmem:[#allocation2 + $0x2] sm:$0xff]
        %v7004 = vld [vmem:[#allocation2 + $0xa] sm:$0xff]
        %v7005 = vld [vmem:[#allocation2 + $0x12] sm:$0xff]
        %v7006 = vld [vmem:[#allocation2 + $0x1a] sm:$0xff]
        %v7007 = vld [vmem:[#allocation2 + $0x22] sm:$0xff]
        %v7008 = vld [vmem:[#allocation2 + $0x2a] sm:$0xff]
        %v7009 = vld [vmem:[#allocation2 + $0x32] sm:$0xff]
        %v7010 = vld [vmem:[#allocation2 + $0x3a] sm:$0xff]
        %v7011 = vld [vmem:[#allocation2 + $0x42] sm:$0xff]
        %v7012 = vld [vmem:[#allocation2 + $0x4a] sm:$0xff]
        %v7013 = vld [vmem:[#allocation2 + $0x52] sm:$0xff]
        %v7014 = vld [vmem:[#allocation2 + $0x5a] sm:$0xff]
        %v7015 = vld [vmem:[#allocation2 + $0x62] sm:$0xff]
        %v7016 = vld [vmem:[#allocation2 + $0x6a] sm:$0xff]
        %v7017 = vld [vmem:[#allocation2 + $0x72] sm:$0xff]
        %v7018 = vld [vmem:[#allocation2 + $0x7a] sm:$0xff]
        %v7019 = vsel %vm1448, %v7003, 0.0
        %v7020 = vsel %vm1449, %v7004, 0.0
        %v7021 = vsel %vm1450, %v7005, 0.0
        %v7022 = vsel %vm1451, %v7006, 0.0
        %v7023 = vsel %vm1452, %v7007, 0.0
        %v7024 = vsel %vm1453, %v7008, 0.0
        %v7025 = vsel %vm1454, %v7009, 0.0
        %v7026 = vsel %vm1455, %v7010, 0.0
        %v7027 = vsel %vm1456, %v7011, 0.0
        %v7028 = vsel %vm1457, %v7012, 0.0
        %v7029 = vsel %vm1458, %v7013, 0.0
        %v7030 = vsel %vm1459, %v7014, 0.0
        %v7031 = vsel %vm1460, %v7015, 0.0
        %v7032 = vsel %vm1461, %v7016, 0.0
        %v7033 = vsel %vm1462, %v7017, 0.0
        %v7034 = vsel %vm1463, %v7018, 0.0
        %v7035 = vld [vmem:[#allocation2 + $0x3] sm:$0xff]
        %v7036 = vld [vmem:[#allocation2 + $0xb] sm:$0xff]
        %v7037 = vld [vmem:[#allocation2 + $0x13] sm:$0xff]
        %v7038 = vld [vmem:[#allocation2 + $0x1b] sm:$0xff]
        %v7039 = vld [vmem:[#allocation2 + $0x23] sm:$0xff]
        %v7040 = vld [vmem:[#allocation2 + $0x2b] sm:$0xff]
        %v7041 = vld [vmem:[#allocation2 + $0x33] sm:$0xff]
        %v7042 = vld [vmem:[#allocation2 + $0x3b] sm:$0xff]
        %v7043 = vld [vmem:[#allocation2 + $0x43] sm:$0xff]
        %v7044 = vld [vmem:[#allocation2 + $0x4b] sm:$0xff]
        %v7045 = vld [vmem:[#allocation2 + $0x53] sm:$0xff]
        %v7046 = vld [vmem:[#allocation2 + $0x5b] sm:$0xff]
        %v7047 = vld [vmem:[#allocation2 + $0x63] sm:$0xff]
        %v7048 = vld [vmem:[#allocation2 + $0x6b] sm:$0xff]
        %v7049 = vld [vmem:[#allocation2 + $0x73] sm:$0xff]
        %v7050 = vld [vmem:[#allocation2 + $0x7b] sm:$0xff]
        %v7051 = vld [vmem:[#allocation2 + $0x4] sm:$0xff]
        %v7052 = vld [vmem:[#allocation2 + $0xc] sm:$0xff]
        %v7053 = vld [vmem:[#allocation2 + $0x14] sm:$0xff]
        %v7054 = vld [vmem:[#allocation2 + $0x1c] sm:$0xff]
        %v7055 = vld [vmem:[#allocation2 + $0x24] sm:$0xff]
        %v7056 = vld [vmem:[#allocation2 + $0x2c] sm:$0xff]
        %v7057 = vld [vmem:[#allocation2 + $0x34] sm:$0xff]
        %v7058 = vld [vmem:[#allocation2 + $0x3c] sm:$0xff]
        %v7059 = vld [vmem:[#allocation2 + $0x44] sm:$0xff]
        %v7060 = vld [vmem:[#allocation2 + $0x4c] sm:$0xff]
        %v7061 = vld [vmem:[#allocation2 + $0x54] sm:$0xff]
        %v7062 = vld [vmem:[#allocation2 + $0x5c] sm:$0xff]
        %v7063 = vld [vmem:[#allocation2 + $0x64] sm:$0xff]
        %v7064 = vld [vmem:[#allocation2 + $0x6c] sm:$0xff]
        %v7065 = vld [vmem:[#allocation2 + $0x74] sm:$0xff]
        %v7066 = vld [vmem:[#allocation2 + $0x7c] sm:$0xff]
        %v7067 = vsel %vm1528, %v7051, 0.0
        %v7068 = vsel %vm1529, %v7052, 0.0
        %v7069 = vsel %vm1530, %v7053, 0.0
        %v7070 = vsel %vm1531, %v7054, 0.0
        %v7071 = vsel %vm1532, %v7055, 0.0
        %v7072 = vsel %vm1533, %v7056, 0.0
        %v7073 = vsel %vm1534, %v7057, 0.0
        %v7074 = vsel %vm1535, %v7058, 0.0
        %v7075 = vsel %vm1536, %v7059, 0.0
        %v7076 = vsel %vm1537, %v7060, 0.0
        %v7077 = vsel %vm1538, %v7061, 0.0
        %v7078 = vsel %vm1539, %v7062, 0.0
        %v7079 = vsel %vm1540, %v7063, 0.0
        %v7080 = vsel %vm1541, %v7064, 0.0
        %v7081 = vsel %vm1542, %v7065, 0.0
        %v7082 = vsel %vm1543, %v7066, 0.0
        %v7083 = vld [vmem:[#allocation2 + $0x5] sm:$0xff]
        %v7084 = vld [vmem:[#allocation2 + $0xd] sm:$0xff]
        %v7085 = vld [vmem:[#allocation2 + $0x15] sm:$0xff]
        %v7086 = vld [vmem:[#allocation2 + $0x1d] sm:$0xff]
        %v7087 = vld [vmem:[#allocation2 + $0x25] sm:$0xff]
        %v7088 = vld [vmem:[#allocation2 + $0x2d] sm:$0xff]
        %v7089 = vld [vmem:[#allocation2 + $0x35] sm:$0xff]
        %v7090 = vld [vmem:[#allocation2 + $0x3d] sm:$0xff]
        %v7091 = vld [vmem:[#allocation2 + $0x45] sm:$0xff]
        %v7092 = vld [vmem:[#allocation2 + $0x4d] sm:$0xff]
        %v7093 = vld [vmem:[#allocation2 + $0x55] sm:$0xff]
        %v7094 = vld [vmem:[#allocation2 + $0x5d] sm:$0xff]
        %v7095 = vld [vmem:[#allocation2 + $0x65] sm:$0xff]
        %v7096 = vld [vmem:[#allocation2 + $0x6d] sm:$0xff]
        %v7097 = vld [vmem:[#allocation2 + $0x75] sm:$0xff]
        %v7098 = vld [vmem:[#allocation2 + $0x7d] sm:$0xff]
        %v7099 = vsel %vm1592, %v7083, 0.0
        %v7100 = vsel %vm1593, %v7084, 0.0
        %v7101 = vsel %vm1594, %v7085, 0.0
        %v7102 = vsel %vm1595, %v7086, 0.0
        %v7103 = vsel %vm1596, %v7087, 0.0
        %v7104 = vsel %vm1597, %v7088, 0.0
        %v7105 = vsel %vm1598, %v7089, 0.0
        %v7106 = vsel %vm1599, %v7090, 0.0
        %v7107 = vsel %vm1600, %v7091, 0.0
        %v7108 = vsel %vm1601, %v7092, 0.0
        %v7109 = vsel %vm1602, %v7093, 0.0
        %v7110 = vsel %vm1603, %v7094, 0.0
        %v7111 = vsel %vm1604, %v7095, 0.0
        %v7112 = vsel %vm1605, %v7096, 0.0
        %v7113 = vsel %vm1606, %v7097, 0.0
        %v7114 = vsel %vm1607, %v7098, 0.0
        %v7115 = vld [vmem:[#allocation8] sm:$0xff]
        %v7116 = vld [vmem:[#allocation8 + $0x8] sm:$0xff]
        %v7117 = vld [vmem:[#allocation8 + $0x10] sm:$0xff]
        %v7118 = vld [vmem:[#allocation8 + $0x18] sm:$0xff]
        %v7119 = vld [vmem:[#allocation8 + $0x20] sm:$0xff]
        %v7120 = vld [vmem:[#allocation8 + $0x28] sm:$0xff]
        %v7121 = vld [vmem:[#allocation8 + $0x30] sm:$0xff]
        %v7122 = vld [vmem:[#allocation8 + $0x38] sm:$0xff]
        %v7123 = vld [vmem:[#allocation8 + $0x40] sm:$0xff]
        %v7124 = vld [vmem:[#allocation8 + $0x48] sm:$0xff]
        %v7125 = vld [vmem:[#allocation8 + $0x50] sm:$0xff]
        %v7126 = vld [vmem:[#allocation8 + $0x58] sm:$0xff]
        %v7127 = vld [vmem:[#allocation8 + $0x60] sm:$0xff]
        %v7128 = vld [vmem:[#allocation8 + $0x68] sm:$0xff]
        %v7129 = vld [vmem:[#allocation8 + $0x70] sm:$0xff]
        %v7130 = vld [vmem:[#allocation8 + $0x78] sm:$0xff]
        %v7131 = vld [vmem:[#allocation8 + $0x80] sm:$0xff]
        %v7132 = vld [vmem:[#allocation8 + $0x88] sm:$0xff]
        %v7133 = vld [vmem:[#allocation8 + $0x90] sm:$0xff]
        %v7134 = vld [vmem:[#allocation8 + $0x98] sm:$0xff]
        %v7135 = vld [vmem:[#allocation8 + $0xa0] sm:$0xff]
        %v7136 = vld [vmem:[#allocation8 + $0xa8] sm:$0xff]
        %v7137 = vld [vmem:[#allocation8 + $0xb0] sm:$0xff]
        %v7138 = vld [vmem:[#allocation8 + $0xb8] sm:$0xff]
        %v7139 = vld [vmem:[#allocation8 + $0xc0] sm:$0xff]
        %v7140 = vld [vmem:[#allocation8 + $0xc8] sm:$0xff]
        %v7141 = vld [vmem:[#allocation8 + $0xd0] sm:$0xff]
        %v7142 = vld [vmem:[#allocation8 + $0xd8] sm:$0xff]
        %v7143 = vld [vmem:[#allocation8 + $0xe0] sm:$0xff]
        %v7144 = vld [vmem:[#allocation8 + $0xe8] sm:$0xff]
        %v7145 = vld [vmem:[#allocation8 + $0xf0] sm:$0xff]
        %v7146 = vld [vmem:[#allocation8 + $0xf8] sm:$0xff]
        %v7147 = vld [vmem:[#allocation8 + $0x100] sm:$0xff]
        %v7148 = vld [vmem:[#allocation8 + $0x108] sm:$0xff]
        %v7149 = vld [vmem:[#allocation8 + $0x110] sm:$0xff]
        %v7150 = vld [vmem:[#allocation8 + $0x118] sm:$0xff]
        %v7151 = vld [vmem:[#allocation8 + $0x120] sm:$0xff]
        %v7152 = vld [vmem:[#allocation8 + $0x128] sm:$0xff]
        %v7153 = vld [vmem:[#allocation8 + $0x130] sm:$0xff]
        %v7154 = vld [vmem:[#allocation8 + $0x138] sm:$0xff]
        %v7155 = vld [vmem:[#allocation8 + $0x140] sm:$0xff]
        %v7156 = vld [vmem:[#allocation8 + $0x148] sm:$0xff]
        %v7157 = vld [vmem:[#allocation8 + $0x150] sm:$0xff]
        %v7158 = vld [vmem:[#allocation8 + $0x158] sm:$0xff]
        %v7159 = vld [vmem:[#allocation8 + $0x160] sm:$0xff]
        %v7160 = vld [vmem:[#allocation8 + $0x168] sm:$0xff]
        %v7161 = vld [vmem:[#allocation8 + $0x170] sm:$0xff]
        %v7162 = vld [vmem:[#allocation8 + $0x178] sm:$0xff]
        %v7163 = vld [vmem:[#allocation8 + $0x180] sm:$0xff]
        %v7164 = vld [vmem:[#allocation8 + $0x188] sm:$0xff]
        %v7165 = vld [vmem:[#allocation8 + $0x190] sm:$0xff]
        %v7166 = vld [vmem:[#allocation8 + $0x198] sm:$0xff]
        %v7167 = vld [vmem:[#allocation8 + $0x1a0] sm:$0xff]
        %v7168 = vld [vmem:[#allocation8 + $0x1a8] sm:$0xff]
        %v7169 = vld [vmem:[#allocation8 + $0x1b0] sm:$0xff]
        %v7170 = vld [vmem:[#allocation8 + $0x1b8] sm:$0xff]
        %v7171 = vld [vmem:[#allocation8 + $0x1c0] sm:$0xff]
        %v7172 = vld [vmem:[#allocation8 + $0x1c8] sm:$0xff]
        %v7173 = vld [vmem:[#allocation8 + $0x1d0] sm:$0xff]
        %v7174 = vld [vmem:[#allocation8 + $0x1d8] sm:$0xff]
        %v7175 = vld [vmem:[#allocation8 + $0x1e0] sm:$0xff]
        %v7176 = vld [vmem:[#allocation8 + $0x1e8] sm:$0xff]
        %v7177 = vld [vmem:[#allocation8 + $0x1f0] sm:$0xff]
        %v7178 = vld [vmem:[#allocation8 + $0x1f8] sm:$0xff]
        %v7179 = vld [vmem:[#allocation8 + $0x200] sm:$0xff]
        %v7180 = vld [vmem:[#allocation8 + $0x208] sm:$0xff]
        %v7181 = vld [vmem:[#allocation8 + $0x210] sm:$0xff]
        %v7182 = vld [vmem:[#allocation8 + $0x218] sm:$0xff]
        %v7183 = vld [vmem:[#allocation8 + $0x220] sm:$0xff]
        %v7184 = vld [vmem:[#allocation8 + $0x228] sm:$0xff]
        %v7185 = vld [vmem:[#allocation8 + $0x230] sm:$0xff]
        %v7186 = vld [vmem:[#allocation8 + $0x238] sm:$0xff]
        %v7187 = vld [vmem:[#allocation8 + $0x240] sm:$0xff]
        %v7188 = vld [vmem:[#allocation8 + $0x248] sm:$0xff]
        %v7189 = vld [vmem:[#allocation8 + $0x250] sm:$0xff]
        %v7190 = vld [vmem:[#allocation8 + $0x258] sm:$0xff]
        %v7191 = vld [vmem:[#allocation8 + $0x260] sm:$0xff]
        %v7192 = vld [vmem:[#allocation8 + $0x268] sm:$0xff]
        %v7193 = vld [vmem:[#allocation8 + $0x270] sm:$0xff]
        %v7194 = vld [vmem:[#allocation8 + $0x278] sm:$0xff]
        %v7195 = vld [vmem:[%s20] sm:$0x1]
        %v7197 = vlaneseq
        %v7198 = vshrl.u32 %v7197, 7
        %v7199 = vsub.s32 0, %v7198
        %v7200 = vrot.slane %v7195, %v7199
        %7202 = vmatprep.subr.mxu0 0.0
        %7203 = vmatpush1.msra.mxu0 %v7130
        %7204 = vmatprep.subr.mxu0 0.0
        %7205 = vmatpush1.msra.mxu0 %v7129
        %7206 = vmatprep.subr.mxu0 0.0
        %7207 = vmatpush1.msra.mxu0 %v7128
        %7208 = vmatprep.subr.mxu0 0.0
        %7209 = vmatpush1.msra.mxu0 %v7127
        %7210 = vmatprep.subr.mxu0 0.0
        %7211 = vmatpush1.msra.mxu0 %v7126
        %7212 = vmatprep.subr.mxu0 0.0
        %7213 = vmatpush1.msra.mxu0 %v7125
        %7214 = vmatprep.subr.mxu0 0.0
        %7215 = vmatpush1.msra.mxu0 %v7124
        %7216 = vmatprep.subr.mxu0 0.0
        %7217 = vmatpush1.msra.mxu0 %v7123
        %7218 = vmatprep.subr.mxu0 0.0
        %7219 = vmatpush1.msra.mxu0 %v7122
        %7220 = vmatprep.subr.mxu0 0.0
        %7221 = vmatpush1.msra.mxu0 %v7121
        %7222 = vmatprep.subr.mxu0 0.0
        %7223 = vmatpush1.msra.mxu0 %v7120
        %7224 = vmatprep.subr.mxu0 0.0
        %7225 = vmatpush1.msra.mxu0 %v7119
        %7226 = vmatprep.subr.mxu0 0.0
        %7227 = vmatpush1.msra.mxu0 %v7118
        %7228 = vmatprep.subr.mxu0 0.0
        %7229 = vmatpush1.msra.mxu0 %v7117
        %7230 = vmatprep.subr.mxu0 0.0
        %7231 = vmatpush1.msra.mxu0 %v7116
        %7232 = vmatprep.subr.mxu0 0.0
        %7233 = vmatpush1.msra.mxu0 %v7115
        %7234 = vmatprep.subr.mxu0 0.0
        %7235 = vmatpush2.msra.mxu0 %v7146
        %7236 = vmatprep.subr.mxu0 0.0
        %7237 = vmatpush2.msra.mxu0 %v7145
        %7238 = vmatprep.subr.mxu0 0.0
        %7239 = vmatpush2.msra.mxu0 %v7144
        %7240 = vmatprep.subr.mxu0 0.0
        %7241 = vmatpush2.msra.mxu0 %v7143
        %7242 = vmatprep.subr.mxu0 0.0
        %7243 = vmatpush2.msra.mxu0 %v7142
        %7244 = vmatprep.subr.mxu0 0.0
        %7245 = vmatpush2.msra.mxu0 %v7141
        %7246 = vmatprep.subr.mxu0 0.0
        %7247 = vmatpush2.msra.mxu0 %v7140
        %7248 = vmatprep.subr.mxu0 0.0
        %7249 = vmatpush2.msra.mxu0 %v7139
        %7250 = vmatprep.subr.mxu0 0.0
        %7251 = vmatpush2.msra.mxu0 %v7138
        %7252 = vmatprep.subr.mxu0 0.0
        %7253 = vmatpush2.msra.mxu0 %v7137
        %7254 = vmatprep.subr.mxu0 0.0
        %7255 = vmatpush2.msra.mxu0 %v7136
        %7256 = vmatprep.subr.mxu0 0.0
        %7257 = vmatpush2.msra.mxu0 %v7135
        %7258 = vmatprep.subr.mxu0 0.0
        %7259 = vmatpush2.msra.mxu0 %v7134
        %7260 = vmatprep.subr.mxu0 0.0
        %7261 = vmatpush2.msra.mxu0 %v7133
        %7262 = vmatprep.subr.mxu0 0.0
        %7263 = vmatpush2.msra.mxu0 %v7132
        %7264 = vmatprep.subr.mxu0 0.0
        %7265 = vmatpush2.msra.mxu0 %v7131
        %7266 = vmatprep.mubr.f32.mxu0 %v7019
        %7267 = vmatmul.mubr.f32.gmra.mxu0 %v6987
        %v7268 = vpop.f32.mrf.mxu0
        %v7269 = vadd.f32 %v7200, %v7268
        %v7270 = vpop.f32.mrf.mxu0
        %7271 = vmatprep.mubr.f32.mxu0 %v7020
        %7272 = vmatmul.mubr.f32.gmra.mxu0 %v6988
        %v7273 = vpop.f32.mrf.mxu0
        %v7274 = vadd.f32 %v7200, %v7273
        %v7275 = vpop.f32.mrf.mxu0
        %7276 = vmatprep.mubr.f32.mxu0 %v7021
        %7277 = vmatmul.mubr.f32.gmra.mxu0 %v6989
        %v7278 = vpop.f32.mrf.mxu0
        %v7279 = vadd.f32 %v7200, %v7278
        %v7280 = vpop.f32.mrf.mxu0
        %7281 = vmatprep.mubr.f32.mxu0 %v7022
        %7282 = vmatmul.mubr.f32.gmra.mxu0 %v6990
        %v7283 = vpop.f32.mrf.mxu0
        %v7284 = vadd.f32 %v7200, %v7283
        %v7285 = vpop.f32.mrf.mxu0
        %7286 = vmatprep.mubr.f32.mxu0 %v7023
        %7287 = vmatmul.mubr.f32.gmra.mxu0 %v6991
        %v7288 = vpop.f32.mrf.mxu0
        %v7289 = vadd.f32 %v7200, %v7288
        %v7290 = vpop.f32.mrf.mxu0
        %7291 = vmatprep.mubr.f32.mxu0 %v7024
        %7292 = vmatmul.mubr.f32.gmra.mxu0 %v6992
        %v7293 = vpop.f32.mrf.mxu0
        %v7294 = vadd.f32 %v7200, %v7293
        %v7295 = vpop.f32.mrf.mxu0
        %7296 = vmatprep.mubr.f32.mxu0 %v7025
        %7297 = vmatmul.mubr.f32.gmra.mxu0 %v6993
        %v7298 = vpop.f32.mrf.mxu0
        %v7299 = vadd.f32 %v7200, %v7298
        %v7300 = vpop.f32.mrf.mxu0
        %7301 = vmatprep.mubr.f32.mxu0 %v7026
        %7302 = vmatmul.mubr.f32.gmra.mxu0 %v6994
        %v7303 = vpop.f32.mrf.mxu0
        %v7304 = vadd.f32 %v7200, %v7303
        %v7305 = vpop.f32.mrf.mxu0
        %7306 = vmatprep.mubr.f32.mxu0 %v7027
        %7307 = vmatmul.mubr.f32.gmra.mxu0 %v6995
        %v7308 = vpop.f32.mrf.mxu0
        %v7309 = vadd.f32 %v7200, %v7308
        %v7310 = vpop.f32.mrf.mxu0
        %7311 = vmatprep.mubr.f32.mxu0 %v7028
        %7312 = vmatmul.mubr.f32.gmra.mxu0 %v6996
        %v7313 = vpop.f32.mrf.mxu0
        %v7314 = vadd.f32 %v7200, %v7313
        %v7315 = vpop.f32.mrf.mxu0
        %7316 = vmatprep.mubr.f32.mxu0 %v7029
        %7317 = vmatmul.mubr.f32.gmra.mxu0 %v6997
        %v7318 = vpop.f32.mrf.mxu0
        %v7319 = vadd.f32 %v7200, %v7318
        %v7320 = vpop.f32.mrf.mxu0
        %7321 = vmatprep.mubr.f32.mxu0 %v7030
        %7322 = vmatmul.mubr.f32.gmra.mxu0 %v6998
        %v7323 = vpop.f32.mrf.mxu0
        %v7324 = vadd.f32 %v7200, %v7323
        %v7325 = vpop.f32.mrf.mxu0
        %7326 = vmatprep.mubr.f32.mxu0 %v7031
        %7327 = vmatmul.mubr.f32.gmra.mxu0 %v6999
        %v7328 = vpop.f32.mrf.mxu0
        %v7329 = vadd.f32 %v7200, %v7328
        %v7330 = vpop.f32.mrf.mxu0
        %7331 = vmatprep.mubr.f32.mxu0 %v7032
        %7332 = vmatmul.mubr.f32.gmra.mxu0 %v7000
        %v7333 = vpop.f32.mrf.mxu0
        %v7334 = vadd.f32 %v7200, %v7333
        %v7335 = vpop.f32.mrf.mxu0
        %7336 = vmatprep.mubr.f32.mxu0 %v7033
        %7337 = vmatmul.mubr.f32.gmra.mxu0 %v7001
        %v7338 = vpop.f32.mrf.mxu0
        %v7339 = vadd.f32 %v7200, %v7338
        %v7340 = vpop.f32.mrf.mxu0
        %7341 = vmatprep.mubr.f32.mxu0 %v7034
        %7342 = vmatmul.mubr.f32.gmra.mxu0 %v7002
        %v7343 = vpop.f32.mrf.mxu0
        %v7344 = vadd.f32 %v7200, %v7343
        %v7345 = vpop.f32.mrf.mxu0
        %7346 = vdwg.mxu0
        %7347 = vmatprep.subr.mxu0 0.0
        %7348 = vmatpush1.msra.mxu0 %v7162
        %7349 = vmatprep.subr.mxu0 0.0
        %7350 = vmatpush1.msra.mxu0 %v7161
        %7351 = vmatprep.subr.mxu0 0.0
        %7352 = vmatpush1.msra.mxu0 %v7160
        %7353 = vmatprep.subr.mxu0 0.0
        %7354 = vmatpush1.msra.mxu0 %v7159
        %7355 = vmatprep.subr.mxu0 0.0
        %7356 = vmatpush1.msra.mxu0 %v7158
        %7357 = vmatprep.subr.mxu0 0.0
        %7358 = vmatpush1.msra.mxu0 %v7157
        %7359 = vmatprep.subr.mxu0 0.0
        %7360 = vmatpush1.msra.mxu0 %v7156
        %7361 = vmatprep.subr.mxu0 0.0
        %7362 = vmatpush1.msra.mxu0 %v7155
        %7363 = vmatprep.subr.mxu0 0.0
        %7364 = vmatpush1.msra.mxu0 %v7154
        %7365 = vmatprep.subr.mxu0 0.0
        %7366 = vmatpush1.msra.mxu0 %v7153
        %7367 = vmatprep.subr.mxu0 0.0
        %7368 = vmatpush1.msra.mxu0 %v7152
        %7369 = vmatprep.subr.mxu0 0.0
        %7370 = vmatpush1.msra.mxu0 %v7151
        %7371 = vmatprep.subr.mxu0 0.0
        %7372 = vmatpush1.msra.mxu0 %v7150
        %7373 = vmatprep.subr.mxu0 0.0
        %7374 = vmatpush1.msra.mxu0 %v7149
        %7375 = vmatprep.subr.mxu0 0.0
        %7376 = vmatpush1.msra.mxu0 %v7148
        %7377 = vmatprep.subr.mxu0 0.0
        %7378 = vmatpush1.msra.mxu0 %v7147
        %7379 = vmatprep.subr.mxu0 0.0
        %7380 = vmatpush2.msra.mxu0 %v7178
        %7381 = vmatprep.subr.mxu0 0.0
        %7382 = vmatpush2.msra.mxu0 %v7177
        %7383 = vmatprep.subr.mxu0 0.0
        %7384 = vmatpush2.msra.mxu0 %v7176
        %7385 = vmatprep.subr.mxu0 0.0
        %7386 = vmatpush2.msra.mxu0 %v7175
        %7387 = vmatprep.subr.mxu0 0.0
        %7388 = vmatpush2.msra.mxu0 %v7174
        %7389 = vmatprep.subr.mxu0 0.0
        %7390 = vmatpush2.msra.mxu0 %v7173
        %7391 = vmatprep.subr.mxu0 0.0
        %7392 = vmatpush2.msra.mxu0 %v7172
        %7393 = vmatprep.subr.mxu0 0.0
        %7394 = vmatpush2.msra.mxu0 %v7171
        %7395 = vmatprep.subr.mxu0 0.0
        %7396 = vmatpush2.msra.mxu0 %v7170
        %7397 = vmatprep.subr.mxu0 0.0
        %7398 = vmatpush2.msra.mxu0 %v7169
        %7399 = vmatprep.subr.mxu0 0.0
        %7400 = vmatpush2.msra.mxu0 %v7168
        %7401 = vmatprep.subr.mxu0 0.0
        %7402 = vmatpush2.msra.mxu0 %v7167
        %7403 = vmatprep.subr.mxu0 0.0
        %7404 = vmatpush2.msra.mxu0 %v7166
        %7405 = vmatprep.subr.mxu0 0.0
        %7406 = vmatpush2.msra.mxu0 %v7165
        %7407 = vmatprep.subr.mxu0 0.0
        %7408 = vmatpush2.msra.mxu0 %v7164
        %7409 = vmatprep.subr.mxu0 0.0
        %7410 = vmatpush2.msra.mxu0 %v7163
        %7411 = vmatprep.mubr.f32.mxu0 %v7067
        %7412 = vmatmul.mubr.f32.gmra.mxu0 %v7035
        %v7413 = vpop.f32.mrf.mxu0
        %v7414 = vadd.f32 %v7269, %v7413
        %v7415 = vpop.f32.mrf.mxu0
        %7416 = vmatprep.mubr.f32.mxu0 %v7068
        %7417 = vmatmul.mubr.f32.gmra.mxu0 %v7036
        %v7418 = vpop.f32.mrf.mxu0
        %v7419 = vadd.f32 %v7274, %v7418
        %v7420 = vpop.f32.mrf.mxu0
        %7421 = vmatprep.mubr.f32.mxu0 %v7069
        %7422 = vmatmul.mubr.f32.gmra.mxu0 %v7037
        %v7423 = vpop.f32.mrf.mxu0
        %v7424 = vadd.f32 %v7279, %v7423
        %v7425 = vpop.f32.mrf.mxu0
        %7426 = vmatprep.mubr.f32.mxu0 %v7070
        %7427 = vmatmul.mubr.f32.gmra.mxu0 %v7038
        %v7428 = vpop.f32.mrf.mxu0
        %v7429 = vadd.f32 %v7284, %v7428
        %v7430 = vpop.f32.mrf.mxu0
        %7431 = vmatprep.mubr.f32.mxu0 %v7071
        %7432 = vmatmul.mubr.f32.gmra.mxu0 %v7039
        %v7433 = vpop.f32.mrf.mxu0
        %v7434 = vadd.f32 %v7289, %v7433
        %v7435 = vpop.f32.mrf.mxu0
        %7436 = vmatprep.mubr.f32.mxu0 %v7072
        %7437 = vmatmul.mubr.f32.gmra.mxu0 %v7040
        %v7438 = vpop.f32.mrf.mxu0
        %v7439 = vadd.f32 %v7294, %v7438
        %v7440 = vpop.f32.mrf.mxu0
        %7441 = vmatprep.mubr.f32.mxu0 %v7073
        %7442 = vmatmul.mubr.f32.gmra.mxu0 %v7041
        %v7443 = vpop.f32.mrf.mxu0
        %v7444 = vadd.f32 %v7299, %v7443
        %v7445 = vpop.f32.mrf.mxu0
        %7446 = vmatprep.mubr.f32.mxu0 %v7074
        %7447 = vmatmul.mubr.f32.gmra.mxu0 %v7042
        %v7448 = vpop.f32.mrf.mxu0
        %v7449 = vadd.f32 %v7304, %v7448
        %v7450 = vpop.f32.mrf.mxu0
        %7451 = vmatprep.mubr.f32.mxu0 %v7075
        %7452 = vmatmul.mubr.f32.gmra.mxu0 %v7043
        %v7453 = vpop.f32.mrf.mxu0
        %v7454 = vadd.f32 %v7309, %v7453
        %v7455 = vpop.f32.mrf.mxu0
        %7456 = vmatprep.mubr.f32.mxu0 %v7076
        %7457 = vmatmul.mubr.f32.gmra.mxu0 %v7044
        %v7458 = vpop.f32.mrf.mxu0
        %v7459 = vadd.f32 %v7314, %v7458
        %v7460 = vpop.f32.mrf.mxu0
        %7461 = vmatprep.mubr.f32.mxu0 %v7077
        %7462 = vmatmul.mubr.f32.gmra.mxu0 %v7045
        %v7463 = vpop.f32.mrf.mxu0
        %v7464 = vadd.f32 %v7319, %v7463
        %v7465 = vpop.f32.mrf.mxu0
        %7466 = vmatprep.mubr.f32.mxu0 %v7078
        %7467 = vmatmul.mubr.f32.gmra.mxu0 %v7046
        %v7468 = vpop.f32.mrf.mxu0
        %v7469 = vadd.f32 %v7324, %v7468
        %v7470 = vpop.f32.mrf.mxu0
        %7471 = vmatprep.mubr.f32.mxu0 %v7079
        %7472 = vmatmul.mubr.f32.gmra.mxu0 %v7047
        %v7473 = vpop.f32.mrf.mxu0
        %v7474 = vadd.f32 %v7329, %v7473
        %v7475 = vpop.f32.mrf.mxu0
        %7476 = vmatprep.mubr.f32.mxu0 %v7080
        %7477 = vmatmul.mubr.f32.gmra.mxu0 %v7048
        %v7478 = vpop.f32.mrf.mxu0
        %v7479 = vadd.f32 %v7334, %v7478
        %v7480 = vpop.f32.mrf.mxu0
        %7481 = vmatprep.mubr.f32.mxu0 %v7081
        %7482 = vmatmul.mubr.f32.gmra.mxu0 %v7049
        %v7483 = vpop.f32.mrf.mxu0
        %v7484 = vadd.f32 %v7339, %v7483
        %v7485 = vpop.f32.mrf.mxu0
        %7486 = vmatprep.mubr.f32.mxu0 %v7082
        %7487 = vmatmul.mubr.f32.gmra.mxu0 %v7050
        %v7488 = vpop.f32.mrf.mxu0
        %v7489 = vadd.f32 %v7344, %v7488
        %v7490 = vpop.f32.mrf.mxu0
        %7491 = vdwg.mxu0
        %7492 = vmatprep.subr.mxu0 0.0
        %7493 = vmatpush1.msra.mxu0 %v7194
        %7494 = vmatprep.subr.mxu0 0.0
        %7495 = vmatpush1.msra.mxu0 %v7193
        %7496 = vmatprep.subr.mxu0 0.0
        %7497 = vmatpush1.msra.mxu0 %v7192
        %7498 = vmatprep.subr.mxu0 0.0
        %7499 = vmatpush1.msra.mxu0 %v7191
        %7500 = vmatprep.subr.mxu0 0.0
        %7501 = vmatpush1.msra.mxu0 %v7190
        %7502 = vmatprep.subr.mxu0 0.0
        %7503 = vmatpush1.msra.mxu0 %v7189
        %7504 = vmatprep.subr.mxu0 0.0
        %7505 = vmatpush1.msra.mxu0 %v7188
        %7506 = vmatprep.subr.mxu0 0.0
        %7507 = vmatpush1.msra.mxu0 %v7187
        %7508 = vmatprep.subr.mxu0 0.0
        %7509 = vmatpush1.msra.mxu0 %v7186
        %7510 = vmatprep.subr.mxu0 0.0
        %7511 = vmatpush1.msra.mxu0 %v7185
        %7512 = vmatprep.subr.mxu0 0.0
        %7513 = vmatpush1.msra.mxu0 %v7184
        %7514 = vmatprep.subr.mxu0 0.0
        %7515 = vmatpush1.msra.mxu0 %v7183
        %7516 = vmatprep.subr.mxu0 0.0
        %7517 = vmatpush1.msra.mxu0 %v7182
        %7518 = vmatprep.subr.mxu0 0.0
        %7519 = vmatpush1.msra.mxu0 %v7181
        %7520 = vmatprep.subr.mxu0 0.0
        %7521 = vmatpush1.msra.mxu0 %v7180
        %7522 = vmatprep.subr.mxu0 0.0
        %7523 = vmatpush1.msra.mxu0 %v7179
        %7524 = vmatprep.subr.mxu0 0.0
        %7525 = vmatpush2.msra.mxu0 0.0
        %7526 = vmatprep.subr.mxu0 0.0
        %7527 = vmatpush2.msra.mxu0 0.0
        %7528 = vmatprep.subr.mxu0 0.0
        %7529 = vmatpush2.msra.mxu0 0.0
        %7530 = vmatprep.subr.mxu0 0.0
        %7531 = vmatpush2.msra.mxu0 0.0
        %7532 = vmatprep.subr.mxu0 0.0
        %7533 = vmatpush2.msra.mxu0 0.0
        %7534 = vmatprep.subr.mxu0 0.0
        %7535 = vmatpush2.msra.mxu0 0.0
        %7536 = vmatprep.subr.mxu0 0.0
        %7537 = vmatpush2.msra.mxu0 0.0
        %7538 = vmatprep.subr.mxu0 0.0
        %7539 = vmatpush2.msra.mxu0 0.0
        %7540 = vmatprep.subr.mxu0 0.0
        %7541 = vmatpush2.msra.mxu0 0.0
        %7542 = vmatprep.subr.mxu0 0.0
        %7543 = vmatpush2.msra.mxu0 0.0
        %7544 = vmatprep.subr.mxu0 0.0
        %7545 = vmatpush2.msra.mxu0 0.0
        %7546 = vmatprep.subr.mxu0 0.0
        %7547 = vmatpush2.msra.mxu0 0.0
        %7548 = vmatprep.subr.mxu0 0.0
        %7549 = vmatpush2.msra.mxu0 0.0
        %7550 = vmatprep.subr.mxu0 0.0
        %7551 = vmatpush2.msra.mxu0 0.0
        %7552 = vmatprep.subr.mxu0 0.0
        %7553 = vmatpush2.msra.mxu0 0.0
        %7554 = vmatprep.subr.mxu0 0.0
        %7555 = vmatpush2.msra.mxu0 0.0
        %7556 = vmatprep.mubr.f32.mxu0 0.0
        %7557 = vmatmul.mubr.f32.gmra.mxu0 %v7099
        %v7558 = vpop.f32.mrf.mxu0
        %v7559 = vadd.f32 %v7414, %v7558
        %v7560 = vpop.f32.mrf.mxu0
        %7561 = vmatprep.mubr.f32.mxu0 0.0
        %7562 = vmatmul.mubr.f32.gmra.mxu0 %v7100
        %v7563 = vpop.f32.mrf.mxu0
        %v7564 = vadd.f32 %v7419, %v7563
        %v7565 = vpop.f32.mrf.mxu0
        %7566 = vmatprep.mubr.f32.mxu0 0.0
        %7567 = vmatmul.mubr.f32.gmra.mxu0 %v7101
        %v7568 = vpop.f32.mrf.mxu0
        %v7569 = vadd.f32 %v7424, %v7568
        %v7570 = vpop.f32.mrf.mxu0
        %7571 = vmatprep.mubr.f32.mxu0 0.0
        %7572 = vmatmul.mubr.f32.gmra.mxu0 %v7102
        %v7573 = vpop.f32.mrf.mxu0
        %v7574 = vadd.f32 %v7429, %v7573
        %v7575 = vpop.f32.mrf.mxu0
        %7576 = vmatprep.mubr.f32.mxu0 0.0
        %7577 = vmatmul.mubr.f32.gmra.mxu0 %v7103
        %v7578 = vpop.f32.mrf.mxu0
        %v7579 = vadd.f32 %v7434, %v7578
        %v7580 = vpop.f32.mrf.mxu0
        %7581 = vmatprep.mubr.f32.mxu0 0.0
        %7582 = vmatmul.mubr.f32.gmra.mxu0 %v7104
        %v7583 = vpop.f32.mrf.mxu0
        %v7584 = vadd.f32 %v7439, %v7583
        %v7585 = vpop.f32.mrf.mxu0
        %7586 = vmatprep.mubr.f32.mxu0 0.0
        %7587 = vmatmul.mubr.f32.gmra.mxu0 %v7105
        %v7588 = vpop.f32.mrf.mxu0
        %v7589 = vadd.f32 %v7444, %v7588
        %v7590 = vpop.f32.mrf.mxu0
        %7591 = vmatprep.mubr.f32.mxu0 0.0
        %7592 = vmatmul.mubr.f32.gmra.mxu0 %v7106
        %v7593 = vpop.f32.mrf.mxu0
        %v7594 = vadd.f32 %v7449, %v7593
        %v7595 = vpop.f32.mrf.mxu0
        %7596 = vmatprep.mubr.f32.mxu0 0.0
        %7597 = vmatmul.mubr.f32.gmra.mxu0 %v7107
        %v7598 = vpop.f32.mrf.mxu0
        %v7599 = vadd.f32 %v7454, %v7598
        %v7600 = vpop.f32.mrf.mxu0
        %7601 = vmatprep.mubr.f32.mxu0 0.0
        %7602 = vmatmul.mubr.f32.gmra.mxu0 %v7108
        %v7603 = vpop.f32.mrf.mxu0
        %v7604 = vadd.f32 %v7459, %v7603
        %v7605 = vpop.f32.mrf.mxu0
        %7606 = vmatprep.mubr.f32.mxu0 0.0
        %7607 = vmatmul.mubr.f32.gmra.mxu0 %v7109
        %v7608 = vpop.f32.mrf.mxu0
        %v7609 = vadd.f32 %v7464, %v7608
        %v7610 = vpop.f32.mrf.mxu0
        %7611 = vmatprep.mubr.f32.mxu0 0.0
        %7612 = vmatmul.mubr.f32.gmra.mxu0 %v7110
        %v7613 = vpop.f32.mrf.mxu0
        %v7614 = vadd.f32 %v7469, %v7613
        %v7615 = vpop.f32.mrf.mxu0
        %7616 = vmatprep.mubr.f32.mxu0 0.0
        %7617 = vmatmul.mubr.f32.gmra.mxu0 %v7111
        %v7618 = vpop.f32.mrf.mxu0
        %v7619 = vadd.f32 %v7474, %v7618
        %v7620 = vpop.f32.mrf.mxu0
        %7621 = vmatprep.mubr.f32.mxu0 0.0
        %7622 = vmatmul.mubr.f32.gmra.mxu0 %v7112
        %v7623 = vpop.f32.mrf.mxu0
        %v7624 = vadd.f32 %v7479, %v7623
        %v7625 = vpop.f32.mrf.mxu0
        %7626 = vmatprep.mubr.f32.mxu0 0.0
        %7627 = vmatmul.mubr.f32.gmra.mxu0 %v7113
        %v7628 = vpop.f32.mrf.mxu0
        %v7629 = vadd.f32 %v7484, %v7628
        %v7630 = vpop.f32.mrf.mxu0
        %7631 = vmatprep.mubr.f32.mxu0 0.0
        %7632 = vmatmul.mubr.f32.gmra.mxu0 %v7114
        %v7633 = vpop.f32.mrf.mxu0
        %v7634 = vadd.f32 %v7489, %v7633
        %v7635 = vpop.f32.mrf.mxu0
        %7636 = vdwg.mxu0
        %v7637 = vmax.f32 %v7559, 0.0
        %v7638 = vmax.f32 %v7564, 0.0
        %v7639 = vmax.f32 %v7569, 0.0
        %v7640 = vmax.f32 %v7574, 0.0
        %v7641 = vmax.f32 %v7579, 0.0
        %v7642 = vmax.f32 %v7584, 0.0
        %v7643 = vmax.f32 %v7589, 0.0
        %v7644 = vmax.f32 %v7594, 0.0
        %v7645 = vmax.f32 %v7599, 0.0
        %v7646 = vmax.f32 %v7604, 0.0
        %v7647 = vmax.f32 %v7609, 0.0
        %v7648 = vmax.f32 %v7614, 0.0
        %v7649 = vmax.f32 %v7619, 0.0
        %v7650 = vmax.f32 %v7624, 0.0
        %v7651 = vmax.f32 %v7629, 0.0
        %v7652 = vmax.f32 %v7634, 0.0
        %7653 = vst [vmem:[#allocation2 + $0x3] sm:$0xff] %v7637
        %7654 = vst [vmem:[#allocation2 + $0xb] sm:$0xff] %v7638
        %7655 = vst [vmem:[#allocation2 + $0x13] sm:$0xff] %v7639
        %7656 = vst [vmem:[#allocation2 + $0x1b] sm:$0xff] %v7640
        %7657 = vst [vmem:[#allocation2 + $0x23] sm:$0xff] %v7641
        %7658 = vst [vmem:[#allocation2 + $0x2b] sm:$0xff] %v7642
        %7659 = vst [vmem:[#allocation2 + $0x33] sm:$0xff] %v7643
        %7660 = vst [vmem:[#allocation2 + $0x3b] sm:$0xff] %v7644
        %7661 = vst [vmem:[#allocation2 + $0x43] sm:$0xff] %v7645
        %7662 = vst [vmem:[#allocation2 + $0x4b] sm:$0xff] %v7646
        %7663 = vst [vmem:[#allocation2 + $0x53] sm:$0xff] %v7647
        %7664 = vst [vmem:[#allocation2 + $0x5b] sm:$0xff] %v7648
        %7665 = vst [vmem:[#allocation2 + $0x63] sm:$0xff] %v7649
        %7666 = vst [vmem:[#allocation2 + $0x6b] sm:$0xff] %v7650
        %7667 = vst [vmem:[#allocation2 + $0x73] sm:$0xff] %v7651
        %7668 = vst [vmem:[#allocation2 + $0x7b] sm:$0xff] %v7652
        %v7669 = vld [vmem:[#allocation2 + $0x2] sm:$0xff]
        %v7670 = vld [vmem:[#allocation2 + $0xa] sm:$0xff]
        %v7671 = vld [vmem:[#allocation2 + $0x12] sm:$0xff]
        %v7672 = vld [vmem:[#allocation2 + $0x1a] sm:$0xff]
        %v7673 = vld [vmem:[#allocation2 + $0x22] sm:$0xff]
        %v7674 = vld [vmem:[#allocation2 + $0x2a] sm:$0xff]
        %v7675 = vld [vmem:[#allocation2 + $0x32] sm:$0xff]
        %v7676 = vld [vmem:[#allocation2 + $0x3a] sm:$0xff]
        %v7677 = vld [vmem:[#allocation2 + $0x42] sm:$0xff]
        %v7678 = vld [vmem:[#allocation2 + $0x4a] sm:$0xff]
        %v7679 = vld [vmem:[#allocation2 + $0x52] sm:$0xff]
        %v7680 = vld [vmem:[#allocation2 + $0x5a] sm:$0xff]
        %v7681 = vld [vmem:[#allocation2 + $0x62] sm:$0xff]
        %v7682 = vld [vmem:[#allocation2 + $0x6a] sm:$0xff]
        %v7683 = vld [vmem:[#allocation2 + $0x72] sm:$0xff]
        %v7684 = vld [vmem:[#allocation2 + $0x7a] sm:$0xff]
        %v7685 = vsel %vm1448, %v7669, 0.0
        %v7686 = vsel %vm1449, %v7670, 0.0
        %v7687 = vsel %vm1450, %v7671, 0.0
        %v7688 = vsel %vm1451, %v7672, 0.0
        %v7689 = vsel %vm1452, %v7673, 0.0
        %v7690 = vsel %vm1453, %v7674, 0.0
        %v7691 = vsel %vm1454, %v7675, 0.0
        %v7692 = vsel %vm1455, %v7676, 0.0
        %v7693 = vsel %vm1456, %v7677, 0.0
        %v7694 = vsel %vm1457, %v7678, 0.0
        %v7695 = vsel %vm1458, %v7679, 0.0
        %v7696 = vsel %vm1459, %v7680, 0.0
        %v7697 = vsel %vm1460, %v7681, 0.0
        %v7698 = vsel %vm1461, %v7682, 0.0
        %v7699 = vsel %vm1462, %v7683, 0.0
        %v7700 = vsel %vm1463, %v7684, 0.0
        %v7701 = vld [vmem:[#allocation2 + $0x3] sm:$0xff]
        %v7702 = vld [vmem:[#allocation2 + $0xb] sm:$0xff]
        %v7703 = vld [vmem:[#allocation2 + $0x13] sm:$0xff]
        %v7704 = vld [vmem:[#allocation2 + $0x1b] sm:$0xff]
        %v7705 = vld [vmem:[#allocation2 + $0x23] sm:$0xff]
        %v7706 = vld [vmem:[#allocation2 + $0x2b] sm:$0xff]
        %v7707 = vld [vmem:[#allocation2 + $0x33] sm:$0xff]
        %v7708 = vld [vmem:[#allocation2 + $0x3b] sm:$0xff]
        %v7709 = vld [vmem:[#allocation2 + $0x43] sm:$0xff]
        %v7710 = vld [vmem:[#allocation2 + $0x4b] sm:$0xff]
        %v7711 = vld [vmem:[#allocation2 + $0x53] sm:$0xff]
        %v7712 = vld [vmem:[#allocation2 + $0x5b] sm:$0xff]
        %v7713 = vld [vmem:[#allocation2 + $0x63] sm:$0xff]
        %v7714 = vld [vmem:[#allocation2 + $0x6b] sm:$0xff]
        %v7715 = vld [vmem:[#allocation2 + $0x73] sm:$0xff]
        %v7716 = vld [vmem:[#allocation2 + $0x7b] sm:$0xff]
        %v7717 = vld [vmem:[#allocation2 + $0x4] sm:$0xff]
        %v7718 = vld [vmem:[#allocation2 + $0xc] sm:$0xff]
        %v7719 = vld [vmem:[#allocation2 + $0x14] sm:$0xff]
        %v7720 = vld [vmem:[#allocation2 + $0x1c] sm:$0xff]
        %v7721 = vld [vmem:[#allocation2 + $0x24] sm:$0xff]
        %v7722 = vld [vmem:[#allocation2 + $0x2c] sm:$0xff]
        %v7723 = vld [vmem:[#allocation2 + $0x34] sm:$0xff]
        %v7724 = vld [vmem:[#allocation2 + $0x3c] sm:$0xff]
        %v7725 = vld [vmem:[#allocation2 + $0x44] sm:$0xff]
        %v7726 = vld [vmem:[#allocation2 + $0x4c] sm:$0xff]
        %v7727 = vld [vmem:[#allocation2 + $0x54] sm:$0xff]
        %v7728 = vld [vmem:[#allocation2 + $0x5c] sm:$0xff]
        %v7729 = vld [vmem:[#allocation2 + $0x64] sm:$0xff]
        %v7730 = vld [vmem:[#allocation2 + $0x6c] sm:$0xff]
        %v7731 = vld [vmem:[#allocation2 + $0x74] sm:$0xff]
        %v7732 = vld [vmem:[#allocation2 + $0x7c] sm:$0xff]
        %v7733 = vsel %vm1528, %v7717, 0.0
        %v7734 = vsel %vm1529, %v7718, 0.0
        %v7735 = vsel %vm1530, %v7719, 0.0
        %v7736 = vsel %vm1531, %v7720, 0.0
        %v7737 = vsel %vm1532, %v7721, 0.0
        %v7738 = vsel %vm1533, %v7722, 0.0
        %v7739 = vsel %vm1534, %v7723, 0.0
        %v7740 = vsel %vm1535, %v7724, 0.0
        %v7741 = vsel %vm1536, %v7725, 0.0
        %v7742 = vsel %vm1537, %v7726, 0.0
        %v7743 = vsel %vm1538, %v7727, 0.0
        %v7744 = vsel %vm1539, %v7728, 0.0
        %v7745 = vsel %vm1540, %v7729, 0.0
        %v7746 = vsel %vm1541, %v7730, 0.0
        %v7747 = vsel %vm1542, %v7731, 0.0
        %v7748 = vsel %vm1543, %v7732, 0.0
        %v7749 = vld [vmem:[#allocation10] sm:$0xff]
        %v7750 = vld [vmem:[#allocation10 + $0x8] sm:$0xff]
        %v7751 = vld [vmem:[#allocation10 + $0x10] sm:$0xff]
        %v7752 = vld [vmem:[#allocation10 + $0x18] sm:$0xff]
        %v7753 = vld [vmem:[#allocation10 + $0x20] sm:$0xff]
        %v7754 = vld [vmem:[#allocation10 + $0x28] sm:$0xff]
        %v7755 = vld [vmem:[#allocation10 + $0x30] sm:$0xff]
        %v7756 = vld [vmem:[#allocation10 + $0x38] sm:$0xff]
        %v7757 = vld [vmem:[#allocation10 + $0x40] sm:$0xff]
        %v7758 = vld [vmem:[#allocation10 + $0x48] sm:$0xff]
        %v7759 = vld [vmem:[#allocation10 + $0x50] sm:$0xff]
        %v7760 = vld [vmem:[#allocation10 + $0x58] sm:$0xff]
        %v7761 = vld [vmem:[#allocation10 + $0x60] sm:$0xff]
        %v7762 = vld [vmem:[#allocation10 + $0x68] sm:$0xff]
        %v7763 = vld [vmem:[#allocation10 + $0x70] sm:$0xff]
        %v7764 = vld [vmem:[#allocation10 + $0x78] sm:$0xff]
        %v7765 = vld [vmem:[#allocation10 + $0x80] sm:$0xff]
        %v7766 = vld [vmem:[#allocation10 + $0x88] sm:$0xff]
        %v7767 = vld [vmem:[#allocation10 + $0x90] sm:$0xff]
        %v7768 = vld [vmem:[#allocation10 + $0x98] sm:$0xff]
        %v7769 = vld [vmem:[#allocation10 + $0xa0] sm:$0xff]
        %v7770 = vld [vmem:[#allocation10 + $0xa8] sm:$0xff]
        %v7771 = vld [vmem:[#allocation10 + $0xb0] sm:$0xff]
        %v7772 = vld [vmem:[#allocation10 + $0xb8] sm:$0xff]
        %v7773 = vld [vmem:[#allocation10 + $0xc0] sm:$0xff]
        %v7774 = vld [vmem:[#allocation10 + $0xc8] sm:$0xff]
        %v7775 = vld [vmem:[#allocation10 + $0xd0] sm:$0xff]
        %v7776 = vld [vmem:[#allocation10 + $0xd8] sm:$0xff]
        %v7777 = vld [vmem:[#allocation10 + $0xe0] sm:$0xff]
        %v7778 = vld [vmem:[#allocation10 + $0xe8] sm:$0xff]
        %v7779 = vld [vmem:[#allocation10 + $0xf0] sm:$0xff]
        %v7780 = vld [vmem:[#allocation10 + $0xf8] sm:$0xff]
        %v7781 = vld [vmem:[#allocation10 + $0x100] sm:$0xff]
        %v7782 = vld [vmem:[#allocation10 + $0x108] sm:$0xff]
        %v7783 = vld [vmem:[#allocation10 + $0x110] sm:$0xff]
        %v7784 = vld [vmem:[#allocation10 + $0x118] sm:$0xff]
        %v7785 = vld [vmem:[#allocation10 + $0x120] sm:$0xff]
        %v7786 = vld [vmem:[#allocation10 + $0x128] sm:$0xff]
        %v7787 = vld [vmem:[#allocation10 + $0x130] sm:$0xff]
        %v7788 = vld [vmem:[#allocation10 + $0x138] sm:$0xff]
        %v7789 = vld [vmem:[#allocation10 + $0x140] sm:$0xff]
        %v7790 = vld [vmem:[#allocation10 + $0x148] sm:$0xff]
        %v7791 = vld [vmem:[#allocation10 + $0x150] sm:$0xff]
        %v7792 = vld [vmem:[#allocation10 + $0x158] sm:$0xff]
        %v7793 = vld [vmem:[#allocation10 + $0x160] sm:$0xff]
        %v7794 = vld [vmem:[#allocation10 + $0x168] sm:$0xff]
        %v7795 = vld [vmem:[#allocation10 + $0x170] sm:$0xff]
        %v7796 = vld [vmem:[#allocation10 + $0x178] sm:$0xff]
        %v7797 = vld [vmem:[%s22] sm:$0x1]
        %v7799 = vlaneseq
        %v7800 = vshrl.u32 %v7799, 7
        %v7801 = vsub.s32 0, %v7800
        %v7802 = vrot.slane %v7797, %v7801
        %7804 = vmatprep.subr.mxu0 0.0
        %7805 = vmatpush1.msra.mxu0 %v7764
        %7806 = vmatprep.subr.mxu0 0.0
        %7807 = vmatpush1.msra.mxu0 %v7763
        %7808 = vmatprep.subr.mxu0 0.0
        %7809 = vmatpush1.msra.mxu0 %v7762
        %7810 = vmatprep.subr.mxu0 0.0
        %7811 = vmatpush1.msra.mxu0 %v7761
        %7812 = vmatprep.subr.mxu0 0.0
        %7813 = vmatpush1.msra.mxu0 %v7760
        %7814 = vmatprep.subr.mxu0 0.0
        %7815 = vmatpush1.msra.mxu0 %v7759
        %7816 = vmatprep.subr.mxu0 0.0
        %7817 = vmatpush1.msra.mxu0 %v7758
        %7818 = vmatprep.subr.mxu0 0.0
        %7819 = vmatpush1.msra.mxu0 %v7757
        %7820 = vmatprep.subr.mxu0 0.0
        %7821 = vmatpush1.msra.mxu0 %v7756
        %7822 = vmatprep.subr.mxu0 0.0
        %7823 = vmatpush1.msra.mxu0 %v7755
        %7824 = vmatprep.subr.mxu0 0.0
        %7825 = vmatpush1.msra.mxu0 %v7754
        %7826 = vmatprep.subr.mxu0 0.0
        %7827 = vmatpush1.msra.mxu0 %v7753
        %7828 = vmatprep.subr.mxu0 0.0
        %7829 = vmatpush1.msra.mxu0 %v7752
        %7830 = vmatprep.subr.mxu0 0.0
        %7831 = vmatpush1.msra.mxu0 %v7751
        %7832 = vmatprep.subr.mxu0 0.0
        %7833 = vmatpush1.msra.mxu0 %v7750
        %7834 = vmatprep.subr.mxu0 0.0
        %7835 = vmatpush1.msra.mxu0 %v7749
        %7836 = vmatprep.subr.mxu0 0.0
        %7837 = vmatpush2.msra.mxu0 %v7780
        %7838 = vmatprep.subr.mxu0 0.0
        %7839 = vmatpush2.msra.mxu0 %v7779
        %7840 = vmatprep.subr.mxu0 0.0
        %7841 = vmatpush2.msra.mxu0 %v7778
        %7842 = vmatprep.subr.mxu0 0.0
        %7843 = vmatpush2.msra.mxu0 %v7777
        %7844 = vmatprep.subr.mxu0 0.0
        %7845 = vmatpush2.msra.mxu0 %v7776
        %7846 = vmatprep.subr.mxu0 0.0
        %7847 = vmatpush2.msra.mxu0 %v7775
        %7848 = vmatprep.subr.mxu0 0.0
        %7849 = vmatpush2.msra.mxu0 %v7774
        %7850 = vmatprep.subr.mxu0 0.0
        %7851 = vmatpush2.msra.mxu0 %v7773
        %7852 = vmatprep.subr.mxu0 0.0
        %7853 = vmatpush2.msra.mxu0 %v7772
        %7854 = vmatprep.subr.mxu0 0.0
        %7855 = vmatpush2.msra.mxu0 %v7771
        %7856 = vmatprep.subr.mxu0 0.0
        %7857 = vmatpush2.msra.mxu0 %v7770
        %7858 = vmatprep.subr.mxu0 0.0
        %7859 = vmatpush2.msra.mxu0 %v7769
        %7860 = vmatprep.subr.mxu0 0.0
        %7861 = vmatpush2.msra.mxu0 %v7768
        %7862 = vmatprep.subr.mxu0 0.0
        %7863 = vmatpush2.msra.mxu0 %v7767
        %7864 = vmatprep.subr.mxu0 0.0
        %7865 = vmatpush2.msra.mxu0 %v7766
        %7866 = vmatprep.subr.mxu0 0.0
        %7867 = vmatpush2.msra.mxu0 %v7765
        %7868 = vmatprep.mubr.f32.mxu0 %v7701
        %7869 = vmatmul.mubr.f32.gmra.mxu0 %v7685
        %v7870 = vpop.f32.mrf.mxu0
        %v7871 = vadd.f32 %v7802, %v7870
        %v7872 = vpop.f32.mrf.mxu0
        %7873 = vmatprep.mubr.f32.mxu0 %v7702
        %7874 = vmatmul.mubr.f32.gmra.mxu0 %v7686
        %v7875 = vpop.f32.mrf.mxu0
        %v7876 = vadd.f32 %v7802, %v7875
        %v7877 = vpop.f32.mrf.mxu0
        %7878 = vmatprep.mubr.f32.mxu0 %v7703
        %7879 = vmatmul.mubr.f32.gmra.mxu0 %v7687
        %v7880 = vpop.f32.mrf.mxu0
        %v7881 = vadd.f32 %v7802, %v7880
        %v7882 = vpop.f32.mrf.mxu0
        %7883 = vmatprep.mubr.f32.mxu0 %v7704
        %7884 = vmatmul.mubr.f32.gmra.mxu0 %v7688
        %v7885 = vpop.f32.mrf.mxu0
        %v7886 = vadd.f32 %v7802, %v7885
        %v7887 = vpop.f32.mrf.mxu0
        %7888 = vmatprep.mubr.f32.mxu0 %v7705
        %7889 = vmatmul.mubr.f32.gmra.mxu0 %v7689
        %v7890 = vpop.f32.mrf.mxu0
        %v7891 = vadd.f32 %v7802, %v7890
        %v7892 = vpop.f32.mrf.mxu0
        %7893 = vmatprep.mubr.f32.mxu0 %v7706
        %7894 = vmatmul.mubr.f32.gmra.mxu0 %v7690
        %v7895 = vpop.f32.mrf.mxu0
        %v7896 = vadd.f32 %v7802, %v7895
        %v7897 = vpop.f32.mrf.mxu0
        %7898 = vmatprep.mubr.f32.mxu0 %v7707
        %7899 = vmatmul.mubr.f32.gmra.mxu0 %v7691
        %v7900 = vpop.f32.mrf.mxu0
        %v7901 = vadd.f32 %v7802, %v7900
        %v7902 = vpop.f32.mrf.mxu0
        %7903 = vmatprep.mubr.f32.mxu0 %v7708
        %7904 = vmatmul.mubr.f32.gmra.mxu0 %v7692
        %v7905 = vpop.f32.mrf.mxu0
        %v7906 = vadd.f32 %v7802, %v7905
        %v7907 = vpop.f32.mrf.mxu0
        %7908 = vmatprep.mubr.f32.mxu0 %v7709
        %7909 = vmatmul.mubr.f32.gmra.mxu0 %v7693
        %v7910 = vpop.f32.mrf.mxu0
        %v7911 = vadd.f32 %v7802, %v7910
        %v7912 = vpop.f32.mrf.mxu0
        %7913 = vmatprep.mubr.f32.mxu0 %v7710
        %7914 = vmatmul.mubr.f32.gmra.mxu0 %v7694
        %v7915 = vpop.f32.mrf.mxu0
        %v7916 = vadd.f32 %v7802, %v7915
        %v7917 = vpop.f32.mrf.mxu0
        %7918 = vmatprep.mubr.f32.mxu0 %v7711
        %7919 = vmatmul.mubr.f32.gmra.mxu0 %v7695
        %v7920 = vpop.f32.mrf.mxu0
        %v7921 = vadd.f32 %v7802, %v7920
        %v7922 = vpop.f32.mrf.mxu0
        %7923 = vmatprep.mubr.f32.mxu0 %v7712
        %7924 = vmatmul.mubr.f32.gmra.mxu0 %v7696
        %v7925 = vpop.f32.mrf.mxu0
        %v7926 = vadd.f32 %v7802, %v7925
        %v7927 = vpop.f32.mrf.mxu0
        %7928 = vmatprep.mubr.f32.mxu0 %v7713
        %7929 = vmatmul.mubr.f32.gmra.mxu0 %v7697
        %v7930 = vpop.f32.mrf.mxu0
        %v7931 = vadd.f32 %v7802, %v7930
        %v7932 = vpop.f32.mrf.mxu0
        %7933 = vmatprep.mubr.f32.mxu0 %v7714
        %7934 = vmatmul.mubr.f32.gmra.mxu0 %v7698
        %v7935 = vpop.f32.mrf.mxu0
        %v7936 = vadd.f32 %v7802, %v7935
        %v7937 = vpop.f32.mrf.mxu0
        %7938 = vmatprep.mubr.f32.mxu0 %v7715
        %7939 = vmatmul.mubr.f32.gmra.mxu0 %v7699
        %v7940 = vpop.f32.mrf.mxu0
        %v7941 = vadd.f32 %v7802, %v7940
        %v7942 = vpop.f32.mrf.mxu0
        %7943 = vmatprep.mubr.f32.mxu0 %v7716
        %7944 = vmatmul.mubr.f32.gmra.mxu0 %v7700
        %v7945 = vpop.f32.mrf.mxu0
        %v7946 = vadd.f32 %v7802, %v7945
        %v7947 = vpop.f32.mrf.mxu0
        %7948 = vdwg.mxu0
        %7949 = vmatprep.subr.mxu0 0.0
        %7950 = vmatpush1.msra.mxu0 %v7796
        %7951 = vmatprep.subr.mxu0 0.0
        %7952 = vmatpush1.msra.mxu0 %v7795
        %7953 = vmatprep.subr.mxu0 0.0
        %7954 = vmatpush1.msra.mxu0 %v7794
        %7955 = vmatprep.subr.mxu0 0.0
        %7956 = vmatpush1.msra.mxu0 %v7793
        %7957 = vmatprep.subr.mxu0 0.0
        %7958 = vmatpush1.msra.mxu0 %v7792
        %7959 = vmatprep.subr.mxu0 0.0
        %7960 = vmatpush1.msra.mxu0 %v7791
        %7961 = vmatprep.subr.mxu0 0.0
        %7962 = vmatpush1.msra.mxu0 %v7790
        %7963 = vmatprep.subr.mxu0 0.0
        %7964 = vmatpush1.msra.mxu0 %v7789
        %7965 = vmatprep.subr.mxu0 0.0
        %7966 = vmatpush1.msra.mxu0 %v7788
        %7967 = vmatprep.subr.mxu0 0.0
        %7968 = vmatpush1.msra.mxu0 %v7787
        %7969 = vmatprep.subr.mxu0 0.0
        %7970 = vmatpush1.msra.mxu0 %v7786
        %7971 = vmatprep.subr.mxu0 0.0
        %7972 = vmatpush1.msra.mxu0 %v7785
        %7973 = vmatprep.subr.mxu0 0.0
        %7974 = vmatpush1.msra.mxu0 %v7784
        %7975 = vmatprep.subr.mxu0 0.0
        %7976 = vmatpush1.msra.mxu0 %v7783
        %7977 = vmatprep.subr.mxu0 0.0
        %7978 = vmatpush1.msra.mxu0 %v7782
        %7979 = vmatprep.subr.mxu0 0.0
        %7980 = vmatpush1.msra.mxu0 %v7781
        %7981 = vmatprep.subr.mxu0 0.0
        %7982 = vmatpush2.msra.mxu0 0.0
        %7983 = vmatprep.subr.mxu0 0.0
        %7984 = vmatpush2.msra.mxu0 0.0
        %7985 = vmatprep.subr.mxu0 0.0
        %7986 = vmatpush2.msra.mxu0 0.0
        %7987 = vmatprep.subr.mxu0 0.0
        %7988 = vmatpush2.msra.mxu0 0.0
        %7989 = vmatprep.subr.mxu0 0.0
        %7990 = vmatpush2.msra.mxu0 0.0
        %7991 = vmatprep.subr.mxu0 0.0
        %7992 = vmatpush2.msra.mxu0 0.0
        %7993 = vmatprep.subr.mxu0 0.0
        %7994 = vmatpush2.msra.mxu0 0.0
        %7995 = vmatprep.subr.mxu0 0.0
        %7996 = vmatpush2.msra.mxu0 0.0
        %7997 = vmatprep.subr.mxu0 0.0
        %7998 = vmatpush2.msra.mxu0 0.0
        %7999 = vmatprep.subr.mxu0 0.0
        %8000 = vmatpush2.msra.mxu0 0.0
        %8001 = vmatprep.subr.mxu0 0.0
        %8002 = vmatpush2.msra.mxu0 0.0
        %8003 = vmatprep.subr.mxu0 0.0
        %8004 = vmatpush2.msra.mxu0 0.0
        %8005 = vmatprep.subr.mxu0 0.0
        %8006 = vmatpush2.msra.mxu0 0.0
        %8007 = vmatprep.subr.mxu0 0.0
        %8008 = vmatpush2.msra.mxu0 0.0
        %8009 = vmatprep.subr.mxu0 0.0
        %8010 = vmatpush2.msra.mxu0 0.0
        %8011 = vmatprep.subr.mxu0 0.0
        %8012 = vmatpush2.msra.mxu0 0.0
        %8013 = vmatprep.mubr.f32.mxu0 0.0
        %8014 = vmatmul.mubr.f32.gmra.mxu0 %v7733
        %v8015 = vpop.f32.mrf.mxu0
        %v8016 = vadd.f32 %v7871, %v8015
        %v8017 = vpop.f32.mrf.mxu0
        %8018 = vmatprep.mubr.f32.mxu0 0.0
        %8019 = vmatmul.mubr.f32.gmra.mxu0 %v7734
        %v8020 = vpop.f32.mrf.mxu0
        %v8021 = vadd.f32 %v7876, %v8020
        %v8022 = vpop.f32.mrf.mxu0
        %8023 = vmatprep.mubr.f32.mxu0 0.0
        %8024 = vmatmul.mubr.f32.gmra.mxu0 %v7735
        %v8025 = vpop.f32.mrf.mxu0
        %v8026 = vadd.f32 %v7881, %v8025
        %v8027 = vpop.f32.mrf.mxu0
        %8028 = vmatprep.mubr.f32.mxu0 0.0
        %8029 = vmatmul.mubr.f32.gmra.mxu0 %v7736
        %v8030 = vpop.f32.mrf.mxu0
        %v8031 = vadd.f32 %v7886, %v8030
        %v8032 = vpop.f32.mrf.mxu0
        %8033 = vmatprep.mubr.f32.mxu0 0.0
        %8034 = vmatmul.mubr.f32.gmra.mxu0 %v7737
        %v8035 = vpop.f32.mrf.mxu0
        %v8036 = vadd.f32 %v7891, %v8035
        %v8037 = vpop.f32.mrf.mxu0
        %8038 = vmatprep.mubr.f32.mxu0 0.0
        %8039 = vmatmul.mubr.f32.gmra.mxu0 %v7738
        %v8040 = vpop.f32.mrf.mxu0
        %v8041 = vadd.f32 %v7896, %v8040
        %v8042 = vpop.f32.mrf.mxu0
        %8043 = vmatprep.mubr.f32.mxu0 0.0
        %8044 = vmatmul.mubr.f32.gmra.mxu0 %v7739
        %v8045 = vpop.f32.mrf.mxu0
        %v8046 = vadd.f32 %v7901, %v8045
        %v8047 = vpop.f32.mrf.mxu0
        %8048 = vmatprep.mubr.f32.mxu0 0.0
        %8049 = vmatmul.mubr.f32.gmra.mxu0 %v7740
        %v8050 = vpop.f32.mrf.mxu0
        %v8051 = vadd.f32 %v7906, %v8050
        %v8052 = vpop.f32.mrf.mxu0
        %8053 = vmatprep.mubr.f32.mxu0 0.0
        %8054 = vmatmul.mubr.f32.gmra.mxu0 %v7741
        %v8055 = vpop.f32.mrf.mxu0
        %v8056 = vadd.f32 %v7911, %v8055
        %v8057 = vpop.f32.mrf.mxu0
        %8058 = vmatprep.mubr.f32.mxu0 0.0
        %8059 = vmatmul.mubr.f32.gmra.mxu0 %v7742
        %v8060 = vpop.f32.mrf.mxu0
        %v8061 = vadd.f32 %v7916, %v8060
        %v8062 = vpop.f32.mrf.mxu0
        %8063 = vmatprep.mubr.f32.mxu0 0.0
        %8064 = vmatmul.mubr.f32.gmra.mxu0 %v7743
        %v8065 = vpop.f32.mrf.mxu0
        %v8066 = vadd.f32 %v7921, %v8065
        %v8067 = vpop.f32.mrf.mxu0
        %8068 = vmatprep.mubr.f32.mxu0 0.0
        %8069 = vmatmul.mubr.f32.gmra.mxu0 %v7744
        %v8070 = vpop.f32.mrf.mxu0
        %v8071 = vadd.f32 %v7926, %v8070
        %v8072 = vpop.f32.mrf.mxu0
        %8073 = vmatprep.mubr.f32.mxu0 0.0
        %8074 = vmatmul.mubr.f32.gmra.mxu0 %v7745
        %v8075 = vpop.f32.mrf.mxu0
        %v8076 = vadd.f32 %v7931, %v8075
        %v8077 = vpop.f32.mrf.mxu0
        %8078 = vmatprep.mubr.f32.mxu0 0.0
        %8079 = vmatmul.mubr.f32.gmra.mxu0 %v7746
        %v8080 = vpop.f32.mrf.mxu0
        %v8081 = vadd.f32 %v7936, %v8080
        %v8082 = vpop.f32.mrf.mxu0
        %8083 = vmatprep.mubr.f32.mxu0 0.0
        %8084 = vmatmul.mubr.f32.gmra.mxu0 %v7747
        %v8085 = vpop.f32.mrf.mxu0
        %v8086 = vadd.f32 %v7941, %v8085
        %v8087 = vpop.f32.mrf.mxu0
        %8088 = vmatprep.mubr.f32.mxu0 0.0
        %8089 = vmatmul.mubr.f32.gmra.mxu0 %v7748
        %v8090 = vpop.f32.mrf.mxu0
        %v8091 = vadd.f32 %v7946, %v8090
        %v8092 = vpop.f32.mrf.mxu0
        %8093 = vdwg.mxu0
        %v8094 = vadd.f32 %v8016, %v6000
        %v8095 = vadd.f32 %v8021, %v6001
        %v8096 = vadd.f32 %v8026, %v6002
        %v8097 = vadd.f32 %v8031, %v6003
        %v8098 = vadd.f32 %v8036, %v6004
        %v8099 = vadd.f32 %v8041, %v6005
        %v8100 = vadd.f32 %v8046, %v6006
        %v8101 = vadd.f32 %v8051, %v6007
        %v8102 = vadd.f32 %v8056, %v6008
        %v8103 = vadd.f32 %v8061, %v6009
        %v8104 = vadd.f32 %v8066, %v6010
        %v8105 = vadd.f32 %v8071, %v6011
        %v8106 = vadd.f32 %v8076, %v6012
        %v8107 = vadd.f32 %v8081, %v6013
        %v8108 = vadd.f32 %v8086, %v6014
        %v8109 = vadd.f32 %v8091, %v6015
        %v8110 = vmax.f32 %v8094, 0.0
        %v8111 = vmax.f32 %v8095, 0.0
        %v8112 = vmax.f32 %v8096, 0.0
        %v8113 = vmax.f32 %v8097, 0.0
        %v8114 = vmax.f32 %v8098, 0.0
        %v8115 = vmax.f32 %v8099, 0.0
        %v8116 = vmax.f32 %v8100, 0.0
        %v8117 = vmax.f32 %v8101, 0.0
        %v8118 = vmax.f32 %v8102, 0.0
        %v8119 = vmax.f32 %v8103, 0.0
        %v8120 = vmax.f32 %v8104, 0.0
        %v8121 = vmax.f32 %v8105, 0.0
        %v8122 = vmax.f32 %v8106, 0.0
        %v8123 = vmax.f32 %v8107, 0.0
        %v8124 = vmax.f32 %v8108, 0.0
        %v8125 = vmax.f32 %v8109, 0.0
        %v8126 = vadd.f32 %v8110, %v8111
        %v8127 = vrot.slane %v8126, 4
        %v8128 = vadd.f32 %v8126, %v8127
        %v8129 = vrot.slane %v8128, 2
        %v8130 = vadd.f32 %v8128, %v8129
        %v8131 = vrot.slane %v8130, 1
        %v8132 = vadd.f32 %v8130, %v8131
        %v8133 = vadd.f32 %v8112, %v8113
        %v8134 = vrot.slane %v8133, 4
        %v8135 = vadd.f32 %v8133, %v8134
        %v8136 = vrot.slane %v8135, 2
        %v8137 = vadd.f32 %v8135, %v8136
        %v8138 = vrot.slane %v8137, 1
        %v8139 = vadd.f32 %v8137, %v8138
        %v8140 = vadd.f32 %v8114, %v8115
        %v8141 = vrot.slane %v8140, 4
        %v8142 = vadd.f32 %v8140, %v8141
        %v8143 = vrot.slane %v8142, 2
        %v8144 = vadd.f32 %v8142, %v8143
        %v8145 = vrot.slane %v8144, 1
        %v8146 = vadd.f32 %v8144, %v8145
        %v8147 = vadd.f32 %v8116, %v8117
        %v8148 = vrot.slane %v8147, 4
        %v8149 = vadd.f32 %v8147, %v8148
        %v8150 = vrot.slane %v8149, 2
        %v8151 = vadd.f32 %v8149, %v8150
        %v8152 = vrot.slane %v8151, 1
        %v8153 = vadd.f32 %v8151, %v8152
        %v8154 = vadd.f32 %v8118, %v8119
        %v8155 = vrot.slane %v8154, 4
        %v8156 = vadd.f32 %v8154, %v8155
        %v8157 = vrot.slane %v8156, 2
        %v8158 = vadd.f32 %v8156, %v8157
        %v8159 = vrot.slane %v8158, 1
        %v8160 = vadd.f32 %v8158, %v8159
        %v8161 = vadd.f32 %v8120, %v8121
        %v8162 = vrot.slane %v8161, 4
        %v8163 = vadd.f32 %v8161, %v8162
        %v8164 = vrot.slane %v8163, 2
        %v8165 = vadd.f32 %v8163, %v8164
        %v8166 = vrot.slane %v8165, 1
        %v8167 = vadd.f32 %v8165, %v8166
        %v8168 = vadd.f32 %v8122, %v8123
        %v8169 = vrot.slane %v8168, 4
        %v8170 = vadd.f32 %v8168, %v8169
        %v8171 = vrot.slane %v8170, 2
        %v8172 = vadd.f32 %v8170, %v8171
        %v8173 = vrot.slane %v8172, 1
        %v8174 = vadd.f32 %v8172, %v8173
        %v8175 = vadd.f32 %v8124, %v8125
        %v8176 = vrot.slane %v8175, 4
        %v8177 = vadd.f32 %v8175, %v8176
        %v8178 = vrot.slane %v8177, 2
        %v8179 = vadd.f32 %v8177, %v8178
        %v8180 = vrot.slane %v8179, 1
        %v8181 = vadd.f32 %v8179, %v8180
        %v8182 = vrcp.pop 16.0
        %v8183 = vmul.f32 %v8132, %v8182
        %v8184 = vmul.f32 %v8139, %v8182
        %v8185 = vmul.f32 %v8146, %v8182
        %v8186 = vmul.f32 %v8153, %v8182
        %v8187 = vmul.f32 %v8160, %v8182
        %v8188 = vmul.f32 %v8167, %v8182
        %v8189 = vmul.f32 %v8174, %v8182
        %v8190 = vmul.f32 %v8181, %v8182
        %v8191 = vld [vmem:[%s23] sm:$0xff]
        %v8192 = vld [vmem:[%s23 + $0x8] sm:$0xff]
        %v8193 = vld [vmem:[%s23 + $0x10] sm:$0xff]
        %v8194 = vld [vmem:[%s23 + $0x18] sm:$0xff]
        %v8195 = vld [vmem:[%s23 + $0x20] sm:$0xff]
        %v8196 = vld [vmem:[%s23 + $0x28] sm:$0xff]
        %v8197 = vld [vmem:[%s23 + $0x30] sm:$0xff]
        %v8198 = vld [vmem:[%s23 + $0x38] sm:$0xff]
        %v8199 = vld [vmem:[%s23 + $0x40] sm:$0xff]
        %v8200 = vld [vmem:[%s23 + $0x48] sm:$0xff]
        %v8201 = vld [vmem:[%s23 + $0x50] sm:$0xff]
        %v8202 = vld [vmem:[%s23 + $0x58] sm:$0xff]
        %v8203 = vld [vmem:[%s23 + $0x60] sm:$0xff]
        %v8204 = vld [vmem:[%s23 + $0x68] sm:$0xff]
        %v8205 = vld [vmem:[%s23 + $0x70] sm:$0xff]
        %v8206 = vld [vmem:[%s23 + $0x78] sm:$0xff]
        %v8207 = vld [vmem:[%s24] sm:$0x1]
        %v8209 = vlaneseq
        %v8210 = vshrl.u32 %v8209, 7
        %v8211 = vsub.s32 0, %v8210
        %v8212 = vrot.slane %v8207, %v8211
        %vm8222 = vcmask 1041409
        %v8223 = vsel %vm8222, %v8184, %v8183
        %vm8224 = vcmask 1042434
        %v8225 = vsel %vm8224, %v8185, %v8223
        %vm8226 = vcmask 1043459
        %v8227 = vsel %vm8226, %v8186, %v8225
        %vm8228 = vcmask 1044484
        %v8229 = vsel %vm8228, %v8187, %v8227
        %vm8230 = vcmask 1045509
        %v8231 = vsel %vm8230, %v8188, %v8229
        %vm8232 = vcmask 1046534
        %v8233 = vsel %vm8232, %v8189, %v8231
        %vm8234 = vcmask 1047559
        %v8235 = vsel %vm8234, %v8190, %v8233
        %8237 = vmatprep.subr.mxu0 0.0
        %8238 = vmatpush1.msra.mxu0 %v8206
        %8239 = vmatprep.subr.mxu0 0.0
        %8240 = vmatpush1.msra.mxu0 %v8205
        %8241 = vmatprep.subr.mxu0 0.0
        %8242 = vmatpush1.msra.mxu0 %v8204
        %8243 = vmatprep.subr.mxu0 0.0
        %8244 = vmatpush1.msra.mxu0 %v8203
        %8245 = vmatprep.subr.mxu0 0.0
        %8246 = vmatpush1.msra.mxu0 %v8202
        %8247 = vmatprep.subr.mxu0 0.0
        %8248 = vmatpush1.msra.mxu0 %v8201
        %8249 = vmatprep.subr.mxu0 0.0
        %8250 = vmatpush1.msra.mxu0 %v8200
        %8251 = vmatprep.subr.mxu0 0.0
        %8252 = vmatpush1.msra.mxu0 %v8199
        %8253 = vmatprep.subr.mxu0 0.0
        %8254 = vmatpush1.msra.mxu0 %v8198
        %8255 = vmatprep.subr.mxu0 0.0
        %8256 = vmatpush1.msra.mxu0 %v8197
        %8257 = vmatprep.subr.mxu0 0.0
        %8258 = vmatpush1.msra.mxu0 %v8196
        %8259 = vmatprep.subr.mxu0 0.0
        %8260 = vmatpush1.msra.mxu0 %v8195
        %8261 = vmatprep.subr.mxu0 0.0
        %8262 = vmatpush1.msra.mxu0 %v8194
        %8263 = vmatprep.subr.mxu0 0.0
        %8264 = vmatpush1.msra.mxu0 %v8193
        %8265 = vmatprep.subr.mxu0 0.0
        %8266 = vmatpush1.msra.mxu0 %v8192
        %8267 = vmatprep.subr.mxu0 0.0
        %8268 = vmatpush1.msra.mxu0 %v8191
        %8269 = vmatprep.subr.mxu0 0.0
        %8270 = vmatpush2.msra.mxu0 0.0
        %8271 = vmatprep.subr.mxu0 0.0
        %8272 = vmatpush2.msra.mxu0 0.0
        %8273 = vmatprep.subr.mxu0 0.0
        %8274 = vmatpush2.msra.mxu0 0.0
        %8275 = vmatprep.subr.mxu0 0.0
        %8276 = vmatpush2.msra.mxu0 0.0
        %8277 = vmatprep.subr.mxu0 0.0
        %8278 = vmatpush2.msra.mxu0 0.0
        %8279 = vmatprep.subr.mxu0 0.0
        %8280 = vmatpush2.msra.mxu0 0.0
        %8281 = vmatprep.subr.mxu0 0.0
        %8282 = vmatpush2.msra.mxu0 0.0
        %8283 = vmatprep.subr.mxu0 0.0
        %8284 = vmatpush2.msra.mxu0 0.0
        %8285 = vmatprep.subr.mxu0 0.0
        %8286 = vmatpush2.msra.mxu0 0.0
        %8287 = vmatprep.subr.mxu0 0.0
        %8288 = vmatpush2.msra.mxu0 0.0
        %8289 = vmatprep.subr.mxu0 0.0
        %8290 = vmatpush2.msra.mxu0 0.0
        %8291 = vmatprep.subr.mxu0 0.0
        %8292 = vmatpush2.msra.mxu0 0.0
        %8293 = vmatprep.subr.mxu0 0.0
        %8294 = vmatpush2.msra.mxu0 0.0
        %8295 = vmatprep.subr.mxu0 0.0
        %8296 = vmatpush2.msra.mxu0 0.0
        %8297 = vmatprep.subr.mxu0 0.0
        %8298 = vmatpush2.msra.mxu0 0.0
        %8299 = vmatprep.subr.mxu0 0.0
        %8300 = vmatpush2.msra.mxu0 0.0
        %8301 = vmatprep.mubr.f32.mxu0 0.0
        %8302 = vmatmul.mubr.f32.gmra.mxu0 %v8235
        %v8303 = vpop.f32.mrf.mxu0
        %v8304 = vadd.f32 %v8212, %v8303
        %v8305 = vpop.f32.mrf.mxu0
        %8306 = vdwg.mxu0
        %vm8307 = vcmask 39936
        %8308 = vst.msk [vmem:[%s837] sm:$0xff] %vm8307, %v8304
        %p8309 = scmp.lt.s32.totalorder %s39, 1
        %s8310 = scalar_select %p8309, %s39, 1
        %s8311 = smul.addr %s8310, 8
        %s8312 = scalar_lea.vmem %s25, %s8311
        // Predicated region
        $region141: #{tpu_custom_call.1} parent=119 // pred_check
          %p8313 = pneg %p587
        $region142: #{tpu_custom_call.1} parent=119 // pred_check_branch
          %8315 = sbr.rel (%p8313) target = $region144
        $region143: #{tpu_custom_call.1} parent=119 // pred_region
          _
        $region144: #{tpu_custom_call.1} parent=119 // pred_fallthru
          _
      $region120: #{tpu_custom_call.1} parent=5 // pred_fallthru
        _
      %p8316 = scmp.le.s32.totalorder 2, %s34
      // Predicated region
      $region145: #{tpu_custom_call.1} parent=5 // pred_check
        %p8317 = pneg %p8316
      $region146: #{tpu_custom_call.1} parent=5 // pred_check_branch
        %8319 = sbr.rel (%p8317) target = $region148
      $region147: #{tpu_custom_call.1} parent=5 // pred_region
        %s8320 = ssub.s32 %s34, 2
        // Predicated region
        $region149: #{tpu_custom_call.1} parent=147 // pred_check
          %p8321 = pneg %p593
        $region150: #{tpu_custom_call.1} parent=147 // pred_check_branch
          %8323 = sbr.rel (%p8321) target = $region152
        $region151: #{tpu_custom_call.1} parent=147 // pred_region
          %p8324 = scmp.lt.s32.totalorder %s40, 1
          %s8325 = scalar_select %p8324, %s40, 1
          %s8326 = smul.addr %s8325, 8
          %s8327 = scalar_lea.vmem %s25, %s8326
        $region152: #{tpu_custom_call.1} parent=147 // pred_fallthru
          _
      $region148: #{tpu_custom_call.1} parent=5 // pred_fallthru
        _
    $region6: #{tpu_custom_call.1} parent=1 // loop_footer
      %s38 = sadd.s32 1, %s34
    $region7: #{tpu_custom_call.1} parent=1 // loop_footer_branch
      %33 = sbr.rel target = $region3
    $region8: #{tpu_custom_call.1} parent=1 // loop_exit
      _
    %8328 = vsyncpa [#allocation4], 1
    %s8329 = scalar_lea.sflag [#allocation4], 1
    %8330 = vsyncpa %s8329, 1
    %8331 = vsyncpa [#allocation6], 1
    %8332 = vsyncpa [#allocation9], 1

</llo_original>
